<compile_context>
chip_gen: v6e
topology: v6e:2x2x1
jax: 0.10.0
libtpu: 0.0.40
codegen_flags: <defaults>
</compile_context>

<pallas_src>
import functools

import jax
import jax.numpy as jnp
from jax import lax
from jax.experimental import pallas as pl
from jax.experimental.pallas import tpu as pltpu

# ------------------------- config (small, self-consistent) -------------------
SEQ_LEN = 8
N_AGENTS = 4
BATCH_SIZE = 2
NN = N_AGENTS * BATCH_SIZE         # total "batch" rows (agents across games) = 8
X_DIM = 4
H_DIM = 32
RNN_DIM = 32
GRAPH_HID = 16
N_HEADS = 2
G_DIM = 4                          # g_dim > 1  -> softmax head + OneHotCategorical
N_LAYERS = 1
ALPHA = 0.2                        # GAT LeakyReLU slope
PHI_SLOPE = 0.01                   # nn.LeakyReLU() default slope
NEG_INF = -9e15


def _leaky(v, slope):
    return jnp.where(v > 0, v, slope * v)


def _elu(v):
    return jnp.where(v > 0, v, jnp.exp(v) - 1.0)


def _masked_softmax(e, mask):
    m = jnp.where(mask, e, jnp.float32(NEG_INF))
    m = m - jnp.max(m, axis=-1, keepdims=True)
    ex = jnp.exp(m)
    return ex * pl.reciprocal(jnp.sum(ex, axis=-1, keepdims=True), approx=True)


# ------------------------------ Pallas kernel --------------------------------
def detnet_kernel(t_steps,
                  x_ref, g_ref, adj_ref,                 # data
                  w1_ref, w2_ref,                        # phi_x
                  gru_w_ref, gru_b_ref,                  # GRU ([wih;whh], [bih;bhh])
                  gat_w_ref, gat_a_ref,                  # GAT heads (fused)
                  gat_wo_ref, gat_ao_ref,                # GAT output attention layer
                  lg_w_ref, cw_ref, bias_ref,            # lg_hiddens / classify / biases
                  loss_ref, h_ref):
    f32 = jnp.float32
    dn = (((1,), (1,)), ((), ()))      # contract feature dims

    # ---- hoisted weight loads / bias broadcasts (done once, outside the loop)
    b1 = bias_ref[:, 0:H_DIM]                                           # [1, 32]
    b2 = bias_ref[:, H_DIM:2 * H_DIM]                                   # [1, 32]
    lgb = jnp.broadcast_to(
        bias_ref[:, 2 * H_DIM:2 * H_DIM + RNN_DIM], (NN, RNN_DIM))      # [N, 32]
    cb = jnp.broadcast_to(
        bias_ref[:, 2 * H_DIM + RNN_DIM:2 * H_DIM + RNN_DIM + G_DIM],
        (NN, G_DIM))                                                    # [N, 4]

    wih = gru_w_ref[0:H_DIM, :]                                         # [32, 96]
    whh = gru_w_ref[H_DIM:H_DIM + RNN_DIM, :]                           # [32, 96]
    bih = gru_b_ref[0:1, :]                                             # [1, 96]
    bhh = jnp.broadcast_to(gru_b_ref[1:2, :], (NN, 3 * RNN_DIM))        # [N, 96]

    gat_w = gat_w_ref[...]                                              # [32, 32]
    a_src = gat_a_ref[0:1, :]                                           # [1, 32]
    a_dst = gat_a_ref[1:2, :]                                           # [1, 32]
    gat_wo = gat_wo_ref[...]                                            # [32, 32]
    ao_src = gat_ao_ref[0:1, :]                                         # [1, 32]
    ao_dst = gat_ao_ref[1:2, :]                                         # [1, 32]
    lg_w = lg_w_ref[...]                                                # [64, 32]
    cw = cw_ref[...]                                                    # [32, 4]

    # ---- h-independent compute, batched over ALL timesteps ([T*N, .] matmuls)
    x2d = x_ref[...]                                                    # [T*N, X]
    a1 = _leaky(jnp.dot(x2d, w1_ref[...], preferred_element_type=f32) + b1,
                PHI_SLOPE)
    phi = _leaky(jnp.dot(a1, w2_ref[...], preferred_element_type=f32) + b2,
                 PHI_SLOPE)
    gi_all = jnp.dot(phi, wih, preferred_element_type=f32) + bih        # [T*N, 96]

    h = jnp.zeros((NN, RNN_DIM), f32)
    loss = jnp.zeros((1, 1), f32)

    # ---- recurrent part: fully unrolled (T is tiny) -> single basic block
    for t in range(t_steps):
        gi = gi_all[t * NN:(t + 1) * NN, :]                             # [N, 96]
        g_t = g_ref[t]                                                  # [N, G]
        adj_t = adj_ref[t]                                              # [N, N]
        mask = adj_t > 0

        # GRU cell (PyTorch convention; gate order r, z, n)
        gh = jnp.dot(h, whh, preferred_element_type=f32) + bhh
        r = jax.nn.sigmoid(gi[:, :RNN_DIM] + gh[:, :RNN_DIM])
        z = jax.nn.sigmoid(gi[:, RNN_DIM:2 * RNN_DIM] + gh[:, RNN_DIM:2 * RNN_DIM])
        n_g = jnp.tanh(gi[:, 2 * RNN_DIM:] + r * gh[:, 2 * RNN_DIM:])
        h_new = (1.0 - z) * n_g + z * h                                 # [N, 32]

        # GAT layer 1: both heads share one MXU push for Wh
        wh_all = jnp.dot(h_new, gat_w, preferred_element_type=f32)      # [N, 32]
        ps = wh_all * a_src                                             # [N, 32]
        heads = []
        for hd in range(N_HEADS):
            sl = slice(hd * GRAPH_HID, (hd + 1) * GRAPH_HID)
            wh_h = wh_all[:, sl]                                        # [N, 16]
            e_src = jnp.sum(ps[:, sl], axis=-1, keepdims=True)          # [N, 1]
            e_dst = lax.dot_general(a_dst[:, sl], wh_h, dn,
                                    preferred_element_type=f32)         # [1, N]
            att = _masked_softmax(_leaky(e_src + e_dst, ALPHA), mask)   # [N, N]
            heads.append(_elu(jnp.dot(att, wh_h, preferred_element_type=f32)))
        head_cat = jnp.concatenate(heads, axis=-1)                      # [N, 32]
        wh_o = jnp.dot(head_cat, gat_wo, preferred_element_type=f32)    # [N, 32]

        # GAT output attention layer
        e_src = jnp.sum(wh_o * ao_src, axis=-1, keepdims=True)          # [N, 1]
        e_dst = lax.dot_general(ao_dst, wh_o, dn, preferred_element_type=f32)
        att = _masked_softmax(_leaky(e_src + e_dst, ALPHA), mask)
        h_refined = _elu(jnp.dot(att, wh_o, preferred_element_type=f32))  # [N, 32]

        # lg_hiddens(cat([h_refined, h_new], -1)) as one K=64 matmul
        hcat = jnp.concatenate([h_refined, h_new], axis=-1)             # [N, 64]
        h = jnp.dot(hcat, lg_w, preferred_element_type=f32) + lgb       # [N, 32]

        # classify -> OneHotCategorical log-prob via stable log-softmax
        logits = jnp.dot(h, cw, preferred_element_type=f32) + cb        # [N, 4]
        lmax = jnp.max(logits, axis=-1, keepdims=True)
        lse = jnp.log(jnp.sum(jnp.exp(logits - lmax), axis=-1, keepdims=True))
        logp = logits - lmax - lse
        per_row = jnp.sum(g_t * logp, axis=-1, keepdims=True)           # 0 off-ball
        loss = loss - jnp.sum(per_row, axis=0, keepdims=True) * (1.0 / BATCH_SIZE)

    loss_ref[...] = loss
    h_ref[0] = h


# ------------------------------ wrapper ---------------------------------------
def detnet_forward(traj_rel, targets_full, adj, params):
    """traj_rel [S,N,X], targets_full [S,N,G] (scattered one-hot), adj [S,N,N]."""
    seq_len = traj_rel.shape[0]
    t_steps = seq_len - 1

    # steps 1..S-1 only; flatten time into rows for the hoisted batched matmuls
    x_flat = traj_rel[1:].reshape(t_steps * NN, X_DIM)
    g = targets_full[1:]
    adj_s = adj[1:]

    # ---- weight packing (matches the in-kernel fusions)
    gru_w = jnp.concatenate([params["wih"], params["whh"]], axis=0)        # [64, 96]
    gru_b = jnp.concatenate([params["bih"], params["bhh"]], axis=0)        # [2, 96]
    gat_w = jnp.concatenate([params["gw"][hd] for hd in range(N_HEADS)], axis=1)
    gat_a = jnp.concatenate([
        jnp.concatenate([params["gas"][hd] for hd in range(N_HEADS)], axis=1),
        jnp.concatenate([params["gad"][hd] for hd in range(N_HEADS)], axis=1)],
        axis=0)                                                            # [2, 32]
    gat_wo = jnp.concatenate([params["gwo"][hd] for hd in range(N_HEADS)], axis=0)
    gat_ao = jnp.concatenate([params["gaos"], params["gaod"]], axis=0)     # [2, 32]
    lg_w = params["lgw"].reshape(2 * RNN_DIM, RNN_DIM)                     # [64, 32]
    biases = jnp.concatenate(
        [params["b1"], params["b2"], params["lgb"], params["cb"]], axis=1)  # [1, 100]

    operands = (x_flat, g, adj_s, params["w1"], params["w2"], gru_w, gru_b,
                gat_w, gat_a, gat_wo, gat_ao, lg_w, params["cw"], biases)

    def full_spec(a):
        nd = a.ndim
        return pl.BlockSpec(a.shape, lambda i, _n=nd: (0,) * _n)

    loss, h = pl.pallas_call(
        functools.partial(detnet_kernel, t_steps),
        out_shape=(
            jax.ShapeDtypeStruct((1, 1), jnp.float32),
            jax.ShapeDtypeStruct((N_LAYERS, NN, RNN_DIM), jnp.float32),
        ),
        grid=(1,),
        in_specs=[full_spec(a) for a in operands],
        out_specs=[
            pl.BlockSpec((1, 1), lambda i: (0, 0)),
            pl.BlockSpec((N_LAYERS, NN, RNN_DIM), lambda i: (0, 0, 0)),
        ],
        compiler_params=pltpu.CompilerParams(dimension_semantics=("arbitrary",)),
    )(*operands)
    return loss.reshape(1), h


# ------------------------- pure-JAX reference (validation) --------------------
def detnet_reference(traj_rel, targets, adj, params):
    dot = functools.partial(jnp.dot, precision=lax.Precision.HIGHEST)
    h = jnp.zeros((NN, RNN_DIM), jnp.float32)
    loss = jnp.zeros((), jnp.float32)
    for t in range(1, SEQ_LEN):
        x_t, g_t, adj_t = traj_rel[t], targets[t], adj[t]
        a1 = _leaky(dot(x_t, params["w1"]) + params["b1"], PHI_SLOPE)
        phi = _leaky(dot(a1, params["w2"]) + params["b2"], PHI_SLOPE)
        gi = dot(phi, params["wih"]) + params["bih"]
        gh = dot(h, params["whh"]) + params["bhh"]
        r = jax.nn.sigmoid(gi[:, :RNN_DIM] + gh[:, :RNN_DIM])
        z = jax.nn.sigmoid(gi[:, RNN_DIM:2 * RNN_DIM] + gh[:, RNN_DIM:2 * RNN_DIM])
        ng = jnp.tanh(gi[:, 2 * RNN_DIM:] + r * gh[:, 2 * RNN_DIM:])
        h_new = (1.0 - z) * ng + z * h
        mask = adj_t > 0
        wh_o = jnp.zeros((NN, RNN_DIM), jnp.float32)
        for hd in range(N_HEADS):
            wh = dot(h_new, params["gw"][hd])
            e = _leaky(dot(wh, params["gas"][hd].T) + dot(params["gad"][hd], wh.T), ALPHA)
            att = jax.nn.softmax(jnp.where(mask, e, NEG_INF), axis=-1)
            head = _elu(dot(att, wh))
            wh_o = wh_o + dot(head, params["gwo"][hd])
        e = _leaky(dot(wh_o, params["gaos"].T) + dot(params["gaod"], wh_o.T), ALPHA)
        att = jax.nn.softmax(jnp.where(mask, e, NEG_INF), axis=-1)
        h_refined = _elu(dot(att, wh_o))
        h = dot(h_refined, params["lgw"][0]) + dot(h_new, params["lgw"][1]) + params["lgb"]
        probs = jax.nn.softmax(dot(h, params["cw"]) + params["cb"], axis=-1)
        ball_probs = probs[0::N_AGENTS]                      # ball rows
        loss = loss - jnp.mean(jnp.sum(g_t * jnp.log(ball_probs), axis=-1))
    return loss.reshape(1), h[None]


# ----------------------------------- main --------------------------------------
def _make_params(key):
    def nrm(k, shape, scale=0.2):
        return scale * jax.random.normal(k, shape, jnp.float32)

    ks = jax.random.split(key, 18)
    return {
        "w1": nrm(ks[0], (X_DIM, H_DIM)),
        "b1": nrm(ks[1], (1, H_DIM), 0.05),
        "w2": nrm(ks[2], (H_DIM, H_DIM)),
        "b2": nrm(ks[3], (1, H_DIM), 0.05),
        "wih": nrm(ks[4], (H_DIM, 3 * RNN_DIM)),
        "whh": nrm(ks[5], (RNN_DIM, 3 * RNN_DIM)),
        "bih": nrm(ks[6], (1, 3 * RNN_DIM), 0.05),
        "bhh": nrm(ks[7], (1, 3 * RNN_DIM), 0.05),
        "gw": nrm(ks[8], (N_HEADS, RNN_DIM, GRAPH_HID)),
        "gas": nrm(ks[9], (N_HEADS, 1, GRAPH_HID)),
        "gad": nrm(ks[10], (N_HEADS, 1, GRAPH_HID)),
        "gwo": nrm(ks[11], (N_HEADS, GRAPH_HID, RNN_DIM)),
        "gaos": nrm(ks[12], (1, RNN_DIM)),
        "gaod": nrm(ks[13], (1, RNN_DIM)),
        "lgw": nrm(ks[14], (2, RNN_DIM, RNN_DIM)),
        "lgb": nrm(ks[15], (1, RNN_DIM), 0.05),
        "cw": nrm(ks[16], (RNN_DIM, G_DIM)),
        "cb": nrm(ks[17], (1, G_DIM), 0.05),
    }


if __name__ == "__main__":
    key = jax.random.PRNGKey(0)
    k_par, k_x, k_adj, k_tgt = jax.random.split(key, 4)
    params = _make_params(k_par)

    traj_rel = jax.random.normal(k_x, (SEQ_LEN, NN, X_DIM), jnp.float32)
    adj = (jax.random.uniform(k_adj, (SEQ_LEN, NN, NN)) > 0.5).astype(jnp.float32)
    adj = jnp.maximum(adj, jnp.eye(NN, dtype=jnp.float32)[None])      # self loops
    tgt_idx = jax.random.randint(k_tgt, (SEQ_LEN, BATCH_SIZE), 0, G_DIM)
    targets = jax.nn.one_hot(tgt_idx, G_DIM, dtype=jnp.float32)       # [S, B, G]
    # scatter targets onto ball rows (idx * n_agents) -> [S, N, G]
    targets_full = jnp.zeros((SEQ_LEN, NN, G_DIM), jnp.float32)
    targets_full = targets_full.at[:, 0::N_AGENTS, :].set(targets)

    loss_k, h_k = jax.jit(detnet_forward)(traj_rel, targets_full, adj, params)
    loss_k = jax.block_until_ready(loss_k)
    h_k = jax.block_until_ready(h_k)

    loss_r, h_r = detnet_reference(traj_rel, targets, adj, params)

    assert bool(jnp.isfinite(loss_k).all()) and bool(jnp.isfinite(h_k).all())
    assert bool(jnp.allclose(loss_k, loss_r, rtol=2e-2, atol=2e-2)), (loss_k, loss_r)
    assert bool(jnp.allclose(h_k, h_r, rtol=2e-2, atol=2e-2))
    print("KERNEL_OK")
</pallas_src>

<mosaic_0001>
module attributes {stable_mosaic.version = 11 : i64} {
  func.func @detnet_kernel(%arg0: i32, %arg1: memref<56x4xf32, #tpu.memory_space<vmem>>, %arg2: memref<7x8x4xf32, #tpu.memory_space<vmem>>, %arg3: memref<7x8x8xf32, #tpu.memory_space<vmem>>, %arg4: memref<4x32xf32, #tpu.memory_space<vmem>>, %arg5: memref<32x32xf32, #tpu.memory_space<vmem>>, %arg6: memref<64x96xf32, #tpu.memory_space<vmem>>, %arg7: memref<2x96xf32, #tpu.memory_space<vmem>>, %arg8: memref<32x32xf32, #tpu.memory_space<vmem>>, %arg9: memref<2x32xf32, #tpu.memory_space<vmem>>, %arg10: memref<32x32xf32, #tpu.memory_space<vmem>>, %arg11: memref<2x32xf32, #tpu.memory_space<vmem>>, %arg12: memref<64x32xf32, #tpu.memory_space<vmem>>, %arg13: memref<32x4xf32, #tpu.memory_space<vmem>>, %arg14: memref<1x100xf32, #tpu.memory_space<vmem>>, %arg15: memref<1x1xf32, #tpu.memory_space<vmem>>, %arg16: memref<1x8x32xf32, #tpu.memory_space<vmem>>) attributes {dimension_semantics = [#tpu.dimension_semantics<arbitrary>], iteration_bounds = array<i64: 1>, scalar_prefetch = 0 : i64, scratch_operands = 0 : i64, tpu.core_type = #tpu.core_type<tc>, window_params = [{pipeline_mode = #tpu.pipeline_mode<synchronous>, transform_indices = @transform_0, window_bounds = array<i64: 56, 4>}, {pipeline_mode = #tpu.pipeline_mode<synchronous>, transform_indices = @transform_1, window_bounds = array<i64: 7, 8, 4>}, {pipeline_mode = #tpu.pipeline_mode<synchronous>, transform_indices = @transform_2, window_bounds = array<i64: 7, 8, 8>}, {pipeline_mode = #tpu.pipeline_mode<synchronous>, transform_indices = @transform_3, window_bounds = array<i64: 4, 32>}, {pipeline_mode = #tpu.pipeline_mode<synchronous>, transform_indices = @transform_4, window_bounds = array<i64: 32, 32>}, {pipeline_mode = #tpu.pipeline_mode<synchronous>, transform_indices = @transform_5, window_bounds = array<i64: 64, 96>}, {pipeline_mode = #tpu.pipeline_mode<synchronous>, transform_indices = @transform_6, window_bounds = array<i64: 2, 96>}, {pipeline_mode = #tpu.pipeline_mode<synchronous>, transform_indices = @transform_7, window_bounds = array<i64: 32, 32>}, {pipeline_mode = #tpu.pipeline_mode<synchronous>, transform_indices = @transform_8, window_bounds = array<i64: 2, 32>}, {pipeline_mode = #tpu.pipeline_mode<synchronous>, transform_indices = @transform_9, window_bounds = array<i64: 32, 32>}, {pipeline_mode = #tpu.pipeline_mode<synchronous>, transform_indices = @transform_10, window_bounds = array<i64: 2, 32>}, {pipeline_mode = #tpu.pipeline_mode<synchronous>, transform_indices = @transform_11, window_bounds = array<i64: 64, 32>}, {pipeline_mode = #tpu.pipeline_mode<synchronous>, transform_indices = @transform_12, window_bounds = array<i64: 32, 4>}, {pipeline_mode = #tpu.pipeline_mode<synchronous>, transform_indices = @transform_13, window_bounds = array<i64: 1, 100>}, {pipeline_mode = #tpu.pipeline_mode<synchronous>, transform_indices = @transform_14, window_bounds = array<i64: 1, 1>}, {pipeline_mode = #tpu.pipeline_mode<synchronous>, transform_indices = @transform_15, window_bounds = array<i64: 1, 8, 32>}]} {
    %c0 = arith.constant 0 : index
    %c0_0 = arith.constant 0 : index
    %0 = vector.load %arg14[%c0, %c0_0] : memref<1x100xf32, #tpu.memory_space<vmem>>, vector<1x32xf32>
    %c0_1 = arith.constant 0 : index
    %c32 = arith.constant 32 : index
    %1 = vector.load %arg14[%c0_1, %c32] : memref<1x100xf32, #tpu.memory_space<vmem>>, vector<1x32xf32>
    %c0_2 = arith.constant 0 : index
    %c64 = arith.constant 64 : index
    %2 = vector.load %arg14[%c0_2, %c64] : memref<1x100xf32, #tpu.memory_space<vmem>>, vector<1x32xf32>
    %3 = vector.shape_cast %2 : vector<1x32xf32> to vector<1x32xf32>
    %4 = vector.broadcast %3 : vector<1x32xf32> to vector<8x32xf32>
    %c0_3 = arith.constant 0 : index
    %c96 = arith.constant 96 : index
    %5 = vector.load %arg14[%c0_3, %c96] : memref<1x100xf32, #tpu.memory_space<vmem>>, vector<1x4xf32>
    %6 = vector.shape_cast %5 : vector<1x4xf32> to vector<1x4xf32>
    %7 = vector.broadcast %6 : vector<1x4xf32> to vector<8x4xf32>
    %c0_4 = arith.constant 0 : index
    %c0_5 = arith.constant 0 : index
    %8 = vector.load %arg6[%c0_4, %c0_5] : memref<64x96xf32, #tpu.memory_space<vmem>>, vector<32x96xf32>
    %c32_6 = arith.constant 32 : index
    %c0_7 = arith.constant 0 : index
    %9 = vector.load %arg6[%c32_6, %c0_7] : memref<64x96xf32, #tpu.memory_space<vmem>>, vector<32x96xf32>
    %c0_8 = arith.constant 0 : index
    %c0_9 = arith.constant 0 : index
    %10 = vector.load %arg7[%c0_8, %c0_9] : memref<2x96xf32, #tpu.memory_space<vmem>>, vector<1x96xf32>
    %c1 = arith.constant 1 : index
    %c0_10 = arith.constant 0 : index
    %11 = vector.load %arg7[%c1, %c0_10] : memref<2x96xf32, #tpu.memory_space<vmem>>, vector<1x96xf32>
    %12 = vector.shape_cast %11 : vector<1x96xf32> to vector<1x96xf32>
    %13 = vector.broadcast %12 : vector<1x96xf32> to vector<8x96xf32>
    %c0_11 = arith.constant 0 : index
    %c0_12 = arith.constant 0 : index
    %14 = vector.load %arg8[%c0_11, %c0_12] : memref<32x32xf32, #tpu.memory_space<vmem>>, vector<32x32xf32>
    %c0_13 = arith.constant 0 : index
    %c0_14 = arith.constant 0 : index
    %15 = vector.load %arg9[%c0_13, %c0_14] : memref<2x32xf32, #tpu.memory_space<vmem>>, vector<1x32xf32>
    %c1_15 = arith.constant 1 : index
    %c0_16 = arith.constant 0 : index
    %16 = vector.load %arg9[%c1_15, %c0_16] : memref<2x32xf32, #tpu.memory_space<vmem>>, vector<1x32xf32>
    %c0_17 = arith.constant 0 : index
    %c0_18 = arith.constant 0 : index
    %17 = vector.load %arg10[%c0_17, %c0_18] : memref<32x32xf32, #tpu.memory_space<vmem>>, vector<32x32xf32>
    %c0_19 = arith.constant 0 : index
    %c0_20 = arith.constant 0 : index
    %18 = vector.load %arg11[%c0_19, %c0_20] : memref<2x32xf32, #tpu.memory_space<vmem>>, vector<1x32xf32>
    %c1_21 = arith.constant 1 : index
    %c0_22 = arith.constant 0 : index
    %19 = vector.load %arg11[%c1_21, %c0_22] : memref<2x32xf32, #tpu.memory_space<vmem>>, vector<1x32xf32>
    %c0_23 = arith.constant 0 : index
    %c0_24 = arith.constant 0 : index
    %20 = vector.load %arg12[%c0_23, %c0_24] : memref<64x32xf32, #tpu.memory_space<vmem>>, vector<64x32xf32>
    %c0_25 = arith.constant 0 : index
    %c0_26 = arith.constant 0 : index
    %21 = vector.load %arg13[%c0_25, %c0_26] : memref<32x4xf32, #tpu.memory_space<vmem>>, vector<32x4xf32>
    %c0_27 = arith.constant 0 : index
    %c0_28 = arith.constant 0 : index
    %22 = vector.load %arg1[%c0_27, %c0_28] : memref<56x4xf32, #tpu.memory_space<vmem>>, vector<56x4xf32>
    %c0_29 = arith.constant 0 : index
    %c0_30 = arith.constant 0 : index
    %23 = vector.load %arg4[%c0_29, %c0_30] : memref<4x32xf32, #tpu.memory_space<vmem>>, vector<4x32xf32>
    %cst = arith.constant dense<0.000000e+00> : vector<56x32xf32>
    %24 = tpu.matmul %22, %23, %cst {dimension_numbers = #tpu.dot_dimension_numbers<[1], [0], [0], [1], [0, 0, 1, 1], [], []>} : vector<56x4xf32>, vector<4x32xf32>, vector<56x32xf32> -> vector<56x32xf32>
    %25 = vector.broadcast %0 : vector<1x32xf32> to vector<56x32xf32>
    %26 = arith.addf %24, %25 : vector<56x32xf32>
    %cst_31 = arith.constant 0.000000e+00 : f32
    %27 = vector.broadcast %cst_31 : f32 to vector<56x32xf32>
    %28 = arith.cmpf ogt, %26, %27 : vector<56x32xf32>
    %cst_32 = arith.constant 0.00999999977 : f32
    %29 = vector.broadcast %cst_32 : f32 to vector<56x32xf32>
    %30 = arith.mulf %29, %26 : vector<56x32xf32>
    %31 = arith.select %28, %26, %30 : vector<56x32xi1>, vector<56x32xf32>
    %c0_33 = arith.constant 0 : index
    %c0_34 = arith.constant 0 : index
    %32 = vector.load %arg5[%c0_33, %c0_34] : memref<32x32xf32, #tpu.memory_space<vmem>>, vector<32x32xf32>
    %cst_35 = arith.constant dense<0.000000e+00> : vector<56x32xf32>
    %33 = tpu.matmul %31, %32, %cst_35 {dimension_numbers = #tpu.dot_dimension_numbers<[1], [0], [0], [1], [0, 0, 1, 1], [], []>} : vector<56x32xf32>, vector<32x32xf32>, vector<56x32xf32> -> vector<56x32xf32>
    %34 = vector.broadcast %1 : vector<1x32xf32> to vector<56x32xf32>
    %35 = arith.addf %33, %34 : vector<56x32xf32>
    %cst_36 = arith.constant 0.000000e+00 : f32
    %36 = vector.broadcast %cst_36 : f32 to vector<56x32xf32>
    %37 = arith.cmpf ogt, %35, %36 : vector<56x32xf32>
    %cst_37 = arith.constant 0.00999999977 : f32
    %38 = vector.broadcast %cst_37 : f32 to vector<56x32xf32>
    %39 = arith.mulf %38, %35 : vector<56x32xf32>
    %40 = arith.select %37, %35, %39 : vector<56x32xi1>, vector<56x32xf32>
    %cst_38 = arith.constant dense<0.000000e+00> : vector<56x96xf32>
    %41 = tpu.matmul %40, %8, %cst_38 {dimension_numbers = #tpu.dot_dimension_numbers<[1], [0], [0], [1], [0, 0, 1, 1], [], []>} : vector<56x32xf32>, vector<32x96xf32>, vector<56x96xf32> -> vector<56x96xf32>
    %42 = vector.broadcast %10 : vector<1x96xf32> to vector<56x96xf32>
    %43 = arith.addf %41, %42 : vector<56x96xf32>
    %cst_39 = arith.constant 0.000000e+00 : f32
    %44 = vector.broadcast %cst_39 : f32 to vector<8x32xf32>
    %cst_40 = arith.constant 0.000000e+00 : f32
    %45 = vector.broadcast %cst_40 : f32 to vector<1x1xf32>
    %46 = vector.extract_strided_slice %43 {offsets = [0, 0], sizes = [8, 96], strides = [1, 1]} : vector<56x96xf32> to vector<8x96xf32>
    %c0_41 = arith.constant 0 : index
    %c0_42 = arith.constant 0 : index
    %c0_43 = arith.constant 0 : index
    %47 = vector.load %arg2[%c0_41, %c0_42, %c0_43] : memref<7x8x4xf32, #tpu.memory_space<vmem>>, vector<1x8x4xf32>
    %48 = vector.shape_cast %47 : vector<1x8x4xf32> to vector<8x4xf32>
    %c0_44 = arith.constant 0 : index
    %c0_45 = arith.constant 0 : index
    %c0_46 = arith.constant 0 : index
    %49 = vector.load %arg3[%c0_44, %c0_45, %c0_46] : memref<7x8x8xf32, #tpu.memory_space<vmem>>, vector<1x8x8xf32>
    %50 = vector.shape_cast %49 : vector<1x8x8xf32> to vector<8x8xf32>
    %cst_47 = arith.constant 0.000000e+00 : f32
    %51 = vector.broadcast %cst_47 : f32 to vector<8x8xf32>
    %52 = arith.cmpf ogt, %50, %51 : vector<8x8xf32>
    %cst_48 = arith.constant dense<0.000000e+00> : vector<8x96xf32>
    %53 = tpu.matmul %44, %9, %cst_48 {dimension_numbers = #tpu.dot_dimension_numbers<[1], [0], [0], [1], [0, 0, 1, 1], [], []>} : vector<8x32xf32>, vector<32x96xf32>, vector<8x96xf32> -> vector<8x96xf32>
    %54 = arith.addf %53, %13 : vector<8x96xf32>
    %55 = vector.extract_strided_slice %46 {offsets = [0, 0], sizes = [8, 32], strides = [1, 1]} : vector<8x96xf32> to vector<8x32xf32>
    %56 = vector.extract_strided_slice %54 {offsets = [0, 0], sizes = [8, 32], strides = [1, 1]} : vector<8x96xf32> to vector<8x32xf32>
    %57 = arith.addf %55, %56 : vector<8x32xf32>
    %58 = arith.negf %57 : vector<8x32xf32>
    %59 = math.exp %58 : vector<8x32xf32>
    %cst_49 = arith.constant 1.000000e+00 : f32
    %60 = vector.broadcast %cst_49 : f32 to vector<8x32xf32>
    %61 = arith.addf %60, %59 : vector<8x32xf32>
    %62 = arith.divf %60, %61 : vector<8x32xf32>
    %63 = vector.extract_strided_slice %46 {offsets = [0, 32], sizes = [8, 32], strides = [1, 1]} : vector<8x96xf32> to vector<8x32xf32>
    %64 = vector.extract_strided_slice %54 {offsets = [0, 32], sizes = [8, 32], strides = [1, 1]} : vector<8x96xf32> to vector<8x32xf32>
    %65 = arith.addf %63, %64 : vector<8x32xf32>
    %66 = arith.negf %65 : vector<8x32xf32>
    %67 = math.exp %66 : vector<8x32xf32>
    %cst_50 = arith.constant 1.000000e+00 : f32
    %68 = vector.broadcast %cst_50 : f32 to vector<8x32xf32>
    %69 = arith.addf %68, %67 : vector<8x32xf32>
    %70 = arith.divf %68, %69 : vector<8x32xf32>
    %71 = vector.extract_strided_slice %46 {offsets = [0, 64], sizes = [8, 32], strides = [1, 1]} : vector<8x96xf32> to vector<8x32xf32>
    %72 = vector.extract_strided_slice %54 {offsets = [0, 64], sizes = [8, 32], strides = [1, 1]} : vector<8x96xf32> to vector<8x32xf32>
    %73 = arith.mulf %62, %72 : vector<8x32xf32>
    %74 = arith.addf %71, %73 : vector<8x32xf32>
    %75 = math.tanh %74 : vector<8x32xf32>
    %cst_51 = arith.constant 1.000000e+00 : f32
    %76 = vector.broadcast %cst_51 : f32 to vector<8x32xf32>
    %77 = arith.subf %76, %70 : vector<8x32xf32>
    %78 = arith.mulf %77, %75 : vector<8x32xf32>
    %79 = arith.mulf %70, %44 : vector<8x32xf32>
    %80 = arith.addf %78, %79 : vector<8x32xf32>
    %cst_52 = arith.constant dense<0.000000e+00> : vector<8x32xf32>
    %81 = tpu.matmul %80, %14, %cst_52 {dimension_numbers = #tpu.dot_dimension_numbers<[1], [0], [0], [1], [0, 0, 1, 1], [], []>} : vector<8x32xf32>, vector<32x32xf32>, vector<8x32xf32> -> vector<8x32xf32>
    %82 = vector.broadcast %15 : vector<1x32xf32> to vector<8x32xf32>
    %83 = arith.mulf %81, %82 : vector<8x32xf32>
    %84 = vector.extract_strided_slice %81 {offsets = [0, 0], sizes = [8, 16], strides = [1, 1]} : vector<8x32xf32> to vector<8x16xf32>
    %85 = vector.extract_strided_slice %83 {offsets = [0, 0], sizes = [8, 16], strides = [1, 1]} : vector<8x32xf32> to vector<8x16xf32>
    %cst_53 = arith.constant dense<0.000000e+00> : vector<8xf32>
    %86 = vector.multi_reduction <add>, %85, %cst_53 [1] : vector<8x16xf32> to vector<8xf32>
    %87 = vector.shape_cast %86 : vector<8xf32> to vector<8x1xf32>
    %88 = vector.extract_strided_slice %16 {offsets = [0, 0], sizes = [1, 16], strides = [1, 1]} : vector<1x32xf32> to vector<1x16xf32>
    %cst_54 = arith.constant dense<0.000000e+00> : vector<1x8xf32>
    %89 = tpu.matmul %88, %84, %cst_54 {dimension_numbers = #tpu.dot_dimension_numbers<[1], [1], [0], [0], [0, 0, 1, 0], [], []>} : vector<1x16xf32>, vector<8x16xf32>, vector<1x8xf32> -> vector<1x8xf32>
    %90 = vector.broadcast %87 : vector<8x1xf32> to vector<8x8xf32>
    %91 = vector.broadcast %89 : vector<1x8xf32> to vector<8x8xf32>
    %92 = arith.addf %90, %91 : vector<8x8xf32>
    %cst_55 = arith.constant 0.000000e+00 : f32
    %93 = vector.broadcast %cst_55 : f32 to vector<8x8xf32>
    %94 = arith.cmpf ogt, %92, %93 : vector<8x8xf32>
    %cst_56 = arith.constant 2.000000e-01 : f32
    %95 = vector.broadcast %cst_56 : f32 to vector<8x8xf32>
    %96 = arith.mulf %95, %92 : vector<8x8xf32>
    %97 = arith.select %94, %92, %96 : vector<8x8xi1>, vector<8x8xf32>
    %cst_57 = arith.constant -9.000000e+15 : f32
    %98 = vector.broadcast %cst_57 : f32 to vector<8x8xf32>
    %99 = arith.select %52, %97, %98 : vector<8x8xi1>, vector<8x8xf32>
    %cst_58 = arith.constant dense<0xFF800000> : vector<8xf32>
    %100 = vector.multi_reduction <maximumf>, %99, %cst_58 [1] : vector<8x8xf32> to vector<8xf32>
    %101 = vector.shape_cast %100 : vector<8xf32> to vector<8x1xf32>
    %102 = vector.broadcast %101 : vector<8x1xf32> to vector<8x8xf32>
    %103 = arith.subf %99, %102 : vector<8x8xf32>
    %104 = math.exp %103 : vector<8x8xf32>
    %cst_59 = arith.constant dense<0.000000e+00> : vector<8xf32>
    %105 = vector.multi_reduction <add>, %104, %cst_59 [1] : vector<8x8xf32> to vector<8xf32>
    %106 = vector.shape_cast %105 : vector<8xf32> to vector<8x1xf32>
    %107 = tpu.reciprocal %106 {approx = true} : vector<8x1xf32> -> vector<8x1xf32>
    %108 = vector.broadcast %107 : vector<8x1xf32> to vector<8x8xf32>
    %109 = arith.mulf %104, %108 : vector<8x8xf32>
    %cst_60 = arith.constant dense<0.000000e+00> : vector<8x16xf32>
    %110 = tpu.matmul %109, %84, %cst_60 {dimension_numbers = #tpu.dot_dimension_numbers<[1], [0], [0], [1], [0, 0, 1, 1], [], []>} : vector<8x8xf32>, vector<8x16xf32>, vector<8x16xf32> -> vector<8x16xf32>
    %cst_61 = arith.constant 0.000000e+00 : f32
    %111 = vector.broadcast %cst_61 : f32 to vector<8x16xf32>
    %112 = arith.cmpf ogt, %110, %111 : vector<8x16xf32>
    %113 = math.exp %110 : vector<8x16xf32>
    %cst_62 = arith.constant 1.000000e+00 : f32
    %114 = vector.broadcast %cst_62 : f32 to vector<8x16xf32>
    %115 = arith.subf %113, %114 : vector<8x16xf32>
    %116 = arith.select %112, %110, %115 : vector<8x16xi1>, vector<8x16xf32>
    %117 = vector.extract_strided_slice %81 {offsets = [0, 16], sizes = [8, 16], strides = [1, 1]} : vector<8x32xf32> to vector<8x16xf32>
    %118 = vector.extract_strided_slice %83 {offsets = [0, 16], sizes = [8, 16], strides = [1, 1]} : vector<8x32xf32> to vector<8x16xf32>
    %cst_63 = arith.constant dense<0.000000e+00> : vector<8xf32>
    %119 = vector.multi_reduction <add>, %118, %cst_63 [1] : vector<8x16xf32> to vector<8xf32>
    %120 = vector.shape_cast %119 : vector<8xf32> to vector<8x1xf32>
    %121 = vector.extract_strided_slice %16 {offsets = [0, 16], sizes = [1, 16], strides = [1, 1]} : vector<1x32xf32> to vector<1x16xf32>
    %cst_64 = arith.constant dense<0.000000e+00> : vector<1x8xf32>
    %122 = tpu.matmul %121, %117, %cst_64 {dimension_numbers = #tpu.dot_dimension_numbers<[1], [1], [0], [0], [0, 0, 1, 0], [], []>} : vector<1x16xf32>, vector<8x16xf32>, vector<1x8xf32> -> vector<1x8xf32>
    %123 = vector.broadcast %120 : vector<8x1xf32> to vector<8x8xf32>
    %124 = vector.broadcast %122 : vector<1x8xf32> to vector<8x8xf32>
    %125 = arith.addf %123, %124 : vector<8x8xf32>
    %cst_65 = arith.constant 0.000000e+00 : f32
    %126 = vector.broadcast %cst_65 : f32 to vector<8x8xf32>
    %127 = arith.cmpf ogt, %125, %126 : vector<8x8xf32>
    %cst_66 = arith.constant 2.000000e-01 : f32
    %128 = vector.broadcast %cst_66 : f32 to vector<8x8xf32>
    %129 = arith.mulf %128, %125 : vector<8x8xf32>
    %130 = arith.select %127, %125, %129 : vector<8x8xi1>, vector<8x8xf32>
    %cst_67 = arith.constant -9.000000e+15 : f32
    %131 = vector.broadcast %cst_67 : f32 to vector<8x8xf32>
    %132 = arith.select %52, %130, %131 : vector<8x8xi1>, vector<8x8xf32>
    %cst_68 = arith.constant dense<0xFF800000> : vector<8xf32>
    %133 = vector.multi_reduction <maximumf>, %132, %cst_68 [1] : vector<8x8xf32> to vector<8xf32>
    %134 = vector.shape_cast %133 : vector<8xf32> to vector<8x1xf32>
    %135 = vector.broadcast %134 : vector<8x1xf32> to vector<8x8xf32>
    %136 = arith.subf %132, %135 : vector<8x8xf32>
    %137 = math.exp %136 : vector<8x8xf32>
    %cst_69 = arith.constant dense<0.000000e+00> : vector<8xf32>
    %138 = vector.multi_reduction <add>, %137, %cst_69 [1] : vector<8x8xf32> to vector<8xf32>
    %139 = vector.shape_cast %138 : vector<8xf32> to vector<8x1xf32>
    %140 = tpu.reciprocal %139 {approx = true} : vector<8x1xf32> -> vector<8x1xf32>
    %141 = vector.broadcast %140 : vector<8x1xf32> to vector<8x8xf32>
    %142 = arith.mulf %137, %141 : vector<8x8xf32>
    %cst_70 = arith.constant dense<0.000000e+00> : vector<8x16xf32>
    %143 = tpu.matmul %142, %117, %cst_70 {dimension_numbers = #tpu.dot_dimension_numbers<[1], [0], [0], [1], [0, 0, 1, 1], [], []>} : vector<8x8xf32>, vector<8x16xf32>, vector<8x16xf32> -> vector<8x16xf32>
    %cst_71 = arith.constant 0.000000e+00 : f32
    %144 = vector.broadcast %cst_71 : f32 to vector<8x16xf32>
    %145 = arith.cmpf ogt, %143, %144 : vector<8x16xf32>
    %146 = math.exp %143 : vector<8x16xf32>
    %cst_72 = arith.constant 1.000000e+00 : f32
    %147 = vector.broadcast %cst_72 : f32 to vector<8x16xf32>
    %148 = arith.subf %146, %147 : vector<8x16xf32>
    %149 = arith.select %145, %143, %148 : vector<8x16xi1>, vector<8x16xf32>
    %150 = tpu.concatenate %116, %149 in 1 : vector<8x16xf32>, vector<8x16xf32> -> vector<8x32xf32>
    %cst_73 = arith.constant dense<0.000000e+00> : vector<8x32xf32>
    %151 = tpu.matmul %150, %17, %cst_73 {dimension_numbers = #tpu.dot_dimension_numbers<[1], [0], [0], [1], [0, 0, 1, 1], [], []>} : vector<8x32xf32>, vector<32x32xf32>, vector<8x32xf32> -> vector<8x32xf32>
    %152 = vector.broadcast %18 : vector<1x32xf32> to vector<8x32xf32>
    %153 = arith.mulf %151, %152 : vector<8x32xf32>
    %cst_74 = arith.constant dense<0.000000e+00> : vector<8xf32>
    %154 = vector.multi_reduction <add>, %153, %cst_74 [1] : vector<8x32xf32> to vector<8xf32>
    %155 = vector.shape_cast %154 : vector<8xf32> to vector<8x1xf32>
    %cst_75 = arith.constant dense<0.000000e+00> : vector<1x8xf32>
    %156 = tpu.matmul %19, %151, %cst_75 {dimension_numbers = #tpu.dot_dimension_numbers<[1], [1], [0], [0], [0, 0, 1, 0], [], []>} : vector<1x32xf32>, vector<8x32xf32>, vector<1x8xf32> -> vector<1x8xf32>
    %157 = vector.broadcast %155 : vector<8x1xf32> to vector<8x8xf32>
    %158 = vector.broadcast %156 : vector<1x8xf32> to vector<8x8xf32>
    %159 = arith.addf %157, %158 : vector<8x8xf32>
    %cst_76 = arith.constant 0.000000e+00 : f32
    %160 = vector.broadcast %cst_76 : f32 to vector<8x8xf32>
    %161 = arith.cmpf ogt, %159, %160 : vector<8x8xf32>
    %cst_77 = arith.constant 2.000000e-01 : f32
    %162 = vector.broadcast %cst_77 : f32 to vector<8x8xf32>
    %163 = arith.mulf %162, %159 : vector<8x8xf32>
    %164 = arith.select %161, %159, %163 : vector<8x8xi1>, vector<8x8xf32>
    %cst_78 = arith.constant -9.000000e+15 : f32
    %165 = vector.broadcast %cst_78 : f32 to vector<8x8xf32>
    %166 = arith.select %52, %164, %165 : vector<8x8xi1>, vector<8x8xf32>
    %cst_79 = arith.constant dense<0xFF800000> : vector<8xf32>
    %167 = vector.multi_reduction <maximumf>, %166, %cst_79 [1] : vector<8x8xf32> to vector<8xf32>
    %168 = vector.shape_cast %167 : vector<8xf32> to vector<8x1xf32>
    %169 = vector.broadcast %168 : vector<8x1xf32> to vector<8x8xf32>
    %170 = arith.subf %166, %169 : vector<8x8xf32>
    %171 = math.exp %170 : vector<8x8xf32>
    %cst_80 = arith.constant dense<0.000000e+00> : vector<8xf32>
    %172 = vector.multi_reduction <add>, %171, %cst_80 [1] : vector<8x8xf32> to vector<8xf32>
    %173 = vector.shape_cast %172 : vector<8xf32> to vector<8x1xf32>
    %174 = tpu.reciprocal %173 {approx = true} : vector<8x1xf32> -> vector<8x1xf32>
    %175 = vector.broadcast %174 : vector<8x1xf32> to vector<8x8xf32>
    %176 = arith.mulf %171, %175 : vector<8x8xf32>
    %cst_81 = arith.constant dense<0.000000e+00> : vector<8x32xf32>
    %177 = tpu.matmul %176, %151, %cst_81 {dimension_numbers = #tpu.dot_dimension_numbers<[1], [0], [0], [1], [0, 0, 1, 1], [], []>} : vector<8x8xf32>, vector<8x32xf32>, vector<8x32xf32> -> vector<8x32xf32>
    %cst_82 = arith.constant 0.000000e+00 : f32
    %178 = vector.broadcast %cst_82 : f32 to vector<8x32xf32>
    %179 = arith.cmpf ogt, %177, %178 : vector<8x32xf32>
    %180 = math.exp %177 : vector<8x32xf32>
    %cst_83 = arith.constant 1.000000e+00 : f32
    %181 = vector.broadcast %cst_83 : f32 to vector<8x32xf32>
    %182 = arith.subf %180, %181 : vector<8x32xf32>
    %183 = arith.select %179, %177, %182 : vector<8x32xi1>, vector<8x32xf32>
    %184 = tpu.concatenate %183, %80 in 1 : vector<8x32xf32>, vector<8x32xf32> -> vector<8x64xf32>
    %cst_84 = arith.constant dense<0.000000e+00> : vector<8x32xf32>
    %185 = tpu.matmul %184, %20, %cst_84 {dimension_numbers = #tpu.dot_dimension_numbers<[1], [0], [0], [1], [0, 0, 1, 1], [], []>} : vector<8x64xf32>, vector<64x32xf32>, vector<8x32xf32> -> vector<8x32xf32>
    %186 = arith.addf %185, %4 : vector<8x32xf32>
    %cst_85 = arith.constant dense<0.000000e+00> : vector<8x4xf32>
    %187 = tpu.matmul %186, %21, %cst_85 {dimension_numbers = #tpu.dot_dimension_numbers<[1], [0], [0], [1], [0, 0, 1, 1], [], []>} : vector<8x32xf32>, vector<32x4xf32>, vector<8x4xf32> -> vector<8x4xf32>
    %188 = arith.addf %187, %7 : vector<8x4xf32>
    %cst_86 = arith.constant dense<0xFF800000> : vector<8xf32>
    %189 = vector.multi_reduction <maximumf>, %188, %cst_86 [1] : vector<8x4xf32> to vector<8xf32>
    %190 = vector.shape_cast %189 : vector<8xf32> to vector<8x1xf32>
    %191 = vector.broadcast %190 : vector<8x1xf32> to vector<8x4xf32>
    %192 = arith.subf %188, %191 : vector<8x4xf32>
    %193 = math.exp %192 : vector<8x4xf32>
    %cst_87 = arith.constant dense<0.000000e+00> : vector<8xf32>
    %194 = vector.multi_reduction <add>, %193, %cst_87 [1] : vector<8x4xf32> to vector<8xf32>
    %195 = vector.shape_cast %194 : vector<8xf32> to vector<8x1xf32>
    %196 = math.log %195 : vector<8x1xf32>
    %197 = vector.broadcast %190 : vector<8x1xf32> to vector<8x4xf32>
    %198 = arith.subf %188, %197 : vector<8x4xf32>
    %199 = vector.broadcast %196 : vector<8x1xf32> to vector<8x4xf32>
    %200 = arith.subf %198, %199 : vector<8x4xf32>
    %201 = arith.mulf %48, %200 : vector<8x4xf32>
    %cst_88 = arith.constant dense<0.000000e+00> : vector<8xf32>
    %202 = vector.multi_reduction <add>, %201, %cst_88 [1] : vector<8x4xf32> to vector<8xf32>
    %203 = vector.shape_cast %202 : vector<8xf32> to vector<8x1xf32>
    %cst_89 = arith.constant dense<0.000000e+00> : vector<1xf32>
    %204 = vector.multi_reduction <add>, %203, %cst_89 [0] : vector<8x1xf32> to vector<1xf32>
    %205 = vector.shape_cast %204 : vector<1xf32> to vector<1x1xf32>
    %cst_90 = arith.constant 5.000000e-01 : f32
    %206 = vector.broadcast %cst_90 : f32 to vector<1x1xf32>
    %207 = arith.mulf %205, %206 : vector<1x1xf32>
    %208 = arith.subf %45, %207 : vector<1x1xf32>
    %209 = vector.extract_strided_slice %43 {offsets = [8, 0], sizes = [8, 96], strides = [1, 1]} : vector<56x96xf32> to vector<8x96xf32>
    %c1_91 = arith.constant 1 : index
    %c0_92 = arith.constant 0 : index
    %c0_93 = arith.constant 0 : index
    %210 = vector.load %arg2[%c1_91, %c0_92, %c0_93] : memref<7x8x4xf32, #tpu.memory_space<vmem>>, vector<1x8x4xf32>
    %211 = vector.shape_cast %210 : vector<1x8x4xf32> to vector<8x4xf32>
    %c1_94 = arith.constant 1 : index
    %c0_95 = arith.constant 0 : index
    %c0_96 = arith.constant 0 : index
    %212 = vector.load %arg3[%c1_94, %c0_95, %c0_96] : memref<7x8x8xf32, #tpu.memory_space<vmem>>, vector<1x8x8xf32>
    %213 = vector.shape_cast %212 : vector<1x8x8xf32> to vector<8x8xf32>
    %cst_97 = arith.constant 0.000000e+00 : f32
    %214 = vector.broadcast %cst_97 : f32 to vector<8x8xf32>
    %215 = arith.cmpf ogt, %213, %214 : vector<8x8xf32>
    %cst_98 = arith.constant dense<0.000000e+00> : vector<8x96xf32>
    %216 = tpu.matmul %186, %9, %cst_98 {dimension_numbers = #tpu.dot_dimension_numbers<[1], [0], [0], [1], [0, 0, 1, 1], [], []>} : vector<8x32xf32>, vector<32x96xf32>, vector<8x96xf32> -> vector<8x96xf32>
    %217 = arith.addf %216, %13 : vector<8x96xf32>
    %218 = vector.extract_strided_slice %209 {offsets = [0, 0], sizes = [8, 32], strides = [1, 1]} : vector<8x96xf32> to vector<8x32xf32>
    %219 = vector.extract_strided_slice %217 {offsets = [0, 0], sizes = [8, 32], strides = [1, 1]} : vector<8x96xf32> to vector<8x32xf32>
    %220 = arith.addf %218, %219 : vector<8x32xf32>
    %221 = arith.negf %220 : vector<8x32xf32>
    %222 = math.exp %221 : vector<8x32xf32>
    %cst_99 = arith.constant 1.000000e+00 : f32
    %223 = vector.broadcast %cst_99 : f32 to vector<8x32xf32>
    %224 = arith.addf %223, %222 : vector<8x32xf32>
    %225 = arith.divf %223, %224 : vector<8x32xf32>
    %226 = vector.extract_strided_slice %209 {offsets = [0, 32], sizes = [8, 32], strides = [1, 1]} : vector<8x96xf32> to vector<8x32xf32>
    %227 = vector.extract_strided_slice %217 {offsets = [0, 32], sizes = [8, 32], strides = [1, 1]} : vector<8x96xf32> to vector<8x32xf32>
    %228 = arith.addf %226, %227 : vector<8x32xf32>
    %229 = arith.negf %228 : vector<8x32xf32>
    %230 = math.exp %229 : vector<8x32xf32>
    %cst_100 = arith.constant 1.000000e+00 : f32
    %231 = vector.broadcast %cst_100 : f32 to vector<8x32xf32>
    %232 = arith.addf %231, %230 : vector<8x32xf32>
    %233 = arith.divf %231, %232 : vector<8x32xf32>
    %234 = vector.extract_strided_slice %209 {offsets = [0, 64], sizes = [8, 32], strides = [1, 1]} : vector<8x96xf32> to vector<8x32xf32>
    %235 = vector.extract_strided_slice %217 {offsets = [0, 64], sizes = [8, 32], strides = [1, 1]} : vector<8x96xf32> to vector<8x32xf32>
    %236 = arith.mulf %225, %235 : vector<8x32xf32>
    %237 = arith.addf %234, %236 : vector<8x32xf32>
    %238 = math.tanh %237 : vector<8x32xf32>
    %cst_101 = arith.constant 1.000000e+00 : f32
    %239 = vector.broadcast %cst_101 : f32 to vector<8x32xf32>
    %240 = arith.subf %239, %233 : vector<8x32xf32>
    %241 = arith.mulf %240, %238 : vector<8x32xf32>
    %242 = arith.mulf %233, %186 : vector<8x32xf32>
    %243 = arith.addf %241, %242 : vector<8x32xf32>
    %cst_102 = arith.constant dense<0.000000e+00> : vector<8x32xf32>
    %244 = tpu.matmul %243, %14, %cst_102 {dimension_numbers = #tpu.dot_dimension_numbers<[1], [0], [0], [1], [0, 0, 1, 1], [], []>} : vector<8x32xf32>, vector<32x32xf32>, vector<8x32xf32> -> vector<8x32xf32>
    %245 = vector.broadcast %15 : vector<1x32xf32> to vector<8x32xf32>
    %246 = arith.mulf %244, %245 : vector<8x32xf32>
    %247 = vector.extract_strided_slice %244 {offsets = [0, 0], sizes = [8, 16], strides = [1, 1]} : vector<8x32xf32> to vector<8x16xf32>
    %248 = vector.extract_strided_slice %246 {offsets = [0, 0], sizes = [8, 16], strides = [1, 1]} : vector<8x32xf32> to vector<8x16xf32>
    %cst_103 = arith.constant dense<0.000000e+00> : vector<8xf32>
    %249 = vector.multi_reduction <add>, %248, %cst_103 [1] : vector<8x16xf32> to vector<8xf32>
    %250 = vector.shape_cast %249 : vector<8xf32> to vector<8x1xf32>
    %251 = vector.extract_strided_slice %16 {offsets = [0, 0], sizes = [1, 16], strides = [1, 1]} : vector<1x32xf32> to vector<1x16xf32>
    %cst_104 = arith.constant dense<0.000000e+00> : vector<1x8xf32>
    %252 = tpu.matmul %251, %247, %cst_104 {dimension_numbers = #tpu.dot_dimension_numbers<[1], [1], [0], [0], [0, 0, 1, 0], [], []>} : vector<1x16xf32>, vector<8x16xf32>, vector<1x8xf32> -> vector<1x8xf32>
    %253 = vector.broadcast %250 : vector<8x1xf32> to vector<8x8xf32>
    %254 = vector.broadcast %252 : vector<1x8xf32> to vector<8x8xf32>
    %255 = arith.addf %253, %254 : vector<8x8xf32>
    %cst_105 = arith.constant 0.000000e+00 : f32
    %256 = vector.broadcast %cst_105 : f32 to vector<8x8xf32>
    %257 = arith.cmpf ogt, %255, %256 : vector<8x8xf32>
    %cst_106 = arith.constant 2.000000e-01 : f32
    %258 = vector.broadcast %cst_106 : f32 to vector<8x8xf32>
    %259 = arith.mulf %258, %255 : vector<8x8xf32>
    %260 = arith.select %257, %255, %259 : vector<8x8xi1>, vector<8x8xf32>
    %cst_107 = arith.constant -9.000000e+15 : f32
    %261 = vector.broadcast %cst_107 : f32 to vector<8x8xf32>
    %262 = arith.select %215, %260, %261 : vector<8x8xi1>, vector<8x8xf32>
    %cst_108 = arith.constant dense<0xFF800000> : vector<8xf32>
    %263 = vector.multi_reduction <maximumf>, %262, %cst_108 [1] : vector<8x8xf32> to vector<8xf32>
    %264 = vector.shape_cast %263 : vector<8xf32> to vector<8x1xf32>
    %265 = vector.broadcast %264 : vector<8x1xf32> to vector<8x8xf32>
    %266 = arith.subf %262, %265 : vector<8x8xf32>
    %267 = math.exp %266 : vector<8x8xf32>
    %cst_109 = arith.constant dense<0.000000e+00> : vector<8xf32>
    %268 = vector.multi_reduction <add>, %267, %cst_109 [1] : vector<8x8xf32> to vector<8xf32>
    %269 = vector.shape_cast %268 : vector<8xf32> to vector<8x1xf32>
    %270 = tpu.reciprocal %269 {approx = true} : vector<8x1xf32> -> vector<8x1xf32>
    %271 = vector.broadcast %270 : vector<8x1xf32> to vector<8x8xf32>
    %272 = arith.mulf %267, %271 : vector<8x8xf32>
    %cst_110 = arith.constant dense<0.000000e+00> : vector<8x16xf32>
    %273 = tpu.matmul %272, %247, %cst_110 {dimension_numbers = #tpu.dot_dimension_numbers<[1], [0], [0], [1], [0, 0, 1, 1], [], []>} : vector<8x8xf32>, vector<8x16xf32>, vector<8x16xf32> -> vector<8x16xf32>
    %cst_111 = arith.constant 0.000000e+00 : f32
    %274 = vector.broadcast %cst_111 : f32 to vector<8x16xf32>
    %275 = arith.cmpf ogt, %273, %274 : vector<8x16xf32>
    %276 = math.exp %273 : vector<8x16xf32>
    %cst_112 = arith.constant 1.000000e+00 : f32
    %277 = vector.broadcast %cst_112 : f32 to vector<8x16xf32>
    %278 = arith.subf %276, %277 : vector<8x16xf32>
    %279 = arith.select %275, %273, %278 : vector<8x16xi1>, vector<8x16xf32>
    %280 = vector.extract_strided_slice %244 {offsets = [0, 16], sizes = [8, 16], strides = [1, 1]} : vector<8x32xf32> to vector<8x16xf32>
    %281 = vector.extract_strided_slice %246 {offsets = [0, 16], sizes = [8, 16], strides = [1, 1]} : vector<8x32xf32> to vector<8x16xf32>
    %cst_113 = arith.constant dense<0.000000e+00> : vector<8xf32>
    %282 = vector.multi_reduction <add>, %281, %cst_113 [1] : vector<8x16xf32> to vector<8xf32>
    %283 = vector.shape_cast %282 : vector<8xf32> to vector<8x1xf32>
    %284 = vector.extract_strided_slice %16 {offsets = [0, 16], sizes = [1, 16], strides = [1, 1]} : vector<1x32xf32> to vector<1x16xf32>
    %cst_114 = arith.constant dense<0.000000e+00> : vector<1x8xf32>
    %285 = tpu.matmul %284, %280, %cst_114 {dimension_numbers = #tpu.dot_dimension_numbers<[1], [1], [0], [0], [0, 0, 1, 0], [], []>} : vector<1x16xf32>, vector<8x16xf32>, vector<1x8xf32> -> vector<1x8xf32>
    %286 = vector.broadcast %283 : vector<8x1xf32> to vector<8x8xf32>
    %287 = vector.broadcast %285 : vector<1x8xf32> to vector<8x8xf32>
    %288 = arith.addf %286, %287 : vector<8x8xf32>
    %cst_115 = arith.constant 0.000000e+00 : f32
    %289 = vector.broadcast %cst_115 : f32 to vector<8x8xf32>
    %290 = arith.cmpf ogt, %288, %289 : vector<8x8xf32>
    %cst_116 = arith.constant 2.000000e-01 : f32
    %291 = vector.broadcast %cst_116 : f32 to vector<8x8xf32>
    %292 = arith.mulf %291, %288 : vector<8x8xf32>
    %293 = arith.select %290, %288, %292 : vector<8x8xi1>, vector<8x8xf32>
    %cst_117 = arith.constant -9.000000e+15 : f32
    %294 = vector.broadcast %cst_117 : f32 to vector<8x8xf32>
    %295 = arith.select %215, %293, %294 : vector<8x8xi1>, vector<8x8xf32>
    %cst_118 = arith.constant dense<0xFF800000> : vector<8xf32>
    %296 = vector.multi_reduction <maximumf>, %295, %cst_118 [1] : vector<8x8xf32> to vector<8xf32>
    %297 = vector.shape_cast %296 : vector<8xf32> to vector<8x1xf32>
    %298 = vector.broadcast %297 : vector<8x1xf32> to vector<8x8xf32>
    %299 = arith.subf %295, %298 : vector<8x8xf32>
    %300 = math.exp %299 : vector<8x8xf32>
    %cst_119 = arith.constant dense<0.000000e+00> : vector<8xf32>
    %301 = vector.multi_reduction <add>, %300, %cst_119 [1] : vector<8x8xf32> to vector<8xf32>
    %302 = vector.shape_cast %301 : vector<8xf32> to vector<8x1xf32>
    %303 = tpu.reciprocal %302 {approx = true} : vector<8x1xf32> -> vector<8x1xf32>
    %304 = vector.broadcast %303 : vector<8x1xf32> to vector<8x8xf32>
    %305 = arith.mulf %300, %304 : vector<8x8xf32>
    %cst_120 = arith.constant dense<0.000000e+00> : vector<8x16xf32>
    %306 = tpu.matmul %305, %280, %cst_120 {dimension_numbers = #tpu.dot_dimension_numbers<[1], [0], [0], [1], [0, 0, 1, 1], [], []>} : vector<8x8xf32>, vector<8x16xf32>, vector<8x16xf32> -> vector<8x16xf32>
    %cst_121 = arith.constant 0.000000e+00 : f32
    %307 = vector.broadcast %cst_121 : f32 to vector<8x16xf32>
    %308 = arith.cmpf ogt, %306, %307 : vector<8x16xf32>
    %309 = math.exp %306 : vector<8x16xf32>
    %cst_122 = arith.constant 1.000000e+00 : f32
    %310 = vector.broadcast %cst_122 : f32 to vector<8x16xf32>
    %311 = arith.subf %309, %310 : vector<8x16xf32>
    %312 = arith.select %308, %306, %311 : vector<8x16xi1>, vector<8x16xf32>
    %313 = tpu.concatenate %279, %312 in 1 : vector<8x16xf32>, vector<8x16xf32> -> vector<8x32xf32>
    %cst_123 = arith.constant dense<0.000000e+00> : vector<8x32xf32>
    %314 = tpu.matmul %313, %17, %cst_123 {dimension_numbers = #tpu.dot_dimension_numbers<[1], [0], [0], [1], [0, 0, 1, 1], [], []>} : vector<8x32xf32>, vector<32x32xf32>, vector<8x32xf32> -> vector<8x32xf32>
    %315 = vector.broadcast %18 : vector<1x32xf32> to vector<8x32xf32>
    %316 = arith.mulf %314, %315 : vector<8x32xf32>
    %cst_124 = arith.constant dense<0.000000e+00> : vector<8xf32>
    %317 = vector.multi_reduction <add>, %316, %cst_124 [1] : vector<8x32xf32> to vector<8xf32>
    %318 = vector.shape_cast %317 : vector<8xf32> to vector<8x1xf32>
    %cst_125 = arith.constant dense<0.000000e+00> : vector<1x8xf32>
    %319 = tpu.matmul %19, %314, %cst_125 {dimension_numbers = #tpu.dot_dimension_numbers<[1], [1], [0], [0], [0, 0, 1, 0], [], []>} : vector<1x32xf32>, vector<8x32xf32>, vector<1x8xf32> -> vector<1x8xf32>
    %320 = vector.broadcast %318 : vector<8x1xf32> to vector<8x8xf32>
    %321 = vector.broadcast %319 : vector<1x8xf32> to vector<8x8xf32>
    %322 = arith.addf %320, %321 : vector<8x8xf32>
    %cst_126 = arith.constant 0.000000e+00 : f32
    %323 = vector.broadcast %cst_126 : f32 to vector<8x8xf32>
    %324 = arith.cmpf ogt, %322, %323 : vector<8x8xf32>
    %cst_127 = arith.constant 2.000000e-01 : f32
    %325 = vector.broadcast %cst_127 : f32 to vector<8x8xf32>
    %326 = arith.mulf %325, %322 : vector<8x8xf32>
    %327 = arith.select %324, %322, %326 : vector<8x8xi1>, vector<8x8xf32>
    %cst_128 = arith.constant -9.000000e+15 : f32
    %328 = vector.broadcast %cst_128 : f32 to vector<8x8xf32>
    %329 = arith.select %215, %327, %328 : vector<8x8xi1>, vector<8x8xf32>
    %cst_129 = arith.constant dense<0xFF800000> : vector<8xf32>
    %330 = vector.multi_reduction <maximumf>, %329, %cst_129 [1] : vector<8x8xf32> to vector<8xf32>
    %331 = vector.shape_cast %330 : vector<8xf32> to vector<8x1xf32>
    %332 = vector.broadcast %331 : vector<8x1xf32> to vector<8x8xf32>
    %333 = arith.subf %329, %332 : vector<8x8xf32>
    %334 = math.exp %333 : vector<8x8xf32>
    %cst_130 = arith.constant dense<0.000000e+00> : vector<8xf32>
    %335 = vector.multi_reduction <add>, %334, %cst_130 [1] : vector<8x8xf32> to vector<8xf32>
    %336 = vector.shape_cast %335 : vector<8xf32> to vector<8x1xf32>
    %337 = tpu.reciprocal %336 {approx = true} : vector<8x1xf32> -> vector<8x1xf32>
    %338 = vector.broadcast %337 : vector<8x1xf32> to vector<8x8xf32>
    %339 = arith.mulf %334, %338 : vector<8x8xf32>
    %cst_131 = arith.constant dense<0.000000e+00> : vector<8x32xf32>
    %340 = tpu.matmul %339, %314, %cst_131 {dimension_numbers = #tpu.dot_dimension_numbers<[1], [0], [0], [1], [0, 0, 1, 1], [], []>} : vector<8x8xf32>, vector<8x32xf32>, vector<8x32xf32> -> vector<8x32xf32>
    %cst_132 = arith.constant 0.000000e+00 : f32
    %341 = vector.broadcast %cst_132 : f32 to vector<8x32xf32>
    %342 = arith.cmpf ogt, %340, %341 : vector<8x32xf32>
    %343 = math.exp %340 : vector<8x32xf32>
    %cst_133 = arith.constant 1.000000e+00 : f32
    %344 = vector.broadcast %cst_133 : f32 to vector<8x32xf32>
    %345 = arith.subf %343, %344 : vector<8x32xf32>
    %346 = arith.select %342, %340, %345 : vector<8x32xi1>, vector<8x32xf32>
    %347 = tpu.concatenate %346, %243 in 1 : vector<8x32xf32>, vector<8x32xf32> -> vector<8x64xf32>
    %cst_134 = arith.constant dense<0.000000e+00> : vector<8x32xf32>
    %348 = tpu.matmul %347, %20, %cst_134 {dimension_numbers = #tpu.dot_dimension_numbers<[1], [0], [0], [1], [0, 0, 1, 1], [], []>} : vector<8x64xf32>, vector<64x32xf32>, vector<8x32xf32> -> vector<8x32xf32>
    %349 = arith.addf %348, %4 : vector<8x32xf32>
    %cst_135 = arith.constant dense<0.000000e+00> : vector<8x4xf32>
    %350 = tpu.matmul %349, %21, %cst_135 {dimension_numbers = #tpu.dot_dimension_numbers<[1], [0], [0], [1], [0, 0, 1, 1], [], []>} : vector<8x32xf32>, vector<32x4xf32>, vector<8x4xf32> -> vector<8x4xf32>
    %351 = arith.addf %350, %7 : vector<8x4xf32>
    %cst_136 = arith.constant dense<0xFF800000> : vector<8xf32>
    %352 = vector.multi_reduction <maximumf>, %351, %cst_136 [1] : vector<8x4xf32> to vector<8xf32>
    %353 = vector.shape_cast %352 : vector<8xf32> to vector<8x1xf32>
    %354 = vector.broadcast %353 : vector<8x1xf32> to vector<8x4xf32>
    %355 = arith.subf %351, %354 : vector<8x4xf32>
    %356 = math.exp %355 : vector<8x4xf32>
    %cst_137 = arith.constant dense<0.000000e+00> : vector<8xf32>
    %357 = vector.multi_reduction <add>, %356, %cst_137 [1] : vector<8x4xf32> to vector<8xf32>
    %358 = vector.shape_cast %357 : vector<8xf32> to vector<8x1xf32>
    %359 = math.log %358 : vector<8x1xf32>
    %360 = vector.broadcast %353 : vector<8x1xf32> to vector<8x4xf32>
    %361 = arith.subf %351, %360 : vector<8x4xf32>
    %362 = vector.broadcast %359 : vector<8x1xf32> to vector<8x4xf32>
    %363 = arith.subf %361, %362 : vector<8x4xf32>
    %364 = arith.mulf %211, %363 : vector<8x4xf32>
    %cst_138 = arith.constant dense<0.000000e+00> : vector<8xf32>
    %365 = vector.multi_reduction <add>, %364, %cst_138 [1] : vector<8x4xf32> to vector<8xf32>
    %366 = vector.shape_cast %365 : vector<8xf32> to vector<8x1xf32>
    %cst_139 = arith.constant dense<0.000000e+00> : vector<1xf32>
    %367 = vector.multi_reduction <add>, %366, %cst_139 [0] : vector<8x1xf32> to vector<1xf32>
    %368 = vector.shape_cast %367 : vector<1xf32> to vector<1x1xf32>
    %cst_140 = arith.constant 5.000000e-01 : f32
    %369 = vector.broadcast %cst_140 : f32 to vector<1x1xf32>
    %370 = arith.mulf %368, %369 : vector<1x1xf32>
    %371 = arith.subf %208, %370 : vector<1x1xf32>
    %372 = vector.extract_strided_slice %43 {offsets = [16, 0], sizes = [8, 96], strides = [1, 1]} : vector<56x96xf32> to vector<8x96xf32>
    %c2 = arith.constant 2 : index
    %c0_141 = arith.constant 0 : index
    %c0_142 = arith.constant 0 : index
    %373 = vector.load %arg2[%c2, %c0_141, %c0_142] : memref<7x8x4xf32, #tpu.memory_space<vmem>>, vector<1x8x4xf32>
    %374 = vector.shape_cast %373 : vector<1x8x4xf32> to vector<8x4xf32>
    %c2_143 = arith.constant 2 : index
    %c0_144 = arith.constant 0 : index
    %c0_145 = arith.constant 0 : index
    %375 = vector.load %arg3[%c2_143, %c0_144, %c0_145] : memref<7x8x8xf32, #tpu.memory_space<vmem>>, vector<1x8x8xf32>
    %376 = vector.shape_cast %375 : vector<1x8x8xf32> to vector<8x8xf32>
    %cst_146 = arith.constant 0.000000e+00 : f32
    %377 = vector.broadcast %cst_146 : f32 to vector<8x8xf32>
    %378 = arith.cmpf ogt, %376, %377 : vector<8x8xf32>
    %cst_147 = arith.constant dense<0.000000e+00> : vector<8x96xf32>
    %379 = tpu.matmul %349, %9, %cst_147 {dimension_numbers = #tpu.dot_dimension_numbers<[1], [0], [0], [1], [0, 0, 1, 1], [], []>} : vector<8x32xf32>, vector<32x96xf32>, vector<8x96xf32> -> vector<8x96xf32>
    %380 = arith.addf %379, %13 : vector<8x96xf32>
    %381 = vector.extract_strided_slice %372 {offsets = [0, 0], sizes = [8, 32], strides = [1, 1]} : vector<8x96xf32> to vector<8x32xf32>
    %382 = vector.extract_strided_slice %380 {offsets = [0, 0], sizes = [8, 32], strides = [1, 1]} : vector<8x96xf32> to vector<8x32xf32>
    %383 = arith.addf %381, %382 : vector<8x32xf32>
    %384 = arith.negf %383 : vector<8x32xf32>
    %385 = math.exp %384 : vector<8x32xf32>
    %cst_148 = arith.constant 1.000000e+00 : f32
    %386 = vector.broadcast %cst_148 : f32 to vector<8x32xf32>
    %387 = arith.addf %386, %385 : vector<8x32xf32>
    %388 = arith.divf %386, %387 : vector<8x32xf32>
    %389 = vector.extract_strided_slice %372 {offsets = [0, 32], sizes = [8, 32], strides = [1, 1]} : vector<8x96xf32> to vector<8x32xf32>
    %390 = vector.extract_strided_slice %380 {offsets = [0, 32], sizes = [8, 32], strides = [1, 1]} : vector<8x96xf32> to vector<8x32xf32>
    %391 = arith.addf %389, %390 : vector<8x32xf32>
    %392 = arith.negf %391 : vector<8x32xf32>
    %393 = math.exp %392 : vector<8x32xf32>
    %cst_149 = arith.constant 1.000000e+00 : f32
    %394 = vector.broadcast %cst_149 : f32 to vector<8x32xf32>
    %395 = arith.addf %394, %393 : vector<8x32xf32>
    %396 = arith.divf %394, %395 : vector<8x32xf32>
    %397 = vector.extract_strided_slice %372 {offsets = [0, 64], sizes = [8, 32], strides = [1, 1]} : vector<8x96xf32> to vector<8x32xf32>
    %398 = vector.extract_strided_slice %380 {offsets = [0, 64], sizes = [8, 32], strides = [1, 1]} : vector<8x96xf32> to vector<8x32xf32>
    %399 = arith.mulf %388, %398 : vector<8x32xf32>
    %400 = arith.addf %397, %399 : vector<8x32xf32>
    %401 = math.tanh %400 : vector<8x32xf32>
    %cst_150 = arith.constant 1.000000e+00 : f32
    %402 = vector.broadcast %cst_150 : f32 to vector<8x32xf32>
    %403 = arith.subf %402, %396 : vector<8x32xf32>
    %404 = arith.mulf %403, %401 : vector<8x32xf32>
    %405 = arith.mulf %396, %349 : vector<8x32xf32>
    %406 = arith.addf %404, %405 : vector<8x32xf32>
    %cst_151 = arith.constant dense<0.000000e+00> : vector<8x32xf32>
    %407 = tpu.matmul %406, %14, %cst_151 {dimension_numbers = #tpu.dot_dimension_numbers<[1], [0], [0], [1], [0, 0, 1, 1], [], []>} : vector<8x32xf32>, vector<32x32xf32>, vector<8x32xf32> -> vector<8x32xf32>
    %408 = vector.broadcast %15 : vector<1x32xf32> to vector<8x32xf32>
    %409 = arith.mulf %407, %408 : vector<8x32xf32>
    %410 = vector.extract_strided_slice %407 {offsets = [0, 0], sizes = [8, 16], strides = [1, 1]} : vector<8x32xf32> to vector<8x16xf32>
    %411 = vector.extract_strided_slice %409 {offsets = [0, 0], sizes = [8, 16], strides = [1, 1]} : vector<8x32xf32> to vector<8x16xf32>
    %cst_152 = arith.constant dense<0.000000e+00> : vector<8xf32>
    %412 = vector.multi_reduction <add>, %411, %cst_152 [1] : vector<8x16xf32> to vector<8xf32>
    %413 = vector.shape_cast %412 : vector<8xf32> to vector<8x1xf32>
    %414 = vector.extract_strided_slice %16 {offsets = [0, 0], sizes = [1, 16], strides = [1, 1]} : vector<1x32xf32> to vector<1x16xf32>
    %cst_153 = arith.constant dense<0.000000e+00> : vector<1x8xf32>
    %415 = tpu.matmul %414, %410, %cst_153 {dimension_numbers = #tpu.dot_dimension_numbers<[1], [1], [0], [0], [0, 0, 1, 0], [], []>} : vector<1x16xf32>, vector<8x16xf32>, vector<1x8xf32> -> vector<1x8xf32>
    %416 = vector.broadcast %413 : vector<8x1xf32> to vector<8x8xf32>
    %417 = vector.broadcast %415 : vector<1x8xf32> to vector<8x8xf32>
    %418 = arith.addf %416, %417 : vector<8x8xf32>
    %cst_154 = arith.constant 0.000000e+00 : f32
    %419 = vector.broadcast %cst_154 : f32 to vector<8x8xf32>
    %420 = arith.cmpf ogt, %418, %419 : vector<8x8xf32>
    %cst_155 = arith.constant 2.000000e-01 : f32
    %421 = vector.broadcast %cst_155 : f32 to vector<8x8xf32>
    %422 = arith.mulf %421, %418 : vector<8x8xf32>
    %423 = arith.select %420, %418, %422 : vector<8x8xi1>, vector<8x8xf32>
    %cst_156 = arith.constant -9.000000e+15 : f32
    %424 = vector.broadcast %cst_156 : f32 to vector<8x8xf32>
    %425 = arith.select %378, %423, %424 : vector<8x8xi1>, vector<8x8xf32>
    %cst_157 = arith.constant dense<0xFF800000> : vector<8xf32>
    %426 = vector.multi_reduction <maximumf>, %425, %cst_157 [1] : vector<8x8xf32> to vector<8xf32>
    %427 = vector.shape_cast %426 : vector<8xf32> to vector<8x1xf32>
    %428 = vector.broadcast %427 : vector<8x1xf32> to vector<8x8xf32>
    %429 = arith.subf %425, %428 : vector<8x8xf32>
    %430 = math.exp %429 : vector<8x8xf32>
    %cst_158 = arith.constant dense<0.000000e+00> : vector<8xf32>
    %431 = vector.multi_reduction <add>, %430, %cst_158 [1] : vector<8x8xf32> to vector<8xf32>
    %432 = vector.shape_cast %431 : vector<8xf32> to vector<8x1xf32>
    %433 = tpu.reciprocal %432 {approx = true} : vector<8x1xf32> -> vector<8x1xf32>
    %434 = vector.broadcast %433 : vector<8x1xf32> to vector<8x8xf32>
    %435 = arith.mulf %430, %434 : vector<8x8xf32>
    %cst_159 = arith.constant dense<0.000000e+00> : vector<8x16xf32>
    %436 = tpu.matmul %435, %410, %cst_159 {dimension_numbers = #tpu.dot_dimension_numbers<[1], [0], [0], [1], [0, 0, 1, 1], [], []>} : vector<8x8xf32>, vector<8x16xf32>, vector<8x16xf32> -> vector<8x16xf32>
    %cst_160 = arith.constant 0.000000e+00 : f32
    %437 = vector.broadcast %cst_160 : f32 to vector<8x16xf32>
    %438 = arith.cmpf ogt, %436, %437 : vector<8x16xf32>
    %439 = math.exp %436 : vector<8x16xf32>
    %cst_161 = arith.constant 1.000000e+00 : f32
    %440 = vector.broadcast %cst_161 : f32 to vector<8x16xf32>
    %441 = arith.subf %439, %440 : vector<8x16xf32>
    %442 = arith.select %438, %436, %441 : vector<8x16xi1>, vector<8x16xf32>
    %443 = vector.extract_strided_slice %407 {offsets = [0, 16], sizes = [8, 16], strides = [1, 1]} : vector<8x32xf32> to vector<8x16xf32>
    %444 = vector.extract_strided_slice %409 {offsets = [0, 16], sizes = [8, 16], strides = [1, 1]} : vector<8x32xf32> to vector<8x16xf32>
    %cst_162 = arith.constant dense<0.000000e+00> : vector<8xf32>
    %445 = vector.multi_reduction <add>, %444, %cst_162 [1] : vector<8x16xf32> to vector<8xf32>
    %446 = vector.shape_cast %445 : vector<8xf32> to vector<8x1xf32>
    %447 = vector.extract_strided_slice %16 {offsets = [0, 16], sizes = [1, 16], strides = [1, 1]} : vector<1x32xf32> to vector<1x16xf32>
    %cst_163 = arith.constant dense<0.000000e+00> : vector<1x8xf32>
    %448 = tpu.matmul %447, %443, %cst_163 {dimension_numbers = #tpu.dot_dimension_numbers<[1], [1], [0], [0], [0, 0, 1, 0], [], []>} : vector<1x16xf32>, vector<8x16xf32>, vector<1x8xf32> -> vector<1x8xf32>
    %449 = vector.broadcast %446 : vector<8x1xf32> to vector<8x8xf32>
    %450 = vector.broadcast %448 : vector<1x8xf32> to vector<8x8xf32>
    %451 = arith.addf %449, %450 : vector<8x8xf32>
    %cst_164 = arith.constant 0.000000e+00 : f32
    %452 = vector.broadcast %cst_164 : f32 to vector<8x8xf32>
    %453 = arith.cmpf ogt, %451, %452 : vector<8x8xf32>
    %cst_165 = arith.constant 2.000000e-01 : f32
    %454 = vector.broadcast %cst_165 : f32 to vector<8x8xf32>
    %455 = arith.mulf %454, %451 : vector<8x8xf32>
    %456 = arith.select %453, %451, %455 : vector<8x8xi1>, vector<8x8xf32>
    %cst_166 = arith.constant -9.000000e+15 : f32
    %457 = vector.broadcast %cst_166 : f32 to vector<8x8xf32>
    %458 = arith.select %378, %456, %457 : vector<8x8xi1>, vector<8x8xf32>
    %cst_167 = arith.constant dense<0xFF800000> : vector<8xf32>
    %459 = vector.multi_reduction <maximumf>, %458, %cst_167 [1] : vector<8x8xf32> to vector<8xf32>
    %460 = vector.shape_cast %459 : vector<8xf32> to vector<8x1xf32>
    %461 = vector.broadcast %460 : vector<8x1xf32> to vector<8x8xf32>
    %462 = arith.subf %458, %461 : vector<8x8xf32>
    %463 = math.exp %462 : vector<8x8xf32>
    %cst_168 = arith.constant dense<0.000000e+00> : vector<8xf32>
    %464 = vector.multi_reduction <add>, %463, %cst_168 [1] : vector<8x8xf32> to vector<8xf32>
    %465 = vector.shape_cast %464 : vector<8xf32> to vector<8x1xf32>
    %466 = tpu.reciprocal %465 {approx = true} : vector<8x1xf32> -> vector<8x1xf32>
    %467 = vector.broadcast %466 : vector<8x1xf32> to vector<8x8xf32>
    %468 = arith.mulf %463, %467 : vector<8x8xf32>
    %cst_169 = arith.constant dense<0.000000e+00> : vector<8x16xf32>
    %469 = tpu.matmul %468, %443, %cst_169 {dimension_numbers = #tpu.dot_dimension_numbers<[1], [0], [0], [1], [0, 0, 1, 1], [], []>} : vector<8x8xf32>, vector<8x16xf32>, vector<8x16xf32> -> vector<8x16xf32>
    %cst_170 = arith.constant 0.000000e+00 : f32
    %470 = vector.broadcast %cst_170 : f32 to vector<8x16xf32>
    %471 = arith.cmpf ogt, %469, %470 : vector<8x16xf32>
    %472 = math.exp %469 : vector<8x16xf32>
    %cst_171 = arith.constant 1.000000e+00 : f32
    %473 = vector.broadcast %cst_171 : f32 to vector<8x16xf32>
    %474 = arith.subf %472, %473 : vector<8x16xf32>
    %475 = arith.select %471, %469, %474 : vector<8x16xi1>, vector<8x16xf32>
    %476 = tpu.concatenate %442, %475 in 1 : vector<8x16xf32>, vector<8x16xf32> -> vector<8x32xf32>
    %cst_172 = arith.constant dense<0.000000e+00> : vector<8x32xf32>
    %477 = tpu.matmul %476, %17, %cst_172 {dimension_numbers = #tpu.dot_dimension_numbers<[1], [0], [0], [1], [0, 0, 1, 1], [], []>} : vector<8x32xf32>, vector<32x32xf32>, vector<8x32xf32> -> vector<8x32xf32>
    %478 = vector.broadcast %18 : vector<1x32xf32> to vector<8x32xf32>
    %479 = arith.mulf %477, %478 : vector<8x32xf32>
    %cst_173 = arith.constant dense<0.000000e+00> : vector<8xf32>
    %480 = vector.multi_reduction <add>, %479, %cst_173 [1] : vector<8x32xf32> to vector<8xf32>
    %481 = vector.shape_cast %480 : vector<8xf32> to vector<8x1xf32>
    %cst_174 = arith.constant dense<0.000000e+00> : vector<1x8xf32>
    %482 = tpu.matmul %19, %477, %cst_174 {dimension_numbers = #tpu.dot_dimension_numbers<[1], [1], [0], [0], [0, 0, 1, 0], [], []>} : vector<1x32xf32>, vector<8x32xf32>, vector<1x8xf32> -> vector<1x8xf32>
    %483 = vector.broadcast %481 : vector<8x1xf32> to vector<8x8xf32>
    %484 = vector.broadcast %482 : vector<1x8xf32> to vector<8x8xf32>
    %485 = arith.addf %483, %484 : vector<8x8xf32>
    %cst_175 = arith.constant 0.000000e+00 : f32
    %486 = vector.broadcast %cst_175 : f32 to vector<8x8xf32>
    %487 = arith.cmpf ogt, %485, %486 : vector<8x8xf32>
    %cst_176 = arith.constant 2.000000e-01 : f32
    %488 = vector.broadcast %cst_176 : f32 to vector<8x8xf32>
    %489 = arith.mulf %488, %485 : vector<8x8xf32>
    %490 = arith.select %487, %485, %489 : vector<8x8xi1>, vector<8x8xf32>
    %cst_177 = arith.constant -9.000000e+15 : f32
    %491 = vector.broadcast %cst_177 : f32 to vector<8x8xf32>
    %492 = arith.select %378, %490, %491 : vector<8x8xi1>, vector<8x8xf32>
    %cst_178 = arith.constant dense<0xFF800000> : vector<8xf32>
    %493 = vector.multi_reduction <maximumf>, %492, %cst_178 [1] : vector<8x8xf32> to vector<8xf32>
    %494 = vector.shape_cast %493 : vector<8xf32> to vector<8x1xf32>
    %495 = vector.broadcast %494 : vector<8x1xf32> to vector<8x8xf32>
    %496 = arith.subf %492, %495 : vector<8x8xf32>
    %497 = math.exp %496 : vector<8x8xf32>
    %cst_179 = arith.constant dense<0.000000e+00> : vector<8xf32>
    %498 = vector.multi_reduction <add>, %497, %cst_179 [1] : vector<8x8xf32> to vector<8xf32>
    %499 = vector.shape_cast %498 : vector<8xf32> to vector<8x1xf32>
    %500 = tpu.reciprocal %499 {approx = true} : vector<8x1xf32> -> vector<8x1xf32>
    %501 = vector.broadcast %500 : vector<8x1xf32> to vector<8x8xf32>
    %502 = arith.mulf %497, %501 : vector<8x8xf32>
    %cst_180 = arith.constant dense<0.000000e+00> : vector<8x32xf32>
    %503 = tpu.matmul %502, %477, %cst_180 {dimension_numbers = #tpu.dot_dimension_numbers<[1], [0], [0], [1], [0, 0, 1, 1], [], []>} : vector<8x8xf32>, vector<8x32xf32>, vector<8x32xf32> -> vector<8x32xf32>
    %cst_181 = arith.constant 0.000000e+00 : f32
    %504 = vector.broadcast %cst_181 : f32 to vector<8x32xf32>
    %505 = arith.cmpf ogt, %503, %504 : vector<8x32xf32>
    %506 = math.exp %503 : vector<8x32xf32>
    %cst_182 = arith.constant 1.000000e+00 : f32
    %507 = vector.broadcast %cst_182 : f32 to vector<8x32xf32>
    %508 = arith.subf %506, %507 : vector<8x32xf32>
    %509 = arith.select %505, %503, %508 : vector<8x32xi1>, vector<8x32xf32>
    %510 = tpu.concatenate %509, %406 in 1 : vector<8x32xf32>, vector<8x32xf32> -> vector<8x64xf32>
    %cst_183 = arith.constant dense<0.000000e+00> : vector<8x32xf32>
    %511 = tpu.matmul %510, %20, %cst_183 {dimension_numbers = #tpu.dot_dimension_numbers<[1], [0], [0], [1], [0, 0, 1, 1], [], []>} : vector<8x64xf32>, vector<64x32xf32>, vector<8x32xf32> -> vector<8x32xf32>
    %512 = arith.addf %511, %4 : vector<8x32xf32>
    %cst_184 = arith.constant dense<0.000000e+00> : vector<8x4xf32>
    %513 = tpu.matmul %512, %21, %cst_184 {dimension_numbers = #tpu.dot_dimension_numbers<[1], [0], [0], [1], [0, 0, 1, 1], [], []>} : vector<8x32xf32>, vector<32x4xf32>, vector<8x4xf32> -> vector<8x4xf32>
    %514 = arith.addf %513, %7 : vector<8x4xf32>
    %cst_185 = arith.constant dense<0xFF800000> : vector<8xf32>
    %515 = vector.multi_reduction <maximumf>, %514, %cst_185 [1] : vector<8x4xf32> to vector<8xf32>
    %516 = vector.shape_cast %515 : vector<8xf32> to vector<8x1xf32>
    %517 = vector.broadcast %516 : vector<8x1xf32> to vector<8x4xf32>
    %518 = arith.subf %514, %517 : vector<8x4xf32>
    %519 = math.exp %518 : vector<8x4xf32>
    %cst_186 = arith.constant dense<0.000000e+00> : vector<8xf32>
    %520 = vector.multi_reduction <add>, %519, %cst_186 [1] : vector<8x4xf32> to vector<8xf32>
    %521 = vector.shape_cast %520 : vector<8xf32> to vector<8x1xf32>
    %522 = math.log %521 : vector<8x1xf32>
    %523 = vector.broadcast %516 : vector<8x1xf32> to vector<8x4xf32>
    %524 = arith.subf %514, %523 : vector<8x4xf32>
    %525 = vector.broadcast %522 : vector<8x1xf32> to vector<8x4xf32>
    %526 = arith.subf %524, %525 : vector<8x4xf32>
    %527 = arith.mulf %374, %526 : vector<8x4xf32>
    %cst_187 = arith.constant dense<0.000000e+00> : vector<8xf32>
    %528 = vector.multi_reduction <add>, %527, %cst_187 [1] : vector<8x4xf32> to vector<8xf32>
    %529 = vector.shape_cast %528 : vector<8xf32> to vector<8x1xf32>
    %cst_188 = arith.constant dense<0.000000e+00> : vector<1xf32>
    %530 = vector.multi_reduction <add>, %529, %cst_188 [0] : vector<8x1xf32> to vector<1xf32>
    %531 = vector.shape_cast %530 : vector<1xf32> to vector<1x1xf32>
    %cst_189 = arith.constant 5.000000e-01 : f32
    %532 = vector.broadcast %cst_189 : f32 to vector<1x1xf32>
    %533 = arith.mulf %531, %532 : vector<1x1xf32>
    %534 = arith.subf %371, %533 : vector<1x1xf32>
    %535 = vector.extract_strided_slice %43 {offsets = [24, 0], sizes = [8, 96], strides = [1, 1]} : vector<56x96xf32> to vector<8x96xf32>
    %c3 = arith.constant 3 : index
    %c0_190 = arith.constant 0 : index
    %c0_191 = arith.constant 0 : index
    %536 = vector.load %arg2[%c3, %c0_190, %c0_191] : memref<7x8x4xf32, #tpu.memory_space<vmem>>, vector<1x8x4xf32>
    %537 = vector.shape_cast %536 : vector<1x8x4xf32> to vector<8x4xf32>
    %c3_192 = arith.constant 3 : index
    %c0_193 = arith.constant 0 : index
    %c0_194 = arith.constant 0 : index
    %538 = vector.load %arg3[%c3_192, %c0_193, %c0_194] : memref<7x8x8xf32, #tpu.memory_space<vmem>>, vector<1x8x8xf32>
    %539 = vector.shape_cast %538 : vector<1x8x8xf32> to vector<8x8xf32>
    %cst_195 = arith.constant 0.000000e+00 : f32
    %540 = vector.broadcast %cst_195 : f32 to vector<8x8xf32>
    %541 = arith.cmpf ogt, %539, %540 : vector<8x8xf32>
    %cst_196 = arith.constant dense<0.000000e+00> : vector<8x96xf32>
    %542 = tpu.matmul %512, %9, %cst_196 {dimension_numbers = #tpu.dot_dimension_numbers<[1], [0], [0], [1], [0, 0, 1, 1], [], []>} : vector<8x32xf32>, vector<32x96xf32>, vector<8x96xf32> -> vector<8x96xf32>
    %543 = arith.addf %542, %13 : vector<8x96xf32>
    %544 = vector.extract_strided_slice %535 {offsets = [0, 0], sizes = [8, 32], strides = [1, 1]} : vector<8x96xf32> to vector<8x32xf32>
    %545 = vector.extract_strided_slice %543 {offsets = [0, 0], sizes = [8, 32], strides = [1, 1]} : vector<8x96xf32> to vector<8x32xf32>
    %546 = arith.addf %544, %545 : vector<8x32xf32>
    %547 = arith.negf %546 : vector<8x32xf32>
    %548 = math.exp %547 : vector<8x32xf32>
    %cst_197 = arith.constant 1.000000e+00 : f32
    %549 = vector.broadcast %cst_197 : f32 to vector<8x32xf32>
    %550 = arith.addf %549, %548 : vector<8x32xf32>
    %551 = arith.divf %549, %550 : vector<8x32xf32>
    %552 = vector.extract_strided_slice %535 {offsets = [0, 32], sizes = [8, 32], strides = [1, 1]} : vector<8x96xf32> to vector<8x32xf32>
    %553 = vector.extract_strided_slice %543 {offsets = [0, 32], sizes = [8, 32], strides = [1, 1]} : vector<8x96xf32> to vector<8x32xf32>
    %554 = arith.addf %552, %553 : vector<8x32xf32>
    %555 = arith.negf %554 : vector<8x32xf32>
    %556 = math.exp %555 : vector<8x32xf32>
    %cst_198 = arith.constant 1.000000e+00 : f32
    %557 = vector.broadcast %cst_198 : f32 to vector<8x32xf32>
    %558 = arith.addf %557, %556 : vector<8x32xf32>
    %559 = arith.divf %557, %558 : vector<8x32xf32>
    %560 = vector.extract_strided_slice %535 {offsets = [0, 64], sizes = [8, 32], strides = [1, 1]} : vector<8x96xf32> to vector<8x32xf32>
    %561 = vector.extract_strided_slice %543 {offsets = [0, 64], sizes = [8, 32], strides = [1, 1]} : vector<8x96xf32> to vector<8x32xf32>
    %562 = arith.mulf %551, %561 : vector<8x32xf32>
    %563 = arith.addf %560, %562 : vector<8x32xf32>
    %564 = math.tanh %563 : vector<8x32xf32>
    %cst_199 = arith.constant 1.000000e+00 : f32
    %565 = vector.broadcast %cst_199 : f32 to vector<8x32xf32>
    %566 = arith.subf %565, %559 : vector<8x32xf32>
    %567 = arith.mulf %566, %564 : vector<8x32xf32>
    %568 = arith.mulf %559, %512 : vector<8x32xf32>
    %569 = arith.addf %567, %568 : vector<8x32xf32>
    %cst_200 = arith.constant dense<0.000000e+00> : vector<8x32xf32>
    %570 = tpu.matmul %569, %14, %cst_200 {dimension_numbers = #tpu.dot_dimension_numbers<[1], [0], [0], [1], [0, 0, 1, 1], [], []>} : vector<8x32xf32>, vector<32x32xf32>, vector<8x32xf32> -> vector<8x32xf32>
    %571 = vector.broadcast %15 : vector<1x32xf32> to vector<8x32xf32>
    %572 = arith.mulf %570, %571 : vector<8x32xf32>
    %573 = vector.extract_strided_slice %570 {offsets = [0, 0], sizes = [8, 16], strides = [1, 1]} : vector<8x32xf32> to vector<8x16xf32>
    %574 = vector.extract_strided_slice %572 {offsets = [0, 0], sizes = [8, 16], strides = [1, 1]} : vector<8x32xf32> to vector<8x16xf32>
    %cst_201 = arith.constant dense<0.000000e+00> : vector<8xf32>
    %575 = vector.multi_reduction <add>, %574, %cst_201 [1] : vector<8x16xf32> to vector<8xf32>
    %576 = vector.shape_cast %575 : vector<8xf32> to vector<8x1xf32>
    %577 = vector.extract_strided_slice %16 {offsets = [0, 0], sizes = [1, 16], strides = [1, 1]} : vector<1x32xf32> to vector<1x16xf32>
    %cst_202 = arith.constant dense<0.000000e+00> : vector<1x8xf32>
    %578 = tpu.matmul %577, %573, %cst_202 {dimension_numbers = #tpu.dot_dimension_numbers<[1], [1], [0], [0], [0, 0, 1, 0], [], []>} : vector<1x16xf32>, vector<8x16xf32>, vector<1x8xf32> -> vector<1x8xf32>
    %579 = vector.broadcast %576 : vector<8x1xf32> to vector<8x8xf32>
    %580 = vector.broadcast %578 : vector<1x8xf32> to vector<8x8xf32>
    %581 = arith.addf %579, %580 : vector<8x8xf32>
    %cst_203 = arith.constant 0.000000e+00 : f32
    %582 = vector.broadcast %cst_203 : f32 to vector<8x8xf32>
    %583 = arith.cmpf ogt, %581, %582 : vector<8x8xf32>
    %cst_204 = arith.constant 2.000000e-01 : f32
    %584 = vector.broadcast %cst_204 : f32 to vector<8x8xf32>
    %585 = arith.mulf %584, %581 : vector<8x8xf32>
    %586 = arith.select %583, %581, %585 : vector<8x8xi1>, vector<8x8xf32>
    %cst_205 = arith.constant -9.000000e+15 : f32
    %587 = vector.broadcast %cst_205 : f32 to vector<8x8xf32>
    %588 = arith.select %541, %586, %587 : vector<8x8xi1>, vector<8x8xf32>
    %cst_206 = arith.constant dense<0xFF800000> : vector<8xf32>
    %589 = vector.multi_reduction <maximumf>, %588, %cst_206 [1] : vector<8x8xf32> to vector<8xf32>
    %590 = vector.shape_cast %589 : vector<8xf32> to vector<8x1xf32>
    %591 = vector.broadcast %590 : vector<8x1xf32> to vector<8x8xf32>
    %592 = arith.subf %588, %591 : vector<8x8xf32>
    %593 = math.exp %592 : vector<8x8xf32>
    %cst_207 = arith.constant dense<0.000000e+00> : vector<8xf32>
    %594 = vector.multi_reduction <add>, %593, %cst_207 [1] : vector<8x8xf32> to vector<8xf32>
    %595 = vector.shape_cast %594 : vector<8xf32> to vector<8x1xf32>
    %596 = tpu.reciprocal %595 {approx = true} : vector<8x1xf32> -> vector<8x1xf32>
    %597 = vector.broadcast %596 : vector<8x1xf32> to vector<8x8xf32>
    %598 = arith.mulf %593, %597 : vector<8x8xf32>
    %cst_208 = arith.constant dense<0.000000e+00> : vector<8x16xf32>
    %599 = tpu.matmul %598, %573, %cst_208 {dimension_numbers = #tpu.dot_dimension_numbers<[1], [0], [0], [1], [0, 0, 1, 1], [], []>} : vector<8x8xf32>, vector<8x16xf32>, vector<8x16xf32> -> vector<8x16xf32>
    %cst_209 = arith.constant 0.000000e+00 : f32
    %600 = vector.broadcast %cst_209 : f32 to vector<8x16xf32>
    %601 = arith.cmpf ogt, %599, %600 : vector<8x16xf32>
    %602 = math.exp %599 : vector<8x16xf32>
    %cst_210 = arith.constant 1.000000e+00 : f32
    %603 = vector.broadcast %cst_210 : f32 to vector<8x16xf32>
    %604 = arith.subf %602, %603 : vector<8x16xf32>
    %605 = arith.select %601, %599, %604 : vector<8x16xi1>, vector<8x16xf32>
    %606 = vector.extract_strided_slice %570 {offsets = [0, 16], sizes = [8, 16], strides = [1, 1]} : vector<8x32xf32> to vector<8x16xf32>
    %607 = vector.extract_strided_slice %572 {offsets = [0, 16], sizes = [8, 16], strides = [1, 1]} : vector<8x32xf32> to vector<8x16xf32>
    %cst_211 = arith.constant dense<0.000000e+00> : vector<8xf32>
    %608 = vector.multi_reduction <add>, %607, %cst_211 [1] : vector<8x16xf32> to vector<8xf32>
    %609 = vector.shape_cast %608 : vector<8xf32> to vector<8x1xf32>
    %610 = vector.extract_strided_slice %16 {offsets = [0, 16], sizes = [1, 16], strides = [1, 1]} : vector<1x32xf32> to vector<1x16xf32>
    %cst_212 = arith.constant dense<0.000000e+00> : vector<1x8xf32>
    %611 = tpu.matmul %610, %606, %cst_212 {dimension_numbers = #tpu.dot_dimension_numbers<[1], [1], [0], [0], [0, 0, 1, 0], [], []>} : vector<1x16xf32>, vector<8x16xf32>, vector<1x8xf32> -> vector<1x8xf32>
    %612 = vector.broadcast %609 : vector<8x1xf32> to vector<8x8xf32>
    %613 = vector.broadcast %611 : vector<1x8xf32> to vector<8x8xf32>
    %614 = arith.addf %612, %613 : vector<8x8xf32>
    %cst_213 = arith.constant 0.000000e+00 : f32
    %615 = vector.broadcast %cst_213 : f32 to vector<8x8xf32>
    %616 = arith.cmpf ogt, %614, %615 : vector<8x8xf32>
    %cst_214 = arith.constant 2.000000e-01 : f32
    %617 = vector.broadcast %cst_214 : f32 to vector<8x8xf32>
    %618 = arith.mulf %617, %614 : vector<8x8xf32>
    %619 = arith.select %616, %614, %618 : vector<8x8xi1>, vector<8x8xf32>
    %cst_215 = arith.constant -9.000000e+15 : f32
    %620 = vector.broadcast %cst_215 : f32 to vector<8x8xf32>
    %621 = arith.select %541, %619, %620 : vector<8x8xi1>, vector<8x8xf32>
    %cst_216 = arith.constant dense<0xFF800000> : vector<8xf32>
    %622 = vector.multi_reduction <maximumf>, %621, %cst_216 [1] : vector<8x8xf32> to vector<8xf32>
    %623 = vector.shape_cast %622 : vector<8xf32> to vector<8x1xf32>
    %624 = vector.broadcast %623 : vector<8x1xf32> to vector<8x8xf32>
    %625 = arith.subf %621, %624 : vector<8x8xf32>
    %626 = math.exp %625 : vector<8x8xf32>
    %cst_217 = arith.constant dense<0.000000e+00> : vector<8xf32>
    %627 = vector.multi_reduction <add>, %626, %cst_217 [1] : vector<8x8xf32> to vector<8xf32>
    %628 = vector.shape_cast %627 : vector<8xf32> to vector<8x1xf32>
    %629 = tpu.reciprocal %628 {approx = true} : vector<8x1xf32> -> vector<8x1xf32>
    %630 = vector.broadcast %629 : vector<8x1xf32> to vector<8x8xf32>
    %631 = arith.mulf %626, %630 : vector<8x8xf32>
    %cst_218 = arith.constant dense<0.000000e+00> : vector<8x16xf32>
    %632 = tpu.matmul %631, %606, %cst_218 {dimension_numbers = #tpu.dot_dimension_numbers<[1], [0], [0], [1], [0, 0, 1, 1], [], []>} : vector<8x8xf32>, vector<8x16xf32>, vector<8x16xf32> -> vector<8x16xf32>
    %cst_219 = arith.constant 0.000000e+00 : f32
    %633 = vector.broadcast %cst_219 : f32 to vector<8x16xf32>
    %634 = arith.cmpf ogt, %632, %633 : vector<8x16xf32>
    %635 = math.exp %632 : vector<8x16xf32>
    %cst_220 = arith.constant 1.000000e+00 : f32
    %636 = vector.broadcast %cst_220 : f32 to vector<8x16xf32>
    %637 = arith.subf %635, %636 : vector<8x16xf32>
    %638 = arith.select %634, %632, %637 : vector<8x16xi1>, vector<8x16xf32>
    %639 = tpu.concatenate %605, %638 in 1 : vector<8x16xf32>, vector<8x16xf32> -> vector<8x32xf32>
    %cst_221 = arith.constant dense<0.000000e+00> : vector<8x32xf32>
    %640 = tpu.matmul %639, %17, %cst_221 {dimension_numbers = #tpu.dot_dimension_numbers<[1], [0], [0], [1], [0, 0, 1, 1], [], []>} : vector<8x32xf32>, vector<32x32xf32>, vector<8x32xf32> -> vector<8x32xf32>
    %641 = vector.broadcast %18 : vector<1x32xf32> to vector<8x32xf32>
    %642 = arith.mulf %640, %641 : vector<8x32xf32>
    %cst_222 = arith.constant dense<0.000000e+00> : vector<8xf32>
    %643 = vector.multi_reduction <add>, %642, %cst_222 [1] : vector<8x32xf32> to vector<8xf32>
    %644 = vector.shape_cast %643 : vector<8xf32> to vector<8x1xf32>
    %cst_223 = arith.constant dense<0.000000e+00> : vector<1x8xf32>
    %645 = tpu.matmul %19, %640, %cst_223 {dimension_numbers = #tpu.dot_dimension_numbers<[1], [1], [0], [0], [0, 0, 1, 0], [], []>} : vector<1x32xf32>, vector<8x32xf32>, vector<1x8xf32> -> vector<1x8xf32>
    %646 = vector.broadcast %644 : vector<8x1xf32> to vector<8x8xf32>
    %647 = vector.broadcast %645 : vector<1x8xf32> to vector<8x8xf32>
    %648 = arith.addf %646, %647 : vector<8x8xf32>
    %cst_224 = arith.constant 0.000000e+00 : f32
    %649 = vector.broadcast %cst_224 : f32 to vector<8x8xf32>
    %650 = arith.cmpf ogt, %648, %649 : vector<8x8xf32>
    %cst_225 = arith.constant 2.000000e-01 : f32
    %651 = vector.broadcast %cst_225 : f32 to vector<8x8xf32>
    %652 = arith.mulf %651, %648 : vector<8x8xf32>
    %653 = arith.select %650, %648, %652 : vector<8x8xi1>, vector<8x8xf32>
    %cst_226 = arith.constant -9.000000e+15 : f32
    %654 = vector.broadcast %cst_226 : f32 to vector<8x8xf32>
    %655 = arith.select %541, %653, %654 : vector<8x8xi1>, vector<8x8xf32>
    %cst_227 = arith.constant dense<0xFF800000> : vector<8xf32>
    %656 = vector.multi_reduction <maximumf>, %655, %cst_227 [1] : vector<8x8xf32> to vector<8xf32>
    %657 = vector.shape_cast %656 : vector<8xf32> to vector<8x1xf32>
    %658 = vector.broadcast %657 : vector<8x1xf32> to vector<8x8xf32>
    %659 = arith.subf %655, %658 : vector<8x8xf32>
    %660 = math.exp %659 : vector<8x8xf32>
    %cst_228 = arith.constant dense<0.000000e+00> : vector<8xf32>
    %661 = vector.multi_reduction <add>, %660, %cst_228 [1] : vector<8x8xf32> to vector<8xf32>
    %662 = vector.shape_cast %661 : vector<8xf32> to vector<8x1xf32>
    %663 = tpu.reciprocal %662 {approx = true} : vector<8x1xf32> -> vector<8x1xf32>
    %664 = vector.broadcast %663 : vector<8x1xf32> to vector<8x8xf32>
    %665 = arith.mulf %660, %664 : vector<8x8xf32>
    %cst_229 = arith.constant dense<0.000000e+00> : vector<8x32xf32>
    %666 = tpu.matmul %665, %640, %cst_229 {dimension_numbers = #tpu.dot_dimension_numbers<[1], [0], [0], [1], [0, 0, 1, 1], [], []>} : vector<8x8xf32>, vector<8x32xf32>, vector<8x32xf32> -> vector<8x32xf32>
    %cst_230 = arith.constant 0.000000e+00 : f32
    %667 = vector.broadcast %cst_230 : f32 to vector<8x32xf32>
    %668 = arith.cmpf ogt, %666, %667 : vector<8x32xf32>
    %669 = math.exp %666 : vector<8x32xf32>
    %cst_231 = arith.constant 1.000000e+00 : f32
    %670 = vector.broadcast %cst_231 : f32 to vector<8x32xf32>
    %671 = arith.subf %669, %670 : vector<8x32xf32>
    %672 = arith.select %668, %666, %671 : vector<8x32xi1>, vector<8x32xf32>
    %673 = tpu.concatenate %672, %569 in 1 : vector<8x32xf32>, vector<8x32xf32> -> vector<8x64xf32>
    %cst_232 = arith.constant dense<0.000000e+00> : vector<8x32xf32>
    %674 = tpu.matmul %673, %20, %cst_232 {dimension_numbers = #tpu.dot_dimension_numbers<[1], [0], [0], [1], [0, 0, 1, 1], [], []>} : vector<8x64xf32>, vector<64x32xf32>, vector<8x32xf32> -> vector<8x32xf32>
    %675 = arith.addf %674, %4 : vector<8x32xf32>
    %cst_233 = arith.constant dense<0.000000e+00> : vector<8x4xf32>
    %676 = tpu.matmul %675, %21, %cst_233 {dimension_numbers = #tpu.dot_dimension_numbers<[1], [0], [0], [1], [0, 0, 1, 1], [], []>} : vector<8x32xf32>, vector<32x4xf32>, vector<8x4xf32> -> vector<8x4xf32>
    %677 = arith.addf %676, %7 : vector<8x4xf32>
    %cst_234 = arith.constant dense<0xFF800000> : vector<8xf32>
    %678 = vector.multi_reduction <maximumf>, %677, %cst_234 [1] : vector<8x4xf32> to vector<8xf32>
    %679 = vector.shape_cast %678 : vector<8xf32> to vector<8x1xf32>
    %680 = vector.broadcast %679 : vector<8x1xf32> to vector<8x4xf32>
    %681 = arith.subf %677, %680 : vector<8x4xf32>
    %682 = math.exp %681 : vector<8x4xf32>
    %cst_235 = arith.constant dense<0.000000e+00> : vector<8xf32>
    %683 = vector.multi_reduction <add>, %682, %cst_235 [1] : vector<8x4xf32> to vector<8xf32>
    %684 = vector.shape_cast %683 : vector<8xf32> to vector<8x1xf32>
    %685 = math.log %684 : vector<8x1xf32>
    %686 = vector.broadcast %679 : vector<8x1xf32> to vector<8x4xf32>
    %687 = arith.subf %677, %686 : vector<8x4xf32>
    %688 = vector.broadcast %685 : vector<8x1xf32> to vector<8x4xf32>
    %689 = arith.subf %687, %688 : vector<8x4xf32>
    %690 = arith.mulf %537, %689 : vector<8x4xf32>
    %cst_236 = arith.constant dense<0.000000e+00> : vector<8xf32>
    %691 = vector.multi_reduction <add>, %690, %cst_236 [1] : vector<8x4xf32> to vector<8xf32>
    %692 = vector.shape_cast %691 : vector<8xf32> to vector<8x1xf32>
    %cst_237 = arith.constant dense<0.000000e+00> : vector<1xf32>
    %693 = vector.multi_reduction <add>, %692, %cst_237 [0] : vector<8x1xf32> to vector<1xf32>
    %694 = vector.shape_cast %693 : vector<1xf32> to vector<1x1xf32>
    %cst_238 = arith.constant 5.000000e-01 : f32
    %695 = vector.broadcast %cst_238 : f32 to vector<1x1xf32>
    %696 = arith.mulf %694, %695 : vector<1x1xf32>
    %697 = arith.subf %534, %696 : vector<1x1xf32>
    %698 = vector.extract_strided_slice %43 {offsets = [32, 0], sizes = [8, 96], strides = [1, 1]} : vector<56x96xf32> to vector<8x96xf32>
    %c4 = arith.constant 4 : index
    %c0_239 = arith.constant 0 : index
    %c0_240 = arith.constant 0 : index
    %699 = vector.load %arg2[%c4, %c0_239, %c0_240] : memref<7x8x4xf32, #tpu.memory_space<vmem>>, vector<1x8x4xf32>
    %700 = vector.shape_cast %699 : vector<1x8x4xf32> to vector<8x4xf32>
    %c4_241 = arith.constant 4 : index
    %c0_242 = arith.constant 0 : index
    %c0_243 = arith.constant 0 : index
    %701 = vector.load %arg3[%c4_241, %c0_242, %c0_243] : memref<7x8x8xf32, #tpu.memory_space<vmem>>, vector<1x8x8xf32>
    %702 = vector.shape_cast %701 : vector<1x8x8xf32> to vector<8x8xf32>
    %cst_244 = arith.constant 0.000000e+00 : f32
    %703 = vector.broadcast %cst_244 : f32 to vector<8x8xf32>
    %704 = arith.cmpf ogt, %702, %703 : vector<8x8xf32>
    %cst_245 = arith.constant dense<0.000000e+00> : vector<8x96xf32>
    %705 = tpu.matmul %675, %9, %cst_245 {dimension_numbers = #tpu.dot_dimension_numbers<[1], [0], [0], [1], [0, 0, 1, 1], [], []>} : vector<8x32xf32>, vector<32x96xf32>, vector<8x96xf32> -> vector<8x96xf32>
    %706 = arith.addf %705, %13 : vector<8x96xf32>
    %707 = vector.extract_strided_slice %698 {offsets = [0, 0], sizes = [8, 32], strides = [1, 1]} : vector<8x96xf32> to vector<8x32xf32>
    %708 = vector.extract_strided_slice %706 {offsets = [0, 0], sizes = [8, 32], strides = [1, 1]} : vector<8x96xf32> to vector<8x32xf32>
    %709 = arith.addf %707, %708 : vector<8x32xf32>
    %710 = arith.negf %709 : vector<8x32xf32>
    %711 = math.exp %710 : vector<8x32xf32>
    %cst_246 = arith.constant 1.000000e+00 : f32
    %712 = vector.broadcast %cst_246 : f32 to vector<8x32xf32>
    %713 = arith.addf %712, %711 : vector<8x32xf32>
    %714 = arith.divf %712, %713 : vector<8x32xf32>
    %715 = vector.extract_strided_slice %698 {offsets = [0, 32], sizes = [8, 32], strides = [1, 1]} : vector<8x96xf32> to vector<8x32xf32>
    %716 = vector.extract_strided_slice %706 {offsets = [0, 32], sizes = [8, 32], strides = [1, 1]} : vector<8x96xf32> to vector<8x32xf32>
    %717 = arith.addf %715, %716 : vector<8x32xf32>
    %718 = arith.negf %717 : vector<8x32xf32>
    %719 = math.exp %718 : vector<8x32xf32>
    %cst_247 = arith.constant 1.000000e+00 : f32
    %720 = vector.broadcast %cst_247 : f32 to vector<8x32xf32>
    %721 = arith.addf %720, %719 : vector<8x32xf32>
    %722 = arith.divf %720, %721 : vector<8x32xf32>
    %723 = vector.extract_strided_slice %698 {offsets = [0, 64], sizes = [8, 32], strides = [1, 1]} : vector<8x96xf32> to vector<8x32xf32>
    %724 = vector.extract_strided_slice %706 {offsets = [0, 64], sizes = [8, 32], strides = [1, 1]} : vector<8x96xf32> to vector<8x32xf32>
    %725 = arith.mulf %714, %724 : vector<8x32xf32>
    %726 = arith.addf %723, %725 : vector<8x32xf32>
    %727 = math.tanh %726 : vector<8x32xf32>
    %cst_248 = arith.constant 1.000000e+00 : f32
    %728 = vector.broadcast %cst_248 : f32 to vector<8x32xf32>
    %729 = arith.subf %728, %722 : vector<8x32xf32>
    %730 = arith.mulf %729, %727 : vector<8x32xf32>
    %731 = arith.mulf %722, %675 : vector<8x32xf32>
    %732 = arith.addf %730, %731 : vector<8x32xf32>
    %cst_249 = arith.constant dense<0.000000e+00> : vector<8x32xf32>
    %733 = tpu.matmul %732, %14, %cst_249 {dimension_numbers = #tpu.dot_dimension_numbers<[1], [0], [0], [1], [0, 0, 1, 1], [], []>} : vector<8x32xf32>, vector<32x32xf32>, vector<8x32xf32> -> vector<8x32xf32>
    %734 = vector.broadcast %15 : vector<1x32xf32> to vector<8x32xf32>
    %735 = arith.mulf %733, %734 : vector<8x32xf32>
    %736 = vector.extract_strided_slice %733 {offsets = [0, 0], sizes = [8, 16], strides = [1, 1]} : vector<8x32xf32> to vector<8x16xf32>
    %737 = vector.extract_strided_slice %735 {offsets = [0, 0], sizes = [8, 16], strides = [1, 1]} : vector<8x32xf32> to vector<8x16xf32>
    %cst_250 = arith.constant dense<0.000000e+00> : vector<8xf32>
    %738 = vector.multi_reduction <add>, %737, %cst_250 [1] : vector<8x16xf32> to vector<8xf32>
    %739 = vector.shape_cast %738 : vector<8xf32> to vector<8x1xf32>
    %740 = vector.extract_strided_slice %16 {offsets = [0, 0], sizes = [1, 16], strides = [1, 1]} : vector<1x32xf32> to vector<1x16xf32>
    %cst_251 = arith.constant dense<0.000000e+00> : vector<1x8xf32>
    %741 = tpu.matmul %740, %736, %cst_251 {dimension_numbers = #tpu.dot_dimension_numbers<[1], [1], [0], [0], [0, 0, 1, 0], [], []>} : vector<1x16xf32>, vector<8x16xf32>, vector<1x8xf32> -> vector<1x8xf32>
    %742 = vector.broadcast %739 : vector<8x1xf32> to vector<8x8xf32>
    %743 = vector.broadcast %741 : vector<1x8xf32> to vector<8x8xf32>
    %744 = arith.addf %742, %743 : vector<8x8xf32>
    %cst_252 = arith.constant 0.000000e+00 : f32
    %745 = vector.broadcast %cst_252 : f32 to vector<8x8xf32>
    %746 = arith.cmpf ogt, %744, %745 : vector<8x8xf32>
    %cst_253 = arith.constant 2.000000e-01 : f32
    %747 = vector.broadcast %cst_253 : f32 to vector<8x8xf32>
    %748 = arith.mulf %747, %744 : vector<8x8xf32>
    %749 = arith.select %746, %744, %748 : vector<8x8xi1>, vector<8x8xf32>
    %cst_254 = arith.constant -9.000000e+15 : f32
    %750 = vector.broadcast %cst_254 : f32 to vector<8x8xf32>
    %751 = arith.select %704, %749, %750 : vector<8x8xi1>, vector<8x8xf32>
    %cst_255 = arith.constant dense<0xFF800000> : vector<8xf32>
    %752 = vector.multi_reduction <maximumf>, %751, %cst_255 [1] : vector<8x8xf32> to vector<8xf32>
    %753 = vector.shape_cast %752 : vector<8xf32> to vector<8x1xf32>
    %754 = vector.broadcast %753 : vector<8x1xf32> to vector<8x8xf32>
    %755 = arith.subf %751, %754 : vector<8x8xf32>
    %756 = math.exp %755 : vector<8x8xf32>
    %cst_256 = arith.constant dense<0.000000e+00> : vector<8xf32>
    %757 = vector.multi_reduction <add>, %756, %cst_256 [1] : vector<8x8xf32> to vector<8xf32>
    %758 = vector.shape_cast %757 : vector<8xf32> to vector<8x1xf32>
    %759 = tpu.reciprocal %758 {approx = true} : vector<8x1xf32> -> vector<8x1xf32>
    %760 = vector.broadcast %759 : vector<8x1xf32> to vector<8x8xf32>
    %761 = arith.mulf %756, %760 : vector<8x8xf32>
    %cst_257 = arith.constant dense<0.000000e+00> : vector<8x16xf32>
    %762 = tpu.matmul %761, %736, %cst_257 {dimension_numbers = #tpu.dot_dimension_numbers<[1], [0], [0], [1], [0, 0, 1, 1], [], []>} : vector<8x8xf32>, vector<8x16xf32>, vector<8x16xf32> -> vector<8x16xf32>
    %cst_258 = arith.constant 0.000000e+00 : f32
    %763 = vector.broadcast %cst_258 : f32 to vector<8x16xf32>
    %764 = arith.cmpf ogt, %762, %763 : vector<8x16xf32>
    %765 = math.exp %762 : vector<8x16xf32>
    %cst_259 = arith.constant 1.000000e+00 : f32
    %766 = vector.broadcast %cst_259 : f32 to vector<8x16xf32>
    %767 = arith.subf %765, %766 : vector<8x16xf32>
    %768 = arith.select %764, %762, %767 : vector<8x16xi1>, vector<8x16xf32>
    %769 = vector.extract_strided_slice %733 {offsets = [0, 16], sizes = [8, 16], strides = [1, 1]} : vector<8x32xf32> to vector<8x16xf32>
    %770 = vector.extract_strided_slice %735 {offsets = [0, 16], sizes = [8, 16], strides = [1, 1]} : vector<8x32xf32> to vector<8x16xf32>
    %cst_260 = arith.constant dense<0.000000e+00> : vector<8xf32>
    %771 = vector.multi_reduction <add>, %770, %cst_260 [1] : vector<8x16xf32> to vector<8xf32>
    %772 = vector.shape_cast %771 : vector<8xf32> to vector<8x1xf32>
    %773 = vector.extract_strided_slice %16 {offsets = [0, 16], sizes = [1, 16], strides = [1, 1]} : vector<1x32xf32> to vector<1x16xf32>
    %cst_261 = arith.constant dense<0.000000e+00> : vector<1x8xf32>
    %774 = tpu.matmul %773, %769, %cst_261 {dimension_numbers = #tpu.dot_dimension_numbers<[1], [1], [0], [0], [0, 0, 1, 0], [], []>} : vector<1x16xf32>, vector<8x16xf32>, vector<1x8xf32> -> vector<1x8xf32>
    %775 = vector.broadcast %772 : vector<8x1xf32> to vector<8x8xf32>
    %776 = vector.broadcast %774 : vector<1x8xf32> to vector<8x8xf32>
    %777 = arith.addf %775, %776 : vector<8x8xf32>
    %cst_262 = arith.constant 0.000000e+00 : f32
    %778 = vector.broadcast %cst_262 : f32 to vector<8x8xf32>
    %779 = arith.cmpf ogt, %777, %778 : vector<8x8xf32>
    %cst_263 = arith.constant 2.000000e-01 : f32
    %780 = vector.broadcast %cst_263 : f32 to vector<8x8xf32>
    %781 = arith.mulf %780, %777 : vector<8x8xf32>
    %782 = arith.select %779, %777, %781 : vector<8x8xi1>, vector<8x8xf32>
    %cst_264 = arith.constant -9.000000e+15 : f32
    %783 = vector.broadcast %cst_264 : f32 to vector<8x8xf32>
    %784 = arith.select %704, %782, %783 : vector<8x8xi1>, vector<8x8xf32>
    %cst_265 = arith.constant dense<0xFF800000> : vector<8xf32>
    %785 = vector.multi_reduction <maximumf>, %784, %cst_265 [1] : vector<8x8xf32> to vector<8xf32>
    %786 = vector.shape_cast %785 : vector<8xf32> to vector<8x1xf32>
    %787 = vector.broadcast %786 : vector<8x1xf32> to vector<8x8xf32>
    %788 = arith.subf %784, %787 : vector<8x8xf32>
    %789 = math.exp %788 : vector<8x8xf32>
    %cst_266 = arith.constant dense<0.000000e+00> : vector<8xf32>
    %790 = vector.multi_reduction <add>, %789, %cst_266 [1] : vector<8x8xf32> to vector<8xf32>
    %791 = vector.shape_cast %790 : vector<8xf32> to vector<8x1xf32>
    %792 = tpu.reciprocal %791 {approx = true} : vector<8x1xf32> -> vector<8x1xf32>
    %793 = vector.broadcast %792 : vector<8x1xf32> to vector<8x8xf32>
    %794 = arith.mulf %789, %793 : vector<8x8xf32>
    %cst_267 = arith.constant dense<0.000000e+00> : vector<8x16xf32>
    %795 = tpu.matmul %794, %769, %cst_267 {dimension_numbers = #tpu.dot_dimension_numbers<[1], [0], [0], [1], [0, 0, 1, 1], [], []>} : vector<8x8xf32>, vector<8x16xf32>, vector<8x16xf32> -> vector<8x16xf32>
    %cst_268 = arith.constant 0.000000e+00 : f32
    %796 = vector.broadcast %cst_268 : f32 to vector<8x16xf32>
    %797 = arith.cmpf ogt, %795, %796 : vector<8x16xf32>
    %798 = math.exp %795 : vector<8x16xf32>
    %cst_269 = arith.constant 1.000000e+00 : f32
    %799 = vector.broadcast %cst_269 : f32 to vector<8x16xf32>
    %800 = arith.subf %798, %799 : vector<8x16xf32>
    %801 = arith.select %797, %795, %800 : vector<8x16xi1>, vector<8x16xf32>
    %802 = tpu.concatenate %768, %801 in 1 : vector<8x16xf32>, vector<8x16xf32> -> vector<8x32xf32>
    %cst_270 = arith.constant dense<0.000000e+00> : vector<8x32xf32>
    %803 = tpu.matmul %802, %17, %cst_270 {dimension_numbers = #tpu.dot_dimension_numbers<[1], [0], [0], [1], [0, 0, 1, 1], [], []>} : vector<8x32xf32>, vector<32x32xf32>, vector<8x32xf32> -> vector<8x32xf32>
    %804 = vector.broadcast %18 : vector<1x32xf32> to vector<8x32xf32>
    %805 = arith.mulf %803, %804 : vector<8x32xf32>
    %cst_271 = arith.constant dense<0.000000e+00> : vector<8xf32>
    %806 = vector.multi_reduction <add>, %805, %cst_271 [1] : vector<8x32xf32> to vector<8xf32>
    %807 = vector.shape_cast %806 : vector<8xf32> to vector<8x1xf32>
    %cst_272 = arith.constant dense<0.000000e+00> : vector<1x8xf32>
    %808 = tpu.matmul %19, %803, %cst_272 {dimension_numbers = #tpu.dot_dimension_numbers<[1], [1], [0], [0], [0, 0, 1, 0], [], []>} : vector<1x32xf32>, vector<8x32xf32>, vector<1x8xf32> -> vector<1x8xf32>
    %809 = vector.broadcast %807 : vector<8x1xf32> to vector<8x8xf32>
    %810 = vector.broadcast %808 : vector<1x8xf32> to vector<8x8xf32>
    %811 = arith.addf %809, %810 : vector<8x8xf32>
    %cst_273 = arith.constant 0.000000e+00 : f32
    %812 = vector.broadcast %cst_273 : f32 to vector<8x8xf32>
    %813 = arith.cmpf ogt, %811, %812 : vector<8x8xf32>
    %cst_274 = arith.constant 2.000000e-01 : f32
    %814 = vector.broadcast %cst_274 : f32 to vector<8x8xf32>
    %815 = arith.mulf %814, %811 : vector<8x8xf32>
    %816 = arith.select %813, %811, %815 : vector<8x8xi1>, vector<8x8xf32>
    %cst_275 = arith.constant -9.000000e+15 : f32
    %817 = vector.broadcast %cst_275 : f32 to vector<8x8xf32>
    %818 = arith.select %704, %816, %817 : vector<8x8xi1>, vector<8x8xf32>
    %cst_276 = arith.constant dense<0xFF800000> : vector<8xf32>
    %819 = vector.multi_reduction <maximumf>, %818, %cst_276 [1] : vector<8x8xf32> to vector<8xf32>
    %820 = vector.shape_cast %819 : vector<8xf32> to vector<8x1xf32>
    %821 = vector.broadcast %820 : vector<8x1xf32> to vector<8x8xf32>
    %822 = arith.subf %818, %821 : vector<8x8xf32>
    %823 = math.exp %822 : vector<8x8xf32>
    %cst_277 = arith.constant dense<0.000000e+00> : vector<8xf32>
    %824 = vector.multi_reduction <add>, %823, %cst_277 [1] : vector<8x8xf32> to vector<8xf32>
    %825 = vector.shape_cast %824 : vector<8xf32> to vector<8x1xf32>
    %826 = tpu.reciprocal %825 {approx = true} : vector<8x1xf32> -> vector<8x1xf32>
    %827 = vector.broadcast %826 : vector<8x1xf32> to vector<8x8xf32>
    %828 = arith.mulf %823, %827 : vector<8x8xf32>
    %cst_278 = arith.constant dense<0.000000e+00> : vector<8x32xf32>
    %829 = tpu.matmul %828, %803, %cst_278 {dimension_numbers = #tpu.dot_dimension_numbers<[1], [0], [0], [1], [0, 0, 1, 1], [], []>} : vector<8x8xf32>, vector<8x32xf32>, vector<8x32xf32> -> vector<8x32xf32>
    %cst_279 = arith.constant 0.000000e+00 : f32
    %830 = vector.broadcast %cst_279 : f32 to vector<8x32xf32>
    %831 = arith.cmpf ogt, %829, %830 : vector<8x32xf32>
    %832 = math.exp %829 : vector<8x32xf32>
    %cst_280 = arith.constant 1.000000e+00 : f32
    %833 = vector.broadcast %cst_280 : f32 to vector<8x32xf32>
    %834 = arith.subf %832, %833 : vector<8x32xf32>
    %835 = arith.select %831, %829, %834 : vector<8x32xi1>, vector<8x32xf32>
    %836 = tpu.concatenate %835, %732 in 1 : vector<8x32xf32>, vector<8x32xf32> -> vector<8x64xf32>
    %cst_281 = arith.constant dense<0.000000e+00> : vector<8x32xf32>
    %837 = tpu.matmul %836, %20, %cst_281 {dimension_numbers = #tpu.dot_dimension_numbers<[1], [0], [0], [1], [0, 0, 1, 1], [], []>} : vector<8x64xf32>, vector<64x32xf32>, vector<8x32xf32> -> vector<8x32xf32>
    %838 = arith.addf %837, %4 : vector<8x32xf32>
    %cst_282 = arith.constant dense<0.000000e+00> : vector<8x4xf32>
    %839 = tpu.matmul %838, %21, %cst_282 {dimension_numbers = #tpu.dot_dimension_numbers<[1], [0], [0], [1], [0, 0, 1, 1], [], []>} : vector<8x32xf32>, vector<32x4xf32>, vector<8x4xf32> -> vector<8x4xf32>
    %840 = arith.addf %839, %7 : vector<8x4xf32>
    %cst_283 = arith.constant dense<0xFF800000> : vector<8xf32>
    %841 = vector.multi_reduction <maximumf>, %840, %cst_283 [1] : vector<8x4xf32> to vector<8xf32>
    %842 = vector.shape_cast %841 : vector<8xf32> to vector<8x1xf32>
    %843 = vector.broadcast %842 : vector<8x1xf32> to vector<8x4xf32>
    %844 = arith.subf %840, %843 : vector<8x4xf32>
    %845 = math.exp %844 : vector<8x4xf32>
    %cst_284 = arith.constant dense<0.000000e+00> : vector<8xf32>
    %846 = vector.multi_reduction <add>, %845, %cst_284 [1] : vector<8x4xf32> to vector<8xf32>
    %847 = vector.shape_cast %846 : vector<8xf32> to vector<8x1xf32>
    %848 = math.log %847 : vector<8x1xf32>
    %849 = vector.broadcast %842 : vector<8x1xf32> to vector<8x4xf32>
    %850 = arith.subf %840, %849 : vector<8x4xf32>
    %851 = vector.broadcast %848 : vector<8x1xf32> to vector<8x4xf32>
    %852 = arith.subf %850, %851 : vector<8x4xf32>
    %853 = arith.mulf %700, %852 : vector<8x4xf32>
    %cst_285 = arith.constant dense<0.000000e+00> : vector<8xf32>
    %854 = vector.multi_reduction <add>, %853, %cst_285 [1] : vector<8x4xf32> to vector<8xf32>
    %855 = vector.shape_cast %854 : vector<8xf32> to vector<8x1xf32>
    %cst_286 = arith.constant dense<0.000000e+00> : vector<1xf32>
    %856 = vector.multi_reduction <add>, %855, %cst_286 [0] : vector<8x1xf32> to vector<1xf32>
    %857 = vector.shape_cast %856 : vector<1xf32> to vector<1x1xf32>
    %cst_287 = arith.constant 5.000000e-01 : f32
    %858 = vector.broadcast %cst_287 : f32 to vector<1x1xf32>
    %859 = arith.mulf %857, %858 : vector<1x1xf32>
    %860 = arith.subf %697, %859 : vector<1x1xf32>
    %861 = vector.extract_strided_slice %43 {offsets = [40, 0], sizes = [8, 96], strides = [1, 1]} : vector<56x96xf32> to vector<8x96xf32>
    %c5 = arith.constant 5 : index
    %c0_288 = arith.constant 0 : index
    %c0_289 = arith.constant 0 : index
    %862 = vector.load %arg2[%c5, %c0_288, %c0_289] : memref<7x8x4xf32, #tpu.memory_space<vmem>>, vector<1x8x4xf32>
    %863 = vector.shape_cast %862 : vector<1x8x4xf32> to vector<8x4xf32>
    %c5_290 = arith.constant 5 : index
    %c0_291 = arith.constant 0 : index
    %c0_292 = arith.constant 0 : index
    %864 = vector.load %arg3[%c5_290, %c0_291, %c0_292] : memref<7x8x8xf32, #tpu.memory_space<vmem>>, vector<1x8x8xf32>
    %865 = vector.shape_cast %864 : vector<1x8x8xf32> to vector<8x8xf32>
    %cst_293 = arith.constant 0.000000e+00 : f32
    %866 = vector.broadcast %cst_293 : f32 to vector<8x8xf32>
    %867 = arith.cmpf ogt, %865, %866 : vector<8x8xf32>
    %cst_294 = arith.constant dense<0.000000e+00> : vector<8x96xf32>
    %868 = tpu.matmul %838, %9, %cst_294 {dimension_numbers = #tpu.dot_dimension_numbers<[1], [0], [0], [1], [0, 0, 1, 1], [], []>} : vector<8x32xf32>, vector<32x96xf32>, vector<8x96xf32> -> vector<8x96xf32>
    %869 = arith.addf %868, %13 : vector<8x96xf32>
    %870 = vector.extract_strided_slice %861 {offsets = [0, 0], sizes = [8, 32], strides = [1, 1]} : vector<8x96xf32> to vector<8x32xf32>
    %871 = vector.extract_strided_slice %869 {offsets = [0, 0], sizes = [8, 32], strides = [1, 1]} : vector<8x96xf32> to vector<8x32xf32>
    %872 = arith.addf %870, %871 : vector<8x32xf32>
    %873 = arith.negf %872 : vector<8x32xf32>
    %874 = math.exp %873 : vector<8x32xf32>
    %cst_295 = arith.constant 1.000000e+00 : f32
    %875 = vector.broadcast %cst_295 : f32 to vector<8x32xf32>
    %876 = arith.addf %875, %874 : vector<8x32xf32>
    %877 = arith.divf %875, %876 : vector<8x32xf32>
    %878 = vector.extract_strided_slice %861 {offsets = [0, 32], sizes = [8, 32], strides = [1, 1]} : vector<8x96xf32> to vector<8x32xf32>
    %879 = vector.extract_strided_slice %869 {offsets = [0, 32], sizes = [8, 32], strides = [1, 1]} : vector<8x96xf32> to vector<8x32xf32>
    %880 = arith.addf %878, %879 : vector<8x32xf32>
    %881 = arith.negf %880 : vector<8x32xf32>
    %882 = math.exp %881 : vector<8x32xf32>
    %cst_296 = arith.constant 1.000000e+00 : f32
    %883 = vector.broadcast %cst_296 : f32 to vector<8x32xf32>
    %884 = arith.addf %883, %882 : vector<8x32xf32>
    %885 = arith.divf %883, %884 : vector<8x32xf32>
    %886 = vector.extract_strided_slice %861 {offsets = [0, 64], sizes = [8, 32], strides = [1, 1]} : vector<8x96xf32> to vector<8x32xf32>
    %887 = vector.extract_strided_slice %869 {offsets = [0, 64], sizes = [8, 32], strides = [1, 1]} : vector<8x96xf32> to vector<8x32xf32>
    %888 = arith.mulf %877, %887 : vector<8x32xf32>
    %889 = arith.addf %886, %888 : vector<8x32xf32>
    %890 = math.tanh %889 : vector<8x32xf32>
    %cst_297 = arith.constant 1.000000e+00 : f32
    %891 = vector.broadcast %cst_297 : f32 to vector<8x32xf32>
    %892 = arith.subf %891, %885 : vector<8x32xf32>
    %893 = arith.mulf %892, %890 : vector<8x32xf32>
    %894 = arith.mulf %885, %838 : vector<8x32xf32>
    %895 = arith.addf %893, %894 : vector<8x32xf32>
    %cst_298 = arith.constant dense<0.000000e+00> : vector<8x32xf32>
    %896 = tpu.matmul %895, %14, %cst_298 {dimension_numbers = #tpu.dot_dimension_numbers<[1], [0], [0], [1], [0, 0, 1, 1], [], []>} : vector<8x32xf32>, vector<32x32xf32>, vector<8x32xf32> -> vector<8x32xf32>
    %897 = vector.broadcast %15 : vector<1x32xf32> to vector<8x32xf32>
    %898 = arith.mulf %896, %897 : vector<8x32xf32>
    %899 = vector.extract_strided_slice %896 {offsets = [0, 0], sizes = [8, 16], strides = [1, 1]} : vector<8x32xf32> to vector<8x16xf32>
    %900 = vector.extract_strided_slice %898 {offsets = [0, 0], sizes = [8, 16], strides = [1, 1]} : vector<8x32xf32> to vector<8x16xf32>
    %cst_299 = arith.constant dense<0.000000e+00> : vector<8xf32>
    %901 = vector.multi_reduction <add>, %900, %cst_299 [1] : vector<8x16xf32> to vector<8xf32>
    %902 = vector.shape_cast %901 : vector<8xf32> to vector<8x1xf32>
    %903 = vector.extract_strided_slice %16 {offsets = [0, 0], sizes = [1, 16], strides = [1, 1]} : vector<1x32xf32> to vector<1x16xf32>
    %cst_300 = arith.constant dense<0.000000e+00> : vector<1x8xf32>
    %904 = tpu.matmul %903, %899, %cst_300 {dimension_numbers = #tpu.dot_dimension_numbers<[1], [1], [0], [0], [0, 0, 1, 0], [], []>} : vector<1x16xf32>, vector<8x16xf32>, vector<1x8xf32> -> vector<1x8xf32>
    %905 = vector.broadcast %902 : vector<8x1xf32> to vector<8x8xf32>
    %906 = vector.broadcast %904 : vector<1x8xf32> to vector<8x8xf32>
    %907 = arith.addf %905, %906 : vector<8x8xf32>
    %cst_301 = arith.constant 0.000000e+00 : f32
    %908 = vector.broadcast %cst_301 : f32 to vector<8x8xf32>
    %909 = arith.cmpf ogt, %907, %908 : vector<8x8xf32>
    %cst_302 = arith.constant 2.000000e-01 : f32
    %910 = vector.broadcast %cst_302 : f32 to vector<8x8xf32>
    %911 = arith.mulf %910, %907 : vector<8x8xf32>
    %912 = arith.select %909, %907, %911 : vector<8x8xi1>, vector<8x8xf32>
    %cst_303 = arith.constant -9.000000e+15 : f32
    %913 = vector.broadcast %cst_303 : f32 to vector<8x8xf32>
    %914 = arith.select %867, %912, %913 : vector<8x8xi1>, vector<8x8xf32>
    %cst_304 = arith.constant dense<0xFF800000> : vector<8xf32>
    %915 = vector.multi_reduction <maximumf>, %914, %cst_304 [1] : vector<8x8xf32> to vector<8xf32>
    %916 = vector.shape_cast %915 : vector<8xf32> to vector<8x1xf32>
    %917 = vector.broadcast %916 : vector<8x1xf32> to vector<8x8xf32>
    %918 = arith.subf %914, %917 : vector<8x8xf32>
    %919 = math.exp %918 : vector<8x8xf32>
    %cst_305 = arith.constant dense<0.000000e+00> : vector<8xf32>
    %920 = vector.multi_reduction <add>, %919, %cst_305 [1] : vector<8x8xf32> to vector<8xf32>
    %921 = vector.shape_cast %920 : vector<8xf32> to vector<8x1xf32>
    %922 = tpu.reciprocal %921 {approx = true} : vector<8x1xf32> -> vector<8x1xf32>
    %923 = vector.broadcast %922 : vector<8x1xf32> to vector<8x8xf32>
    %924 = arith.mulf %919, %923 : vector<8x8xf32>
    %cst_306 = arith.constant dense<0.000000e+00> : vector<8x16xf32>
    %925 = tpu.matmul %924, %899, %cst_306 {dimension_numbers = #tpu.dot_dimension_numbers<[1], [0], [0], [1], [0, 0, 1, 1], [], []>} : vector<8x8xf32>, vector<8x16xf32>, vector<8x16xf32> -> vector<8x16xf32>
    %cst_307 = arith.constant 0.000000e+00 : f32
    %926 = vector.broadcast %cst_307 : f32 to vector<8x16xf32>
    %927 = arith.cmpf ogt, %925, %926 : vector<8x16xf32>
    %928 = math.exp %925 : vector<8x16xf32>
    %cst_308 = arith.constant 1.000000e+00 : f32
    %929 = vector.broadcast %cst_308 : f32 to vector<8x16xf32>
    %930 = arith.subf %928, %929 : vector<8x16xf32>
    %931 = arith.select %927, %925, %930 : vector<8x16xi1>, vector<8x16xf32>
    %932 = vector.extract_strided_slice %896 {offsets = [0, 16], sizes = [8, 16], strides = [1, 1]} : vector<8x32xf32> to vector<8x16xf32>
    %933 = vector.extract_strided_slice %898 {offsets = [0, 16], sizes = [8, 16], strides = [1, 1]} : vector<8x32xf32> to vector<8x16xf32>
    %cst_309 = arith.constant dense<0.000000e+00> : vector<8xf32>
    %934 = vector.multi_reduction <add>, %933, %cst_309 [1] : vector<8x16xf32> to vector<8xf32>
    %935 = vector.shape_cast %934 : vector<8xf32> to vector<8x1xf32>
    %936 = vector.extract_strided_slice %16 {offsets = [0, 16], sizes = [1, 16], strides = [1, 1]} : vector<1x32xf32> to vector<1x16xf32>
    %cst_310 = arith.constant dense<0.000000e+00> : vector<1x8xf32>
    %937 = tpu.matmul %936, %932, %cst_310 {dimension_numbers = #tpu.dot_dimension_numbers<[1], [1], [0], [0], [0, 0, 1, 0], [], []>} : vector<1x16xf32>, vector<8x16xf32>, vector<1x8xf32> -> vector<1x8xf32>
    %938 = vector.broadcast %935 : vector<8x1xf32> to vector<8x8xf32>
    %939 = vector.broadcast %937 : vector<1x8xf32> to vector<8x8xf32>
    %940 = arith.addf %938, %939 : vector<8x8xf32>
    %cst_311 = arith.constant 0.000000e+00 : f32
    %941 = vector.broadcast %cst_311 : f32 to vector<8x8xf32>
    %942 = arith.cmpf ogt, %940, %941 : vector<8x8xf32>
    %cst_312 = arith.constant 2.000000e-01 : f32
    %943 = vector.broadcast %cst_312 : f32 to vector<8x8xf32>
    %944 = arith.mulf %943, %940 : vector<8x8xf32>
    %945 = arith.select %942, %940, %944 : vector<8x8xi1>, vector<8x8xf32>
    %cst_313 = arith.constant -9.000000e+15 : f32
    %946 = vector.broadcast %cst_313 : f32 to vector<8x8xf32>
    %947 = arith.select %867, %945, %946 : vector<8x8xi1>, vector<8x8xf32>
    %cst_314 = arith.constant dense<0xFF800000> : vector<8xf32>
    %948 = vector.multi_reduction <maximumf>, %947, %cst_314 [1] : vector<8x8xf32> to vector<8xf32>
    %949 = vector.shape_cast %948 : vector<8xf32> to vector<8x1xf32>
    %950 = vector.broadcast %949 : vector<8x1xf32> to vector<8x8xf32>
    %951 = arith.subf %947, %950 : vector<8x8xf32>
    %952 = math.exp %951 : vector<8x8xf32>
    %cst_315 = arith.constant dense<0.000000e+00> : vector<8xf32>
    %953 = vector.multi_reduction <add>, %952, %cst_315 [1] : vector<8x8xf32> to vector<8xf32>
    %954 = vector.shape_cast %953 : vector<8xf32> to vector<8x1xf32>
    %955 = tpu.reciprocal %954 {approx = true} : vector<8x1xf32> -> vector<8x1xf32>
    %956 = vector.broadcast %955 : vector<8x1xf32> to vector<8x8xf32>
    %957 = arith.mulf %952, %956 : vector<8x8xf32>
    %cst_316 = arith.constant dense<0.000000e+00> : vector<8x16xf32>
    %958 = tpu.matmul %957, %932, %cst_316 {dimension_numbers = #tpu.dot_dimension_numbers<[1], [0], [0], [1], [0, 0, 1, 1], [], []>} : vector<8x8xf32>, vector<8x16xf32>, vector<8x16xf32> -> vector<8x16xf32>
    %cst_317 = arith.constant 0.000000e+00 : f32
    %959 = vector.broadcast %cst_317 : f32 to vector<8x16xf32>
    %960 = arith.cmpf ogt, %958, %959 : vector<8x16xf32>
    %961 = math.exp %958 : vector<8x16xf32>
    %cst_318 = arith.constant 1.000000e+00 : f32
    %962 = vector.broadcast %cst_318 : f32 to vector<8x16xf32>
    %963 = arith.subf %961, %962 : vector<8x16xf32>
    %964 = arith.select %960, %958, %963 : vector<8x16xi1>, vector<8x16xf32>
    %965 = tpu.concatenate %931, %964 in 1 : vector<8x16xf32>, vector<8x16xf32> -> vector<8x32xf32>
    %cst_319 = arith.constant dense<0.000000e+00> : vector<8x32xf32>
    %966 = tpu.matmul %965, %17, %cst_319 {dimension_numbers = #tpu.dot_dimension_numbers<[1], [0], [0], [1], [0, 0, 1, 1], [], []>} : vector<8x32xf32>, vector<32x32xf32>, vector<8x32xf32> -> vector<8x32xf32>
    %967 = vector.broadcast %18 : vector<1x32xf32> to vector<8x32xf32>
    %968 = arith.mulf %966, %967 : vector<8x32xf32>
    %cst_320 = arith.constant dense<0.000000e+00> : vector<8xf32>
    %969 = vector.multi_reduction <add>, %968, %cst_320 [1] : vector<8x32xf32> to vector<8xf32>
    %970 = vector.shape_cast %969 : vector<8xf32> to vector<8x1xf32>
    %cst_321 = arith.constant dense<0.000000e+00> : vector<1x8xf32>
    %971 = tpu.matmul %19, %966, %cst_321 {dimension_numbers = #tpu.dot_dimension_numbers<[1], [1], [0], [0], [0, 0, 1, 0], [], []>} : vector<1x32xf32>, vector<8x32xf32>, vector<1x8xf32> -> vector<1x8xf32>
    %972 = vector.broadcast %970 : vector<8x1xf32> to vector<8x8xf32>
    %973 = vector.broadcast %971 : vector<1x8xf32> to vector<8x8xf32>
    %974 = arith.addf %972, %973 : vector<8x8xf32>
    %cst_322 = arith.constant 0.000000e+00 : f32
    %975 = vector.broadcast %cst_322 : f32 to vector<8x8xf32>
    %976 = arith.cmpf ogt, %974, %975 : vector<8x8xf32>
    %cst_323 = arith.constant 2.000000e-01 : f32
    %977 = vector.broadcast %cst_323 : f32 to vector<8x8xf32>
    %978 = arith.mulf %977, %974 : vector<8x8xf32>
    %979 = arith.select %976, %974, %978 : vector<8x8xi1>, vector<8x8xf32>
    %cst_324 = arith.constant -9.000000e+15 : f32
    %980 = vector.broadcast %cst_324 : f32 to vector<8x8xf32>
    %981 = arith.select %867, %979, %980 : vector<8x8xi1>, vector<8x8xf32>
    %cst_325 = arith.constant dense<0xFF800000> : vector<8xf32>
    %982 = vector.multi_reduction <maximumf>, %981, %cst_325 [1] : vector<8x8xf32> to vector<8xf32>
    %983 = vector.shape_cast %982 : vector<8xf32> to vector<8x1xf32>
    %984 = vector.broadcast %983 : vector<8x1xf32> to vector<8x8xf32>
    %985 = arith.subf %981, %984 : vector<8x8xf32>
    %986 = math.exp %985 : vector<8x8xf32>
    %cst_326 = arith.constant dense<0.000000e+00> : vector<8xf32>
    %987 = vector.multi_reduction <add>, %986, %cst_326 [1] : vector<8x8xf32> to vector<8xf32>
    %988 = vector.shape_cast %987 : vector<8xf32> to vector<8x1xf32>
    %989 = tpu.reciprocal %988 {approx = true} : vector<8x1xf32> -> vector<8x1xf32>
    %990 = vector.broadcast %989 : vector<8x1xf32> to vector<8x8xf32>
    %991 = arith.mulf %986, %990 : vector<8x8xf32>
    %cst_327 = arith.constant dense<0.000000e+00> : vector<8x32xf32>
    %992 = tpu.matmul %991, %966, %cst_327 {dimension_numbers = #tpu.dot_dimension_numbers<[1], [0], [0], [1], [0, 0, 1, 1], [], []>} : vector<8x8xf32>, vector<8x32xf32>, vector<8x32xf32> -> vector<8x32xf32>
    %cst_328 = arith.constant 0.000000e+00 : f32
    %993 = vector.broadcast %cst_328 : f32 to vector<8x32xf32>
    %994 = arith.cmpf ogt, %992, %993 : vector<8x32xf32>
    %995 = math.exp %992 : vector<8x32xf32>
    %cst_329 = arith.constant 1.000000e+00 : f32
    %996 = vector.broadcast %cst_329 : f32 to vector<8x32xf32>
    %997 = arith.subf %995, %996 : vector<8x32xf32>
    %998 = arith.select %994, %992, %997 : vector<8x32xi1>, vector<8x32xf32>
    %999 = tpu.concatenate %998, %895 in 1 : vector<8x32xf32>, vector<8x32xf32> -> vector<8x64xf32>
    %cst_330 = arith.constant dense<0.000000e+00> : vector<8x32xf32>
    %1000 = tpu.matmul %999, %20, %cst_330 {dimension_numbers = #tpu.dot_dimension_numbers<[1], [0], [0], [1], [0, 0, 1, 1], [], []>} : vector<8x64xf32>, vector<64x32xf32>, vector<8x32xf32> -> vector<8x32xf32>
    %1001 = arith.addf %1000, %4 : vector<8x32xf32>
    %cst_331 = arith.constant dense<0.000000e+00> : vector<8x4xf32>
    %1002 = tpu.matmul %1001, %21, %cst_331 {dimension_numbers = #tpu.dot_dimension_numbers<[1], [0], [0], [1], [0, 0, 1, 1], [], []>} : vector<8x32xf32>, vector<32x4xf32>, vector<8x4xf32> -> vector<8x4xf32>
    %1003 = arith.addf %1002, %7 : vector<8x4xf32>
    %cst_332 = arith.constant dense<0xFF800000> : vector<8xf32>
    %1004 = vector.multi_reduction <maximumf>, %1003, %cst_332 [1] : vector<8x4xf32> to vector<8xf32>
    %1005 = vector.shape_cast %1004 : vector<8xf32> to vector<8x1xf32>
    %1006 = vector.broadcast %1005 : vector<8x1xf32> to vector<8x4xf32>
    %1007 = arith.subf %1003, %1006 : vector<8x4xf32>
    %1008 = math.exp %1007 : vector<8x4xf32>
    %cst_333 = arith.constant dense<0.000000e+00> : vector<8xf32>
    %1009 = vector.multi_reduction <add>, %1008, %cst_333 [1] : vector<8x4xf32> to vector<8xf32>
    %1010 = vector.shape_cast %1009 : vector<8xf32> to vector<8x1xf32>
    %1011 = math.log %1010 : vector<8x1xf32>
    %1012 = vector.broadcast %1005 : vector<8x1xf32> to vector<8x4xf32>
    %1013 = arith.subf %1003, %1012 : vector<8x4xf32>
    %1014 = vector.broadcast %1011 : vector<8x1xf32> to vector<8x4xf32>
    %1015 = arith.subf %1013, %1014 : vector<8x4xf32>
    %1016 = arith.mulf %863, %1015 : vector<8x4xf32>
    %cst_334 = arith.constant dense<0.000000e+00> : vector<8xf32>
    %1017 = vector.multi_reduction <add>, %1016, %cst_334 [1] : vector<8x4xf32> to vector<8xf32>
    %1018 = vector.shape_cast %1017 : vector<8xf32> to vector<8x1xf32>
    %cst_335 = arith.constant dense<0.000000e+00> : vector<1xf32>
    %1019 = vector.multi_reduction <add>, %1018, %cst_335 [0] : vector<8x1xf32> to vector<1xf32>
    %1020 = vector.shape_cast %1019 : vector<1xf32> to vector<1x1xf32>
    %cst_336 = arith.constant 5.000000e-01 : f32
    %1021 = vector.broadcast %cst_336 : f32 to vector<1x1xf32>
    %1022 = arith.mulf %1020, %1021 : vector<1x1xf32>
    %1023 = arith.subf %860, %1022 : vector<1x1xf32>
    %1024 = vector.extract_strided_slice %43 {offsets = [48, 0], sizes = [8, 96], strides = [1, 1]} : vector<56x96xf32> to vector<8x96xf32>
    %c6 = arith.constant 6 : index
    %c0_337 = arith.constant 0 : index
    %c0_338 = arith.constant 0 : index
    %1025 = vector.load %arg2[%c6, %c0_337, %c0_338] : memref<7x8x4xf32, #tpu.memory_space<vmem>>, vector<1x8x4xf32>
    %1026 = vector.shape_cast %1025 : vector<1x8x4xf32> to vector<8x4xf32>
    %c6_339 = arith.constant 6 : index
    %c0_340 = arith.constant 0 : index
    %c0_341 = arith.constant 0 : index
    %1027 = vector.load %arg3[%c6_339, %c0_340, %c0_341] : memref<7x8x8xf32, #tpu.memory_space<vmem>>, vector<1x8x8xf32>
    %1028 = vector.shape_cast %1027 : vector<1x8x8xf32> to vector<8x8xf32>
    %cst_342 = arith.constant 0.000000e+00 : f32
    %1029 = vector.broadcast %cst_342 : f32 to vector<8x8xf32>
    %1030 = arith.cmpf ogt, %1028, %1029 : vector<8x8xf32>
    %cst_343 = arith.constant dense<0.000000e+00> : vector<8x96xf32>
    %1031 = tpu.matmul %1001, %9, %cst_343 {dimension_numbers = #tpu.dot_dimension_numbers<[1], [0], [0], [1], [0, 0, 1, 1], [], []>} : vector<8x32xf32>, vector<32x96xf32>, vector<8x96xf32> -> vector<8x96xf32>
    %1032 = arith.addf %1031, %13 : vector<8x96xf32>
    %1033 = vector.extract_strided_slice %1024 {offsets = [0, 0], sizes = [8, 32], strides = [1, 1]} : vector<8x96xf32> to vector<8x32xf32>
    %1034 = vector.extract_strided_slice %1032 {offsets = [0, 0], sizes = [8, 32], strides = [1, 1]} : vector<8x96xf32> to vector<8x32xf32>
    %1035 = arith.addf %1033, %1034 : vector<8x32xf32>
    %1036 = arith.negf %1035 : vector<8x32xf32>
    %1037 = math.exp %1036 : vector<8x32xf32>
    %cst_344 = arith.constant 1.000000e+00 : f32
    %1038 = vector.broadcast %cst_344 : f32 to vector<8x32xf32>
    %1039 = arith.addf %1038, %1037 : vector<8x32xf32>
    %1040 = arith.divf %1038, %1039 : vector<8x32xf32>
    %1041 = vector.extract_strided_slice %1024 {offsets = [0, 32], sizes = [8, 32], strides = [1, 1]} : vector<8x96xf32> to vector<8x32xf32>
    %1042 = vector.extract_strided_slice %1032 {offsets = [0, 32], sizes = [8, 32], strides = [1, 1]} : vector<8x96xf32> to vector<8x32xf32>
    %1043 = arith.addf %1041, %1042 : vector<8x32xf32>
    %1044 = arith.negf %1043 : vector<8x32xf32>
    %1045 = math.exp %1044 : vector<8x32xf32>
    %cst_345 = arith.constant 1.000000e+00 : f32
    %1046 = vector.broadcast %cst_345 : f32 to vector<8x32xf32>
    %1047 = arith.addf %1046, %1045 : vector<8x32xf32>
    %1048 = arith.divf %1046, %1047 : vector<8x32xf32>
    %1049 = vector.extract_strided_slice %1024 {offsets = [0, 64], sizes = [8, 32], strides = [1, 1]} : vector<8x96xf32> to vector<8x32xf32>
    %1050 = vector.extract_strided_slice %1032 {offsets = [0, 64], sizes = [8, 32], strides = [1, 1]} : vector<8x96xf32> to vector<8x32xf32>
    %1051 = arith.mulf %1040, %1050 : vector<8x32xf32>
    %1052 = arith.addf %1049, %1051 : vector<8x32xf32>
    %1053 = math.tanh %1052 : vector<8x32xf32>
    %cst_346 = arith.constant 1.000000e+00 : f32
    %1054 = vector.broadcast %cst_346 : f32 to vector<8x32xf32>
    %1055 = arith.subf %1054, %1048 : vector<8x32xf32>
    %1056 = arith.mulf %1055, %1053 : vector<8x32xf32>
    %1057 = arith.mulf %1048, %1001 : vector<8x32xf32>
    %1058 = arith.addf %1056, %1057 : vector<8x32xf32>
    %cst_347 = arith.constant dense<0.000000e+00> : vector<8x32xf32>
    %1059 = tpu.matmul %1058, %14, %cst_347 {dimension_numbers = #tpu.dot_dimension_numbers<[1], [0], [0], [1], [0, 0, 1, 1], [], []>} : vector<8x32xf32>, vector<32x32xf32>, vector<8x32xf32> -> vector<8x32xf32>
    %1060 = vector.broadcast %15 : vector<1x32xf32> to vector<8x32xf32>
    %1061 = arith.mulf %1059, %1060 : vector<8x32xf32>
    %1062 = vector.extract_strided_slice %1059 {offsets = [0, 0], sizes = [8, 16], strides = [1, 1]} : vector<8x32xf32> to vector<8x16xf32>
    %1063 = vector.extract_strided_slice %1061 {offsets = [0, 0], sizes = [8, 16], strides = [1, 1]} : vector<8x32xf32> to vector<8x16xf32>
    %cst_348 = arith.constant dense<0.000000e+00> : vector<8xf32>
    %1064 = vector.multi_reduction <add>, %1063, %cst_348 [1] : vector<8x16xf32> to vector<8xf32>
    %1065 = vector.shape_cast %1064 : vector<8xf32> to vector<8x1xf32>
    %1066 = vector.extract_strided_slice %16 {offsets = [0, 0], sizes = [1, 16], strides = [1, 1]} : vector<1x32xf32> to vector<1x16xf32>
    %cst_349 = arith.constant dense<0.000000e+00> : vector<1x8xf32>
    %1067 = tpu.matmul %1066, %1062, %cst_349 {dimension_numbers = #tpu.dot_dimension_numbers<[1], [1], [0], [0], [0, 0, 1, 0], [], []>} : vector<1x16xf32>, vector<8x16xf32>, vector<1x8xf32> -> vector<1x8xf32>
    %1068 = vector.broadcast %1065 : vector<8x1xf32> to vector<8x8xf32>
    %1069 = vector.broadcast %1067 : vector<1x8xf32> to vector<8x8xf32>
    %1070 = arith.addf %1068, %1069 : vector<8x8xf32>
    %cst_350 = arith.constant 0.000000e+00 : f32
    %1071 = vector.broadcast %cst_350 : f32 to vector<8x8xf32>
    %1072 = arith.cmpf ogt, %1070, %1071 : vector<8x8xf32>
    %cst_351 = arith.constant 2.000000e-01 : f32
    %1073 = vector.broadcast %cst_351 : f32 to vector<8x8xf32>
    %1074 = arith.mulf %1073, %1070 : vector<8x8xf32>
    %1075 = arith.select %1072, %1070, %1074 : vector<8x8xi1>, vector<8x8xf32>
    %cst_352 = arith.constant -9.000000e+15 : f32
    %1076 = vector.broadcast %cst_352 : f32 to vector<8x8xf32>
    %1077 = arith.select %1030, %1075, %1076 : vector<8x8xi1>, vector<8x8xf32>
    %cst_353 = arith.constant dense<0xFF800000> : vector<8xf32>
    %1078 = vector.multi_reduction <maximumf>, %1077, %cst_353 [1] : vector<8x8xf32> to vector<8xf32>
    %1079 = vector.shape_cast %1078 : vector<8xf32> to vector<8x1xf32>
    %1080 = vector.broadcast %1079 : vector<8x1xf32> to vector<8x8xf32>
    %1081 = arith.subf %1077, %1080 : vector<8x8xf32>
    %1082 = math.exp %1081 : vector<8x8xf32>
    %cst_354 = arith.constant dense<0.000000e+00> : vector<8xf32>
    %1083 = vector.multi_reduction <add>, %1082, %cst_354 [1] : vector<8x8xf32> to vector<8xf32>
    %1084 = vector.shape_cast %1083 : vector<8xf32> to vector<8x1xf32>
    %1085 = tpu.reciprocal %1084 {approx = true} : vector<8x1xf32> -> vector<8x1xf32>
    %1086 = vector.broadcast %1085 : vector<8x1xf32> to vector<8x8xf32>
    %1087 = arith.mulf %1082, %1086 : vector<8x8xf32>
    %cst_355 = arith.constant dense<0.000000e+00> : vector<8x16xf32>
    %1088 = tpu.matmul %1087, %1062, %cst_355 {dimension_numbers = #tpu.dot_dimension_numbers<[1], [0], [0], [1], [0, 0, 1, 1], [], []>} : vector<8x8xf32>, vector<8x16xf32>, vector<8x16xf32> -> vector<8x16xf32>
    %cst_356 = arith.constant 0.000000e+00 : f32
    %1089 = vector.broadcast %cst_356 : f32 to vector<8x16xf32>
    %1090 = arith.cmpf ogt, %1088, %1089 : vector<8x16xf32>
    %1091 = math.exp %1088 : vector<8x16xf32>
    %cst_357 = arith.constant 1.000000e+00 : f32
    %1092 = vector.broadcast %cst_357 : f32 to vector<8x16xf32>
    %1093 = arith.subf %1091, %1092 : vector<8x16xf32>
    %1094 = arith.select %1090, %1088, %1093 : vector<8x16xi1>, vector<8x16xf32>
    %1095 = vector.extract_strided_slice %1059 {offsets = [0, 16], sizes = [8, 16], strides = [1, 1]} : vector<8x32xf32> to vector<8x16xf32>
    %1096 = vector.extract_strided_slice %1061 {offsets = [0, 16], sizes = [8, 16], strides = [1, 1]} : vector<8x32xf32> to vector<8x16xf32>
    %cst_358 = arith.constant dense<0.000000e+00> : vector<8xf32>
    %1097 = vector.multi_reduction <add>, %1096, %cst_358 [1] : vector<8x16xf32> to vector<8xf32>
    %1098 = vector.shape_cast %1097 : vector<8xf32> to vector<8x1xf32>
    %1099 = vector.extract_strided_slice %16 {offsets = [0, 16], sizes = [1, 16], strides = [1, 1]} : vector<1x32xf32> to vector<1x16xf32>
    %cst_359 = arith.constant dense<0.000000e+00> : vector<1x8xf32>
    %1100 = tpu.matmul %1099, %1095, %cst_359 {dimension_numbers = #tpu.dot_dimension_numbers<[1], [1], [0], [0], [0, 0, 1, 0], [], []>} : vector<1x16xf32>, vector<8x16xf32>, vector<1x8xf32> -> vector<1x8xf32>
    %1101 = vector.broadcast %1098 : vector<8x1xf32> to vector<8x8xf32>
    %1102 = vector.broadcast %1100 : vector<1x8xf32> to vector<8x8xf32>
    %1103 = arith.addf %1101, %1102 : vector<8x8xf32>
    %cst_360 = arith.constant 0.000000e+00 : f32
    %1104 = vector.broadcast %cst_360 : f32 to vector<8x8xf32>
    %1105 = arith.cmpf ogt, %1103, %1104 : vector<8x8xf32>
    %cst_361 = arith.constant 2.000000e-01 : f32
    %1106 = vector.broadcast %cst_361 : f32 to vector<8x8xf32>
    %1107 = arith.mulf %1106, %1103 : vector<8x8xf32>
    %1108 = arith.select %1105, %1103, %1107 : vector<8x8xi1>, vector<8x8xf32>
    %cst_362 = arith.constant -9.000000e+15 : f32
    %1109 = vector.broadcast %cst_362 : f32 to vector<8x8xf32>
    %1110 = arith.select %1030, %1108, %1109 : vector<8x8xi1>, vector<8x8xf32>
    %cst_363 = arith.constant dense<0xFF800000> : vector<8xf32>
    %1111 = vector.multi_reduction <maximumf>, %1110, %cst_363 [1] : vector<8x8xf32> to vector<8xf32>
    %1112 = vector.shape_cast %1111 : vector<8xf32> to vector<8x1xf32>
    %1113 = vector.broadcast %1112 : vector<8x1xf32> to vector<8x8xf32>
    %1114 = arith.subf %1110, %1113 : vector<8x8xf32>
    %1115 = math.exp %1114 : vector<8x8xf32>
    %cst_364 = arith.constant dense<0.000000e+00> : vector<8xf32>
    %1116 = vector.multi_reduction <add>, %1115, %cst_364 [1] : vector<8x8xf32> to vector<8xf32>
    %1117 = vector.shape_cast %1116 : vector<8xf32> to vector<8x1xf32>
    %1118 = tpu.reciprocal %1117 {approx = true} : vector<8x1xf32> -> vector<8x1xf32>
    %1119 = vector.broadcast %1118 : vector<8x1xf32> to vector<8x8xf32>
    %1120 = arith.mulf %1115, %1119 : vector<8x8xf32>
    %cst_365 = arith.constant dense<0.000000e+00> : vector<8x16xf32>
    %1121 = tpu.matmul %1120, %1095, %cst_365 {dimension_numbers = #tpu.dot_dimension_numbers<[1], [0], [0], [1], [0, 0, 1, 1], [], []>} : vector<8x8xf32>, vector<8x16xf32>, vector<8x16xf32> -> vector<8x16xf32>
    %cst_366 = arith.constant 0.000000e+00 : f32
    %1122 = vector.broadcast %cst_366 : f32 to vector<8x16xf32>
    %1123 = arith.cmpf ogt, %1121, %1122 : vector<8x16xf32>
    %1124 = math.exp %1121 : vector<8x16xf32>
    %cst_367 = arith.constant 1.000000e+00 : f32
    %1125 = vector.broadcast %cst_367 : f32 to vector<8x16xf32>
    %1126 = arith.subf %1124, %1125 : vector<8x16xf32>
    %1127 = arith.select %1123, %1121, %1126 : vector<8x16xi1>, vector<8x16xf32>
    %1128 = tpu.concatenate %1094, %1127 in 1 : vector<8x16xf32>, vector<8x16xf32> -> vector<8x32xf32>
    %cst_368 = arith.constant dense<0.000000e+00> : vector<8x32xf32>
    %1129 = tpu.matmul %1128, %17, %cst_368 {dimension_numbers = #tpu.dot_dimension_numbers<[1], [0], [0], [1], [0, 0, 1, 1], [], []>} : vector<8x32xf32>, vector<32x32xf32>, vector<8x32xf32> -> vector<8x32xf32>
    %1130 = vector.broadcast %18 : vector<1x32xf32> to vector<8x32xf32>
    %1131 = arith.mulf %1129, %1130 : vector<8x32xf32>
    %cst_369 = arith.constant dense<0.000000e+00> : vector<8xf32>
    %1132 = vector.multi_reduction <add>, %1131, %cst_369 [1] : vector<8x32xf32> to vector<8xf32>
    %1133 = vector.shape_cast %1132 : vector<8xf32> to vector<8x1xf32>
    %cst_370 = arith.constant dense<0.000000e+00> : vector<1x8xf32>
    %1134 = tpu.matmul %19, %1129, %cst_370 {dimension_numbers = #tpu.dot_dimension_numbers<[1], [1], [0], [0], [0, 0, 1, 0], [], []>} : vector<1x32xf32>, vector<8x32xf32>, vector<1x8xf32> -> vector<1x8xf32>
    %1135 = vector.broadcast %1133 : vector<8x1xf32> to vector<8x8xf32>
    %1136 = vector.broadcast %1134 : vector<1x8xf32> to vector<8x8xf32>
    %1137 = arith.addf %1135, %1136 : vector<8x8xf32>
    %cst_371 = arith.constant 0.000000e+00 : f32
    %1138 = vector.broadcast %cst_371 : f32 to vector<8x8xf32>
    %1139 = arith.cmpf ogt, %1137, %1138 : vector<8x8xf32>
    %cst_372 = arith.constant 2.000000e-01 : f32
    %1140 = vector.broadcast %cst_372 : f32 to vector<8x8xf32>
    %1141 = arith.mulf %1140, %1137 : vector<8x8xf32>
    %1142 = arith.select %1139, %1137, %1141 : vector<8x8xi1>, vector<8x8xf32>
    %cst_373 = arith.constant -9.000000e+15 : f32
    %1143 = vector.broadcast %cst_373 : f32 to vector<8x8xf32>
    %1144 = arith.select %1030, %1142, %1143 : vector<8x8xi1>, vector<8x8xf32>
    %cst_374 = arith.constant dense<0xFF800000> : vector<8xf32>
    %1145 = vector.multi_reduction <maximumf>, %1144, %cst_374 [1] : vector<8x8xf32> to vector<8xf32>
    %1146 = vector.shape_cast %1145 : vector<8xf32> to vector<8x1xf32>
    %1147 = vector.broadcast %1146 : vector<8x1xf32> to vector<8x8xf32>
    %1148 = arith.subf %1144, %1147 : vector<8x8xf32>
    %1149 = math.exp %1148 : vector<8x8xf32>
    %cst_375 = arith.constant dense<0.000000e+00> : vector<8xf32>
    %1150 = vector.multi_reduction <add>, %1149, %cst_375 [1] : vector<8x8xf32> to vector<8xf32>
    %1151 = vector.shape_cast %1150 : vector<8xf32> to vector<8x1xf32>
    %1152 = tpu.reciprocal %1151 {approx = true} : vector<8x1xf32> -> vector<8x1xf32>
    %1153 = vector.broadcast %1152 : vector<8x1xf32> to vector<8x8xf32>
    %1154 = arith.mulf %1149, %1153 : vector<8x8xf32>
    %cst_376 = arith.constant dense<0.000000e+00> : vector<8x32xf32>
    %1155 = tpu.matmul %1154, %1129, %cst_376 {dimension_numbers = #tpu.dot_dimension_numbers<[1], [0], [0], [1], [0, 0, 1, 1], [], []>} : vector<8x8xf32>, vector<8x32xf32>, vector<8x32xf32> -> vector<8x32xf32>
    %cst_377 = arith.constant 0.000000e+00 : f32
    %1156 = vector.broadcast %cst_377 : f32 to vector<8x32xf32>
    %1157 = arith.cmpf ogt, %1155, %1156 : vector<8x32xf32>
    %1158 = math.exp %1155 : vector<8x32xf32>
    %cst_378 = arith.constant 1.000000e+00 : f32
    %1159 = vector.broadcast %cst_378 : f32 to vector<8x32xf32>
    %1160 = arith.subf %1158, %1159 : vector<8x32xf32>
    %1161 = arith.select %1157, %1155, %1160 : vector<8x32xi1>, vector<8x32xf32>
    %1162 = tpu.concatenate %1161, %1058 in 1 : vector<8x32xf32>, vector<8x32xf32> -> vector<8x64xf32>
    %cst_379 = arith.constant dense<0.000000e+00> : vector<8x32xf32>
    %1163 = tpu.matmul %1162, %20, %cst_379 {dimension_numbers = #tpu.dot_dimension_numbers<[1], [0], [0], [1], [0, 0, 1, 1], [], []>} : vector<8x64xf32>, vector<64x32xf32>, vector<8x32xf32> -> vector<8x32xf32>
    %1164 = arith.addf %1163, %4 : vector<8x32xf32>
    %cst_380 = arith.constant dense<0.000000e+00> : vector<8x4xf32>
    %1165 = tpu.matmul %1164, %21, %cst_380 {dimension_numbers = #tpu.dot_dimension_numbers<[1], [0], [0], [1], [0, 0, 1, 1], [], []>} : vector<8x32xf32>, vector<32x4xf32>, vector<8x4xf32> -> vector<8x4xf32>
    %1166 = arith.addf %1165, %7 : vector<8x4xf32>
    %cst_381 = arith.constant dense<0xFF800000> : vector<8xf32>
    %1167 = vector.multi_reduction <maximumf>, %1166, %cst_381 [1] : vector<8x4xf32> to vector<8xf32>
    %1168 = vector.shape_cast %1167 : vector<8xf32> to vector<8x1xf32>
    %1169 = vector.broadcast %1168 : vector<8x1xf32> to vector<8x4xf32>
    %1170 = arith.subf %1166, %1169 : vector<8x4xf32>
    %1171 = math.exp %1170 : vector<8x4xf32>
    %cst_382 = arith.constant dense<0.000000e+00> : vector<8xf32>
    %1172 = vector.multi_reduction <add>, %1171, %cst_382 [1] : vector<8x4xf32> to vector<8xf32>
    %1173 = vector.shape_cast %1172 : vector<8xf32> to vector<8x1xf32>
    %1174 = math.log %1173 : vector<8x1xf32>
    %1175 = vector.broadcast %1168 : vector<8x1xf32> to vector<8x4xf32>
    %1176 = arith.subf %1166, %1175 : vector<8x4xf32>
    %1177 = vector.broadcast %1174 : vector<8x1xf32> to vector<8x4xf32>
    %1178 = arith.subf %1176, %1177 : vector<8x4xf32>
    %1179 = arith.mulf %1026, %1178 : vector<8x4xf32>
    %cst_383 = arith.constant dense<0.000000e+00> : vector<8xf32>
    %1180 = vector.multi_reduction <add>, %1179, %cst_383 [1] : vector<8x4xf32> to vector<8xf32>
    %1181 = vector.shape_cast %1180 : vector<8xf32> to vector<8x1xf32>
    %cst_384 = arith.constant dense<0.000000e+00> : vector<1xf32>
    %1182 = vector.multi_reduction <add>, %1181, %cst_384 [0] : vector<8x1xf32> to vector<1xf32>
    %1183 = vector.shape_cast %1182 : vector<1xf32> to vector<1x1xf32>
    %cst_385 = arith.constant 5.000000e-01 : f32
    %1184 = vector.broadcast %cst_385 : f32 to vector<1x1xf32>
    %1185 = arith.mulf %1183, %1184 : vector<1x1xf32>
    %1186 = arith.subf %1023, %1185 : vector<1x1xf32>
    %c0_386 = arith.constant 0 : index
    %c0_387 = arith.constant 0 : index
    %1187 = vector.load %arg15[%c0_386, %c0_387] : memref<1x1xf32, #tpu.memory_space<vmem>>, vector<1x1xf32>
    tpu.vector_store %arg15[%c0_386, %c0_387], %1186 {strides = array<i32>} : memref<1x1xf32, #tpu.memory_space<vmem>>, vector<1x1xf32>,
    %c0_388 = arith.constant 0 : index
    %c0_389 = arith.constant 0 : index
    %c0_390 = arith.constant 0 : index
    %1188 = vector.load %arg16[%c0_388, %c0_389, %c0_390] : memref<1x8x32xf32, #tpu.memory_space<vmem>>, vector<1x8x32xf32>
    %1189 = vector.shape_cast %1188 : vector<1x8x32xf32> to vector<8x32xf32>
    %1190 = vector.shape_cast %1164 : vector<8x32xf32> to vector<1x8x32xf32>
    tpu.vector_store %arg16[%c0_388, %c0_389, %c0_390], %1190 {strides = array<i32>} : memref<1x8x32xf32, #tpu.memory_space<vmem>>, vector<1x8x32xf32>,
    return
  }
  func.func @transform_0(%arg0: i32) -> (i32, i32) {
    %c0_i32 = arith.constant 0 : i32
    %c0_i32_0 = arith.constant 0 : i32
    %c0_i32_1 = arith.constant 0 : i32
    return %c0_i32, %c0_i32_0 : i32, i32
  }
  func.func @transform_1(%arg0: i32) -> (i32, i32, i32) {
    %c0_i32 = arith.constant 0 : i32
    %c0_i32_0 = arith.constant 0 : i32
    %c0_i32_1 = arith.constant 0 : i32
    %c0_i32_2 = arith.constant 0 : i32
    return %c0_i32, %c0_i32_0, %c0_i32_1 : i32, i32, i32
  }
  func.func @transform_2(%arg0: i32) -> (i32, i32, i32) {
    %c0_i32 = arith.constant 0 : i32
    %c0_i32_0 = arith.constant 0 : i32
    %c0_i32_1 = arith.constant 0 : i32
    %c0_i32_2 = arith.constant 0 : i32
    return %c0_i32, %c0_i32_0, %c0_i32_1 : i32, i32, i32
  }
  func.func @transform_3(%arg0: i32) -> (i32, i32) {
    %c0_i32 = arith.constant 0 : i32
    %c0_i32_0 = arith.constant 0 : i32
    %c0_i32_1 = arith.constant 0 : i32
    return %c0_i32, %c0_i32_0 : i32, i32
  }
  func.func @transform_4(%arg0: i32) -> (i32, i32) {
    %c0_i32 = arith.constant 0 : i32
    %c0_i32_0 = arith.constant 0 : i32
    %c0_i32_1 = arith.constant 0 : i32
    return %c0_i32, %c0_i32_0 : i32, i32
  }
  func.func @transform_5(%arg0: i32) -> (i32, i32) {
    %c0_i32 = arith.constant 0 : i32
    %c0_i32_0 = arith.constant 0 : i32
    %c0_i32_1 = arith.constant 0 : i32
    return %c0_i32, %c0_i32_0 : i32, i32
  }
  func.func @transform_6(%arg0: i32) -> (i32, i32) {
    %c0_i32 = arith.constant 0 : i32
    %c0_i32_0 = arith.constant 0 : i32
    %c0_i32_1 = arith.constant 0 : i32
    return %c0_i32, %c0_i32_0 : i32, i32
  }
  func.func @transform_7(%arg0: i32) -> (i32, i32) {
    %c0_i32 = arith.constant 0 : i32
    %c0_i32_0 = arith.constant 0 : i32
    %c0_i32_1 = arith.constant 0 : i32
    return %c0_i32, %c0_i32_0 : i32, i32
  }
  func.func @transform_8(%arg0: i32) -> (i32, i32) {
    %c0_i32 = arith.constant 0 : i32
    %c0_i32_0 = arith.constant 0 : i32
    %c0_i32_1 = arith.constant 0 : i32
    return %c0_i32, %c0_i32_0 : i32, i32
  }
  func.func @transform_9(%arg0: i32) -> (i32, i32) {
    %c0_i32 = arith.constant 0 : i32
    %c0_i32_0 = arith.constant 0 : i32
    %c0_i32_1 = arith.constant 0 : i32
    return %c0_i32, %c0_i32_0 : i32, i32
  }
  func.func @transform_10(%arg0: i32) -> (i32, i32) {
    %c0_i32 = arith.constant 0 : i32
    %c0_i32_0 = arith.constant 0 : i32
    %c0_i32_1 = arith.constant 0 : i32
    return %c0_i32, %c0_i32_0 : i32, i32
  }
  func.func @transform_11(%arg0: i32) -> (i32, i32) {
    %c0_i32 = arith.constant 0 : i32
    %c0_i32_0 = arith.constant 0 : i32
    %c0_i32_1 = arith.constant 0 : i32
    return %c0_i32, %c0_i32_0 : i32, i32
  }
  func.func @transform_12(%arg0: i32) -> (i32, i32) {
    %c0_i32 = arith.constant 0 : i32
    %c0_i32_0 = arith.constant 0 : i32
    %c0_i32_1 = arith.constant 0 : i32
    return %c0_i32, %c0_i32_0 : i32, i32
  }
  func.func @transform_13(%arg0: i32) -> (i32, i32) {
    %c0_i32 = arith.constant 0 : i32
    %c0_i32_0 = arith.constant 0 : i32
    %c0_i32_1 = arith.constant 0 : i32
    return %c0_i32, %c0_i32_0 : i32, i32
  }
  func.func @transform_14(%arg0: i32) -> (i32, i32) {
    %c0_i32 = arith.constant 0 : i32
    %c0_i32_0 = arith.constant 0 : i32
    %c0_i32_1 = arith.constant 0 : i32
    return %c0_i32, %c0_i32_0 : i32, i32
  }
  func.func @transform_15(%arg0: i32) -> (i32, i32, i32) {
    %c0_i32 = arith.constant 0 : i32
    %c0_i32_0 = arith.constant 0 : i32
    %c0_i32_1 = arith.constant 0 : i32
    %c0_i32_2 = arith.constant 0 : i32
    return %c0_i32, %c0_i32_0, %c0_i32_1 : i32, i32, i32
  }
}

</mosaic_0001>

<llo_original>
// kernel: detnet_forward.1
$region0: #{detnet_forward.1}
  #allocation0 [shape = 'u32[]', space=smem, size = 0x4, offset = 0x4, fixed_abs, tag = 'smem constant byte address 0x4 - core index']
  #allocation1 [shape = 'u32[144,128]{1,0:T(1,128)}', space=vmem, size = 0x12000, scoped, tag = 'internal scratch']
  %s0 = inlined_call_operand.vmem [shape: f32[56,4], index: 0, kind: input, shape index: {}]
  %s1 = inlined_call_operand.vmem [shape: f32[7,8,4], index: 1, kind: input, shape index: {}]
  %s2 = inlined_call_operand.vmem [shape: f32[7,8,8], index: 2, kind: input, shape index: {}]
  %s3 = inlined_call_operand.vmem [shape: f32[4,32], index: 3, kind: input, shape index: {}]
  %s4 = inlined_call_operand.vmem [shape: f32[32,32], index: 4, kind: input, shape index: {}]
  %s5 = inlined_call_operand.vmem [shape: f32[64,96], index: 5, kind: input, shape index: {}]
  %s6 = inlined_call_operand.vmem [shape: f32[2,96], index: 6, kind: input, shape index: {}]
  %s7 = inlined_call_operand.vmem [shape: f32[32,32], index: 7, kind: input, shape index: {}]
  %s8 = inlined_call_operand.vmem [shape: f32[2,32], index: 8, kind: input, shape index: {}]
  %s9 = inlined_call_operand.vmem [shape: f32[32,32], index: 9, kind: input, shape index: {}]
  %s10 = inlined_call_operand.vmem [shape: f32[2,32], index: 10, kind: input, shape index: {}]
  %s11 = inlined_call_operand.vmem [shape: f32[64,32], index: 11, kind: input, shape index: {}]
  %s12 = inlined_call_operand.vmem [shape: f32[32,4], index: 12, kind: input, shape index: {}]
  %s13 = inlined_call_operand.vmem [shape: f32[1,100], index: 13, kind: input, shape index: {}]
  %s14 = inlined_call_operand.hbm [shape: f32[1,1], index: 14, kind: output, shape index: {0}]
  %s15 = inlined_call_operand.hbm [shape: f32[1,8,32], index: 15, kind: output, shape index: {1}]
  %16 = xla_tuple %s14, %s15
  %s17 = sld [smem:[#allocation0]]
  $region74: #{detnet_forward.1} parent=0
    _
  %s19 = ssub.s32 1, %s17
  %s20 = scalar_select 0, %s19, %s17
  $region1: #{detnet_forward.1} parent=0
    #allocation2 [shape = 'u8[512]{0}', space=vmem, size = 0x400, scoped, tag = 'output window, operand 0, single buffered']
    #allocation3 [shape = 's32[1]{0}', space=sflag, size = 0x4, scoped, tag = 'scoped memory for detnet_forward.1']
    #allocation4 [shape = 'u8[4096]{0}', space=vmem, size = 0x1000, scoped, tag = 'output window, operand 1, single buffered']
    #allocation5 [shape = 's32[1]{0}', space=sflag, size = 0x4, scoped, tag = 'scoped memory for detnet_forward.1']
    %21 = vsyncpa [#allocation3], 0
    %22 = vsyncpa [#allocation5], 0
    // Predicated region
    $region2: #{detnet_forward.1} parent=1 // pred_check
      _
    $region3: #{detnet_forward.1} parent=1 // pred_check_branch
      %24 = sbr.rel (0) target = $region5
    $region4: #{detnet_forward.1} parent=1 // pred_region
      _
    $region5: #{detnet_forward.1} parent=1 // pred_fallthru
      _
    // Predicated region
    $region6: #{detnet_forward.1} parent=1 // pred_check
      _
    $region7: #{detnet_forward.1} parent=1 // pred_check_branch
      %26 = sbr.rel (0) target = $region9
    $region8: #{detnet_forward.1} parent=1 // pred_region
      _
    $region9: #{detnet_forward.1} parent=1 // pred_fallthru
      _
    // Predicated region
    $region10: #{detnet_forward.1} parent=1 // pred_check
      _
    $region11: #{detnet_forward.1} parent=1 // pred_check_branch
      %28 = sbr.rel (0) target = $region13
    $region12: #{detnet_forward.1} parent=1 // pred_region
      _
    $region13: #{detnet_forward.1} parent=1 // pred_fallthru
      _
    // Predicated region
    $region14: #{detnet_forward.1} parent=1 // pred_check
      _
    $region15: #{detnet_forward.1} parent=1 // pred_check_branch
      %30 = sbr.rel (0) target = $region17
    $region16: #{detnet_forward.1} parent=1 // pred_region
      _
    $region17: #{detnet_forward.1} parent=1 // pred_fallthru
      _
    // Predicated region
    $region18: #{detnet_forward.1} parent=1 // pred_check
      _
    $region19: #{detnet_forward.1} parent=1 // pred_check_branch
      %32 = sbr.rel (0) target = $region21
    $region20: #{detnet_forward.1} parent=1 // pred_region
      _
    $region21: #{detnet_forward.1} parent=1 // pred_fallthru
      _
    // Predicated region
    $region22: #{detnet_forward.1} parent=1 // pred_check
      _
    $region23: #{detnet_forward.1} parent=1 // pred_check_branch
      %34 = sbr.rel (0) target = $region25
    $region24: #{detnet_forward.1} parent=1 // pred_region
      _
    $region25: #{detnet_forward.1} parent=1 // pred_fallthru
      _
    // Predicated region
    $region26: #{detnet_forward.1} parent=1 // pred_check
      _
    $region27: #{detnet_forward.1} parent=1 // pred_check_branch
      %36 = sbr.rel (0) target = $region29
    $region28: #{detnet_forward.1} parent=1 // pred_region
      _
    $region29: #{detnet_forward.1} parent=1 // pred_fallthru
      _
    // Predicated region
    $region30: #{detnet_forward.1} parent=1 // pred_check
      _
    $region31: #{detnet_forward.1} parent=1 // pred_check_branch
      %38 = sbr.rel (0) target = $region33
    $region32: #{detnet_forward.1} parent=1 // pred_region
      _
    $region33: #{detnet_forward.1} parent=1 // pred_fallthru
      _
    // Predicated region
    $region34: #{detnet_forward.1} parent=1 // pred_check
      _
    $region35: #{detnet_forward.1} parent=1 // pred_check_branch
      %40 = sbr.rel (0) target = $region37
    $region36: #{detnet_forward.1} parent=1 // pred_region
      _
    $region37: #{detnet_forward.1} parent=1 // pred_fallthru
      _
    // Predicated region
    $region38: #{detnet_forward.1} parent=1 // pred_check
      _
    $region39: #{detnet_forward.1} parent=1 // pred_check_branch
      %42 = sbr.rel (0) target = $region41
    $region40: #{detnet_forward.1} parent=1 // pred_region
      _
    $region41: #{detnet_forward.1} parent=1 // pred_fallthru
      _
    // Predicated region
    $region42: #{detnet_forward.1} parent=1 // pred_check
      _
    $region43: #{detnet_forward.1} parent=1 // pred_check_branch
      %44 = sbr.rel (0) target = $region45
    $region44: #{detnet_forward.1} parent=1 // pred_region
      _
    $region45: #{detnet_forward.1} parent=1 // pred_fallthru
      _
    // Predicated region
    $region46: #{detnet_forward.1} parent=1 // pred_check
      _
    $region47: #{detnet_forward.1} parent=1 // pred_check_branch
      %46 = sbr.rel (0) target = $region49
    $region48: #{detnet_forward.1} parent=1 // pred_region
      _
    $region49: #{detnet_forward.1} parent=1 // pred_fallthru
      _
    // Predicated region
    $region50: #{detnet_forward.1} parent=1 // pred_check
      _
    $region51: #{detnet_forward.1} parent=1 // pred_check_branch
      %48 = sbr.rel (0) target = $region53
    $region52: #{detnet_forward.1} parent=1 // pred_region
      _
    $region53: #{detnet_forward.1} parent=1 // pred_fallthru
      _
    // Predicated region
    $region54: #{detnet_forward.1} parent=1 // pred_check
      _
    $region55: #{detnet_forward.1} parent=1 // pred_check_branch
      %50 = sbr.rel (0) target = $region57
    $region56: #{detnet_forward.1} parent=1 // pred_region
      _
    $region57: #{detnet_forward.1} parent=1 // pred_fallthru
      _
    %v51 = vld [vmem:[%s13] sm:$0x1]
    %v53 = vlaneseq
    %v54 = vshrl.u32 %v53, 7
    %v55 = vsub.s32 0, %v54
    %v56 = vrot.slane %v51, %v55
    %v57 = vld [vmem:[%s5] sm:$0xff]
    %v58 = vld [vmem:[%s5 + $0x8] sm:$0xff]
    %v59 = vld [vmem:[%s5 + $0x10] sm:$0xff]
    %v60 = vld [vmem:[%s5 + $0x18] sm:$0xff]
    %v61 = vld [vmem:[%s5 + $0x20] sm:$0xff]
    %v62 = vld [vmem:[%s5 + $0x28] sm:$0xff]
    %v63 = vld [vmem:[%s5 + $0x30] sm:$0xff]
    %v64 = vld [vmem:[%s5 + $0x38] sm:$0xff]
    %v65 = vld [vmem:[%s6] sm:$0x1]
    %v66 = vld [vmem:[%s6 + $0x1] sm:$0x1]
    %v67 = vlaneseq
    %v68 = vshrl.u32 %v67, 7
    %v69 = vsub.s32 0, %v68
    %v70 = vrot.slane %v66, %v69
    %v71 = vld [vmem:[%s7] sm:$0xff]
    %v72 = vld [vmem:[%s7 + $0x8] sm:$0xff]
    %v73 = vld [vmem:[%s7 + $0x10] sm:$0xff]
    %v74 = vld [vmem:[%s7 + $0x18] sm:$0xff]
    %v75 = vld [vmem:[%s8] sm:$0x1]
    %v76 = vld [vmem:[%s8 + $0x1] sm:$0x1]
    %v77 = vld [vmem:[%s9] sm:$0xff]
    %v78 = vld [vmem:[%s9 + $0x8] sm:$0xff]
    %v79 = vld [vmem:[%s9 + $0x10] sm:$0xff]
    %v80 = vld [vmem:[%s9 + $0x18] sm:$0xff]
    %v81 = vld [vmem:[%s10] sm:$0x1]
    %v82 = vld [vmem:[%s10 + $0x1] sm:$0x1]
    %v83 = vld [vmem:[%s11] sm:$0xff]
    %v84 = vld [vmem:[%s11 + $0x8] sm:$0xff]
    %v85 = vld [vmem:[%s11 + $0x10] sm:$0xff]
    %v86 = vld [vmem:[%s11 + $0x18] sm:$0xff]
    %v87 = vld [vmem:[%s11 + $0x20] sm:$0xff]
    %v88 = vld [vmem:[%s11 + $0x28] sm:$0xff]
    %v89 = vld [vmem:[%s11 + $0x30] sm:$0xff]
    %v90 = vld [vmem:[%s11 + $0x38] sm:$0xff]
    %v91 = vld [vmem:[%s12] sm:$0xff]
    %v92 = vld [vmem:[%s12 + $0x8] sm:$0xff]
    %v93 = vld [vmem:[%s12 + $0x10] sm:$0xff]
    %v94 = vld [vmem:[%s12 + $0x18] sm:$0xff]
    %v95 = vld [vmem:[%s0] sm:$0xff]
    %v96 = vld [vmem:[%s0 + $0x8] sm:$0xff]
    %v97 = vld [vmem:[%s0 + $0x10] sm:$0xff]
    %v98 = vld [vmem:[%s0 + $0x18] sm:$0xff]
    %v99 = vld [vmem:[%s0 + $0x20] sm:$0xff]
    %v100 = vld [vmem:[%s0 + $0x28] sm:$0xff]
    %v101 = vld [vmem:[%s0 + $0x30] sm:$0xff]
    %v102 = vld [vmem:[%s3] sm:$0xf]
    %vm104 = vcmask 31744
    %v106 = vsel %vm104, %v95, 0
    %v109 = vsel %vm104, %v96, 0
    %v112 = vsel %vm104, %v97, 0
    %v115 = vsel %vm104, %v98, 0
    %v118 = vsel %vm104, %v99, 0
    %v121 = vsel %vm104, %v100, 0
    %v124 = vsel %vm104, %v101, 0
    %vm126 = vcmask 1043456
    %v128 = vsel %vm126, %v102, 0
    %130 = vmatprep.subr.mxu0 0.0
    %131 = vmatpush1.msra.mxu0 0.0
    %132 = vmatprep.subr.mxu0 0.0
    %133 = vmatpush1.msra.mxu0 0.0
    %134 = vmatprep.subr.mxu0 0.0
    %135 = vmatpush1.msra.mxu0 0.0
    %136 = vmatprep.subr.mxu0 0.0
    %137 = vmatpush1.msra.mxu0 0.0
    %138 = vmatprep.subr.mxu0 0.0
    %139 = vmatpush1.msra.mxu0 0.0
    %140 = vmatprep.subr.mxu0 0.0
    %141 = vmatpush1.msra.mxu0 0.0
    %142 = vmatprep.subr.mxu0 0.0
    %143 = vmatpush1.msra.mxu0 0.0
    %144 = vmatprep.subr.mxu0 0.0
    %145 = vmatpush1.msra.mxu0 0.0
    %146 = vmatprep.subr.mxu0 0.0
    %147 = vmatpush1.msra.mxu0 0.0
    %148 = vmatprep.subr.mxu0 0.0
    %149 = vmatpush1.msra.mxu0 0.0
    %150 = vmatprep.subr.mxu0 0.0
    %151 = vmatpush1.msra.mxu0 0.0
    %152 = vmatprep.subr.mxu0 0.0
    %153 = vmatpush1.msra.mxu0 0.0
    %154 = vmatprep.subr.mxu0 0.0
    %155 = vmatpush1.msra.mxu0 0.0
    %156 = vmatprep.subr.mxu0 0.0
    %157 = vmatpush1.msra.mxu0 0.0
    %158 = vmatprep.subr.mxu0 0.0
    %159 = vmatpush1.msra.mxu0 0.0
    %160 = vmatprep.subr.mxu0 0.0
    %161 = vmatpush1.msra.mxu0 %v128
    %162 = vmatprep.subr.mxu0 0.0
    %163 = vmatpush2.msra.mxu0 0.0
    %164 = vmatprep.subr.mxu0 0.0
    %165 = vmatpush2.msra.mxu0 0.0
    %166 = vmatprep.subr.mxu0 0.0
    %167 = vmatpush2.msra.mxu0 0.0
    %168 = vmatprep.subr.mxu0 0.0
    %169 = vmatpush2.msra.mxu0 0.0
    %170 = vmatprep.subr.mxu0 0.0
    %171 = vmatpush2.msra.mxu0 0.0
    %172 = vmatprep.subr.mxu0 0.0
    %173 = vmatpush2.msra.mxu0 0.0
    %174 = vmatprep.subr.mxu0 0.0
    %175 = vmatpush2.msra.mxu0 0.0
    %176 = vmatprep.subr.mxu0 0.0
    %177 = vmatpush2.msra.mxu0 0.0
    %178 = vmatprep.subr.mxu0 0.0
    %179 = vmatpush2.msra.mxu0 0.0
    %180 = vmatprep.subr.mxu0 0.0
    %181 = vmatpush2.msra.mxu0 0.0
    %182 = vmatprep.subr.mxu0 0.0
    %183 = vmatpush2.msra.mxu0 0.0
    %184 = vmatprep.subr.mxu0 0.0
    %185 = vmatpush2.msra.mxu0 0.0
    %186 = vmatprep.subr.mxu0 0.0
    %187 = vmatpush2.msra.mxu0 0.0
    %188 = vmatprep.subr.mxu0 0.0
    %189 = vmatpush2.msra.mxu0 0.0
    %190 = vmatprep.subr.mxu0 0.0
    %191 = vmatpush2.msra.mxu0 0.0
    %192 = vmatprep.subr.mxu0 0.0
    %193 = vmatpush2.msra.mxu0 0.0
    %194 = vmatprep.mubr.f32.mxu0 0.0
    %195 = vmatmul.mubr.f32.gmra.mxu0 %v106
    %v196 = vpop.f32.mrf.mxu0
    %v197 = vadd.f32 %v56, %v196
    %v198 = vpop.f32.mrf.mxu0
    %199 = vmatprep.mubr.f32.mxu0 0.0
    %200 = vmatmul.mubr.f32.gmra.mxu0 %v109
    %v201 = vpop.f32.mrf.mxu0
    %v202 = vadd.f32 %v56, %v201
    %v203 = vpop.f32.mrf.mxu0
    %204 = vmatprep.mubr.f32.mxu0 0.0
    %205 = vmatmul.mubr.f32.gmra.mxu0 %v112
    %v206 = vpop.f32.mrf.mxu0
    %v207 = vadd.f32 %v56, %v206
    %v208 = vpop.f32.mrf.mxu0
    %209 = vmatprep.mubr.f32.mxu0 0.0
    %210 = vmatmul.mubr.f32.gmra.mxu0 %v115
    %v211 = vpop.f32.mrf.mxu0
    %v212 = vadd.f32 %v56, %v211
    %v213 = vpop.f32.mrf.mxu0
    %214 = vmatprep.mubr.f32.mxu0 0.0
    %215 = vmatmul.mubr.f32.gmra.mxu0 %v118
    %v216 = vpop.f32.mrf.mxu0
    %v217 = vadd.f32 %v56, %v216
    %v218 = vpop.f32.mrf.mxu0
    %219 = vmatprep.mubr.f32.mxu0 0.0
    %220 = vmatmul.mubr.f32.gmra.mxu0 %v121
    %v221 = vpop.f32.mrf.mxu0
    %v222 = vadd.f32 %v56, %v221
    %v223 = vpop.f32.mrf.mxu0
    %224 = vmatprep.mubr.f32.mxu0 0.0
    %225 = vmatmul.mubr.f32.gmra.mxu0 %v124
    %v226 = vpop.f32.mrf.mxu0
    %v227 = vadd.f32 %v56, %v226
    %v228 = vpop.f32.mrf.mxu0
    %229 = vdwg.mxu0
    %vm230 = vcmp.gt.f32.partialorder %v197, 0.0
    %vm231 = vcmp.gt.f32.partialorder %v202, 0.0
    %vm232 = vcmp.gt.f32.partialorder %v207, 0.0
    %vm233 = vcmp.gt.f32.partialorder %v212, 0.0
    %vm234 = vcmp.gt.f32.partialorder %v217, 0.0
    %vm235 = vcmp.gt.f32.partialorder %v222, 0.0
    %vm236 = vcmp.gt.f32.partialorder %v227, 0.0
    %v237 = vmul.f32 %v197, 0.01
    %v238 = vmul.f32 %v202, 0.01
    %v239 = vmul.f32 %v207, 0.01
    %v240 = vmul.f32 %v212, 0.01
    %v241 = vmul.f32 %v217, 0.01
    %v242 = vmul.f32 %v222, 0.01
    %v243 = vmul.f32 %v227, 0.01
    %v244 = vsel %vm230, %v197, %v237
    %v245 = vsel %vm231, %v202, %v238
    %v246 = vsel %vm232, %v207, %v239
    %v247 = vsel %vm233, %v212, %v240
    %v248 = vsel %vm234, %v217, %v241
    %v249 = vsel %vm235, %v222, %v242
    %v250 = vsel %vm236, %v227, %v243
    %v251 = vld [vmem:[%s4] sm:$0xff]
    %v252 = vld [vmem:[%s4 + $0x8] sm:$0xff]
    %v253 = vld [vmem:[%s4 + $0x10] sm:$0xff]
    %v254 = vld [vmem:[%s4 + $0x18] sm:$0xff]
    %255 = vrot.lane.b32.xlu0 %v56, 96
    %v256 = vpop.permute.xlu0 %255
    %vm258 = vcmask 261120
    %v260 = vsel %vm258, %v244, 0
    %v263 = vsel %vm258, %v245, 0
    %v266 = vsel %vm258, %v246, 0
    %v269 = vsel %vm258, %v247, 0
    %v272 = vsel %vm258, %v248, 0
    %v275 = vsel %vm258, %v249, 0
    %v278 = vsel %vm258, %v250, 0
    %280 = vmatprep.subr.mxu0 0.0
    %281 = vmatpush1.msra.mxu0 0.0
    %282 = vmatprep.subr.mxu0 0.0
    %283 = vmatpush1.msra.mxu0 0.0
    %284 = vmatprep.subr.mxu0 0.0
    %285 = vmatpush1.msra.mxu0 0.0
    %286 = vmatprep.subr.mxu0 0.0
    %287 = vmatpush1.msra.mxu0 0.0
    %288 = vmatprep.subr.mxu0 0.0
    %289 = vmatpush1.msra.mxu0 0.0
    %290 = vmatprep.subr.mxu0 0.0
    %291 = vmatpush1.msra.mxu0 0.0
    %292 = vmatprep.subr.mxu0 0.0
    %293 = vmatpush1.msra.mxu0 0.0
    %294 = vmatprep.subr.mxu0 0.0
    %295 = vmatpush1.msra.mxu0 0.0
    %296 = vmatprep.subr.mxu0 0.0
    %297 = vmatpush1.msra.mxu0 0.0
    %298 = vmatprep.subr.mxu0 0.0
    %299 = vmatpush1.msra.mxu0 0.0
    %300 = vmatprep.subr.mxu0 0.0
    %301 = vmatpush1.msra.mxu0 0.0
    %302 = vmatprep.subr.mxu0 0.0
    %303 = vmatpush1.msra.mxu0 0.0
    %304 = vmatprep.subr.mxu0 0.0
    %305 = vmatpush1.msra.mxu0 %v254
    %306 = vmatprep.subr.mxu0 0.0
    %307 = vmatpush1.msra.mxu0 %v253
    %308 = vmatprep.subr.mxu0 0.0
    %309 = vmatpush1.msra.mxu0 %v252
    %310 = vmatprep.subr.mxu0 0.0
    %311 = vmatpush1.msra.mxu0 %v251
    %312 = vmatprep.subr.mxu0 0.0
    %313 = vmatpush2.msra.mxu0 0.0
    %314 = vmatprep.subr.mxu0 0.0
    %315 = vmatpush2.msra.mxu0 0.0
    %316 = vmatprep.subr.mxu0 0.0
    %317 = vmatpush2.msra.mxu0 0.0
    %318 = vmatprep.subr.mxu0 0.0
    %319 = vmatpush2.msra.mxu0 0.0
    %320 = vmatprep.subr.mxu0 0.0
    %321 = vmatpush2.msra.mxu0 0.0
    %322 = vmatprep.subr.mxu0 0.0
    %323 = vmatpush2.msra.mxu0 0.0
    %324 = vmatprep.subr.mxu0 0.0
    %325 = vmatpush2.msra.mxu0 0.0
    %326 = vmatprep.subr.mxu0 0.0
    %327 = vmatpush2.msra.mxu0 0.0
    %328 = vmatprep.subr.mxu0 0.0
    %329 = vmatpush2.msra.mxu0 0.0
    %330 = vmatprep.subr.mxu0 0.0
    %331 = vmatpush2.msra.mxu0 0.0
    %332 = vmatprep.subr.mxu0 0.0
    %333 = vmatpush2.msra.mxu0 0.0
    %334 = vmatprep.subr.mxu0 0.0
    %335 = vmatpush2.msra.mxu0 0.0
    %336 = vmatprep.subr.mxu0 0.0
    %337 = vmatpush2.msra.mxu0 0.0
    %338 = vmatprep.subr.mxu0 0.0
    %339 = vmatpush2.msra.mxu0 0.0
    %340 = vmatprep.subr.mxu0 0.0
    %341 = vmatpush2.msra.mxu0 0.0
    %342 = vmatprep.subr.mxu0 0.0
    %343 = vmatpush2.msra.mxu0 0.0
    %344 = vmatprep.mubr.f32.mxu0 0.0
    %345 = vmatmul.mubr.f32.gmra.mxu0 %v260
    %v346 = vpop.f32.mrf.mxu0
    %v347 = vadd.f32 %v256, %v346
    %v348 = vpop.f32.mrf.mxu0
    %349 = vmatprep.mubr.f32.mxu0 0.0
    %350 = vmatmul.mubr.f32.gmra.mxu0 %v263
    %v351 = vpop.f32.mrf.mxu0
    %v352 = vadd.f32 %v256, %v351
    %v353 = vpop.f32.mrf.mxu0
    %354 = vmatprep.mubr.f32.mxu0 0.0
    %355 = vmatmul.mubr.f32.gmra.mxu0 %v266
    %v356 = vpop.f32.mrf.mxu0
    %v357 = vadd.f32 %v256, %v356
    %v358 = vpop.f32.mrf.mxu0
    %359 = vmatprep.mubr.f32.mxu0 0.0
    %360 = vmatmul.mubr.f32.gmra.mxu0 %v269
    %v361 = vpop.f32.mrf.mxu0
    %v362 = vadd.f32 %v256, %v361
    %v363 = vpop.f32.mrf.mxu0
    %364 = vmatprep.mubr.f32.mxu0 0.0
    %365 = vmatmul.mubr.f32.gmra.mxu0 %v272
    %v366 = vpop.f32.mrf.mxu0
    %v367 = vadd.f32 %v256, %v366
    %v368 = vpop.f32.mrf.mxu0
    %369 = vmatprep.mubr.f32.mxu0 0.0
    %370 = vmatmul.mubr.f32.gmra.mxu0 %v275
    %v371 = vpop.f32.mrf.mxu0
    %v372 = vadd.f32 %v256, %v371
    %v373 = vpop.f32.mrf.mxu0
    %374 = vmatprep.mubr.f32.mxu0 0.0
    %375 = vmatmul.mubr.f32.gmra.mxu0 %v278
    %v376 = vpop.f32.mrf.mxu0
    %v377 = vadd.f32 %v256, %v376
    %v378 = vpop.f32.mrf.mxu0
    %379 = vdwg.mxu0
    %vm380 = vcmp.gt.f32.partialorder %v347, 0.0
    %vm381 = vcmp.gt.f32.partialorder %v352, 0.0
    %vm382 = vcmp.gt.f32.partialorder %v357, 0.0
    %vm383 = vcmp.gt.f32.partialorder %v362, 0.0
    %vm384 = vcmp.gt.f32.partialorder %v367, 0.0
    %vm385 = vcmp.gt.f32.partialorder %v372, 0.0
    %vm386 = vcmp.gt.f32.partialorder %v377, 0.0
    %v387 = vmul.f32 %v347, 0.01
    %v388 = vmul.f32 %v352, 0.01
    %v389 = vmul.f32 %v357, 0.01
    %v390 = vmul.f32 %v362, 0.01
    %v391 = vmul.f32 %v367, 0.01
    %v392 = vmul.f32 %v372, 0.01
    %v393 = vmul.f32 %v377, 0.01
    %v394 = vsel %vm380, %v347, %v387
    %v395 = vsel %vm381, %v352, %v388
    %v396 = vsel %vm382, %v357, %v389
    %v397 = vsel %vm383, %v362, %v390
    %v398 = vsel %vm384, %v367, %v391
    %v399 = vsel %vm385, %v372, %v392
    %v400 = vsel %vm386, %v377, %v393
    %v401 = vlaneseq
    %v402 = vshrl.u32 %v401, 7
    %v403 = vsub.s32 0, %v402
    %v404 = vrot.slane %v65, %v403
    %v406 = vsel %vm258, %v394, 0
    %v409 = vsel %vm258, %v395, 0
    %v412 = vsel %vm258, %v396, 0
    %v415 = vsel %vm258, %v397, 0
    %v418 = vsel %vm258, %v398, 0
    %v421 = vsel %vm258, %v399, 0
    %v424 = vsel %vm258, %v400, 0
    %426 = vmatprep.subr.mxu0 0.0
    %427 = vmatpush1.msra.mxu0 0.0
    %428 = vmatprep.subr.mxu0 0.0
    %429 = vmatpush1.msra.mxu0 0.0
    %430 = vmatprep.subr.mxu0 0.0
    %431 = vmatpush1.msra.mxu0 0.0
    %432 = vmatprep.subr.mxu0 0.0
    %433 = vmatpush1.msra.mxu0 0.0
    %434 = vmatprep.subr.mxu0 0.0
    %435 = vmatpush1.msra.mxu0 0.0
    %436 = vmatprep.subr.mxu0 0.0
    %437 = vmatpush1.msra.mxu0 0.0
    %438 = vmatprep.subr.mxu0 0.0
    %439 = vmatpush1.msra.mxu0 0.0
    %440 = vmatprep.subr.mxu0 0.0
    %441 = vmatpush1.msra.mxu0 0.0
    %442 = vmatprep.subr.mxu0 0.0
    %443 = vmatpush1.msra.mxu0 0.0
    %444 = vmatprep.subr.mxu0 0.0
    %445 = vmatpush1.msra.mxu0 0.0
    %446 = vmatprep.subr.mxu0 0.0
    %447 = vmatpush1.msra.mxu0 0.0
    %448 = vmatprep.subr.mxu0 0.0
    %449 = vmatpush1.msra.mxu0 0.0
    %450 = vmatprep.subr.mxu0 0.0
    %451 = vmatpush1.msra.mxu0 %v60
    %452 = vmatprep.subr.mxu0 0.0
    %453 = vmatpush1.msra.mxu0 %v59
    %454 = vmatprep.subr.mxu0 0.0
    %455 = vmatpush1.msra.mxu0 %v58
    %456 = vmatprep.subr.mxu0 0.0
    %457 = vmatpush1.msra.mxu0 %v57
    %458 = vmatprep.subr.mxu0 0.0
    %459 = vmatpush2.msra.mxu0 0.0
    %460 = vmatprep.subr.mxu0 0.0
    %461 = vmatpush2.msra.mxu0 0.0
    %462 = vmatprep.subr.mxu0 0.0
    %463 = vmatpush2.msra.mxu0 0.0
    %464 = vmatprep.subr.mxu0 0.0
    %465 = vmatpush2.msra.mxu0 0.0
    %466 = vmatprep.subr.mxu0 0.0
    %467 = vmatpush2.msra.mxu0 0.0
    %468 = vmatprep.subr.mxu0 0.0
    %469 = vmatpush2.msra.mxu0 0.0
    %470 = vmatprep.subr.mxu0 0.0
    %471 = vmatpush2.msra.mxu0 0.0
    %472 = vmatprep.subr.mxu0 0.0
    %473 = vmatpush2.msra.mxu0 0.0
    %474 = vmatprep.subr.mxu0 0.0
    %475 = vmatpush2.msra.mxu0 0.0
    %476 = vmatprep.subr.mxu0 0.0
    %477 = vmatpush2.msra.mxu0 0.0
    %478 = vmatprep.subr.mxu0 0.0
    %479 = vmatpush2.msra.mxu0 0.0
    %480 = vmatprep.subr.mxu0 0.0
    %481 = vmatpush2.msra.mxu0 0.0
    %482 = vmatprep.subr.mxu0 0.0
    %483 = vmatpush2.msra.mxu0 0.0
    %484 = vmatprep.subr.mxu0 0.0
    %485 = vmatpush2.msra.mxu0 0.0
    %486 = vmatprep.subr.mxu0 0.0
    %487 = vmatpush2.msra.mxu0 0.0
    %488 = vmatprep.subr.mxu0 0.0
    %489 = vmatpush2.msra.mxu0 0.0
    %490 = vmatprep.mubr.f32.mxu0 0.0
    %491 = vmatmul.mubr.f32.gmra.mxu0 %v406
    %v492 = vpop.f32.mrf.mxu0
    %v493 = vadd.f32 %v404, %v492
    %v494 = vpop.f32.mrf.mxu0
    %495 = vmatprep.mubr.f32.mxu0 0.0
    %496 = vmatmul.mubr.f32.gmra.mxu0 %v409
    %v497 = vpop.f32.mrf.mxu0
    %v498 = vadd.f32 %v404, %v497
    %v499 = vpop.f32.mrf.mxu0
    %500 = vmatprep.mubr.f32.mxu0 0.0
    %501 = vmatmul.mubr.f32.gmra.mxu0 %v412
    %v502 = vpop.f32.mrf.mxu0
    %v503 = vadd.f32 %v404, %v502
    %v504 = vpop.f32.mrf.mxu0
    %505 = vmatprep.mubr.f32.mxu0 0.0
    %506 = vmatmul.mubr.f32.gmra.mxu0 %v415
    %v507 = vpop.f32.mrf.mxu0
    %v508 = vadd.f32 %v404, %v507
    %v509 = vpop.f32.mrf.mxu0
    %510 = vmatprep.mubr.f32.mxu0 0.0
    %511 = vmatmul.mubr.f32.gmra.mxu0 %v418
    %v512 = vpop.f32.mrf.mxu0
    %v513 = vadd.f32 %v404, %v512
    %v514 = vpop.f32.mrf.mxu0
    %515 = vmatprep.mubr.f32.mxu0 0.0
    %516 = vmatmul.mubr.f32.gmra.mxu0 %v421
    %v517 = vpop.f32.mrf.mxu0
    %v518 = vadd.f32 %v404, %v517
    %v519 = vpop.f32.mrf.mxu0
    %520 = vmatprep.mubr.f32.mxu0 0.0
    %521 = vmatmul.mubr.f32.gmra.mxu0 %v424
    %v522 = vpop.f32.mrf.mxu0
    %v523 = vadd.f32 %v404, %v522
    %v524 = vpop.f32.mrf.mxu0
    %525 = vdwg.mxu0
    %v526 = vld [vmem:[%s1] sm:$0xff]
    %v527 = vld [vmem:[%s2] sm:$0xff]
    %vm528 = vcmp.gt.f32.partialorder %v527, 0.0
    %v530 = vsel %vm258, 0.0, 0
    %532 = vmatprep.subr.mxu0 0.0
    %533 = vmatpush1.msra.mxu0 0.0
    %534 = vmatprep.subr.mxu0 0.0
    %535 = vmatpush1.msra.mxu0 0.0
    %536 = vmatprep.subr.mxu0 0.0
    %537 = vmatpush1.msra.mxu0 0.0
    %538 = vmatprep.subr.mxu0 0.0
    %539 = vmatpush1.msra.mxu0 0.0
    %540 = vmatprep.subr.mxu0 0.0
    %541 = vmatpush1.msra.mxu0 0.0
    %542 = vmatprep.subr.mxu0 0.0
    %543 = vmatpush1.msra.mxu0 0.0
    %544 = vmatprep.subr.mxu0 0.0
    %545 = vmatpush1.msra.mxu0 0.0
    %546 = vmatprep.subr.mxu0 0.0
    %547 = vmatpush1.msra.mxu0 0.0
    %548 = vmatprep.subr.mxu0 0.0
    %549 = vmatpush1.msra.mxu0 0.0
    %550 = vmatprep.subr.mxu0 0.0
    %551 = vmatpush1.msra.mxu0 0.0
    %552 = vmatprep.subr.mxu0 0.0
    %553 = vmatpush1.msra.mxu0 0.0
    %554 = vmatprep.subr.mxu0 0.0
    %555 = vmatpush1.msra.mxu0 0.0
    %556 = vmatprep.subr.mxu0 0.0
    %557 = vmatpush1.msra.mxu0 %v64
    %558 = vmatprep.subr.mxu0 0.0
    %559 = vmatpush1.msra.mxu0 %v63
    %560 = vmatprep.subr.mxu0 0.0
    %561 = vmatpush1.msra.mxu0 %v62
    %562 = vmatprep.subr.mxu0 0.0
    %563 = vmatpush1.msra.mxu0 %v61
    %564 = vmatprep.subr.mxu0 0.0
    %565 = vmatpush2.msra.mxu0 0.0
    %566 = vmatprep.subr.mxu0 0.0
    %567 = vmatpush2.msra.mxu0 0.0
    %568 = vmatprep.subr.mxu0 0.0
    %569 = vmatpush2.msra.mxu0 0.0
    %570 = vmatprep.subr.mxu0 0.0
    %571 = vmatpush2.msra.mxu0 0.0
    %572 = vmatprep.subr.mxu0 0.0
    %573 = vmatpush2.msra.mxu0 0.0
    %574 = vmatprep.subr.mxu0 0.0
    %575 = vmatpush2.msra.mxu0 0.0
    %576 = vmatprep.subr.mxu0 0.0
    %577 = vmatpush2.msra.mxu0 0.0
    %578 = vmatprep.subr.mxu0 0.0
    %579 = vmatpush2.msra.mxu0 0.0
    %580 = vmatprep.subr.mxu0 0.0
    %581 = vmatpush2.msra.mxu0 0.0
    %582 = vmatprep.subr.mxu0 0.0
    %583 = vmatpush2.msra.mxu0 0.0
    %584 = vmatprep.subr.mxu0 0.0
    %585 = vmatpush2.msra.mxu0 0.0
    %586 = vmatprep.subr.mxu0 0.0
    %587 = vmatpush2.msra.mxu0 0.0
    %588 = vmatprep.subr.mxu0 0.0
    %589 = vmatpush2.msra.mxu0 0.0
    %590 = vmatprep.subr.mxu0 0.0
    %591 = vmatpush2.msra.mxu0 0.0
    %592 = vmatprep.subr.mxu0 0.0
    %593 = vmatpush2.msra.mxu0 0.0
    %594 = vmatprep.subr.mxu0 0.0
    %595 = vmatpush2.msra.mxu0 0.0
    %596 = vmatprep.mubr.f32.mxu0 0.0
    %597 = vmatmul.mubr.f32.gmra.mxu0 %v530
    %v598 = vpop.f32.mrf.mxu0
    %v599 = vadd.f32 %v70, %v598
    %v600 = vpop.f32.mrf.mxu0
    %601 = vdwg.mxu0
    %v602 = vadd.f32 %v493, %v599
    %v603 = vxor.u32 %v602, 2147483648
    %v604 = vmul.f32 %v603, 1.442695
    %v605 = vpow.pop %v604
    %v606 = vadd.f32 %v605, 1.0
    %v607 = vrcp.pop %v606
    %v608 = vmul.f32 1.0, %v607
    %610 = vrot.lane.b32.xlu0 %v599, 64
    %v611 = vpop.permute.xlu0 %610
    %v613 = vmul.f32 %v608, %v611
    %615 = vrot.lane.b32.xlu0 %v613, 64
    %v616 = vpop.permute.xlu0 %615
    %v618 = vadd.f32 %v493, %v616
    %v619 = vtanh.pop %v618
    %v620 = vsub.f32 1.0, %v608
    %622 = vrot.lane.b32.xlu0 %v619, 96
    %v623 = vpop.permute.xlu0 %622
    %v625 = vmul.f32 %v620, %v623
    %v626 = vmul.f32 %v608, 0.0
    %v627 = vadd.f32 %v625, %v626
    %629 = vrot.lane.b32.xlu0 %v627, 96
    %v630 = vpop.permute.xlu0 %629
    %v631 = vsel %vm258, %v630, 0
    %633 = vmatprep.subr.mxu0 0.0
    %634 = vmatpush1.msra.mxu0 0.0
    %635 = vmatprep.subr.mxu0 0.0
    %636 = vmatpush1.msra.mxu0 0.0
    %637 = vmatprep.subr.mxu0 0.0
    %638 = vmatpush1.msra.mxu0 0.0
    %639 = vmatprep.subr.mxu0 0.0
    %640 = vmatpush1.msra.mxu0 0.0
    %641 = vmatprep.subr.mxu0 0.0
    %642 = vmatpush1.msra.mxu0 0.0
    %643 = vmatprep.subr.mxu0 0.0
    %644 = vmatpush1.msra.mxu0 0.0
    %645 = vmatprep.subr.mxu0 0.0
    %646 = vmatpush1.msra.mxu0 0.0
    %647 = vmatprep.subr.mxu0 0.0
    %648 = vmatpush1.msra.mxu0 0.0
    %649 = vmatprep.subr.mxu0 0.0
    %650 = vmatpush1.msra.mxu0 0.0
    %651 = vmatprep.subr.mxu0 0.0
    %652 = vmatpush1.msra.mxu0 0.0
    %653 = vmatprep.subr.mxu0 0.0
    %654 = vmatpush1.msra.mxu0 0.0
    %655 = vmatprep.subr.mxu0 0.0
    %656 = vmatpush1.msra.mxu0 0.0
    %657 = vmatprep.subr.mxu0 0.0
    %658 = vmatpush1.msra.mxu0 %v74
    %659 = vmatprep.subr.mxu0 0.0
    %660 = vmatpush1.msra.mxu0 %v73
    %661 = vmatprep.subr.mxu0 0.0
    %662 = vmatpush1.msra.mxu0 %v72
    %663 = vmatprep.subr.mxu0 0.0
    %664 = vmatpush1.msra.mxu0 %v71
    %665 = vmatprep.subr.mxu0 0.0
    %666 = vmatpush2.msra.mxu0 0.0
    %667 = vmatprep.subr.mxu0 0.0
    %668 = vmatpush2.msra.mxu0 0.0
    %669 = vmatprep.subr.mxu0 0.0
    %670 = vmatpush2.msra.mxu0 0.0
    %671 = vmatprep.subr.mxu0 0.0
    %672 = vmatpush2.msra.mxu0 0.0
    %673 = vmatprep.subr.mxu0 0.0
    %674 = vmatpush2.msra.mxu0 0.0
    %675 = vmatprep.subr.mxu0 0.0
    %676 = vmatpush2.msra.mxu0 0.0
    %677 = vmatprep.subr.mxu0 0.0
    %678 = vmatpush2.msra.mxu0 0.0
    %679 = vmatprep.subr.mxu0 0.0
    %680 = vmatpush2.msra.mxu0 0.0
    %681 = vmatprep.subr.mxu0 0.0
    %682 = vmatpush2.msra.mxu0 0.0
    %683 = vmatprep.subr.mxu0 0.0
    %684 = vmatpush2.msra.mxu0 0.0
    %685 = vmatprep.subr.mxu0 0.0
    %686 = vmatpush2.msra.mxu0 0.0
    %687 = vmatprep.subr.mxu0 0.0
    %688 = vmatpush2.msra.mxu0 0.0
    %689 = vmatprep.subr.mxu0 0.0
    %690 = vmatpush2.msra.mxu0 0.0
    %691 = vmatprep.subr.mxu0 0.0
    %692 = vmatpush2.msra.mxu0 0.0
    %693 = vmatprep.subr.mxu0 0.0
    %694 = vmatpush2.msra.mxu0 0.0
    %695 = vmatprep.subr.mxu0 0.0
    %696 = vmatpush2.msra.mxu0 0.0
    %697 = vmatprep.mubr.f32.mxu0 0.0
    %698 = vmatmul.mubr.f32.gmra.mxu0 %v631
    %v699 = vpop.f32.mrf.mxu0
    %v700 = vadd.f32 0.0, %v699
    %v701 = vpop.f32.mrf.mxu0
    %702 = vdwg.mxu0
    %v703 = vlaneseq
    %v704 = vshrl.u32 %v703, 7
    %v705 = vsub.s32 0, %v704
    %v706 = vrot.slane %v75, %v705
    %v707 = vmul.f32 %v700, %v706
    %vm708 = vcmask 130048
    %v709 = vsel %vm708, %v707, 0.0
    %710 = vadd.xlane.f32.xlu0 %v709
    %v711 = vpop.xlane.xlu0 %710
    %v713 = vsel %vm708, %v76, 0
    %v716 = vsel %vm708, %v700, 0
    %718 = vmatprep.subr.mxu0 0.0
    %719 = vmatpush1.xpose.msra.mxu0 0.0
    %720 = vmatprep.subr.mxu0 0.0
    %721 = vmatpush1.xpose.msra.mxu0 0.0
    %722 = vmatprep.subr.mxu0 0.0
    %723 = vmatpush1.xpose.msra.mxu0 0.0
    %724 = vmatprep.subr.mxu0 0.0
    %725 = vmatpush1.xpose.msra.mxu0 0.0
    %726 = vmatprep.subr.mxu0 0.0
    %727 = vmatpush1.xpose.msra.mxu0 0.0
    %728 = vmatprep.subr.mxu0 0.0
    %729 = vmatpush1.xpose.msra.mxu0 0.0
    %730 = vmatprep.subr.mxu0 0.0
    %731 = vmatpush1.xpose.msra.mxu0 0.0
    %732 = vmatprep.subr.mxu0 0.0
    %733 = vmatpush1.xpose.msra.mxu0 0.0
    %734 = vmatprep.subr.mxu0 0.0
    %735 = vmatpush1.xpose.msra.mxu0 0.0
    %736 = vmatprep.subr.mxu0 0.0
    %737 = vmatpush1.xpose.msra.mxu0 0.0
    %738 = vmatprep.subr.mxu0 0.0
    %739 = vmatpush1.xpose.msra.mxu0 0.0
    %740 = vmatprep.subr.mxu0 0.0
    %741 = vmatpush1.xpose.msra.mxu0 0.0
    %742 = vmatprep.subr.mxu0 0.0
    %743 = vmatpush1.xpose.msra.mxu0 0.0
    %744 = vmatprep.subr.mxu0 0.0
    %745 = vmatpush1.xpose.msra.mxu0 0.0
    %746 = vmatprep.subr.mxu0 0.0
    %747 = vmatpush1.xpose.msra.mxu0 0.0
    %748 = vmatprep.subr.mxu0 0.0
    %749 = vmatpush1.xpose.msra.mxu0 %v716
    %750 = vmatprep.subr.mxu0 0.0
    %751 = vmatpush2.xpose.msra.mxu0 0.0
    %752 = vmatprep.subr.mxu0 0.0
    %753 = vmatpush2.xpose.msra.mxu0 0.0
    %754 = vmatprep.subr.mxu0 0.0
    %755 = vmatpush2.xpose.msra.mxu0 0.0
    %756 = vmatprep.subr.mxu0 0.0
    %757 = vmatpush2.xpose.msra.mxu0 0.0
    %758 = vmatprep.subr.mxu0 0.0
    %759 = vmatpush2.xpose.msra.mxu0 0.0
    %760 = vmatprep.subr.mxu0 0.0
    %761 = vmatpush2.xpose.msra.mxu0 0.0
    %762 = vmatprep.subr.mxu0 0.0
    %763 = vmatpush2.xpose.msra.mxu0 0.0
    %764 = vmatprep.subr.mxu0 0.0
    %765 = vmatpush2.xpose.msra.mxu0 0.0
    %766 = vmatprep.subr.mxu0 0.0
    %767 = vmatpush2.xpose.msra.mxu0 0.0
    %768 = vmatprep.subr.mxu0 0.0
    %769 = vmatpush2.xpose.msra.mxu0 0.0
    %770 = vmatprep.subr.mxu0 0.0
    %771 = vmatpush2.xpose.msra.mxu0 0.0
    %772 = vmatprep.subr.mxu0 0.0
    %773 = vmatpush2.xpose.msra.mxu0 0.0
    %774 = vmatprep.subr.mxu0 0.0
    %775 = vmatpush2.xpose.msra.mxu0 0.0
    %776 = vmatprep.subr.mxu0 0.0
    %777 = vmatpush2.xpose.msra.mxu0 0.0
    %778 = vmatprep.subr.mxu0 0.0
    %779 = vmatpush2.xpose.msra.mxu0 0.0
    %780 = vmatprep.subr.mxu0 0.0
    %781 = vmatpush2.xpose.msra.mxu0 0.0
    %782 = vmatprep.mubr.f32.mxu0 0.0
    %783 = vmatmul.mubr.f32.gmra.mxu0 %v713
    %v784 = vpop.f32.mrf.mxu0
    %v785 = vadd.f32 0.0, %v784
    %v786 = vpop.f32.mrf.mxu0
    %787 = vdwg.mxu0
    %v788 = vlaneseq
    %v789 = vshrl.u32 %v788, 7
    %v790 = vsub.s32 0, %v789
    %v791 = vrot.slane %v785, %v790
    %v792 = vadd.f32 %v711, %v791
    %vm793 = vcmp.gt.f32.partialorder %v792, 0.0
    %v794 = vmul.f32 %v792, 0.2
    %v795 = vsel %vm793, %v792, %v794
    %v796 = vsel %vm528, %v795, -9e+15
    %vm797 = vcmask 64512
    %v798 = vsel %vm797, %v796, -inf
    %799 = vmax.xlane.f32.xlu0 %v798
    %v800 = vpop.xlane.xlu0 %799
    %v801 = vsub.f32 %v796, %v800
    %v802 = vmul.f32 %v801, 1.442695
    %v803 = vpow.pop %v802
    %v804 = vsel %vm797, %v803, 0.0
    %805 = vadd.xlane.f32.xlu0 %v804
    %v806 = vpop.xlane.xlu0 %805
    %v807 = vrcp.pop %v806
    %v808 = vmul.f32 %v803, %v807
    %v810 = vsel %vm797, %v808, 0
    %812 = vmatprep.subr.mxu0 0.0
    %813 = vmatpush1.msra.mxu0 0.0
    %814 = vmatprep.subr.mxu0 0.0
    %815 = vmatpush1.msra.mxu0 0.0
    %816 = vmatprep.subr.mxu0 0.0
    %817 = vmatpush1.msra.mxu0 0.0
    %818 = vmatprep.subr.mxu0 0.0
    %819 = vmatpush1.msra.mxu0 0.0
    %820 = vmatprep.subr.mxu0 0.0
    %821 = vmatpush1.msra.mxu0 0.0
    %822 = vmatprep.subr.mxu0 0.0
    %823 = vmatpush1.msra.mxu0 0.0
    %824 = vmatprep.subr.mxu0 0.0
    %825 = vmatpush1.msra.mxu0 0.0
    %826 = vmatprep.subr.mxu0 0.0
    %827 = vmatpush1.msra.mxu0 0.0
    %828 = vmatprep.subr.mxu0 0.0
    %829 = vmatpush1.msra.mxu0 0.0
    %830 = vmatprep.subr.mxu0 0.0
    %831 = vmatpush1.msra.mxu0 0.0
    %832 = vmatprep.subr.mxu0 0.0
    %833 = vmatpush1.msra.mxu0 0.0
    %834 = vmatprep.subr.mxu0 0.0
    %835 = vmatpush1.msra.mxu0 0.0
    %836 = vmatprep.subr.mxu0 0.0
    %837 = vmatpush1.msra.mxu0 0.0
    %838 = vmatprep.subr.mxu0 0.0
    %839 = vmatpush1.msra.mxu0 0.0
    %840 = vmatprep.subr.mxu0 0.0
    %841 = vmatpush1.msra.mxu0 0.0
    %842 = vmatprep.subr.mxu0 0.0
    %843 = vmatpush1.msra.mxu0 %v700
    %844 = vmatprep.subr.mxu0 0.0
    %845 = vmatpush2.msra.mxu0 0.0
    %846 = vmatprep.subr.mxu0 0.0
    %847 = vmatpush2.msra.mxu0 0.0
    %848 = vmatprep.subr.mxu0 0.0
    %849 = vmatpush2.msra.mxu0 0.0
    %850 = vmatprep.subr.mxu0 0.0
    %851 = vmatpush2.msra.mxu0 0.0
    %852 = vmatprep.subr.mxu0 0.0
    %853 = vmatpush2.msra.mxu0 0.0
    %854 = vmatprep.subr.mxu0 0.0
    %855 = vmatpush2.msra.mxu0 0.0
    %856 = vmatprep.subr.mxu0 0.0
    %857 = vmatpush2.msra.mxu0 0.0
    %858 = vmatprep.subr.mxu0 0.0
    %859 = vmatpush2.msra.mxu0 0.0
    %860 = vmatprep.subr.mxu0 0.0
    %861 = vmatpush2.msra.mxu0 0.0
    %862 = vmatprep.subr.mxu0 0.0
    %863 = vmatpush2.msra.mxu0 0.0
    %864 = vmatprep.subr.mxu0 0.0
    %865 = vmatpush2.msra.mxu0 0.0
    %866 = vmatprep.subr.mxu0 0.0
    %867 = vmatpush2.msra.mxu0 0.0
    %868 = vmatprep.subr.mxu0 0.0
    %869 = vmatpush2.msra.mxu0 0.0
    %870 = vmatprep.subr.mxu0 0.0
    %871 = vmatpush2.msra.mxu0 0.0
    %872 = vmatprep.subr.mxu0 0.0
    %873 = vmatpush2.msra.mxu0 0.0
    %874 = vmatprep.subr.mxu0 0.0
    %875 = vmatpush2.msra.mxu0 0.0
    %876 = vmatprep.mubr.f32.mxu0 0.0
    %877 = vmatmul.mubr.f32.gmra.mxu0 %v810
    %v878 = vpop.f32.mrf.mxu0
    %v879 = vadd.f32 0.0, %v878
    %v880 = vpop.f32.mrf.mxu0
    %881 = vdwg.mxu0
    %vm882 = vcmp.gt.f32.partialorder %v879, 0.0
    %v883 = vmul.f32 %v879, 1.442695
    %v884 = vpow.pop %v883
    %v885 = vsub.f32 %v884, 1.0
    %v886 = vsel %vm882, %v879, %v885
    %888 = vrot.lane.b32.xlu0 %v707, 112
    %v889 = vpop.permute.xlu0 %888
    %v891 = vsel %vm708, %v889, 0.0
    %892 = vadd.xlane.f32.xlu0 %v891
    %v893 = vpop.xlane.xlu0 %892
    %894 = vrot.lane.b32.xlu0 %v76, 112
    %v895 = vpop.permute.xlu0 %894
    %896 = vrot.lane.b32.xlu0 %v700, 112
    %v897 = vpop.permute.xlu0 %896
    %v898 = vsel %vm708, %v895, 0
    %v900 = vsel %vm708, %v897, 0
    %902 = vmatprep.subr.mxu0 0.0
    %903 = vmatpush1.xpose.msra.mxu0 0.0
    %904 = vmatprep.subr.mxu0 0.0
    %905 = vmatpush1.xpose.msra.mxu0 0.0
    %906 = vmatprep.subr.mxu0 0.0
    %907 = vmatpush1.xpose.msra.mxu0 0.0
    %908 = vmatprep.subr.mxu0 0.0
    %909 = vmatpush1.xpose.msra.mxu0 0.0
    %910 = vmatprep.subr.mxu0 0.0
    %911 = vmatpush1.xpose.msra.mxu0 0.0
    %912 = vmatprep.subr.mxu0 0.0
    %913 = vmatpush1.xpose.msra.mxu0 0.0
    %914 = vmatprep.subr.mxu0 0.0
    %915 = vmatpush1.xpose.msra.mxu0 0.0
    %916 = vmatprep.subr.mxu0 0.0
    %917 = vmatpush1.xpose.msra.mxu0 0.0
    %918 = vmatprep.subr.mxu0 0.0
    %919 = vmatpush1.xpose.msra.mxu0 0.0
    %920 = vmatprep.subr.mxu0 0.0
    %921 = vmatpush1.xpose.msra.mxu0 0.0
    %922 = vmatprep.subr.mxu0 0.0
    %923 = vmatpush1.xpose.msra.mxu0 0.0
    %924 = vmatprep.subr.mxu0 0.0
    %925 = vmatpush1.xpose.msra.mxu0 0.0
    %926 = vmatprep.subr.mxu0 0.0
    %927 = vmatpush1.xpose.msra.mxu0 0.0
    %928 = vmatprep.subr.mxu0 0.0
    %929 = vmatpush1.xpose.msra.mxu0 0.0
    %930 = vmatprep.subr.mxu0 0.0
    %931 = vmatpush1.xpose.msra.mxu0 0.0
    %932 = vmatprep.subr.mxu0 0.0
    %933 = vmatpush1.xpose.msra.mxu0 %v900
    %934 = vmatprep.subr.mxu0 0.0
    %935 = vmatpush2.xpose.msra.mxu0 0.0
    %936 = vmatprep.subr.mxu0 0.0
    %937 = vmatpush2.xpose.msra.mxu0 0.0
    %938 = vmatprep.subr.mxu0 0.0
    %939 = vmatpush2.xpose.msra.mxu0 0.0
    %940 = vmatprep.subr.mxu0 0.0
    %941 = vmatpush2.xpose.msra.mxu0 0.0
    %942 = vmatprep.subr.mxu0 0.0
    %943 = vmatpush2.xpose.msra.mxu0 0.0
    %944 = vmatprep.subr.mxu0 0.0
    %945 = vmatpush2.xpose.msra.mxu0 0.0
    %946 = vmatprep.subr.mxu0 0.0
    %947 = vmatpush2.xpose.msra.mxu0 0.0
    %948 = vmatprep.subr.mxu0 0.0
    %949 = vmatpush2.xpose.msra.mxu0 0.0
    %950 = vmatprep.subr.mxu0 0.0
    %951 = vmatpush2.xpose.msra.mxu0 0.0
    %952 = vmatprep.subr.mxu0 0.0
    %953 = vmatpush2.xpose.msra.mxu0 0.0
    %954 = vmatprep.subr.mxu0 0.0
    %955 = vmatpush2.xpose.msra.mxu0 0.0
    %956 = vmatprep.subr.mxu0 0.0
    %957 = vmatpush2.xpose.msra.mxu0 0.0
    %958 = vmatprep.subr.mxu0 0.0
    %959 = vmatpush2.xpose.msra.mxu0 0.0
    %960 = vmatprep.subr.mxu0 0.0
    %961 = vmatpush2.xpose.msra.mxu0 0.0
    %962 = vmatprep.subr.mxu0 0.0
    %963 = vmatpush2.xpose.msra.mxu0 0.0
    %964 = vmatprep.subr.mxu0 0.0
    %965 = vmatpush2.xpose.msra.mxu0 0.0
    %966 = vmatprep.mubr.f32.mxu0 0.0
    %967 = vmatmul.mubr.f32.gmra.mxu0 %v898
    %v968 = vpop.f32.mrf.mxu0
    %v969 = vadd.f32 0.0, %v968
    %v970 = vpop.f32.mrf.mxu0
    %971 = vdwg.mxu0
    %v972 = vlaneseq
    %v973 = vshrl.u32 %v972, 7
    %v974 = vsub.s32 0, %v973
    %v975 = vrot.slane %v969, %v974
    %v976 = vadd.f32 %v893, %v975
    %vm977 = vcmp.gt.f32.partialorder %v976, 0.0
    %v978 = vmul.f32 %v976, 0.2
    %v979 = vsel %vm977, %v976, %v978
    %v980 = vsel %vm528, %v979, -9e+15
    %v981 = vsel %vm797, %v980, -inf
    %982 = vmax.xlane.f32.xlu0 %v981
    %v983 = vpop.xlane.xlu0 %982
    %v984 = vsub.f32 %v980, %v983
    %v985 = vmul.f32 %v984, 1.442695
    %v986 = vpow.pop %v985
    %v987 = vsel %vm797, %v986, 0.0
    %988 = vadd.xlane.f32.xlu0 %v987
    %v989 = vpop.xlane.xlu0 %988
    %v990 = vrcp.pop %v989
    %v991 = vmul.f32 %v986, %v990
    %v994 = vsel %vm797, %v991, 0
    %996 = vmatprep.subr.mxu0 0.0
    %997 = vmatpush1.msra.mxu0 0.0
    %998 = vmatprep.subr.mxu0 0.0
    %999 = vmatpush1.msra.mxu0 0.0
    %1000 = vmatprep.subr.mxu0 0.0
    %1001 = vmatpush1.msra.mxu0 0.0
    %1002 = vmatprep.subr.mxu0 0.0
    %1003 = vmatpush1.msra.mxu0 0.0
    %1004 = vmatprep.subr.mxu0 0.0
    %1005 = vmatpush1.msra.mxu0 0.0
    %1006 = vmatprep.subr.mxu0 0.0
    %1007 = vmatpush1.msra.mxu0 0.0
    %1008 = vmatprep.subr.mxu0 0.0
    %1009 = vmatpush1.msra.mxu0 0.0
    %1010 = vmatprep.subr.mxu0 0.0
    %1011 = vmatpush1.msra.mxu0 0.0
    %1012 = vmatprep.subr.mxu0 0.0
    %1013 = vmatpush1.msra.mxu0 0.0
    %1014 = vmatprep.subr.mxu0 0.0
    %1015 = vmatpush1.msra.mxu0 0.0
    %1016 = vmatprep.subr.mxu0 0.0
    %1017 = vmatpush1.msra.mxu0 0.0
    %1018 = vmatprep.subr.mxu0 0.0
    %1019 = vmatpush1.msra.mxu0 0.0
    %1020 = vmatprep.subr.mxu0 0.0
    %1021 = vmatpush1.msra.mxu0 0.0
    %1022 = vmatprep.subr.mxu0 0.0
    %1023 = vmatpush1.msra.mxu0 0.0
    %1024 = vmatprep.subr.mxu0 0.0
    %1025 = vmatpush1.msra.mxu0 0.0
    %1026 = vmatprep.subr.mxu0 0.0
    %1027 = vmatpush1.msra.mxu0 %v897
    %1028 = vmatprep.subr.mxu0 0.0
    %1029 = vmatpush2.msra.mxu0 0.0
    %1030 = vmatprep.subr.mxu0 0.0
    %1031 = vmatpush2.msra.mxu0 0.0
    %1032 = vmatprep.subr.mxu0 0.0
    %1033 = vmatpush2.msra.mxu0 0.0
    %1034 = vmatprep.subr.mxu0 0.0
    %1035 = vmatpush2.msra.mxu0 0.0
    %1036 = vmatprep.subr.mxu0 0.0
    %1037 = vmatpush2.msra.mxu0 0.0
    %1038 = vmatprep.subr.mxu0 0.0
    %1039 = vmatpush2.msra.mxu0 0.0
    %1040 = vmatprep.subr.mxu0 0.0
    %1041 = vmatpush2.msra.mxu0 0.0
    %1042 = vmatprep.subr.mxu0 0.0
    %1043 = vmatpush2.msra.mxu0 0.0
    %1044 = vmatprep.subr.mxu0 0.0
    %1045 = vmatpush2.msra.mxu0 0.0
    %1046 = vmatprep.subr.mxu0 0.0
    %1047 = vmatpush2.msra.mxu0 0.0
    %1048 = vmatprep.subr.mxu0 0.0
    %1049 = vmatpush2.msra.mxu0 0.0
    %1050 = vmatprep.subr.mxu0 0.0
    %1051 = vmatpush2.msra.mxu0 0.0
    %1052 = vmatprep.subr.mxu0 0.0
    %1053 = vmatpush2.msra.mxu0 0.0
    %1054 = vmatprep.subr.mxu0 0.0
    %1055 = vmatpush2.msra.mxu0 0.0
    %1056 = vmatprep.subr.mxu0 0.0
    %1057 = vmatpush2.msra.mxu0 0.0
    %1058 = vmatprep.subr.mxu0 0.0
    %1059 = vmatpush2.msra.mxu0 0.0
    %1060 = vmatprep.mubr.f32.mxu0 0.0
    %1061 = vmatmul.mubr.f32.gmra.mxu0 %v994
    %v1062 = vpop.f32.mrf.mxu0
    %v1063 = vadd.f32 0.0, %v1062
    %v1064 = vpop.f32.mrf.mxu0
    %1065 = vdwg.mxu0
    %vm1066 = vcmp.gt.f32.partialorder %v1063, 0.0
    %v1067 = vmul.f32 %v1063, 1.442695
    %v1068 = vpow.pop %v1067
    %v1069 = vsub.f32 %v1068, 1.0
    %v1070 = vsel %vm1066, %v1063, %v1069
    %1072 = vrot.lane.b32.xlu0 %v1070, 16
    %v1073 = vpop.permute.xlu0 %1072
    %v1075 = vsel %vm708, %v886, %v1073
    %v1077 = vsel %vm258, %v1075, 0
    %1079 = vmatprep.subr.mxu0 0.0
    %1080 = vmatpush1.msra.mxu0 0.0
    %1081 = vmatprep.subr.mxu0 0.0
    %1082 = vmatpush1.msra.mxu0 0.0
    %1083 = vmatprep.subr.mxu0 0.0
    %1084 = vmatpush1.msra.mxu0 0.0
    %1085 = vmatprep.subr.mxu0 0.0
    %1086 = vmatpush1.msra.mxu0 0.0
    %1087 = vmatprep.subr.mxu0 0.0
    %1088 = vmatpush1.msra.mxu0 0.0
    %1089 = vmatprep.subr.mxu0 0.0
    %1090 = vmatpush1.msra.mxu0 0.0
    %1091 = vmatprep.subr.mxu0 0.0
    %1092 = vmatpush1.msra.mxu0 0.0
    %1093 = vmatprep.subr.mxu0 0.0
    %1094 = vmatpush1.msra.mxu0 0.0
    %1095 = vmatprep.subr.mxu0 0.0
    %1096 = vmatpush1.msra.mxu0 0.0
    %1097 = vmatprep.subr.mxu0 0.0
    %1098 = vmatpush1.msra.mxu0 0.0
    %1099 = vmatprep.subr.mxu0 0.0
    %1100 = vmatpush1.msra.mxu0 0.0
    %1101 = vmatprep.subr.mxu0 0.0
    %1102 = vmatpush1.msra.mxu0 0.0
    %1103 = vmatprep.subr.mxu0 0.0
    %1104 = vmatpush1.msra.mxu0 %v80
    %1105 = vmatprep.subr.mxu0 0.0
    %1106 = vmatpush1.msra.mxu0 %v79
    %1107 = vmatprep.subr.mxu0 0.0
    %1108 = vmatpush1.msra.mxu0 %v78
    %1109 = vmatprep.subr.mxu0 0.0
    %1110 = vmatpush1.msra.mxu0 %v77
    %1111 = vmatprep.subr.mxu0 0.0
    %1112 = vmatpush2.msra.mxu0 0.0
    %1113 = vmatprep.subr.mxu0 0.0
    %1114 = vmatpush2.msra.mxu0 0.0
    %1115 = vmatprep.subr.mxu0 0.0
    %1116 = vmatpush2.msra.mxu0 0.0
    %1117 = vmatprep.subr.mxu0 0.0
    %1118 = vmatpush2.msra.mxu0 0.0
    %1119 = vmatprep.subr.mxu0 0.0
    %1120 = vmatpush2.msra.mxu0 0.0
    %1121 = vmatprep.subr.mxu0 0.0
    %1122 = vmatpush2.msra.mxu0 0.0
    %1123 = vmatprep.subr.mxu0 0.0
    %1124 = vmatpush2.msra.mxu0 0.0
    %1125 = vmatprep.subr.mxu0 0.0
    %1126 = vmatpush2.msra.mxu0 0.0
    %1127 = vmatprep.subr.mxu0 0.0
    %1128 = vmatpush2.msra.mxu0 0.0
    %1129 = vmatprep.subr.mxu0 0.0
    %1130 = vmatpush2.msra.mxu0 0.0
    %1131 = vmatprep.subr.mxu0 0.0
    %1132 = vmatpush2.msra.mxu0 0.0
    %1133 = vmatprep.subr.mxu0 0.0
    %1134 = vmatpush2.msra.mxu0 0.0
    %1135 = vmatprep.subr.mxu0 0.0
    %1136 = vmatpush2.msra.mxu0 0.0
    %1137 = vmatprep.subr.mxu0 0.0
    %1138 = vmatpush2.msra.mxu0 0.0
    %1139 = vmatprep.subr.mxu0 0.0
    %1140 = vmatpush2.msra.mxu0 0.0
    %1141 = vmatprep.subr.mxu0 0.0
    %1142 = vmatpush2.msra.mxu0 0.0
    %1143 = vmatprep.mubr.f32.mxu0 0.0
    %1144 = vmatmul.mubr.f32.gmra.mxu0 %v1077
    %v1145 = vpop.f32.mrf.mxu0
    %v1146 = vadd.f32 0.0, %v1145
    %v1147 = vpop.f32.mrf.mxu0
    %1148 = vdwg.mxu0
    %v1149 = vlaneseq
    %v1150 = vshrl.u32 %v1149, 7
    %v1151 = vsub.s32 0, %v1150
    %v1152 = vrot.slane %v81, %v1151
    %v1153 = vmul.f32 %v1146, %v1152
    %v1154 = vsel %vm258, %v1153, 0.0
    %1155 = vadd.xlane.f32.xlu0 %v1154
    %v1156 = vpop.xlane.xlu0 %1155
    %v1158 = vsel %vm258, %v82, 0
    %v1161 = vsel %vm258, %v1146, 0
    %1163 = vmatprep.subr.mxu0 0.0
    %1164 = vmatpush1.xpose.msra.mxu0 0.0
    %1165 = vmatprep.subr.mxu0 0.0
    %1166 = vmatpush1.xpose.msra.mxu0 0.0
    %1167 = vmatprep.subr.mxu0 0.0
    %1168 = vmatpush1.xpose.msra.mxu0 0.0
    %1169 = vmatprep.subr.mxu0 0.0
    %1170 = vmatpush1.xpose.msra.mxu0 0.0
    %1171 = vmatprep.subr.mxu0 0.0
    %1172 = vmatpush1.xpose.msra.mxu0 0.0
    %1173 = vmatprep.subr.mxu0 0.0
    %1174 = vmatpush1.xpose.msra.mxu0 0.0
    %1175 = vmatprep.subr.mxu0 0.0
    %1176 = vmatpush1.xpose.msra.mxu0 0.0
    %1177 = vmatprep.subr.mxu0 0.0
    %1178 = vmatpush1.xpose.msra.mxu0 0.0
    %1179 = vmatprep.subr.mxu0 0.0
    %1180 = vmatpush1.xpose.msra.mxu0 0.0
    %1181 = vmatprep.subr.mxu0 0.0
    %1182 = vmatpush1.xpose.msra.mxu0 0.0
    %1183 = vmatprep.subr.mxu0 0.0
    %1184 = vmatpush1.xpose.msra.mxu0 0.0
    %1185 = vmatprep.subr.mxu0 0.0
    %1186 = vmatpush1.xpose.msra.mxu0 0.0
    %1187 = vmatprep.subr.mxu0 0.0
    %1188 = vmatpush1.xpose.msra.mxu0 0.0
    %1189 = vmatprep.subr.mxu0 0.0
    %1190 = vmatpush1.xpose.msra.mxu0 0.0
    %1191 = vmatprep.subr.mxu0 0.0
    %1192 = vmatpush1.xpose.msra.mxu0 0.0
    %1193 = vmatprep.subr.mxu0 0.0
    %1194 = vmatpush1.xpose.msra.mxu0 %v1161
    %1195 = vmatprep.subr.mxu0 0.0
    %1196 = vmatpush2.xpose.msra.mxu0 0.0
    %1197 = vmatprep.subr.mxu0 0.0
    %1198 = vmatpush2.xpose.msra.mxu0 0.0
    %1199 = vmatprep.subr.mxu0 0.0
    %1200 = vmatpush2.xpose.msra.mxu0 0.0
    %1201 = vmatprep.subr.mxu0 0.0
    %1202 = vmatpush2.xpose.msra.mxu0 0.0
    %1203 = vmatprep.subr.mxu0 0.0
    %1204 = vmatpush2.xpose.msra.mxu0 0.0
    %1205 = vmatprep.subr.mxu0 0.0
    %1206 = vmatpush2.xpose.msra.mxu0 0.0
    %1207 = vmatprep.subr.mxu0 0.0
    %1208 = vmatpush2.xpose.msra.mxu0 0.0
    %1209 = vmatprep.subr.mxu0 0.0
    %1210 = vmatpush2.xpose.msra.mxu0 0.0
    %1211 = vmatprep.subr.mxu0 0.0
    %1212 = vmatpush2.xpose.msra.mxu0 0.0
    %1213 = vmatprep.subr.mxu0 0.0
    %1214 = vmatpush2.xpose.msra.mxu0 0.0
    %1215 = vmatprep.subr.mxu0 0.0
    %1216 = vmatpush2.xpose.msra.mxu0 0.0
    %1217 = vmatprep.subr.mxu0 0.0
    %1218 = vmatpush2.xpose.msra.mxu0 0.0
    %1219 = vmatprep.subr.mxu0 0.0
    %1220 = vmatpush2.xpose.msra.mxu0 0.0
    %1221 = vmatprep.subr.mxu0 0.0
    %1222 = vmatpush2.xpose.msra.mxu0 0.0
    %1223 = vmatprep.subr.mxu0 0.0
    %1224 = vmatpush2.xpose.msra.mxu0 0.0
    %1225 = vmatprep.subr.mxu0 0.0
    %1226 = vmatpush2.xpose.msra.mxu0 0.0
    %1227 = vmatprep.mubr.f32.mxu0 0.0
    %1228 = vmatmul.mubr.f32.gmra.mxu0 %v1158
    %v1229 = vpop.f32.mrf.mxu0
    %v1230 = vadd.f32 0.0, %v1229
    %v1231 = vpop.f32.mrf.mxu0
    %1232 = vdwg.mxu0
    %v1233 = vlaneseq
    %v1234 = vshrl.u32 %v1233, 7
    %v1235 = vsub.s32 0, %v1234
    %v1236 = vrot.slane %v1230, %v1235
    %v1237 = vadd.f32 %v1156, %v1236
    %vm1238 = vcmp.gt.f32.partialorder %v1237, 0.0
    %v1239 = vmul.f32 %v1237, 0.2
    %v1240 = vsel %vm1238, %v1237, %v1239
    %v1241 = vsel %vm528, %v1240, -9e+15
    %v1242 = vsel %vm797, %v1241, -inf
    %1243 = vmax.xlane.f32.xlu0 %v1242
    %v1244 = vpop.xlane.xlu0 %1243
    %v1245 = vsub.f32 %v1241, %v1244
    %v1246 = vmul.f32 %v1245, 1.442695
    %v1247 = vpow.pop %v1246
    %v1248 = vsel %vm797, %v1247, 0.0
    %1249 = vadd.xlane.f32.xlu0 %v1248
    %v1250 = vpop.xlane.xlu0 %1249
    %v1251 = vrcp.pop %v1250
    %v1252 = vmul.f32 %v1247, %v1251
    %v1254 = vsel %vm797, %v1252, 0
    %1256 = vmatprep.subr.mxu0 0.0
    %1257 = vmatpush1.msra.mxu0 0.0
    %1258 = vmatprep.subr.mxu0 0.0
    %1259 = vmatpush1.msra.mxu0 0.0
    %1260 = vmatprep.subr.mxu0 0.0
    %1261 = vmatpush1.msra.mxu0 0.0
    %1262 = vmatprep.subr.mxu0 0.0
    %1263 = vmatpush1.msra.mxu0 0.0
    %1264 = vmatprep.subr.mxu0 0.0
    %1265 = vmatpush1.msra.mxu0 0.0
    %1266 = vmatprep.subr.mxu0 0.0
    %1267 = vmatpush1.msra.mxu0 0.0
    %1268 = vmatprep.subr.mxu0 0.0
    %1269 = vmatpush1.msra.mxu0 0.0
    %1270 = vmatprep.subr.mxu0 0.0
    %1271 = vmatpush1.msra.mxu0 0.0
    %1272 = vmatprep.subr.mxu0 0.0
    %1273 = vmatpush1.msra.mxu0 0.0
    %1274 = vmatprep.subr.mxu0 0.0
    %1275 = vmatpush1.msra.mxu0 0.0
    %1276 = vmatprep.subr.mxu0 0.0
    %1277 = vmatpush1.msra.mxu0 0.0
    %1278 = vmatprep.subr.mxu0 0.0
    %1279 = vmatpush1.msra.mxu0 0.0
    %1280 = vmatprep.subr.mxu0 0.0
    %1281 = vmatpush1.msra.mxu0 0.0
    %1282 = vmatprep.subr.mxu0 0.0
    %1283 = vmatpush1.msra.mxu0 0.0
    %1284 = vmatprep.subr.mxu0 0.0
    %1285 = vmatpush1.msra.mxu0 0.0
    %1286 = vmatprep.subr.mxu0 0.0
    %1287 = vmatpush1.msra.mxu0 %v1146
    %1288 = vmatprep.subr.mxu0 0.0
    %1289 = vmatpush2.msra.mxu0 0.0
    %1290 = vmatprep.subr.mxu0 0.0
    %1291 = vmatpush2.msra.mxu0 0.0
    %1292 = vmatprep.subr.mxu0 0.0
    %1293 = vmatpush2.msra.mxu0 0.0
    %1294 = vmatprep.subr.mxu0 0.0
    %1295 = vmatpush2.msra.mxu0 0.0
    %1296 = vmatprep.subr.mxu0 0.0
    %1297 = vmatpush2.msra.mxu0 0.0
    %1298 = vmatprep.subr.mxu0 0.0
    %1299 = vmatpush2.msra.mxu0 0.0
    %1300 = vmatprep.subr.mxu0 0.0
    %1301 = vmatpush2.msra.mxu0 0.0
    %1302 = vmatprep.subr.mxu0 0.0
    %1303 = vmatpush2.msra.mxu0 0.0
    %1304 = vmatprep.subr.mxu0 0.0
    %1305 = vmatpush2.msra.mxu0 0.0
    %1306 = vmatprep.subr.mxu0 0.0
    %1307 = vmatpush2.msra.mxu0 0.0
    %1308 = vmatprep.subr.mxu0 0.0
    %1309 = vmatpush2.msra.mxu0 0.0
    %1310 = vmatprep.subr.mxu0 0.0
    %1311 = vmatpush2.msra.mxu0 0.0
    %1312 = vmatprep.subr.mxu0 0.0
    %1313 = vmatpush2.msra.mxu0 0.0
    %1314 = vmatprep.subr.mxu0 0.0
    %1315 = vmatpush2.msra.mxu0 0.0
    %1316 = vmatprep.subr.mxu0 0.0
    %1317 = vmatpush2.msra.mxu0 0.0
    %1318 = vmatprep.subr.mxu0 0.0
    %1319 = vmatpush2.msra.mxu0 0.0
    %1320 = vmatprep.mubr.f32.mxu0 0.0
    %1321 = vmatmul.mubr.f32.gmra.mxu0 %v1254
    %v1322 = vpop.f32.mrf.mxu0
    %v1323 = vadd.f32 0.0, %v1322
    %v1324 = vpop.f32.mrf.mxu0
    %1325 = vdwg.mxu0
    %vm1326 = vcmp.gt.f32.partialorder %v1323, 0.0
    %v1327 = vmul.f32 %v1323, 1.442695
    %v1328 = vpow.pop %v1327
    %v1329 = vsub.f32 %v1328, 1.0
    %v1330 = vsel %vm1326, %v1323, %v1329
    %v1331 = vsel %vm258, %v1330, %v627
    %1332 = vrot.lane.b32.xlu0 %v56, 64
    %v1333 = vpop.permute.xlu0 %1332
    %vm1335 = vcmask 523264
    %v1337 = vsel %vm1335, %v1331, 0
    %1339 = vmatprep.subr.mxu0 0.0
    %1340 = vmatpush1.msra.mxu0 0.0
    %1341 = vmatprep.subr.mxu0 0.0
    %1342 = vmatpush1.msra.mxu0 0.0
    %1343 = vmatprep.subr.mxu0 0.0
    %1344 = vmatpush1.msra.mxu0 0.0
    %1345 = vmatprep.subr.mxu0 0.0
    %1346 = vmatpush1.msra.mxu0 0.0
    %1347 = vmatprep.subr.mxu0 0.0
    %1348 = vmatpush1.msra.mxu0 0.0
    %1349 = vmatprep.subr.mxu0 0.0
    %1350 = vmatpush1.msra.mxu0 0.0
    %1351 = vmatprep.subr.mxu0 0.0
    %1352 = vmatpush1.msra.mxu0 0.0
    %1353 = vmatprep.subr.mxu0 0.0
    %1354 = vmatpush1.msra.mxu0 0.0
    %1355 = vmatprep.subr.mxu0 0.0
    %1356 = vmatpush1.msra.mxu0 %v90
    %1357 = vmatprep.subr.mxu0 0.0
    %1358 = vmatpush1.msra.mxu0 %v89
    %1359 = vmatprep.subr.mxu0 0.0
    %1360 = vmatpush1.msra.mxu0 %v88
    %1361 = vmatprep.subr.mxu0 0.0
    %1362 = vmatpush1.msra.mxu0 %v87
    %1363 = vmatprep.subr.mxu0 0.0
    %1364 = vmatpush1.msra.mxu0 %v86
    %1365 = vmatprep.subr.mxu0 0.0
    %1366 = vmatpush1.msra.mxu0 %v85
    %1367 = vmatprep.subr.mxu0 0.0
    %1368 = vmatpush1.msra.mxu0 %v84
    %1369 = vmatprep.subr.mxu0 0.0
    %1370 = vmatpush1.msra.mxu0 %v83
    %1371 = vmatprep.subr.mxu0 0.0
    %1372 = vmatpush2.msra.mxu0 0.0
    %1373 = vmatprep.subr.mxu0 0.0
    %1374 = vmatpush2.msra.mxu0 0.0
    %1375 = vmatprep.subr.mxu0 0.0
    %1376 = vmatpush2.msra.mxu0 0.0
    %1377 = vmatprep.subr.mxu0 0.0
    %1378 = vmatpush2.msra.mxu0 0.0
    %1379 = vmatprep.subr.mxu0 0.0
    %1380 = vmatpush2.msra.mxu0 0.0
    %1381 = vmatprep.subr.mxu0 0.0
    %1382 = vmatpush2.msra.mxu0 0.0
    %1383 = vmatprep.subr.mxu0 0.0
    %1384 = vmatpush2.msra.mxu0 0.0
    %1385 = vmatprep.subr.mxu0 0.0
    %1386 = vmatpush2.msra.mxu0 0.0
    %1387 = vmatprep.subr.mxu0 0.0
    %1388 = vmatpush2.msra.mxu0 0.0
    %1389 = vmatprep.subr.mxu0 0.0
    %1390 = vmatpush2.msra.mxu0 0.0
    %1391 = vmatprep.subr.mxu0 0.0
    %1392 = vmatpush2.msra.mxu0 0.0
    %1393 = vmatprep.subr.mxu0 0.0
    %1394 = vmatpush2.msra.mxu0 0.0
    %1395 = vmatprep.subr.mxu0 0.0
    %1396 = vmatpush2.msra.mxu0 0.0
    %1397 = vmatprep.subr.mxu0 0.0
    %1398 = vmatpush2.msra.mxu0 0.0
    %1399 = vmatprep.subr.mxu0 0.0
    %1400 = vmatpush2.msra.mxu0 0.0
    %1401 = vmatprep.subr.mxu0 0.0
    %1402 = vmatpush2.msra.mxu0 0.0
    %1403 = vmatprep.mubr.f32.mxu0 0.0
    %1404 = vmatmul.mubr.f32.gmra.mxu0 %v1337
    %v1405 = vpop.f32.mrf.mxu0
    %v1406 = vadd.f32 %v1333, %v1405
    %v1407 = vpop.f32.mrf.mxu0
    %1408 = vdwg.mxu0
    %1409 = vrot.lane.b32.xlu0 %v56, 32
    %v1410 = vpop.permute.xlu0 %1409
    %v1413 = vsel %vm258, %v1406, 0
    %1415 = vmatprep.subr.mxu0 0.0
    %1416 = vmatpush1.msra.mxu0 0.0
    %1417 = vmatprep.subr.mxu0 0.0
    %1418 = vmatpush1.msra.mxu0 0.0
    %1419 = vmatprep.subr.mxu0 0.0
    %1420 = vmatpush1.msra.mxu0 0.0
    %1421 = vmatprep.subr.mxu0 0.0
    %1422 = vmatpush1.msra.mxu0 0.0
    %1423 = vmatprep.subr.mxu0 0.0
    %1424 = vmatpush1.msra.mxu0 0.0
    %1425 = vmatprep.subr.mxu0 0.0
    %1426 = vmatpush1.msra.mxu0 0.0
    %1427 = vmatprep.subr.mxu0 0.0
    %1428 = vmatpush1.msra.mxu0 0.0
    %1429 = vmatprep.subr.mxu0 0.0
    %1430 = vmatpush1.msra.mxu0 0.0
    %1431 = vmatprep.subr.mxu0 0.0
    %1432 = vmatpush1.msra.mxu0 0.0
    %1433 = vmatprep.subr.mxu0 0.0
    %1434 = vmatpush1.msra.mxu0 0.0
    %1435 = vmatprep.subr.mxu0 0.0
    %1436 = vmatpush1.msra.mxu0 0.0
    %1437 = vmatprep.subr.mxu0 0.0
    %1438 = vmatpush1.msra.mxu0 0.0
    %1439 = vmatprep.subr.mxu0 0.0
    %1440 = vmatpush1.msra.mxu0 %v94
    %1441 = vmatprep.subr.mxu0 0.0
    %1442 = vmatpush1.msra.mxu0 %v93
    %1443 = vmatprep.subr.mxu0 0.0
    %1444 = vmatpush1.msra.mxu0 %v92
    %1445 = vmatprep.subr.mxu0 0.0
    %1446 = vmatpush1.msra.mxu0 %v91
    %1447 = vmatprep.subr.mxu0 0.0
    %1448 = vmatpush2.msra.mxu0 0.0
    %1449 = vmatprep.subr.mxu0 0.0
    %1450 = vmatpush2.msra.mxu0 0.0
    %1451 = vmatprep.subr.mxu0 0.0
    %1452 = vmatpush2.msra.mxu0 0.0
    %1453 = vmatprep.subr.mxu0 0.0
    %1454 = vmatpush2.msra.mxu0 0.0
    %1455 = vmatprep.subr.mxu0 0.0
    %1456 = vmatpush2.msra.mxu0 0.0
    %1457 = vmatprep.subr.mxu0 0.0
    %1458 = vmatpush2.msra.mxu0 0.0
    %1459 = vmatprep.subr.mxu0 0.0
    %1460 = vmatpush2.msra.mxu0 0.0
    %1461 = vmatprep.subr.mxu0 0.0
    %1462 = vmatpush2.msra.mxu0 0.0
    %1463 = vmatprep.subr.mxu0 0.0
    %1464 = vmatpush2.msra.mxu0 0.0
    %1465 = vmatprep.subr.mxu0 0.0
    %1466 = vmatpush2.msra.mxu0 0.0
    %1467 = vmatprep.subr.mxu0 0.0
    %1468 = vmatpush2.msra.mxu0 0.0
    %1469 = vmatprep.subr.mxu0 0.0
    %1470 = vmatpush2.msra.mxu0 0.0
    %1471 = vmatprep.subr.mxu0 0.0
    %1472 = vmatpush2.msra.mxu0 0.0
    %1473 = vmatprep.subr.mxu0 0.0
    %1474 = vmatpush2.msra.mxu0 0.0
    %1475 = vmatprep.subr.mxu0 0.0
    %1476 = vmatpush2.msra.mxu0 0.0
    %1477 = vmatprep.subr.mxu0 0.0
    %1478 = vmatpush2.msra.mxu0 0.0
    %1479 = vmatprep.mubr.f32.mxu0 0.0
    %1480 = vmatmul.mubr.f32.gmra.mxu0 %v1413
    %v1481 = vpop.f32.mrf.mxu0
    %v1482 = vadd.f32 %v1410, %v1481
    %v1483 = vpop.f32.mrf.mxu0
    %1484 = vdwg.mxu0
    %v1485 = vsel %vm104, %v1482, -inf
    %1486 = vmax.xlane.f32.xlu0 %v1485
    %v1487 = vpop.xlane.xlu0 %1486
    %v1488 = vsub.f32 %v1482, %v1487
    %v1489 = vmul.f32 %v1488, 1.442695
    %v1490 = vpow.pop %v1489
    %v1491 = vsel %vm104, %v1490, 0.0
    %1492 = vadd.xlane.f32.xlu0 %v1491
    %v1493 = vpop.xlane.xlu0 %1492
    %v1494 = vlog2.pop %v1493
    %v1495 = vmul.f32 %v1494, 0.6931472
    %v1496 = vsub.f32 %v1488, %v1495
    %v1497 = vmul.f32 %v526, %v1496
    %v1498 = vsel %vm104, %v1497, 0.0
    %1499 = vadd.xlane.f32.xlu0 %v1498
    %v1500 = vpop.xlane.xlu0 %1499
    %v1501 = vrot.slane %v1500, 4
    %v1502 = vadd.f32 %v1500, %v1501
    %v1503 = vrot.slane %v1502, 2
    %v1504 = vadd.f32 %v1502, %v1503
    %v1505 = vrot.slane %v1504, 1
    %v1506 = vadd.f32 %v1504, %v1505
    %v1507 = vmul.f32 %v1506, 0.5
    %v1508 = vsub.f32 0.0, %v1507
    %s1509 = scalar_lea.vmem %s1, 8
    %v1510 = vld [vmem:[%s1509] sm:$0xff]
    %s1511 = scalar_lea.vmem %s2, 8
    %v1512 = vld [vmem:[%s1511] sm:$0xff]
    %vm1513 = vcmp.gt.f32.partialorder %v1512, 0.0
    %1514 = vmatprep.subr.mxu0 0.0
    %1515 = vmatpush1.msra.mxu0 0.0
    %1516 = vmatprep.subr.mxu0 0.0
    %1517 = vmatpush1.msra.mxu0 0.0
    %1518 = vmatprep.subr.mxu0 0.0
    %1519 = vmatpush1.msra.mxu0 0.0
    %1520 = vmatprep.subr.mxu0 0.0
    %1521 = vmatpush1.msra.mxu0 0.0
    %1522 = vmatprep.subr.mxu0 0.0
    %1523 = vmatpush1.msra.mxu0 0.0
    %1524 = vmatprep.subr.mxu0 0.0
    %1525 = vmatpush1.msra.mxu0 0.0
    %1526 = vmatprep.subr.mxu0 0.0
    %1527 = vmatpush1.msra.mxu0 0.0
    %1528 = vmatprep.subr.mxu0 0.0
    %1529 = vmatpush1.msra.mxu0 0.0
    %1530 = vmatprep.subr.mxu0 0.0
    %1531 = vmatpush1.msra.mxu0 0.0
    %1532 = vmatprep.subr.mxu0 0.0
    %1533 = vmatpush1.msra.mxu0 0.0
    %1534 = vmatprep.subr.mxu0 0.0
    %1535 = vmatpush1.msra.mxu0 0.0
    %1536 = vmatprep.subr.mxu0 0.0
    %1537 = vmatpush1.msra.mxu0 0.0
    %1538 = vmatprep.subr.mxu0 0.0
    %1539 = vmatpush1.msra.mxu0 %v64
    %1540 = vmatprep.subr.mxu0 0.0
    %1541 = vmatpush1.msra.mxu0 %v63
    %1542 = vmatprep.subr.mxu0 0.0
    %1543 = vmatpush1.msra.mxu0 %v62
    %1544 = vmatprep.subr.mxu0 0.0
    %1545 = vmatpush1.msra.mxu0 %v61
    %1546 = vmatprep.subr.mxu0 0.0
    %1547 = vmatpush2.msra.mxu0 0.0
    %1548 = vmatprep.subr.mxu0 0.0
    %1549 = vmatpush2.msra.mxu0 0.0
    %1550 = vmatprep.subr.mxu0 0.0
    %1551 = vmatpush2.msra.mxu0 0.0
    %1552 = vmatprep.subr.mxu0 0.0
    %1553 = vmatpush2.msra.mxu0 0.0
    %1554 = vmatprep.subr.mxu0 0.0
    %1555 = vmatpush2.msra.mxu0 0.0
    %1556 = vmatprep.subr.mxu0 0.0
    %1557 = vmatpush2.msra.mxu0 0.0
    %1558 = vmatprep.subr.mxu0 0.0
    %1559 = vmatpush2.msra.mxu0 0.0
    %1560 = vmatprep.subr.mxu0 0.0
    %1561 = vmatpush2.msra.mxu0 0.0
    %1562 = vmatprep.subr.mxu0 0.0
    %1563 = vmatpush2.msra.mxu0 0.0
    %1564 = vmatprep.subr.mxu0 0.0
    %1565 = vmatpush2.msra.mxu0 0.0
    %1566 = vmatprep.subr.mxu0 0.0
    %1567 = vmatpush2.msra.mxu0 0.0
    %1568 = vmatprep.subr.mxu0 0.0
    %1569 = vmatpush2.msra.mxu0 0.0
    %1570 = vmatprep.subr.mxu0 0.0
    %1571 = vmatpush2.msra.mxu0 0.0
    %1572 = vmatprep.subr.mxu0 0.0
    %1573 = vmatpush2.msra.mxu0 0.0
    %1574 = vmatprep.subr.mxu0 0.0
    %1575 = vmatpush2.msra.mxu0 0.0
    %1576 = vmatprep.subr.mxu0 0.0
    %1577 = vmatpush2.msra.mxu0 0.0
    %1578 = vmatprep.mubr.f32.mxu0 0.0
    %1579 = vmatmul.mubr.f32.gmra.mxu0 %v1413
    %v1580 = vpop.f32.mrf.mxu0
    %v1581 = vadd.f32 %v70, %v1580
    %v1582 = vpop.f32.mrf.mxu0
    %1583 = vdwg.mxu0
    %v1584 = vadd.f32 %v498, %v1581
    %v1585 = vxor.u32 %v1584, 2147483648
    %v1586 = vmul.f32 %v1585, 1.442695
    %v1587 = vpow.pop %v1586
    %v1588 = vadd.f32 %v1587, 1.0
    %v1589 = vrcp.pop %v1588
    %v1590 = vmul.f32 1.0, %v1589
    %1592 = vrot.lane.b32.xlu0 %v1581, 64
    %v1593 = vpop.permute.xlu0 %1592
    %v1595 = vmul.f32 %v1590, %v1593
    %1597 = vrot.lane.b32.xlu0 %v1595, 64
    %v1598 = vpop.permute.xlu0 %1597
    %v1600 = vadd.f32 %v498, %v1598
    %v1601 = vtanh.pop %v1600
    %v1602 = vsub.f32 1.0, %v1590
    %1604 = vrot.lane.b32.xlu0 %v1601, 96
    %v1605 = vpop.permute.xlu0 %1604
    %v1607 = vmul.f32 %v1602, %v1605
    %1608 = vrot.lane.b32.xlu0 %v1406, 32
    %v1609 = vpop.permute.xlu0 %1608
    %v1611 = vmul.f32 %v1590, %v1609
    %v1612 = vadd.f32 %v1607, %v1611
    %1614 = vrot.lane.b32.xlu0 %v1612, 96
    %v1615 = vpop.permute.xlu0 %1614
    %v1616 = vsel %vm258, %v1615, 0
    %1618 = vmatprep.subr.mxu0 0.0
    %1619 = vmatpush1.msra.mxu0 0.0
    %1620 = vmatprep.subr.mxu0 0.0
    %1621 = vmatpush1.msra.mxu0 0.0
    %1622 = vmatprep.subr.mxu0 0.0
    %1623 = vmatpush1.msra.mxu0 0.0
    %1624 = vmatprep.subr.mxu0 0.0
    %1625 = vmatpush1.msra.mxu0 0.0
    %1626 = vmatprep.subr.mxu0 0.0
    %1627 = vmatpush1.msra.mxu0 0.0
    %1628 = vmatprep.subr.mxu0 0.0
    %1629 = vmatpush1.msra.mxu0 0.0
    %1630 = vmatprep.subr.mxu0 0.0
    %1631 = vmatpush1.msra.mxu0 0.0
    %1632 = vmatprep.subr.mxu0 0.0
    %1633 = vmatpush1.msra.mxu0 0.0
    %1634 = vmatprep.subr.mxu0 0.0
    %1635 = vmatpush1.msra.mxu0 0.0
    %1636 = vmatprep.subr.mxu0 0.0
    %1637 = vmatpush1.msra.mxu0 0.0
    %1638 = vmatprep.subr.mxu0 0.0
    %1639 = vmatpush1.msra.mxu0 0.0
    %1640 = vmatprep.subr.mxu0 0.0
    %1641 = vmatpush1.msra.mxu0 0.0
    %1642 = vmatprep.subr.mxu0 0.0
    %1643 = vmatpush1.msra.mxu0 %v74
    %1644 = vmatprep.subr.mxu0 0.0
    %1645 = vmatpush1.msra.mxu0 %v73
    %1646 = vmatprep.subr.mxu0 0.0
    %1647 = vmatpush1.msra.mxu0 %v72
    %1648 = vmatprep.subr.mxu0 0.0
    %1649 = vmatpush1.msra.mxu0 %v71
    %1650 = vmatprep.subr.mxu0 0.0
    %1651 = vmatpush2.msra.mxu0 0.0
    %1652 = vmatprep.subr.mxu0 0.0
    %1653 = vmatpush2.msra.mxu0 0.0
    %1654 = vmatprep.subr.mxu0 0.0
    %1655 = vmatpush2.msra.mxu0 0.0
    %1656 = vmatprep.subr.mxu0 0.0
    %1657 = vmatpush2.msra.mxu0 0.0
    %1658 = vmatprep.subr.mxu0 0.0
    %1659 = vmatpush2.msra.mxu0 0.0
    %1660 = vmatprep.subr.mxu0 0.0
    %1661 = vmatpush2.msra.mxu0 0.0
    %1662 = vmatprep.subr.mxu0 0.0
    %1663 = vmatpush2.msra.mxu0 0.0
    %1664 = vmatprep.subr.mxu0 0.0
    %1665 = vmatpush2.msra.mxu0 0.0
    %1666 = vmatprep.subr.mxu0 0.0
    %1667 = vmatpush2.msra.mxu0 0.0
    %1668 = vmatprep.subr.mxu0 0.0
    %1669 = vmatpush2.msra.mxu0 0.0
    %1670 = vmatprep.subr.mxu0 0.0
    %1671 = vmatpush2.msra.mxu0 0.0
    %1672 = vmatprep.subr.mxu0 0.0
    %1673 = vmatpush2.msra.mxu0 0.0
    %1674 = vmatprep.subr.mxu0 0.0
    %1675 = vmatpush2.msra.mxu0 0.0
    %1676 = vmatprep.subr.mxu0 0.0
    %1677 = vmatpush2.msra.mxu0 0.0
    %1678 = vmatprep.subr.mxu0 0.0
    %1679 = vmatpush2.msra.mxu0 0.0
    %1680 = vmatprep.subr.mxu0 0.0
    %1681 = vmatpush2.msra.mxu0 0.0
    %1682 = vmatprep.mubr.f32.mxu0 0.0
    %1683 = vmatmul.mubr.f32.gmra.mxu0 %v1616
    %v1684 = vpop.f32.mrf.mxu0
    %v1685 = vadd.f32 0.0, %v1684
    %v1686 = vpop.f32.mrf.mxu0
    %1687 = vdwg.mxu0
    %v1688 = vmul.f32 %v1685, %v706
    %v1689 = vsel %vm708, %v1688, 0.0
    %1690 = vadd.xlane.f32.xlu0 %v1689
    %v1691 = vpop.xlane.xlu0 %1690
    %v1693 = vsel %vm708, %v1685, 0
    %1695 = vmatprep.subr.mxu0 0.0
    %1696 = vmatpush1.xpose.msra.mxu0 0.0
    %1697 = vmatprep.subr.mxu0 0.0
    %1698 = vmatpush1.xpose.msra.mxu0 0.0
    %1699 = vmatprep.subr.mxu0 0.0
    %1700 = vmatpush1.xpose.msra.mxu0 0.0
    %1701 = vmatprep.subr.mxu0 0.0
    %1702 = vmatpush1.xpose.msra.mxu0 0.0
    %1703 = vmatprep.subr.mxu0 0.0
    %1704 = vmatpush1.xpose.msra.mxu0 0.0
    %1705 = vmatprep.subr.mxu0 0.0
    %1706 = vmatpush1.xpose.msra.mxu0 0.0
    %1707 = vmatprep.subr.mxu0 0.0
    %1708 = vmatpush1.xpose.msra.mxu0 0.0
    %1709 = vmatprep.subr.mxu0 0.0
    %1710 = vmatpush1.xpose.msra.mxu0 0.0
    %1711 = vmatprep.subr.mxu0 0.0
    %1712 = vmatpush1.xpose.msra.mxu0 0.0
    %1713 = vmatprep.subr.mxu0 0.0
    %1714 = vmatpush1.xpose.msra.mxu0 0.0
    %1715 = vmatprep.subr.mxu0 0.0
    %1716 = vmatpush1.xpose.msra.mxu0 0.0
    %1717 = vmatprep.subr.mxu0 0.0
    %1718 = vmatpush1.xpose.msra.mxu0 0.0
    %1719 = vmatprep.subr.mxu0 0.0
    %1720 = vmatpush1.xpose.msra.mxu0 0.0
    %1721 = vmatprep.subr.mxu0 0.0
    %1722 = vmatpush1.xpose.msra.mxu0 0.0
    %1723 = vmatprep.subr.mxu0 0.0
    %1724 = vmatpush1.xpose.msra.mxu0 0.0
    %1725 = vmatprep.subr.mxu0 0.0
    %1726 = vmatpush1.xpose.msra.mxu0 %v1693
    %1727 = vmatprep.subr.mxu0 0.0
    %1728 = vmatpush2.xpose.msra.mxu0 0.0
    %1729 = vmatprep.subr.mxu0 0.0
    %1730 = vmatpush2.xpose.msra.mxu0 0.0
    %1731 = vmatprep.subr.mxu0 0.0
    %1732 = vmatpush2.xpose.msra.mxu0 0.0
    %1733 = vmatprep.subr.mxu0 0.0
    %1734 = vmatpush2.xpose.msra.mxu0 0.0
    %1735 = vmatprep.subr.mxu0 0.0
    %1736 = vmatpush2.xpose.msra.mxu0 0.0
    %1737 = vmatprep.subr.mxu0 0.0
    %1738 = vmatpush2.xpose.msra.mxu0 0.0
    %1739 = vmatprep.subr.mxu0 0.0
    %1740 = vmatpush2.xpose.msra.mxu0 0.0
    %1741 = vmatprep.subr.mxu0 0.0
    %1742 = vmatpush2.xpose.msra.mxu0 0.0
    %1743 = vmatprep.subr.mxu0 0.0
    %1744 = vmatpush2.xpose.msra.mxu0 0.0
    %1745 = vmatprep.subr.mxu0 0.0
    %1746 = vmatpush2.xpose.msra.mxu0 0.0
    %1747 = vmatprep.subr.mxu0 0.0
    %1748 = vmatpush2.xpose.msra.mxu0 0.0
    %1749 = vmatprep.subr.mxu0 0.0
    %1750 = vmatpush2.xpose.msra.mxu0 0.0
    %1751 = vmatprep.subr.mxu0 0.0
    %1752 = vmatpush2.xpose.msra.mxu0 0.0
    %1753 = vmatprep.subr.mxu0 0.0
    %1754 = vmatpush2.xpose.msra.mxu0 0.0
    %1755 = vmatprep.subr.mxu0 0.0
    %1756 = vmatpush2.xpose.msra.mxu0 0.0
    %1757 = vmatprep.subr.mxu0 0.0
    %1758 = vmatpush2.xpose.msra.mxu0 0.0
    %1759 = vmatprep.mubr.f32.mxu0 0.0
    %1760 = vmatmul.mubr.f32.gmra.mxu0 %v713
    %v1761 = vpop.f32.mrf.mxu0
    %v1762 = vadd.f32 0.0, %v1761
    %v1763 = vpop.f32.mrf.mxu0
    %1764 = vdwg.mxu0
    %v1765 = vlaneseq
    %v1766 = vshrl.u32 %v1765, 7
    %v1767 = vsub.s32 0, %v1766
    %v1768 = vrot.slane %v1762, %v1767
    %v1769 = vadd.f32 %v1691, %v1768
    %vm1770 = vcmp.gt.f32.partialorder %v1769, 0.0
    %v1771 = vmul.f32 %v1769, 0.2
    %v1772 = vsel %vm1770, %v1769, %v1771
    %v1773 = vsel %vm1513, %v1772, -9e+15
    %v1774 = vsel %vm797, %v1773, -inf
    %1775 = vmax.xlane.f32.xlu0 %v1774
    %v1776 = vpop.xlane.xlu0 %1775
    %v1777 = vsub.f32 %v1773, %v1776
    %v1778 = vmul.f32 %v1777, 1.442695
    %v1779 = vpow.pop %v1778
    %v1780 = vsel %vm797, %v1779, 0.0
    %1781 = vadd.xlane.f32.xlu0 %v1780
    %v1782 = vpop.xlane.xlu0 %1781
    %v1783 = vrcp.pop %v1782
    %v1784 = vmul.f32 %v1779, %v1783
    %v1786 = vsel %vm797, %v1784, 0
    %1788 = vmatprep.subr.mxu0 0.0
    %1789 = vmatpush1.msra.mxu0 0.0
    %1790 = vmatprep.subr.mxu0 0.0
    %1791 = vmatpush1.msra.mxu0 0.0
    %1792 = vmatprep.subr.mxu0 0.0
    %1793 = vmatpush1.msra.mxu0 0.0
    %1794 = vmatprep.subr.mxu0 0.0
    %1795 = vmatpush1.msra.mxu0 0.0
    %1796 = vmatprep.subr.mxu0 0.0
    %1797 = vmatpush1.msra.mxu0 0.0
    %1798 = vmatprep.subr.mxu0 0.0
    %1799 = vmatpush1.msra.mxu0 0.0
    %1800 = vmatprep.subr.mxu0 0.0
    %1801 = vmatpush1.msra.mxu0 0.0
    %1802 = vmatprep.subr.mxu0 0.0
    %1803 = vmatpush1.msra.mxu0 0.0
    %1804 = vmatprep.subr.mxu0 0.0
    %1805 = vmatpush1.msra.mxu0 0.0
    %1806 = vmatprep.subr.mxu0 0.0
    %1807 = vmatpush1.msra.mxu0 0.0
    %1808 = vmatprep.subr.mxu0 0.0
    %1809 = vmatpush1.msra.mxu0 0.0
    %1810 = vmatprep.subr.mxu0 0.0
    %1811 = vmatpush1.msra.mxu0 0.0
    %1812 = vmatprep.subr.mxu0 0.0
    %1813 = vmatpush1.msra.mxu0 0.0
    %1814 = vmatprep.subr.mxu0 0.0
    %1815 = vmatpush1.msra.mxu0 0.0
    %1816 = vmatprep.subr.mxu0 0.0
    %1817 = vmatpush1.msra.mxu0 0.0
    %1818 = vmatprep.subr.mxu0 0.0
    %1819 = vmatpush1.msra.mxu0 %v1685
    %1820 = vmatprep.subr.mxu0 0.0
    %1821 = vmatpush2.msra.mxu0 0.0
    %1822 = vmatprep.subr.mxu0 0.0
    %1823 = vmatpush2.msra.mxu0 0.0
    %1824 = vmatprep.subr.mxu0 0.0
    %1825 = vmatpush2.msra.mxu0 0.0
    %1826 = vmatprep.subr.mxu0 0.0
    %1827 = vmatpush2.msra.mxu0 0.0
    %1828 = vmatprep.subr.mxu0 0.0
    %1829 = vmatpush2.msra.mxu0 0.0
    %1830 = vmatprep.subr.mxu0 0.0
    %1831 = vmatpush2.msra.mxu0 0.0
    %1832 = vmatprep.subr.mxu0 0.0
    %1833 = vmatpush2.msra.mxu0 0.0
    %1834 = vmatprep.subr.mxu0 0.0
    %1835 = vmatpush2.msra.mxu0 0.0
    %1836 = vmatprep.subr.mxu0 0.0
    %1837 = vmatpush2.msra.mxu0 0.0
    %1838 = vmatprep.subr.mxu0 0.0
    %1839 = vmatpush2.msra.mxu0 0.0
    %1840 = vmatprep.subr.mxu0 0.0
    %1841 = vmatpush2.msra.mxu0 0.0
    %1842 = vmatprep.subr.mxu0 0.0
    %1843 = vmatpush2.msra.mxu0 0.0
    %1844 = vmatprep.subr.mxu0 0.0
    %1845 = vmatpush2.msra.mxu0 0.0
    %1846 = vmatprep.subr.mxu0 0.0
    %1847 = vmatpush2.msra.mxu0 0.0
    %1848 = vmatprep.subr.mxu0 0.0
    %1849 = vmatpush2.msra.mxu0 0.0
    %1850 = vmatprep.subr.mxu0 0.0
    %1851 = vmatpush2.msra.mxu0 0.0
    %1852 = vmatprep.mubr.f32.mxu0 0.0
    %1853 = vmatmul.mubr.f32.gmra.mxu0 %v1786
    %v1854 = vpop.f32.mrf.mxu0
    %v1855 = vadd.f32 0.0, %v1854
    %v1856 = vpop.f32.mrf.mxu0
    %1857 = vdwg.mxu0
    %vm1858 = vcmp.gt.f32.partialorder %v1855, 0.0
    %v1859 = vmul.f32 %v1855, 1.442695
    %v1860 = vpow.pop %v1859
    %v1861 = vsub.f32 %v1860, 1.0
    %v1862 = vsel %vm1858, %v1855, %v1861
    %1864 = vrot.lane.b32.xlu0 %v1688, 112
    %v1865 = vpop.permute.xlu0 %1864
    %v1867 = vsel %vm708, %v1865, 0.0
    %1868 = vadd.xlane.f32.xlu0 %v1867
    %v1869 = vpop.xlane.xlu0 %1868
    %1870 = vrot.lane.b32.xlu0 %v1685, 112
    %v1871 = vpop.permute.xlu0 %1870
    %v1872 = vsel %vm708, %v1871, 0
    %1874 = vmatprep.subr.mxu0 0.0
    %1875 = vmatpush1.xpose.msra.mxu0 0.0
    %1876 = vmatprep.subr.mxu0 0.0
    %1877 = vmatpush1.xpose.msra.mxu0 0.0
    %1878 = vmatprep.subr.mxu0 0.0
    %1879 = vmatpush1.xpose.msra.mxu0 0.0
    %1880 = vmatprep.subr.mxu0 0.0
    %1881 = vmatpush1.xpose.msra.mxu0 0.0
    %1882 = vmatprep.subr.mxu0 0.0
    %1883 = vmatpush1.xpose.msra.mxu0 0.0
    %1884 = vmatprep.subr.mxu0 0.0
    %1885 = vmatpush1.xpose.msra.mxu0 0.0
    %1886 = vmatprep.subr.mxu0 0.0
    %1887 = vmatpush1.xpose.msra.mxu0 0.0
    %1888 = vmatprep.subr.mxu0 0.0
    %1889 = vmatpush1.xpose.msra.mxu0 0.0
    %1890 = vmatprep.subr.mxu0 0.0
    %1891 = vmatpush1.xpose.msra.mxu0 0.0
    %1892 = vmatprep.subr.mxu0 0.0
    %1893 = vmatpush1.xpose.msra.mxu0 0.0
    %1894 = vmatprep.subr.mxu0 0.0
    %1895 = vmatpush1.xpose.msra.mxu0 0.0
    %1896 = vmatprep.subr.mxu0 0.0
    %1897 = vmatpush1.xpose.msra.mxu0 0.0
    %1898 = vmatprep.subr.mxu0 0.0
    %1899 = vmatpush1.xpose.msra.mxu0 0.0
    %1900 = vmatprep.subr.mxu0 0.0
    %1901 = vmatpush1.xpose.msra.mxu0 0.0
    %1902 = vmatprep.subr.mxu0 0.0
    %1903 = vmatpush1.xpose.msra.mxu0 0.0
    %1904 = vmatprep.subr.mxu0 0.0
    %1905 = vmatpush1.xpose.msra.mxu0 %v1872
    %1906 = vmatprep.subr.mxu0 0.0
    %1907 = vmatpush2.xpose.msra.mxu0 0.0
    %1908 = vmatprep.subr.mxu0 0.0
    %1909 = vmatpush2.xpose.msra.mxu0 0.0
    %1910 = vmatprep.subr.mxu0 0.0
    %1911 = vmatpush2.xpose.msra.mxu0 0.0
    %1912 = vmatprep.subr.mxu0 0.0
    %1913 = vmatpush2.xpose.msra.mxu0 0.0
    %1914 = vmatprep.subr.mxu0 0.0
    %1915 = vmatpush2.xpose.msra.mxu0 0.0
    %1916 = vmatprep.subr.mxu0 0.0
    %1917 = vmatpush2.xpose.msra.mxu0 0.0
    %1918 = vmatprep.subr.mxu0 0.0
    %1919 = vmatpush2.xpose.msra.mxu0 0.0
    %1920 = vmatprep.subr.mxu0 0.0
    %1921 = vmatpush2.xpose.msra.mxu0 0.0
    %1922 = vmatprep.subr.mxu0 0.0
    %1923 = vmatpush2.xpose.msra.mxu0 0.0
    %1924 = vmatprep.subr.mxu0 0.0
    %1925 = vmatpush2.xpose.msra.mxu0 0.0
    %1926 = vmatprep.subr.mxu0 0.0
    %1927 = vmatpush2.xpose.msra.mxu0 0.0
    %1928 = vmatprep.subr.mxu0 0.0
    %1929 = vmatpush2.xpose.msra.mxu0 0.0
    %1930 = vmatprep.subr.mxu0 0.0
    %1931 = vmatpush2.xpose.msra.mxu0 0.0
    %1932 = vmatprep.subr.mxu0 0.0
    %1933 = vmatpush2.xpose.msra.mxu0 0.0
    %1934 = vmatprep.subr.mxu0 0.0
    %1935 = vmatpush2.xpose.msra.mxu0 0.0
    %1936 = vmatprep.subr.mxu0 0.0
    %1937 = vmatpush2.xpose.msra.mxu0 0.0
    %1938 = vmatprep.mubr.f32.mxu0 0.0
    %1939 = vmatmul.mubr.f32.gmra.mxu0 %v898
    %v1940 = vpop.f32.mrf.mxu0
    %v1941 = vadd.f32 0.0, %v1940
    %v1942 = vpop.f32.mrf.mxu0
    %1943 = vdwg.mxu0
    %v1944 = vlaneseq
    %v1945 = vshrl.u32 %v1944, 7
    %v1946 = vsub.s32 0, %v1945
    %v1947 = vrot.slane %v1941, %v1946
    %v1948 = vadd.f32 %v1869, %v1947
    %vm1949 = vcmp.gt.f32.partialorder %v1948, 0.0
    %v1950 = vmul.f32 %v1948, 0.2
    %v1951 = vsel %vm1949, %v1948, %v1950
    %v1952 = vsel %vm1513, %v1951, -9e+15
    %v1953 = vsel %vm797, %v1952, -inf
    %1954 = vmax.xlane.f32.xlu0 %v1953
    %v1955 = vpop.xlane.xlu0 %1954
    %v1956 = vsub.f32 %v1952, %v1955
    %v1957 = vmul.f32 %v1956, 1.442695
    %v1958 = vpow.pop %v1957
    %v1959 = vsel %vm797, %v1958, 0.0
    %1960 = vadd.xlane.f32.xlu0 %v1959
    %v1961 = vpop.xlane.xlu0 %1960
    %v1962 = vrcp.pop %v1961
    %v1963 = vmul.f32 %v1958, %v1962
    %v1966 = vsel %vm797, %v1963, 0
    %1968 = vmatprep.subr.mxu0 0.0
    %1969 = vmatpush1.msra.mxu0 0.0
    %1970 = vmatprep.subr.mxu0 0.0
    %1971 = vmatpush1.msra.mxu0 0.0
    %1972 = vmatprep.subr.mxu0 0.0
    %1973 = vmatpush1.msra.mxu0 0.0
    %1974 = vmatprep.subr.mxu0 0.0
    %1975 = vmatpush1.msra.mxu0 0.0
    %1976 = vmatprep.subr.mxu0 0.0
    %1977 = vmatpush1.msra.mxu0 0.0
    %1978 = vmatprep.subr.mxu0 0.0
    %1979 = vmatpush1.msra.mxu0 0.0
    %1980 = vmatprep.subr.mxu0 0.0
    %1981 = vmatpush1.msra.mxu0 0.0
    %1982 = vmatprep.subr.mxu0 0.0
    %1983 = vmatpush1.msra.mxu0 0.0
    %1984 = vmatprep.subr.mxu0 0.0
    %1985 = vmatpush1.msra.mxu0 0.0
    %1986 = vmatprep.subr.mxu0 0.0
    %1987 = vmatpush1.msra.mxu0 0.0
    %1988 = vmatprep.subr.mxu0 0.0
    %1989 = vmatpush1.msra.mxu0 0.0
    %1990 = vmatprep.subr.mxu0 0.0
    %1991 = vmatpush1.msra.mxu0 0.0
    %1992 = vmatprep.subr.mxu0 0.0
    %1993 = vmatpush1.msra.mxu0 0.0
    %1994 = vmatprep.subr.mxu0 0.0
    %1995 = vmatpush1.msra.mxu0 0.0
    %1996 = vmatprep.subr.mxu0 0.0
    %1997 = vmatpush1.msra.mxu0 0.0
    %1998 = vmatprep.subr.mxu0 0.0
    %1999 = vmatpush1.msra.mxu0 %v1871
    %2000 = vmatprep.subr.mxu0 0.0
    %2001 = vmatpush2.msra.mxu0 0.0
    %2002 = vmatprep.subr.mxu0 0.0
    %2003 = vmatpush2.msra.mxu0 0.0
    %2004 = vmatprep.subr.mxu0 0.0
    %2005 = vmatpush2.msra.mxu0 0.0
    %2006 = vmatprep.subr.mxu0 0.0
    %2007 = vmatpush2.msra.mxu0 0.0
    %2008 = vmatprep.subr.mxu0 0.0
    %2009 = vmatpush2.msra.mxu0 0.0
    %2010 = vmatprep.subr.mxu0 0.0
    %2011 = vmatpush2.msra.mxu0 0.0
    %2012 = vmatprep.subr.mxu0 0.0
    %2013 = vmatpush2.msra.mxu0 0.0
    %2014 = vmatprep.subr.mxu0 0.0
    %2015 = vmatpush2.msra.mxu0 0.0
    %2016 = vmatprep.subr.mxu0 0.0
    %2017 = vmatpush2.msra.mxu0 0.0
    %2018 = vmatprep.subr.mxu0 0.0
    %2019 = vmatpush2.msra.mxu0 0.0
    %2020 = vmatprep.subr.mxu0 0.0
    %2021 = vmatpush2.msra.mxu0 0.0
    %2022 = vmatprep.subr.mxu0 0.0
    %2023 = vmatpush2.msra.mxu0 0.0
    %2024 = vmatprep.subr.mxu0 0.0
    %2025 = vmatpush2.msra.mxu0 0.0
    %2026 = vmatprep.subr.mxu0 0.0
    %2027 = vmatpush2.msra.mxu0 0.0
    %2028 = vmatprep.subr.mxu0 0.0
    %2029 = vmatpush2.msra.mxu0 0.0
    %2030 = vmatprep.subr.mxu0 0.0
    %2031 = vmatpush2.msra.mxu0 0.0
    %2032 = vmatprep.mubr.f32.mxu0 0.0
    %2033 = vmatmul.mubr.f32.gmra.mxu0 %v1966
    %v2034 = vpop.f32.mrf.mxu0
    %v2035 = vadd.f32 0.0, %v2034
    %v2036 = vpop.f32.mrf.mxu0
    %2037 = vdwg.mxu0
    %vm2038 = vcmp.gt.f32.partialorder %v2035, 0.0
    %v2039 = vmul.f32 %v2035, 1.442695
    %v2040 = vpow.pop %v2039
    %v2041 = vsub.f32 %v2040, 1.0
    %v2042 = vsel %vm2038, %v2035, %v2041
    %2044 = vrot.lane.b32.xlu0 %v2042, 16
    %v2045 = vpop.permute.xlu0 %2044
    %v2047 = vsel %vm708, %v1862, %v2045
    %v2049 = vsel %vm258, %v2047, 0
    %2051 = vmatprep.subr.mxu0 0.0
    %2052 = vmatpush1.msra.mxu0 0.0
    %2053 = vmatprep.subr.mxu0 0.0
    %2054 = vmatpush1.msra.mxu0 0.0
    %2055 = vmatprep.subr.mxu0 0.0
    %2056 = vmatpush1.msra.mxu0 0.0
    %2057 = vmatprep.subr.mxu0 0.0
    %2058 = vmatpush1.msra.mxu0 0.0
    %2059 = vmatprep.subr.mxu0 0.0
    %2060 = vmatpush1.msra.mxu0 0.0
    %2061 = vmatprep.subr.mxu0 0.0
    %2062 = vmatpush1.msra.mxu0 0.0
    %2063 = vmatprep.subr.mxu0 0.0
    %2064 = vmatpush1.msra.mxu0 0.0
    %2065 = vmatprep.subr.mxu0 0.0
    %2066 = vmatpush1.msra.mxu0 0.0
    %2067 = vmatprep.subr.mxu0 0.0
    %2068 = vmatpush1.msra.mxu0 0.0
    %2069 = vmatprep.subr.mxu0 0.0
    %2070 = vmatpush1.msra.mxu0 0.0
    %2071 = vmatprep.subr.mxu0 0.0
    %2072 = vmatpush1.msra.mxu0 0.0
    %2073 = vmatprep.subr.mxu0 0.0
    %2074 = vmatpush1.msra.mxu0 0.0
    %2075 = vmatprep.subr.mxu0 0.0
    %2076 = vmatpush1.msra.mxu0 %v80
    %2077 = vmatprep.subr.mxu0 0.0
    %2078 = vmatpush1.msra.mxu0 %v79
    %2079 = vmatprep.subr.mxu0 0.0
    %2080 = vmatpush1.msra.mxu0 %v78
    %2081 = vmatprep.subr.mxu0 0.0
    %2082 = vmatpush1.msra.mxu0 %v77
    %2083 = vmatprep.subr.mxu0 0.0
    %2084 = vmatpush2.msra.mxu0 0.0
    %2085 = vmatprep.subr.mxu0 0.0
    %2086 = vmatpush2.msra.mxu0 0.0
    %2087 = vmatprep.subr.mxu0 0.0
    %2088 = vmatpush2.msra.mxu0 0.0
    %2089 = vmatprep.subr.mxu0 0.0
    %2090 = vmatpush2.msra.mxu0 0.0
    %2091 = vmatprep.subr.mxu0 0.0
    %2092 = vmatpush2.msra.mxu0 0.0
    %2093 = vmatprep.subr.mxu0 0.0
    %2094 = vmatpush2.msra.mxu0 0.0
    %2095 = vmatprep.subr.mxu0 0.0
    %2096 = vmatpush2.msra.mxu0 0.0
    %2097 = vmatprep.subr.mxu0 0.0
    %2098 = vmatpush2.msra.mxu0 0.0
    %2099 = vmatprep.subr.mxu0 0.0
    %2100 = vmatpush2.msra.mxu0 0.0
    %2101 = vmatprep.subr.mxu0 0.0
    %2102 = vmatpush2.msra.mxu0 0.0
    %2103 = vmatprep.subr.mxu0 0.0
    %2104 = vmatpush2.msra.mxu0 0.0
    %2105 = vmatprep.subr.mxu0 0.0
    %2106 = vmatpush2.msra.mxu0 0.0
    %2107 = vmatprep.subr.mxu0 0.0
    %2108 = vmatpush2.msra.mxu0 0.0
    %2109 = vmatprep.subr.mxu0 0.0
    %2110 = vmatpush2.msra.mxu0 0.0
    %2111 = vmatprep.subr.mxu0 0.0
    %2112 = vmatpush2.msra.mxu0 0.0
    %2113 = vmatprep.subr.mxu0 0.0
    %2114 = vmatpush2.msra.mxu0 0.0
    %2115 = vmatprep.mubr.f32.mxu0 0.0
    %2116 = vmatmul.mubr.f32.gmra.mxu0 %v2049
    %v2117 = vpop.f32.mrf.mxu0
    %v2118 = vadd.f32 0.0, %v2117
    %v2119 = vpop.f32.mrf.mxu0
    %2120 = vdwg.mxu0
    %v2121 = vmul.f32 %v2118, %v1152
    %v2122 = vsel %vm258, %v2121, 0.0
    %2123 = vadd.xlane.f32.xlu0 %v2122
    %v2124 = vpop.xlane.xlu0 %2123
    %v2126 = vsel %vm258, %v2118, 0
    %2128 = vmatprep.subr.mxu0 0.0
    %2129 = vmatpush1.xpose.msra.mxu0 0.0
    %2130 = vmatprep.subr.mxu0 0.0
    %2131 = vmatpush1.xpose.msra.mxu0 0.0
    %2132 = vmatprep.subr.mxu0 0.0
    %2133 = vmatpush1.xpose.msra.mxu0 0.0
    %2134 = vmatprep.subr.mxu0 0.0
    %2135 = vmatpush1.xpose.msra.mxu0 0.0
    %2136 = vmatprep.subr.mxu0 0.0
    %2137 = vmatpush1.xpose.msra.mxu0 0.0
    %2138 = vmatprep.subr.mxu0 0.0
    %2139 = vmatpush1.xpose.msra.mxu0 0.0
    %2140 = vmatprep.subr.mxu0 0.0
    %2141 = vmatpush1.xpose.msra.mxu0 0.0
    %2142 = vmatprep.subr.mxu0 0.0
    %2143 = vmatpush1.xpose.msra.mxu0 0.0
    %2144 = vmatprep.subr.mxu0 0.0
    %2145 = vmatpush1.xpose.msra.mxu0 0.0
    %2146 = vmatprep.subr.mxu0 0.0
    %2147 = vmatpush1.xpose.msra.mxu0 0.0
    %2148 = vmatprep.subr.mxu0 0.0
    %2149 = vmatpush1.xpose.msra.mxu0 0.0
    %2150 = vmatprep.subr.mxu0 0.0
    %2151 = vmatpush1.xpose.msra.mxu0 0.0
    %2152 = vmatprep.subr.mxu0 0.0
    %2153 = vmatpush1.xpose.msra.mxu0 0.0
    %2154 = vmatprep.subr.mxu0 0.0
    %2155 = vmatpush1.xpose.msra.mxu0 0.0
    %2156 = vmatprep.subr.mxu0 0.0
    %2157 = vmatpush1.xpose.msra.mxu0 0.0
    %2158 = vmatprep.subr.mxu0 0.0
    %2159 = vmatpush1.xpose.msra.mxu0 %v2126
    %2160 = vmatprep.subr.mxu0 0.0
    %2161 = vmatpush2.xpose.msra.mxu0 0.0
    %2162 = vmatprep.subr.mxu0 0.0
    %2163 = vmatpush2.xpose.msra.mxu0 0.0
    %2164 = vmatprep.subr.mxu0 0.0
    %2165 = vmatpush2.xpose.msra.mxu0 0.0
    %2166 = vmatprep.subr.mxu0 0.0
    %2167 = vmatpush2.xpose.msra.mxu0 0.0
    %2168 = vmatprep.subr.mxu0 0.0
    %2169 = vmatpush2.xpose.msra.mxu0 0.0
    %2170 = vmatprep.subr.mxu0 0.0
    %2171 = vmatpush2.xpose.msra.mxu0 0.0
    %2172 = vmatprep.subr.mxu0 0.0
    %2173 = vmatpush2.xpose.msra.mxu0 0.0
    %2174 = vmatprep.subr.mxu0 0.0
    %2175 = vmatpush2.xpose.msra.mxu0 0.0
    %2176 = vmatprep.subr.mxu0 0.0
    %2177 = vmatpush2.xpose.msra.mxu0 0.0
    %2178 = vmatprep.subr.mxu0 0.0
    %2179 = vmatpush2.xpose.msra.mxu0 0.0
    %2180 = vmatprep.subr.mxu0 0.0
    %2181 = vmatpush2.xpose.msra.mxu0 0.0
    %2182 = vmatprep.subr.mxu0 0.0
    %2183 = vmatpush2.xpose.msra.mxu0 0.0
    %2184 = vmatprep.subr.mxu0 0.0
    %2185 = vmatpush2.xpose.msra.mxu0 0.0
    %2186 = vmatprep.subr.mxu0 0.0
    %2187 = vmatpush2.xpose.msra.mxu0 0.0
    %2188 = vmatprep.subr.mxu0 0.0
    %2189 = vmatpush2.xpose.msra.mxu0 0.0
    %2190 = vmatprep.subr.mxu0 0.0
    %2191 = vmatpush2.xpose.msra.mxu0 0.0
    %2192 = vmatprep.mubr.f32.mxu0 0.0
    %2193 = vmatmul.mubr.f32.gmra.mxu0 %v1158
    %v2194 = vpop.f32.mrf.mxu0
    %v2195 = vadd.f32 0.0, %v2194
    %v2196 = vpop.f32.mrf.mxu0
    %2197 = vdwg.mxu0
    %v2198 = vlaneseq
    %v2199 = vshrl.u32 %v2198, 7
    %v2200 = vsub.s32 0, %v2199
    %v2201 = vrot.slane %v2195, %v2200
    %v2202 = vadd.f32 %v2124, %v2201
    %vm2203 = vcmp.gt.f32.partialorder %v2202, 0.0
    %v2204 = vmul.f32 %v2202, 0.2
    %v2205 = vsel %vm2203, %v2202, %v2204
    %v2206 = vsel %vm1513, %v2205, -9e+15
    %v2207 = vsel %vm797, %v2206, -inf
    %2208 = vmax.xlane.f32.xlu0 %v2207
    %v2209 = vpop.xlane.xlu0 %2208
    %v2210 = vsub.f32 %v2206, %v2209
    %v2211 = vmul.f32 %v2210, 1.442695
    %v2212 = vpow.pop %v2211
    %v2213 = vsel %vm797, %v2212, 0.0
    %2214 = vadd.xlane.f32.xlu0 %v2213
    %v2215 = vpop.xlane.xlu0 %2214
    %v2216 = vrcp.pop %v2215
    %v2217 = vmul.f32 %v2212, %v2216
    %v2219 = vsel %vm797, %v2217, 0
    %2221 = vmatprep.subr.mxu0 0.0
    %2222 = vmatpush1.msra.mxu0 0.0
    %2223 = vmatprep.subr.mxu0 0.0
    %2224 = vmatpush1.msra.mxu0 0.0
    %2225 = vmatprep.subr.mxu0 0.0
    %2226 = vmatpush1.msra.mxu0 0.0
    %2227 = vmatprep.subr.mxu0 0.0
    %2228 = vmatpush1.msra.mxu0 0.0
    %2229 = vmatprep.subr.mxu0 0.0
    %2230 = vmatpush1.msra.mxu0 0.0
    %2231 = vmatprep.subr.mxu0 0.0
    %2232 = vmatpush1.msra.mxu0 0.0
    %2233 = vmatprep.subr.mxu0 0.0
    %2234 = vmatpush1.msra.mxu0 0.0
    %2235 = vmatprep.subr.mxu0 0.0
    %2236 = vmatpush1.msra.mxu0 0.0
    %2237 = vmatprep.subr.mxu0 0.0
    %2238 = vmatpush1.msra.mxu0 0.0
    %2239 = vmatprep.subr.mxu0 0.0
    %2240 = vmatpush1.msra.mxu0 0.0
    %2241 = vmatprep.subr.mxu0 0.0
    %2242 = vmatpush1.msra.mxu0 0.0
    %2243 = vmatprep.subr.mxu0 0.0
    %2244 = vmatpush1.msra.mxu0 0.0
    %2245 = vmatprep.subr.mxu0 0.0
    %2246 = vmatpush1.msra.mxu0 0.0
    %2247 = vmatprep.subr.mxu0 0.0
    %2248 = vmatpush1.msra.mxu0 0.0
    %2249 = vmatprep.subr.mxu0 0.0
    %2250 = vmatpush1.msra.mxu0 0.0
    %2251 = vmatprep.subr.mxu0 0.0
    %2252 = vmatpush1.msra.mxu0 %v2118
    %2253 = vmatprep.subr.mxu0 0.0
    %2254 = vmatpush2.msra.mxu0 0.0
    %2255 = vmatprep.subr.mxu0 0.0
    %2256 = vmatpush2.msra.mxu0 0.0
    %2257 = vmatprep.subr.mxu0 0.0
    %2258 = vmatpush2.msra.mxu0 0.0
    %2259 = vmatprep.subr.mxu0 0.0
    %2260 = vmatpush2.msra.mxu0 0.0
    %2261 = vmatprep.subr.mxu0 0.0
    %2262 = vmatpush2.msra.mxu0 0.0
    %2263 = vmatprep.subr.mxu0 0.0
    %2264 = vmatpush2.msra.mxu0 0.0
    %2265 = vmatprep.subr.mxu0 0.0
    %2266 = vmatpush2.msra.mxu0 0.0
    %2267 = vmatprep.subr.mxu0 0.0
    %2268 = vmatpush2.msra.mxu0 0.0
    %2269 = vmatprep.subr.mxu0 0.0
    %2270 = vmatpush2.msra.mxu0 0.0
    %2271 = vmatprep.subr.mxu0 0.0
    %2272 = vmatpush2.msra.mxu0 0.0
    %2273 = vmatprep.subr.mxu0 0.0
    %2274 = vmatpush2.msra.mxu0 0.0
    %2275 = vmatprep.subr.mxu0 0.0
    %2276 = vmatpush2.msra.mxu0 0.0
    %2277 = vmatprep.subr.mxu0 0.0
    %2278 = vmatpush2.msra.mxu0 0.0
    %2279 = vmatprep.subr.mxu0 0.0
    %2280 = vmatpush2.msra.mxu0 0.0
    %2281 = vmatprep.subr.mxu0 0.0
    %2282 = vmatpush2.msra.mxu0 0.0
    %2283 = vmatprep.subr.mxu0 0.0
    %2284 = vmatpush2.msra.mxu0 0.0
    %2285 = vmatprep.mubr.f32.mxu0 0.0
    %2286 = vmatmul.mubr.f32.gmra.mxu0 %v2219
    %v2287 = vpop.f32.mrf.mxu0
    %v2288 = vadd.f32 0.0, %v2287
    %v2289 = vpop.f32.mrf.mxu0
    %2290 = vdwg.mxu0
    %vm2291 = vcmp.gt.f32.partialorder %v2288, 0.0
    %v2292 = vmul.f32 %v2288, 1.442695
    %v2293 = vpow.pop %v2292
    %v2294 = vsub.f32 %v2293, 1.0
    %v2295 = vsel %vm2291, %v2288, %v2294
    %v2296 = vsel %vm258, %v2295, %v1612
    %v2298 = vsel %vm1335, %v2296, 0
    %2300 = vmatprep.subr.mxu0 0.0
    %2301 = vmatpush1.msra.mxu0 0.0
    %2302 = vmatprep.subr.mxu0 0.0
    %2303 = vmatpush1.msra.mxu0 0.0
    %2304 = vmatprep.subr.mxu0 0.0
    %2305 = vmatpush1.msra.mxu0 0.0
    %2306 = vmatprep.subr.mxu0 0.0
    %2307 = vmatpush1.msra.mxu0 0.0
    %2308 = vmatprep.subr.mxu0 0.0
    %2309 = vmatpush1.msra.mxu0 0.0
    %2310 = vmatprep.subr.mxu0 0.0
    %2311 = vmatpush1.msra.mxu0 0.0
    %2312 = vmatprep.subr.mxu0 0.0
    %2313 = vmatpush1.msra.mxu0 0.0
    %2314 = vmatprep.subr.mxu0 0.0
    %2315 = vmatpush1.msra.mxu0 0.0
    %2316 = vmatprep.subr.mxu0 0.0
    %2317 = vmatpush1.msra.mxu0 %v90
    %2318 = vmatprep.subr.mxu0 0.0
    %2319 = vmatpush1.msra.mxu0 %v89
    %2320 = vmatprep.subr.mxu0 0.0
    %2321 = vmatpush1.msra.mxu0 %v88
    %2322 = vmatprep.subr.mxu0 0.0
    %2323 = vmatpush1.msra.mxu0 %v87
    %2324 = vmatprep.subr.mxu0 0.0
    %2325 = vmatpush1.msra.mxu0 %v86
    %2326 = vmatprep.subr.mxu0 0.0
    %2327 = vmatpush1.msra.mxu0 %v85
    %2328 = vmatprep.subr.mxu0 0.0
    %2329 = vmatpush1.msra.mxu0 %v84
    %2330 = vmatprep.subr.mxu0 0.0
    %2331 = vmatpush1.msra.mxu0 %v83
    %2332 = vmatprep.subr.mxu0 0.0
    %2333 = vmatpush2.msra.mxu0 0.0
    %2334 = vmatprep.subr.mxu0 0.0
    %2335 = vmatpush2.msra.mxu0 0.0
    %2336 = vmatprep.subr.mxu0 0.0
    %2337 = vmatpush2.msra.mxu0 0.0
    %2338 = vmatprep.subr.mxu0 0.0
    %2339 = vmatpush2.msra.mxu0 0.0
    %2340 = vmatprep.subr.mxu0 0.0
    %2341 = vmatpush2.msra.mxu0 0.0
    %2342 = vmatprep.subr.mxu0 0.0
    %2343 = vmatpush2.msra.mxu0 0.0
    %2344 = vmatprep.subr.mxu0 0.0
    %2345 = vmatpush2.msra.mxu0 0.0
    %2346 = vmatprep.subr.mxu0 0.0
    %2347 = vmatpush2.msra.mxu0 0.0
    %2348 = vmatprep.subr.mxu0 0.0
    %2349 = vmatpush2.msra.mxu0 0.0
    %2350 = vmatprep.subr.mxu0 0.0
    %2351 = vmatpush2.msra.mxu0 0.0
    %2352 = vmatprep.subr.mxu0 0.0
    %2353 = vmatpush2.msra.mxu0 0.0
    %2354 = vmatprep.subr.mxu0 0.0
    %2355 = vmatpush2.msra.mxu0 0.0
    %2356 = vmatprep.subr.mxu0 0.0
    %2357 = vmatpush2.msra.mxu0 0.0
    %2358 = vmatprep.subr.mxu0 0.0
    %2359 = vmatpush2.msra.mxu0 0.0
    %2360 = vmatprep.subr.mxu0 0.0
    %2361 = vmatpush2.msra.mxu0 0.0
    %2362 = vmatprep.subr.mxu0 0.0
    %2363 = vmatpush2.msra.mxu0 0.0
    %2364 = vmatprep.mubr.f32.mxu0 0.0
    %2365 = vmatmul.mubr.f32.gmra.mxu0 %v2298
    %v2366 = vpop.f32.mrf.mxu0
    %v2367 = vadd.f32 %v1333, %v2366
    %v2368 = vpop.f32.mrf.mxu0
    %2369 = vdwg.mxu0
    %v2371 = vsel %vm258, %v2367, 0
    %2373 = vmatprep.subr.mxu0 0.0
    %2374 = vmatpush1.msra.mxu0 0.0
    %2375 = vmatprep.subr.mxu0 0.0
    %2376 = vmatpush1.msra.mxu0 0.0
    %2377 = vmatprep.subr.mxu0 0.0
    %2378 = vmatpush1.msra.mxu0 0.0
    %2379 = vmatprep.subr.mxu0 0.0
    %2380 = vmatpush1.msra.mxu0 0.0
    %2381 = vmatprep.subr.mxu0 0.0
    %2382 = vmatpush1.msra.mxu0 0.0
    %2383 = vmatprep.subr.mxu0 0.0
    %2384 = vmatpush1.msra.mxu0 0.0
    %2385 = vmatprep.subr.mxu0 0.0
    %2386 = vmatpush1.msra.mxu0 0.0
    %2387 = vmatprep.subr.mxu0 0.0
    %2388 = vmatpush1.msra.mxu0 0.0
    %2389 = vmatprep.subr.mxu0 0.0
    %2390 = vmatpush1.msra.mxu0 0.0
    %2391 = vmatprep.subr.mxu0 0.0
    %2392 = vmatpush1.msra.mxu0 0.0
    %2393 = vmatprep.subr.mxu0 0.0
    %2394 = vmatpush1.msra.mxu0 0.0
    %2395 = vmatprep.subr.mxu0 0.0
    %2396 = vmatpush1.msra.mxu0 0.0
    %2397 = vmatprep.subr.mxu0 0.0
    %2398 = vmatpush1.msra.mxu0 %v94
    %2399 = vmatprep.subr.mxu0 0.0
    %2400 = vmatpush1.msra.mxu0 %v93
    %2401 = vmatprep.subr.mxu0 0.0
    %2402 = vmatpush1.msra.mxu0 %v92
    %2403 = vmatprep.subr.mxu0 0.0
    %2404 = vmatpush1.msra.mxu0 %v91
    %2405 = vmatprep.subr.mxu0 0.0
    %2406 = vmatpush2.msra.mxu0 0.0
    %2407 = vmatprep.subr.mxu0 0.0
    %2408 = vmatpush2.msra.mxu0 0.0
    %2409 = vmatprep.subr.mxu0 0.0
    %2410 = vmatpush2.msra.mxu0 0.0
    %2411 = vmatprep.subr.mxu0 0.0
    %2412 = vmatpush2.msra.mxu0 0.0
    %2413 = vmatprep.subr.mxu0 0.0
    %2414 = vmatpush2.msra.mxu0 0.0
    %2415 = vmatprep.subr.mxu0 0.0
    %2416 = vmatpush2.msra.mxu0 0.0
    %2417 = vmatprep.subr.mxu0 0.0
    %2418 = vmatpush2.msra.mxu0 0.0
    %2419 = vmatprep.subr.mxu0 0.0
    %2420 = vmatpush2.msra.mxu0 0.0
    %2421 = vmatprep.subr.mxu0 0.0
    %2422 = vmatpush2.msra.mxu0 0.0
    %2423 = vmatprep.subr.mxu0 0.0
    %2424 = vmatpush2.msra.mxu0 0.0
    %2425 = vmatprep.subr.mxu0 0.0
    %2426 = vmatpush2.msra.mxu0 0.0
    %2427 = vmatprep.subr.mxu0 0.0
    %2428 = vmatpush2.msra.mxu0 0.0
    %2429 = vmatprep.subr.mxu0 0.0
    %2430 = vmatpush2.msra.mxu0 0.0
    %2431 = vmatprep.subr.mxu0 0.0
    %2432 = vmatpush2.msra.mxu0 0.0
    %2433 = vmatprep.subr.mxu0 0.0
    %2434 = vmatpush2.msra.mxu0 0.0
    %2435 = vmatprep.subr.mxu0 0.0
    %2436 = vmatpush2.msra.mxu0 0.0
    %2437 = vmatprep.mubr.f32.mxu0 0.0
    %2438 = vmatmul.mubr.f32.gmra.mxu0 %v2371
    %v2439 = vpop.f32.mrf.mxu0
    %v2440 = vadd.f32 %v1410, %v2439
    %v2441 = vpop.f32.mrf.mxu0
    %2442 = vdwg.mxu0
    %v2443 = vsel %vm104, %v2440, -inf
    %2444 = vmax.xlane.f32.xlu0 %v2443
    %v2445 = vpop.xlane.xlu0 %2444
    %v2446 = vsub.f32 %v2440, %v2445
    %v2447 = vmul.f32 %v2446, 1.442695
    %v2448 = vpow.pop %v2447
    %v2449 = vsel %vm104, %v2448, 0.0
    %2450 = vadd.xlane.f32.xlu0 %v2449
    %v2451 = vpop.xlane.xlu0 %2450
    %v2452 = vlog2.pop %v2451
    %v2453 = vmul.f32 %v2452, 0.6931472
    %v2454 = vsub.f32 %v2446, %v2453
    %v2455 = vmul.f32 %v1510, %v2454
    %v2456 = vsel %vm104, %v2455, 0.0
    %2457 = vadd.xlane.f32.xlu0 %v2456
    %v2458 = vpop.xlane.xlu0 %2457
    %v2459 = vrot.slane %v2458, 4
    %v2460 = vadd.f32 %v2458, %v2459
    %v2461 = vrot.slane %v2460, 2
    %v2462 = vadd.f32 %v2460, %v2461
    %v2463 = vrot.slane %v2462, 1
    %v2464 = vadd.f32 %v2462, %v2463
    %v2465 = vmul.f32 %v2464, 0.5
    %v2466 = vsub.f32 %v1508, %v2465
    %s2467 = scalar_lea.vmem %s1, 16
    %v2468 = vld [vmem:[%s2467] sm:$0xff]
    %s2469 = scalar_lea.vmem %s2, 16
    %v2470 = vld [vmem:[%s2469] sm:$0xff]
    %vm2471 = vcmp.gt.f32.partialorder %v2470, 0.0
    %2472 = vmatprep.subr.mxu0 0.0
    %2473 = vmatpush1.msra.mxu0 0.0
    %2474 = vmatprep.subr.mxu0 0.0
    %2475 = vmatpush1.msra.mxu0 0.0
    %2476 = vmatprep.subr.mxu0 0.0
    %2477 = vmatpush1.msra.mxu0 0.0
    %2478 = vmatprep.subr.mxu0 0.0
    %2479 = vmatpush1.msra.mxu0 0.0
    %2480 = vmatprep.subr.mxu0 0.0
    %2481 = vmatpush1.msra.mxu0 0.0
    %2482 = vmatprep.subr.mxu0 0.0
    %2483 = vmatpush1.msra.mxu0 0.0
    %2484 = vmatprep.subr.mxu0 0.0
    %2485 = vmatpush1.msra.mxu0 0.0
    %2486 = vmatprep.subr.mxu0 0.0
    %2487 = vmatpush1.msra.mxu0 0.0
    %2488 = vmatprep.subr.mxu0 0.0
    %2489 = vmatpush1.msra.mxu0 0.0
    %2490 = vmatprep.subr.mxu0 0.0
    %2491 = vmatpush1.msra.mxu0 0.0
    %2492 = vmatprep.subr.mxu0 0.0
    %2493 = vmatpush1.msra.mxu0 0.0
    %2494 = vmatprep.subr.mxu0 0.0
    %2495 = vmatpush1.msra.mxu0 0.0
    %2496 = vmatprep.subr.mxu0 0.0
    %2497 = vmatpush1.msra.mxu0 %v64
    %2498 = vmatprep.subr.mxu0 0.0
    %2499 = vmatpush1.msra.mxu0 %v63
    %2500 = vmatprep.subr.mxu0 0.0
    %2501 = vmatpush1.msra.mxu0 %v62
    %2502 = vmatprep.subr.mxu0 0.0
    %2503 = vmatpush1.msra.mxu0 %v61
    %2504 = vmatprep.subr.mxu0 0.0
    %2505 = vmatpush2.msra.mxu0 0.0
    %2506 = vmatprep.subr.mxu0 0.0
    %2507 = vmatpush2.msra.mxu0 0.0
    %2508 = vmatprep.subr.mxu0 0.0
    %2509 = vmatpush2.msra.mxu0 0.0
    %2510 = vmatprep.subr.mxu0 0.0
    %2511 = vmatpush2.msra.mxu0 0.0
    %2512 = vmatprep.subr.mxu0 0.0
    %2513 = vmatpush2.msra.mxu0 0.0
    %2514 = vmatprep.subr.mxu0 0.0
    %2515 = vmatpush2.msra.mxu0 0.0
    %2516 = vmatprep.subr.mxu0 0.0
    %2517 = vmatpush2.msra.mxu0 0.0
    %2518 = vmatprep.subr.mxu0 0.0
    %2519 = vmatpush2.msra.mxu0 0.0
    %2520 = vmatprep.subr.mxu0 0.0
    %2521 = vmatpush2.msra.mxu0 0.0
    %2522 = vmatprep.subr.mxu0 0.0
    %2523 = vmatpush2.msra.mxu0 0.0
    %2524 = vmatprep.subr.mxu0 0.0
    %2525 = vmatpush2.msra.mxu0 0.0
    %2526 = vmatprep.subr.mxu0 0.0
    %2527 = vmatpush2.msra.mxu0 0.0
    %2528 = vmatprep.subr.mxu0 0.0
    %2529 = vmatpush2.msra.mxu0 0.0
    %2530 = vmatprep.subr.mxu0 0.0
    %2531 = vmatpush2.msra.mxu0 0.0
    %2532 = vmatprep.subr.mxu0 0.0
    %2533 = vmatpush2.msra.mxu0 0.0
    %2534 = vmatprep.subr.mxu0 0.0
    %2535 = vmatpush2.msra.mxu0 0.0
    %2536 = vmatprep.mubr.f32.mxu0 0.0
    %2537 = vmatmul.mubr.f32.gmra.mxu0 %v2371
    %v2538 = vpop.f32.mrf.mxu0
    %v2539 = vadd.f32 %v70, %v2538
    %v2540 = vpop.f32.mrf.mxu0
    %2541 = vdwg.mxu0
    %v2542 = vadd.f32 %v503, %v2539
    %v2543 = vxor.u32 %v2542, 2147483648
    %v2544 = vmul.f32 %v2543, 1.442695
    %v2545 = vpow.pop %v2544
    %v2546 = vadd.f32 %v2545, 1.0
    %v2547 = vrcp.pop %v2546
    %v2548 = vmul.f32 1.0, %v2547
    %2550 = vrot.lane.b32.xlu0 %v2539, 64
    %v2551 = vpop.permute.xlu0 %2550
    %v2553 = vmul.f32 %v2548, %v2551
    %2555 = vrot.lane.b32.xlu0 %v2553, 64
    %v2556 = vpop.permute.xlu0 %2555
    %v2558 = vadd.f32 %v503, %v2556
    %v2559 = vtanh.pop %v2558
    %v2560 = vsub.f32 1.0, %v2548
    %2562 = vrot.lane.b32.xlu0 %v2559, 96
    %v2563 = vpop.permute.xlu0 %2562
    %v2565 = vmul.f32 %v2560, %v2563
    %2566 = vrot.lane.b32.xlu0 %v2367, 32
    %v2567 = vpop.permute.xlu0 %2566
    %v2569 = vmul.f32 %v2548, %v2567
    %v2570 = vadd.f32 %v2565, %v2569
    %2572 = vrot.lane.b32.xlu0 %v2570, 96
    %v2573 = vpop.permute.xlu0 %2572
    %v2574 = vsel %vm258, %v2573, 0
    %2576 = vmatprep.subr.mxu0 0.0
    %2577 = vmatpush1.msra.mxu0 0.0
    %2578 = vmatprep.subr.mxu0 0.0
    %2579 = vmatpush1.msra.mxu0 0.0
    %2580 = vmatprep.subr.mxu0 0.0
    %2581 = vmatpush1.msra.mxu0 0.0
    %2582 = vmatprep.subr.mxu0 0.0
    %2583 = vmatpush1.msra.mxu0 0.0
    %2584 = vmatprep.subr.mxu0 0.0
    %2585 = vmatpush1.msra.mxu0 0.0
    %2586 = vmatprep.subr.mxu0 0.0
    %2587 = vmatpush1.msra.mxu0 0.0
    %2588 = vmatprep.subr.mxu0 0.0
    %2589 = vmatpush1.msra.mxu0 0.0
    %2590 = vmatprep.subr.mxu0 0.0
    %2591 = vmatpush1.msra.mxu0 0.0
    %2592 = vmatprep.subr.mxu0 0.0
    %2593 = vmatpush1.msra.mxu0 0.0
    %2594 = vmatprep.subr.mxu0 0.0
    %2595 = vmatpush1.msra.mxu0 0.0
    %2596 = vmatprep.subr.mxu0 0.0
    %2597 = vmatpush1.msra.mxu0 0.0
    %2598 = vmatprep.subr.mxu0 0.0
    %2599 = vmatpush1.msra.mxu0 0.0
    %2600 = vmatprep.subr.mxu0 0.0
    %2601 = vmatpush1.msra.mxu0 %v74
    %2602 = vmatprep.subr.mxu0 0.0
    %2603 = vmatpush1.msra.mxu0 %v73
    %2604 = vmatprep.subr.mxu0 0.0
    %2605 = vmatpush1.msra.mxu0 %v72
    %2606 = vmatprep.subr.mxu0 0.0
    %2607 = vmatpush1.msra.mxu0 %v71
    %2608 = vmatprep.subr.mxu0 0.0
    %2609 = vmatpush2.msra.mxu0 0.0
    %2610 = vmatprep.subr.mxu0 0.0
    %2611 = vmatpush2.msra.mxu0 0.0
    %2612 = vmatprep.subr.mxu0 0.0
    %2613 = vmatpush2.msra.mxu0 0.0
    %2614 = vmatprep.subr.mxu0 0.0
    %2615 = vmatpush2.msra.mxu0 0.0
    %2616 = vmatprep.subr.mxu0 0.0
    %2617 = vmatpush2.msra.mxu0 0.0
    %2618 = vmatprep.subr.mxu0 0.0
    %2619 = vmatpush2.msra.mxu0 0.0
    %2620 = vmatprep.subr.mxu0 0.0
    %2621 = vmatpush2.msra.mxu0 0.0
    %2622 = vmatprep.subr.mxu0 0.0
    %2623 = vmatpush2.msra.mxu0 0.0
    %2624 = vmatprep.subr.mxu0 0.0
    %2625 = vmatpush2.msra.mxu0 0.0
    %2626 = vmatprep.subr.mxu0 0.0
    %2627 = vmatpush2.msra.mxu0 0.0
    %2628 = vmatprep.subr.mxu0 0.0
    %2629 = vmatpush2.msra.mxu0 0.0
    %2630 = vmatprep.subr.mxu0 0.0
    %2631 = vmatpush2.msra.mxu0 0.0
    %2632 = vmatprep.subr.mxu0 0.0
    %2633 = vmatpush2.msra.mxu0 0.0
    %2634 = vmatprep.subr.mxu0 0.0
    %2635 = vmatpush2.msra.mxu0 0.0
    %2636 = vmatprep.subr.mxu0 0.0
    %2637 = vmatpush2.msra.mxu0 0.0
    %2638 = vmatprep.subr.mxu0 0.0
    %2639 = vmatpush2.msra.mxu0 0.0
    %2640 = vmatprep.mubr.f32.mxu0 0.0
    %2641 = vmatmul.mubr.f32.gmra.mxu0 %v2574
    %v2642 = vpop.f32.mrf.mxu0
    %v2643 = vadd.f32 0.0, %v2642
    %v2644 = vpop.f32.mrf.mxu0
    %2645 = vdwg.mxu0
    %v2646 = vmul.f32 %v2643, %v706
    %v2647 = vsel %vm708, %v2646, 0.0
    %2648 = vadd.xlane.f32.xlu0 %v2647
    %v2649 = vpop.xlane.xlu0 %2648
    %v2651 = vsel %vm708, %v2643, 0
    %2653 = vmatprep.subr.mxu0 0.0
    %2654 = vmatpush1.xpose.msra.mxu0 0.0
    %2655 = vmatprep.subr.mxu0 0.0
    %2656 = vmatpush1.xpose.msra.mxu0 0.0
    %2657 = vmatprep.subr.mxu0 0.0
    %2658 = vmatpush1.xpose.msra.mxu0 0.0
    %2659 = vmatprep.subr.mxu0 0.0
    %2660 = vmatpush1.xpose.msra.mxu0 0.0
    %2661 = vmatprep.subr.mxu0 0.0
    %2662 = vmatpush1.xpose.msra.mxu0 0.0
    %2663 = vmatprep.subr.mxu0 0.0
    %2664 = vmatpush1.xpose.msra.mxu0 0.0
    %2665 = vmatprep.subr.mxu0 0.0
    %2666 = vmatpush1.xpose.msra.mxu0 0.0
    %2667 = vmatprep.subr.mxu0 0.0
    %2668 = vmatpush1.xpose.msra.mxu0 0.0
    %2669 = vmatprep.subr.mxu0 0.0
    %2670 = vmatpush1.xpose.msra.mxu0 0.0
    %2671 = vmatprep.subr.mxu0 0.0
    %2672 = vmatpush1.xpose.msra.mxu0 0.0
    %2673 = vmatprep.subr.mxu0 0.0
    %2674 = vmatpush1.xpose.msra.mxu0 0.0
    %2675 = vmatprep.subr.mxu0 0.0
    %2676 = vmatpush1.xpose.msra.mxu0 0.0
    %2677 = vmatprep.subr.mxu0 0.0
    %2678 = vmatpush1.xpose.msra.mxu0 0.0
    %2679 = vmatprep.subr.mxu0 0.0
    %2680 = vmatpush1.xpose.msra.mxu0 0.0
    %2681 = vmatprep.subr.mxu0 0.0
    %2682 = vmatpush1.xpose.msra.mxu0 0.0
    %2683 = vmatprep.subr.mxu0 0.0
    %2684 = vmatpush1.xpose.msra.mxu0 %v2651
    %2685 = vmatprep.subr.mxu0 0.0
    %2686 = vmatpush2.xpose.msra.mxu0 0.0
    %2687 = vmatprep.subr.mxu0 0.0
    %2688 = vmatpush2.xpose.msra.mxu0 0.0
    %2689 = vmatprep.subr.mxu0 0.0
    %2690 = vmatpush2.xpose.msra.mxu0 0.0
    %2691 = vmatprep.subr.mxu0 0.0
    %2692 = vmatpush2.xpose.msra.mxu0 0.0
    %2693 = vmatprep.subr.mxu0 0.0
    %2694 = vmatpush2.xpose.msra.mxu0 0.0
    %2695 = vmatprep.subr.mxu0 0.0
    %2696 = vmatpush2.xpose.msra.mxu0 0.0
    %2697 = vmatprep.subr.mxu0 0.0
    %2698 = vmatpush2.xpose.msra.mxu0 0.0
    %2699 = vmatprep.subr.mxu0 0.0
    %2700 = vmatpush2.xpose.msra.mxu0 0.0
    %2701 = vmatprep.subr.mxu0 0.0
    %2702 = vmatpush2.xpose.msra.mxu0 0.0
    %2703 = vmatprep.subr.mxu0 0.0
    %2704 = vmatpush2.xpose.msra.mxu0 0.0
    %2705 = vmatprep.subr.mxu0 0.0
    %2706 = vmatpush2.xpose.msra.mxu0 0.0
    %2707 = vmatprep.subr.mxu0 0.0
    %2708 = vmatpush2.xpose.msra.mxu0 0.0
    %2709 = vmatprep.subr.mxu0 0.0
    %2710 = vmatpush2.xpose.msra.mxu0 0.0
    %2711 = vmatprep.subr.mxu0 0.0
    %2712 = vmatpush2.xpose.msra.mxu0 0.0
    %2713 = vmatprep.subr.mxu0 0.0
    %2714 = vmatpush2.xpose.msra.mxu0 0.0
    %2715 = vmatprep.subr.mxu0 0.0
    %2716 = vmatpush2.xpose.msra.mxu0 0.0
    %2717 = vmatprep.mubr.f32.mxu0 0.0
    %2718 = vmatmul.mubr.f32.gmra.mxu0 %v713
    %v2719 = vpop.f32.mrf.mxu0
    %v2720 = vadd.f32 0.0, %v2719
    %v2721 = vpop.f32.mrf.mxu0
    %2722 = vdwg.mxu0
    %v2723 = vlaneseq
    %v2724 = vshrl.u32 %v2723, 7
    %v2725 = vsub.s32 0, %v2724
    %v2726 = vrot.slane %v2720, %v2725
    %v2727 = vadd.f32 %v2649, %v2726
    %vm2728 = vcmp.gt.f32.partialorder %v2727, 0.0
    %v2729 = vmul.f32 %v2727, 0.2
    %v2730 = vsel %vm2728, %v2727, %v2729
    %v2731 = vsel %vm2471, %v2730, -9e+15
    %v2732 = vsel %vm797, %v2731, -inf
    %2733 = vmax.xlane.f32.xlu0 %v2732
    %v2734 = vpop.xlane.xlu0 %2733
    %v2735 = vsub.f32 %v2731, %v2734
    %v2736 = vmul.f32 %v2735, 1.442695
    %v2737 = vpow.pop %v2736
    %v2738 = vsel %vm797, %v2737, 0.0
    %2739 = vadd.xlane.f32.xlu0 %v2738
    %v2740 = vpop.xlane.xlu0 %2739
    %v2741 = vrcp.pop %v2740
    %v2742 = vmul.f32 %v2737, %v2741
    %v2744 = vsel %vm797, %v2742, 0
    %2746 = vmatprep.subr.mxu0 0.0
    %2747 = vmatpush1.msra.mxu0 0.0
    %2748 = vmatprep.subr.mxu0 0.0
    %2749 = vmatpush1.msra.mxu0 0.0
    %2750 = vmatprep.subr.mxu0 0.0
    %2751 = vmatpush1.msra.mxu0 0.0
    %2752 = vmatprep.subr.mxu0 0.0
    %2753 = vmatpush1.msra.mxu0 0.0
    %2754 = vmatprep.subr.mxu0 0.0
    %2755 = vmatpush1.msra.mxu0 0.0
    %2756 = vmatprep.subr.mxu0 0.0
    %2757 = vmatpush1.msra.mxu0 0.0
    %2758 = vmatprep.subr.mxu0 0.0
    %2759 = vmatpush1.msra.mxu0 0.0
    %2760 = vmatprep.subr.mxu0 0.0
    %2761 = vmatpush1.msra.mxu0 0.0
    %2762 = vmatprep.subr.mxu0 0.0
    %2763 = vmatpush1.msra.mxu0 0.0
    %2764 = vmatprep.subr.mxu0 0.0
    %2765 = vmatpush1.msra.mxu0 0.0
    %2766 = vmatprep.subr.mxu0 0.0
    %2767 = vmatpush1.msra.mxu0 0.0
    %2768 = vmatprep.subr.mxu0 0.0
    %2769 = vmatpush1.msra.mxu0 0.0
    %2770 = vmatprep.subr.mxu0 0.0
    %2771 = vmatpush1.msra.mxu0 0.0
    %2772 = vmatprep.subr.mxu0 0.0
    %2773 = vmatpush1.msra.mxu0 0.0
    %2774 = vmatprep.subr.mxu0 0.0
    %2775 = vmatpush1.msra.mxu0 0.0
    %2776 = vmatprep.subr.mxu0 0.0
    %2777 = vmatpush1.msra.mxu0 %v2643
    %2778 = vmatprep.subr.mxu0 0.0
    %2779 = vmatpush2.msra.mxu0 0.0
    %2780 = vmatprep.subr.mxu0 0.0
    %2781 = vmatpush2.msra.mxu0 0.0
    %2782 = vmatprep.subr.mxu0 0.0
    %2783 = vmatpush2.msra.mxu0 0.0
    %2784 = vmatprep.subr.mxu0 0.0
    %2785 = vmatpush2.msra.mxu0 0.0
    %2786 = vmatprep.subr.mxu0 0.0
    %2787 = vmatpush2.msra.mxu0 0.0
    %2788 = vmatprep.subr.mxu0 0.0
    %2789 = vmatpush2.msra.mxu0 0.0
    %2790 = vmatprep.subr.mxu0 0.0
    %2791 = vmatpush2.msra.mxu0 0.0
    %2792 = vmatprep.subr.mxu0 0.0
    %2793 = vmatpush2.msra.mxu0 0.0
    %2794 = vmatprep.subr.mxu0 0.0
    %2795 = vmatpush2.msra.mxu0 0.0
    %2796 = vmatprep.subr.mxu0 0.0
    %2797 = vmatpush2.msra.mxu0 0.0
    %2798 = vmatprep.subr.mxu0 0.0
    %2799 = vmatpush2.msra.mxu0 0.0
    %2800 = vmatprep.subr.mxu0 0.0
    %2801 = vmatpush2.msra.mxu0 0.0
    %2802 = vmatprep.subr.mxu0 0.0
    %2803 = vmatpush2.msra.mxu0 0.0
    %2804 = vmatprep.subr.mxu0 0.0
    %2805 = vmatpush2.msra.mxu0 0.0
    %2806 = vmatprep.subr.mxu0 0.0
    %2807 = vmatpush2.msra.mxu0 0.0
    %2808 = vmatprep.subr.mxu0 0.0
    %2809 = vmatpush2.msra.mxu0 0.0
    %2810 = vmatprep.mubr.f32.mxu0 0.0
    %2811 = vmatmul.mubr.f32.gmra.mxu0 %v2744
    %v2812 = vpop.f32.mrf.mxu0
    %v2813 = vadd.f32 0.0, %v2812
    %v2814 = vpop.f32.mrf.mxu0
    %2815 = vdwg.mxu0
    %vm2816 = vcmp.gt.f32.partialorder %v2813, 0.0
    %v2817 = vmul.f32 %v2813, 1.442695
    %v2818 = vpow.pop %v2817
    %v2819 = vsub.f32 %v2818, 1.0
    %v2820 = vsel %vm2816, %v2813, %v2819
    %2822 = vrot.lane.b32.xlu0 %v2646, 112
    %v2823 = vpop.permute.xlu0 %2822
    %v2825 = vsel %vm708, %v2823, 0.0
    %2826 = vadd.xlane.f32.xlu0 %v2825
    %v2827 = vpop.xlane.xlu0 %2826
    %2828 = vrot.lane.b32.xlu0 %v2643, 112
    %v2829 = vpop.permute.xlu0 %2828
    %v2830 = vsel %vm708, %v2829, 0
    %2832 = vmatprep.subr.mxu0 0.0
    %2833 = vmatpush1.xpose.msra.mxu0 0.0
    %2834 = vmatprep.subr.mxu0 0.0
    %2835 = vmatpush1.xpose.msra.mxu0 0.0
    %2836 = vmatprep.subr.mxu0 0.0
    %2837 = vmatpush1.xpose.msra.mxu0 0.0
    %2838 = vmatprep.subr.mxu0 0.0
    %2839 = vmatpush1.xpose.msra.mxu0 0.0
    %2840 = vmatprep.subr.mxu0 0.0
    %2841 = vmatpush1.xpose.msra.mxu0 0.0
    %2842 = vmatprep.subr.mxu0 0.0
    %2843 = vmatpush1.xpose.msra.mxu0 0.0
    %2844 = vmatprep.subr.mxu0 0.0
    %2845 = vmatpush1.xpose.msra.mxu0 0.0
    %2846 = vmatprep.subr.mxu0 0.0
    %2847 = vmatpush1.xpose.msra.mxu0 0.0
    %2848 = vmatprep.subr.mxu0 0.0
    %2849 = vmatpush1.xpose.msra.mxu0 0.0
    %2850 = vmatprep.subr.mxu0 0.0
    %2851 = vmatpush1.xpose.msra.mxu0 0.0
    %2852 = vmatprep.subr.mxu0 0.0
    %2853 = vmatpush1.xpose.msra.mxu0 0.0
    %2854 = vmatprep.subr.mxu0 0.0
    %2855 = vmatpush1.xpose.msra.mxu0 0.0
    %2856 = vmatprep.subr.mxu0 0.0
    %2857 = vmatpush1.xpose.msra.mxu0 0.0
    %2858 = vmatprep.subr.mxu0 0.0
    %2859 = vmatpush1.xpose.msra.mxu0 0.0
    %2860 = vmatprep.subr.mxu0 0.0
    %2861 = vmatpush1.xpose.msra.mxu0 0.0
    %2862 = vmatprep.subr.mxu0 0.0
    %2863 = vmatpush1.xpose.msra.mxu0 %v2830
    %2864 = vmatprep.subr.mxu0 0.0
    %2865 = vmatpush2.xpose.msra.mxu0 0.0
    %2866 = vmatprep.subr.mxu0 0.0
    %2867 = vmatpush2.xpose.msra.mxu0 0.0
    %2868 = vmatprep.subr.mxu0 0.0
    %2869 = vmatpush2.xpose.msra.mxu0 0.0
    %2870 = vmatprep.subr.mxu0 0.0
    %2871 = vmatpush2.xpose.msra.mxu0 0.0
    %2872 = vmatprep.subr.mxu0 0.0
    %2873 = vmatpush2.xpose.msra.mxu0 0.0
    %2874 = vmatprep.subr.mxu0 0.0
    %2875 = vmatpush2.xpose.msra.mxu0 0.0
    %2876 = vmatprep.subr.mxu0 0.0
    %2877 = vmatpush2.xpose.msra.mxu0 0.0
    %2878 = vmatprep.subr.mxu0 0.0
    %2879 = vmatpush2.xpose.msra.mxu0 0.0
    %2880 = vmatprep.subr.mxu0 0.0
    %2881 = vmatpush2.xpose.msra.mxu0 0.0
    %2882 = vmatprep.subr.mxu0 0.0
    %2883 = vmatpush2.xpose.msra.mxu0 0.0
    %2884 = vmatprep.subr.mxu0 0.0
    %2885 = vmatpush2.xpose.msra.mxu0 0.0
    %2886 = vmatprep.subr.mxu0 0.0
    %2887 = vmatpush2.xpose.msra.mxu0 0.0
    %2888 = vmatprep.subr.mxu0 0.0
    %2889 = vmatpush2.xpose.msra.mxu0 0.0
    %2890 = vmatprep.subr.mxu0 0.0
    %2891 = vmatpush2.xpose.msra.mxu0 0.0
    %2892 = vmatprep.subr.mxu0 0.0
    %2893 = vmatpush2.xpose.msra.mxu0 0.0
    %2894 = vmatprep.subr.mxu0 0.0
    %2895 = vmatpush2.xpose.msra.mxu0 0.0
    %2896 = vmatprep.mubr.f32.mxu0 0.0
    %2897 = vmatmul.mubr.f32.gmra.mxu0 %v898
    %v2898 = vpop.f32.mrf.mxu0
    %v2899 = vadd.f32 0.0, %v2898
    %v2900 = vpop.f32.mrf.mxu0
    %2901 = vdwg.mxu0
    %v2902 = vlaneseq
    %v2903 = vshrl.u32 %v2902, 7
    %v2904 = vsub.s32 0, %v2903
    %v2905 = vrot.slane %v2899, %v2904
    %v2906 = vadd.f32 %v2827, %v2905
    %vm2907 = vcmp.gt.f32.partialorder %v2906, 0.0
    %v2908 = vmul.f32 %v2906, 0.2
    %v2909 = vsel %vm2907, %v2906, %v2908
    %v2910 = vsel %vm2471, %v2909, -9e+15
    %v2911 = vsel %vm797, %v2910, -inf
    %2912 = vmax.xlane.f32.xlu0 %v2911
    %v2913 = vpop.xlane.xlu0 %2912
    %v2914 = vsub.f32 %v2910, %v2913
    %v2915 = vmul.f32 %v2914, 1.442695
    %v2916 = vpow.pop %v2915
    %v2917 = vsel %vm797, %v2916, 0.0
    %2918 = vadd.xlane.f32.xlu0 %v2917
    %v2919 = vpop.xlane.xlu0 %2918
    %v2920 = vrcp.pop %v2919
    %v2921 = vmul.f32 %v2916, %v2920
    %v2924 = vsel %vm797, %v2921, 0
    %2926 = vmatprep.subr.mxu0 0.0
    %2927 = vmatpush1.msra.mxu0 0.0
    %2928 = vmatprep.subr.mxu0 0.0
    %2929 = vmatpush1.msra.mxu0 0.0
    %2930 = vmatprep.subr.mxu0 0.0
    %2931 = vmatpush1.msra.mxu0 0.0
    %2932 = vmatprep.subr.mxu0 0.0
    %2933 = vmatpush1.msra.mxu0 0.0
    %2934 = vmatprep.subr.mxu0 0.0
    %2935 = vmatpush1.msra.mxu0 0.0
    %2936 = vmatprep.subr.mxu0 0.0
    %2937 = vmatpush1.msra.mxu0 0.0
    %2938 = vmatprep.subr.mxu0 0.0
    %2939 = vmatpush1.msra.mxu0 0.0
    %2940 = vmatprep.subr.mxu0 0.0
    %2941 = vmatpush1.msra.mxu0 0.0
    %2942 = vmatprep.subr.mxu0 0.0
    %2943 = vmatpush1.msra.mxu0 0.0
    %2944 = vmatprep.subr.mxu0 0.0
    %2945 = vmatpush1.msra.mxu0 0.0
    %2946 = vmatprep.subr.mxu0 0.0
    %2947 = vmatpush1.msra.mxu0 0.0
    %2948 = vmatprep.subr.mxu0 0.0
    %2949 = vmatpush1.msra.mxu0 0.0
    %2950 = vmatprep.subr.mxu0 0.0
    %2951 = vmatpush1.msra.mxu0 0.0
    %2952 = vmatprep.subr.mxu0 0.0
    %2953 = vmatpush1.msra.mxu0 0.0
    %2954 = vmatprep.subr.mxu0 0.0
    %2955 = vmatpush1.msra.mxu0 0.0
    %2956 = vmatprep.subr.mxu0 0.0
    %2957 = vmatpush1.msra.mxu0 %v2829
    %2958 = vmatprep.subr.mxu0 0.0
    %2959 = vmatpush2.msra.mxu0 0.0
    %2960 = vmatprep.subr.mxu0 0.0
    %2961 = vmatpush2.msra.mxu0 0.0
    %2962 = vmatprep.subr.mxu0 0.0
    %2963 = vmatpush2.msra.mxu0 0.0
    %2964 = vmatprep.subr.mxu0 0.0
    %2965 = vmatpush2.msra.mxu0 0.0
    %2966 = vmatprep.subr.mxu0 0.0
    %2967 = vmatpush2.msra.mxu0 0.0
    %2968 = vmatprep.subr.mxu0 0.0
    %2969 = vmatpush2.msra.mxu0 0.0
    %2970 = vmatprep.subr.mxu0 0.0
    %2971 = vmatpush2.msra.mxu0 0.0
    %2972 = vmatprep.subr.mxu0 0.0
    %2973 = vmatpush2.msra.mxu0 0.0
    %2974 = vmatprep.subr.mxu0 0.0
    %2975 = vmatpush2.msra.mxu0 0.0
    %2976 = vmatprep.subr.mxu0 0.0
    %2977 = vmatpush2.msra.mxu0 0.0
    %2978 = vmatprep.subr.mxu0 0.0
    %2979 = vmatpush2.msra.mxu0 0.0
    %2980 = vmatprep.subr.mxu0 0.0
    %2981 = vmatpush2.msra.mxu0 0.0
    %2982 = vmatprep.subr.mxu0 0.0
    %2983 = vmatpush2.msra.mxu0 0.0
    %2984 = vmatprep.subr.mxu0 0.0
    %2985 = vmatpush2.msra.mxu0 0.0
    %2986 = vmatprep.subr.mxu0 0.0
    %2987 = vmatpush2.msra.mxu0 0.0
    %2988 = vmatprep.subr.mxu0 0.0
    %2989 = vmatpush2.msra.mxu0 0.0
    %2990 = vmatprep.mubr.f32.mxu0 0.0
    %2991 = vmatmul.mubr.f32.gmra.mxu0 %v2924
    %v2992 = vpop.f32.mrf.mxu0
    %v2993 = vadd.f32 0.0, %v2992
    %v2994 = vpop.f32.mrf.mxu0
    %2995 = vdwg.mxu0
    %vm2996 = vcmp.gt.f32.partialorder %v2993, 0.0
    %v2997 = vmul.f32 %v2993, 1.442695
    %v2998 = vpow.pop %v2997
    %v2999 = vsub.f32 %v2998, 1.0
    %v3000 = vsel %vm2996, %v2993, %v2999
    %3002 = vrot.lane.b32.xlu0 %v3000, 16
    %v3003 = vpop.permute.xlu0 %3002
    %v3005 = vsel %vm708, %v2820, %v3003
    %v3007 = vsel %vm258, %v3005, 0
    %3009 = vmatprep.subr.mxu0 0.0
    %3010 = vmatpush1.msra.mxu0 0.0
    %3011 = vmatprep.subr.mxu0 0.0
    %3012 = vmatpush1.msra.mxu0 0.0
    %3013 = vmatprep.subr.mxu0 0.0
    %3014 = vmatpush1.msra.mxu0 0.0
    %3015 = vmatprep.subr.mxu0 0.0
    %3016 = vmatpush1.msra.mxu0 0.0
    %3017 = vmatprep.subr.mxu0 0.0
    %3018 = vmatpush1.msra.mxu0 0.0
    %3019 = vmatprep.subr.mxu0 0.0
    %3020 = vmatpush1.msra.mxu0 0.0
    %3021 = vmatprep.subr.mxu0 0.0
    %3022 = vmatpush1.msra.mxu0 0.0
    %3023 = vmatprep.subr.mxu0 0.0
    %3024 = vmatpush1.msra.mxu0 0.0
    %3025 = vmatprep.subr.mxu0 0.0
    %3026 = vmatpush1.msra.mxu0 0.0
    %3027 = vmatprep.subr.mxu0 0.0
    %3028 = vmatpush1.msra.mxu0 0.0
    %3029 = vmatprep.subr.mxu0 0.0
    %3030 = vmatpush1.msra.mxu0 0.0
    %3031 = vmatprep.subr.mxu0 0.0
    %3032 = vmatpush1.msra.mxu0 0.0
    %3033 = vmatprep.subr.mxu0 0.0
    %3034 = vmatpush1.msra.mxu0 %v80
    %3035 = vmatprep.subr.mxu0 0.0
    %3036 = vmatpush1.msra.mxu0 %v79
    %3037 = vmatprep.subr.mxu0 0.0
    %3038 = vmatpush1.msra.mxu0 %v78
    %3039 = vmatprep.subr.mxu0 0.0
    %3040 = vmatpush1.msra.mxu0 %v77
    %3041 = vmatprep.subr.mxu0 0.0
    %3042 = vmatpush2.msra.mxu0 0.0
    %3043 = vmatprep.subr.mxu0 0.0
    %3044 = vmatpush2.msra.mxu0 0.0
    %3045 = vmatprep.subr.mxu0 0.0
    %3046 = vmatpush2.msra.mxu0 0.0
    %3047 = vmatprep.subr.mxu0 0.0
    %3048 = vmatpush2.msra.mxu0 0.0
    %3049 = vmatprep.subr.mxu0 0.0
    %3050 = vmatpush2.msra.mxu0 0.0
    %3051 = vmatprep.subr.mxu0 0.0
    %3052 = vmatpush2.msra.mxu0 0.0
    %3053 = vmatprep.subr.mxu0 0.0
    %3054 = vmatpush2.msra.mxu0 0.0
    %3055 = vmatprep.subr.mxu0 0.0
    %3056 = vmatpush2.msra.mxu0 0.0
    %3057 = vmatprep.subr.mxu0 0.0
    %3058 = vmatpush2.msra.mxu0 0.0
    %3059 = vmatprep.subr.mxu0 0.0
    %3060 = vmatpush2.msra.mxu0 0.0
    %3061 = vmatprep.subr.mxu0 0.0
    %3062 = vmatpush2.msra.mxu0 0.0
    %3063 = vmatprep.subr.mxu0 0.0
    %3064 = vmatpush2.msra.mxu0 0.0
    %3065 = vmatprep.subr.mxu0 0.0
    %3066 = vmatpush2.msra.mxu0 0.0
    %3067 = vmatprep.subr.mxu0 0.0
    %3068 = vmatpush2.msra.mxu0 0.0
    %3069 = vmatprep.subr.mxu0 0.0
    %3070 = vmatpush2.msra.mxu0 0.0
    %3071 = vmatprep.subr.mxu0 0.0
    %3072 = vmatpush2.msra.mxu0 0.0
    %3073 = vmatprep.mubr.f32.mxu0 0.0
    %3074 = vmatmul.mubr.f32.gmra.mxu0 %v3007
    %v3075 = vpop.f32.mrf.mxu0
    %v3076 = vadd.f32 0.0, %v3075
    %v3077 = vpop.f32.mrf.mxu0
    %3078 = vdwg.mxu0
    %v3079 = vmul.f32 %v3076, %v1152
    %v3080 = vsel %vm258, %v3079, 0.0
    %3081 = vadd.xlane.f32.xlu0 %v3080
    %v3082 = vpop.xlane.xlu0 %3081
    %v3084 = vsel %vm258, %v3076, 0
    %3086 = vmatprep.subr.mxu0 0.0
    %3087 = vmatpush1.xpose.msra.mxu0 0.0
    %3088 = vmatprep.subr.mxu0 0.0
    %3089 = vmatpush1.xpose.msra.mxu0 0.0
    %3090 = vmatprep.subr.mxu0 0.0
    %3091 = vmatpush1.xpose.msra.mxu0 0.0
    %3092 = vmatprep.subr.mxu0 0.0
    %3093 = vmatpush1.xpose.msra.mxu0 0.0
    %3094 = vmatprep.subr.mxu0 0.0
    %3095 = vmatpush1.xpose.msra.mxu0 0.0
    %3096 = vmatprep.subr.mxu0 0.0
    %3097 = vmatpush1.xpose.msra.mxu0 0.0
    %3098 = vmatprep.subr.mxu0 0.0
    %3099 = vmatpush1.xpose.msra.mxu0 0.0
    %3100 = vmatprep.subr.mxu0 0.0
    %3101 = vmatpush1.xpose.msra.mxu0 0.0
    %3102 = vmatprep.subr.mxu0 0.0
    %3103 = vmatpush1.xpose.msra.mxu0 0.0
    %3104 = vmatprep.subr.mxu0 0.0
    %3105 = vmatpush1.xpose.msra.mxu0 0.0
    %3106 = vmatprep.subr.mxu0 0.0
    %3107 = vmatpush1.xpose.msra.mxu0 0.0
    %3108 = vmatprep.subr.mxu0 0.0
    %3109 = vmatpush1.xpose.msra.mxu0 0.0
    %3110 = vmatprep.subr.mxu0 0.0
    %3111 = vmatpush1.xpose.msra.mxu0 0.0
    %3112 = vmatprep.subr.mxu0 0.0
    %3113 = vmatpush1.xpose.msra.mxu0 0.0
    %3114 = vmatprep.subr.mxu0 0.0
    %3115 = vmatpush1.xpose.msra.mxu0 0.0
    %3116 = vmatprep.subr.mxu0 0.0
    %3117 = vmatpush1.xpose.msra.mxu0 %v3084
    %3118 = vmatprep.subr.mxu0 0.0
    %3119 = vmatpush2.xpose.msra.mxu0 0.0
    %3120 = vmatprep.subr.mxu0 0.0
    %3121 = vmatpush2.xpose.msra.mxu0 0.0
    %3122 = vmatprep.subr.mxu0 0.0
    %3123 = vmatpush2.xpose.msra.mxu0 0.0
    %3124 = vmatprep.subr.mxu0 0.0
    %3125 = vmatpush2.xpose.msra.mxu0 0.0
    %3126 = vmatprep.subr.mxu0 0.0
    %3127 = vmatpush2.xpose.msra.mxu0 0.0
    %3128 = vmatprep.subr.mxu0 0.0
    %3129 = vmatpush2.xpose.msra.mxu0 0.0
    %3130 = vmatprep.subr.mxu0 0.0
    %3131 = vmatpush2.xpose.msra.mxu0 0.0
    %3132 = vmatprep.subr.mxu0 0.0
    %3133 = vmatpush2.xpose.msra.mxu0 0.0
    %3134 = vmatprep.subr.mxu0 0.0
    %3135 = vmatpush2.xpose.msra.mxu0 0.0
    %3136 = vmatprep.subr.mxu0 0.0
    %3137 = vmatpush2.xpose.msra.mxu0 0.0
    %3138 = vmatprep.subr.mxu0 0.0
    %3139 = vmatpush2.xpose.msra.mxu0 0.0
    %3140 = vmatprep.subr.mxu0 0.0
    %3141 = vmatpush2.xpose.msra.mxu0 0.0
    %3142 = vmatprep.subr.mxu0 0.0
    %3143 = vmatpush2.xpose.msra.mxu0 0.0
    %3144 = vmatprep.subr.mxu0 0.0
    %3145 = vmatpush2.xpose.msra.mxu0 0.0
    %3146 = vmatprep.subr.mxu0 0.0
    %3147 = vmatpush2.xpose.msra.mxu0 0.0
    %3148 = vmatprep.subr.mxu0 0.0
    %3149 = vmatpush2.xpose.msra.mxu0 0.0
    %3150 = vmatprep.mubr.f32.mxu0 0.0
    %3151 = vmatmul.mubr.f32.gmra.mxu0 %v1158
    %v3152 = vpop.f32.mrf.mxu0
    %v3153 = vadd.f32 0.0, %v3152
    %v3154 = vpop.f32.mrf.mxu0
    %3155 = vdwg.mxu0
    %v3156 = vlaneseq
    %v3157 = vshrl.u32 %v3156, 7
    %v3158 = vsub.s32 0, %v3157
    %v3159 = vrot.slane %v3153, %v3158
    %v3160 = vadd.f32 %v3082, %v3159
    %vm3161 = vcmp.gt.f32.partialorder %v3160, 0.0
    %v3162 = vmul.f32 %v3160, 0.2
    %v3163 = vsel %vm3161, %v3160, %v3162
    %v3164 = vsel %vm2471, %v3163, -9e+15
    %v3165 = vsel %vm797, %v3164, -inf
    %3166 = vmax.xlane.f32.xlu0 %v3165
    %v3167 = vpop.xlane.xlu0 %3166
    %v3168 = vsub.f32 %v3164, %v3167
    %v3169 = vmul.f32 %v3168, 1.442695
    %v3170 = vpow.pop %v3169
    %v3171 = vsel %vm797, %v3170, 0.0
    %3172 = vadd.xlane.f32.xlu0 %v3171
    %v3173 = vpop.xlane.xlu0 %3172
    %v3174 = vrcp.pop %v3173
    %v3175 = vmul.f32 %v3170, %v3174
    %v3177 = vsel %vm797, %v3175, 0
    %3179 = vmatprep.subr.mxu0 0.0
    %3180 = vmatpush1.msra.mxu0 0.0
    %3181 = vmatprep.subr.mxu0 0.0
    %3182 = vmatpush1.msra.mxu0 0.0
    %3183 = vmatprep.subr.mxu0 0.0
    %3184 = vmatpush1.msra.mxu0 0.0
    %3185 = vmatprep.subr.mxu0 0.0
    %3186 = vmatpush1.msra.mxu0 0.0
    %3187 = vmatprep.subr.mxu0 0.0
    %3188 = vmatpush1.msra.mxu0 0.0
    %3189 = vmatprep.subr.mxu0 0.0
    %3190 = vmatpush1.msra.mxu0 0.0
    %3191 = vmatprep.subr.mxu0 0.0
    %3192 = vmatpush1.msra.mxu0 0.0
    %3193 = vmatprep.subr.mxu0 0.0
    %3194 = vmatpush1.msra.mxu0 0.0
    %3195 = vmatprep.subr.mxu0 0.0
    %3196 = vmatpush1.msra.mxu0 0.0
    %3197 = vmatprep.subr.mxu0 0.0
    %3198 = vmatpush1.msra.mxu0 0.0
    %3199 = vmatprep.subr.mxu0 0.0
    %3200 = vmatpush1.msra.mxu0 0.0
    %3201 = vmatprep.subr.mxu0 0.0
    %3202 = vmatpush1.msra.mxu0 0.0
    %3203 = vmatprep.subr.mxu0 0.0
    %3204 = vmatpush1.msra.mxu0 0.0
    %3205 = vmatprep.subr.mxu0 0.0
    %3206 = vmatpush1.msra.mxu0 0.0
    %3207 = vmatprep.subr.mxu0 0.0
    %3208 = vmatpush1.msra.mxu0 0.0
    %3209 = vmatprep.subr.mxu0 0.0
    %3210 = vmatpush1.msra.mxu0 %v3076
    %3211 = vmatprep.subr.mxu0 0.0
    %3212 = vmatpush2.msra.mxu0 0.0
    %3213 = vmatprep.subr.mxu0 0.0
    %3214 = vmatpush2.msra.mxu0 0.0
    %3215 = vmatprep.subr.mxu0 0.0
    %3216 = vmatpush2.msra.mxu0 0.0
    %3217 = vmatprep.subr.mxu0 0.0
    %3218 = vmatpush2.msra.mxu0 0.0
    %3219 = vmatprep.subr.mxu0 0.0
    %3220 = vmatpush2.msra.mxu0 0.0
    %3221 = vmatprep.subr.mxu0 0.0
    %3222 = vmatpush2.msra.mxu0 0.0
    %3223 = vmatprep.subr.mxu0 0.0
    %3224 = vmatpush2.msra.mxu0 0.0
    %3225 = vmatprep.subr.mxu0 0.0
    %3226 = vmatpush2.msra.mxu0 0.0
    %3227 = vmatprep.subr.mxu0 0.0
    %3228 = vmatpush2.msra.mxu0 0.0
    %3229 = vmatprep.subr.mxu0 0.0
    %3230 = vmatpush2.msra.mxu0 0.0
    %3231 = vmatprep.subr.mxu0 0.0
    %3232 = vmatpush2.msra.mxu0 0.0
    %3233 = vmatprep.subr.mxu0 0.0
    %3234 = vmatpush2.msra.mxu0 0.0
    %3235 = vmatprep.subr.mxu0 0.0
    %3236 = vmatpush2.msra.mxu0 0.0
    %3237 = vmatprep.subr.mxu0 0.0
    %3238 = vmatpush2.msra.mxu0 0.0
    %3239 = vmatprep.subr.mxu0 0.0
    %3240 = vmatpush2.msra.mxu0 0.0
    %3241 = vmatprep.subr.mxu0 0.0
    %3242 = vmatpush2.msra.mxu0 0.0
    %3243 = vmatprep.mubr.f32.mxu0 0.0
    %3244 = vmatmul.mubr.f32.gmra.mxu0 %v3177
    %v3245 = vpop.f32.mrf.mxu0
    %v3246 = vadd.f32 0.0, %v3245
    %v3247 = vpop.f32.mrf.mxu0
    %3248 = vdwg.mxu0
    %vm3249 = vcmp.gt.f32.partialorder %v3246, 0.0
    %v3250 = vmul.f32 %v3246, 1.442695
    %v3251 = vpow.pop %v3250
    %v3252 = vsub.f32 %v3251, 1.0
    %v3253 = vsel %vm3249, %v3246, %v3252
    %v3254 = vsel %vm258, %v3253, %v2570
    %v3256 = vsel %vm1335, %v3254, 0
    %3258 = vmatprep.subr.mxu0 0.0
    %3259 = vmatpush1.msra.mxu0 0.0
    %3260 = vmatprep.subr.mxu0 0.0
    %3261 = vmatpush1.msra.mxu0 0.0
    %3262 = vmatprep.subr.mxu0 0.0
    %3263 = vmatpush1.msra.mxu0 0.0
    %3264 = vmatprep.subr.mxu0 0.0
    %3265 = vmatpush1.msra.mxu0 0.0
    %3266 = vmatprep.subr.mxu0 0.0
    %3267 = vmatpush1.msra.mxu0 0.0
    %3268 = vmatprep.subr.mxu0 0.0
    %3269 = vmatpush1.msra.mxu0 0.0
    %3270 = vmatprep.subr.mxu0 0.0
    %3271 = vmatpush1.msra.mxu0 0.0
    %3272 = vmatprep.subr.mxu0 0.0
    %3273 = vmatpush1.msra.mxu0 0.0
    %3274 = vmatprep.subr.mxu0 0.0
    %3275 = vmatpush1.msra.mxu0 %v90
    %3276 = vmatprep.subr.mxu0 0.0
    %3277 = vmatpush1.msra.mxu0 %v89
    %3278 = vmatprep.subr.mxu0 0.0
    %3279 = vmatpush1.msra.mxu0 %v88
    %3280 = vmatprep.subr.mxu0 0.0
    %3281 = vmatpush1.msra.mxu0 %v87
    %3282 = vmatprep.subr.mxu0 0.0
    %3283 = vmatpush1.msra.mxu0 %v86
    %3284 = vmatprep.subr.mxu0 0.0
    %3285 = vmatpush1.msra.mxu0 %v85
    %3286 = vmatprep.subr.mxu0 0.0
    %3287 = vmatpush1.msra.mxu0 %v84
    %3288 = vmatprep.subr.mxu0 0.0
    %3289 = vmatpush1.msra.mxu0 %v83
    %3290 = vmatprep.subr.mxu0 0.0
    %3291 = vmatpush2.msra.mxu0 0.0
    %3292 = vmatprep.subr.mxu0 0.0
    %3293 = vmatpush2.msra.mxu0 0.0
    %3294 = vmatprep.subr.mxu0 0.0
    %3295 = vmatpush2.msra.mxu0 0.0
    %3296 = vmatprep.subr.mxu0 0.0
    %3297 = vmatpush2.msra.mxu0 0.0
    %3298 = vmatprep.subr.mxu0 0.0
    %3299 = vmatpush2.msra.mxu0 0.0
    %3300 = vmatprep.subr.mxu0 0.0
    %3301 = vmatpush2.msra.mxu0 0.0
    %3302 = vmatprep.subr.mxu0 0.0
    %3303 = vmatpush2.msra.mxu0 0.0
    %3304 = vmatprep.subr.mxu0 0.0
    %3305 = vmatpush2.msra.mxu0 0.0
    %3306 = vmatprep.subr.mxu0 0.0
    %3307 = vmatpush2.msra.mxu0 0.0
    %3308 = vmatprep.subr.mxu0 0.0
    %3309 = vmatpush2.msra.mxu0 0.0
    %3310 = vmatprep.subr.mxu0 0.0
    %3311 = vmatpush2.msra.mxu0 0.0
    %3312 = vmatprep.subr.mxu0 0.0
    %3313 = vmatpush2.msra.mxu0 0.0
    %3314 = vmatprep.subr.mxu0 0.0
    %3315 = vmatpush2.msra.mxu0 0.0
    %3316 = vmatprep.subr.mxu0 0.0
    %3317 = vmatpush2.msra.mxu0 0.0
    %3318 = vmatprep.subr.mxu0 0.0
    %3319 = vmatpush2.msra.mxu0 0.0
    %3320 = vmatprep.subr.mxu0 0.0
    %3321 = vmatpush2.msra.mxu0 0.0
    %3322 = vmatprep.mubr.f32.mxu0 0.0
    %3323 = vmatmul.mubr.f32.gmra.mxu0 %v3256
    %v3324 = vpop.f32.mrf.mxu0
    %v3325 = vadd.f32 %v1333, %v3324
    %v3326 = vpop.f32.mrf.mxu0
    %3327 = vdwg.mxu0
    %v3329 = vsel %vm258, %v3325, 0
    %3331 = vmatprep.subr.mxu0 0.0
    %3332 = vmatpush1.msra.mxu0 0.0
    %3333 = vmatprep.subr.mxu0 0.0
    %3334 = vmatpush1.msra.mxu0 0.0
    %3335 = vmatprep.subr.mxu0 0.0
    %3336 = vmatpush1.msra.mxu0 0.0
    %3337 = vmatprep.subr.mxu0 0.0
    %3338 = vmatpush1.msra.mxu0 0.0
    %3339 = vmatprep.subr.mxu0 0.0
    %3340 = vmatpush1.msra.mxu0 0.0
    %3341 = vmatprep.subr.mxu0 0.0
    %3342 = vmatpush1.msra.mxu0 0.0
    %3343 = vmatprep.subr.mxu0 0.0
    %3344 = vmatpush1.msra.mxu0 0.0
    %3345 = vmatprep.subr.mxu0 0.0
    %3346 = vmatpush1.msra.mxu0 0.0
    %3347 = vmatprep.subr.mxu0 0.0
    %3348 = vmatpush1.msra.mxu0 0.0
    %3349 = vmatprep.subr.mxu0 0.0
    %3350 = vmatpush1.msra.mxu0 0.0
    %3351 = vmatprep.subr.mxu0 0.0
    %3352 = vmatpush1.msra.mxu0 0.0
    %3353 = vmatprep.subr.mxu0 0.0
    %3354 = vmatpush1.msra.mxu0 0.0
    %3355 = vmatprep.subr.mxu0 0.0
    %3356 = vmatpush1.msra.mxu0 %v94
    %3357 = vmatprep.subr.mxu0 0.0
    %3358 = vmatpush1.msra.mxu0 %v93
    %3359 = vmatprep.subr.mxu0 0.0
    %3360 = vmatpush1.msra.mxu0 %v92
    %3361 = vmatprep.subr.mxu0 0.0
    %3362 = vmatpush1.msra.mxu0 %v91
    %3363 = vmatprep.subr.mxu0 0.0
    %3364 = vmatpush2.msra.mxu0 0.0
    %3365 = vmatprep.subr.mxu0 0.0
    %3366 = vmatpush2.msra.mxu0 0.0
    %3367 = vmatprep.subr.mxu0 0.0
    %3368 = vmatpush2.msra.mxu0 0.0
    %3369 = vmatprep.subr.mxu0 0.0
    %3370 = vmatpush2.msra.mxu0 0.0
    %3371 = vmatprep.subr.mxu0 0.0
    %3372 = vmatpush2.msra.mxu0 0.0
    %3373 = vmatprep.subr.mxu0 0.0
    %3374 = vmatpush2.msra.mxu0 0.0
    %3375 = vmatprep.subr.mxu0 0.0
    %3376 = vmatpush2.msra.mxu0 0.0
    %3377 = vmatprep.subr.mxu0 0.0
    %3378 = vmatpush2.msra.mxu0 0.0
    %3379 = vmatprep.subr.mxu0 0.0
    %3380 = vmatpush2.msra.mxu0 0.0
    %3381 = vmatprep.subr.mxu0 0.0
    %3382 = vmatpush2.msra.mxu0 0.0
    %3383 = vmatprep.subr.mxu0 0.0
    %3384 = vmatpush2.msra.mxu0 0.0
    %3385 = vmatprep.subr.mxu0 0.0
    %3386 = vmatpush2.msra.mxu0 0.0
    %3387 = vmatprep.subr.mxu0 0.0
    %3388 = vmatpush2.msra.mxu0 0.0
    %3389 = vmatprep.subr.mxu0 0.0
    %3390 = vmatpush2.msra.mxu0 0.0
    %3391 = vmatprep.subr.mxu0 0.0
    %3392 = vmatpush2.msra.mxu0 0.0
    %3393 = vmatprep.subr.mxu0 0.0
    %3394 = vmatpush2.msra.mxu0 0.0
    %3395 = vmatprep.mubr.f32.mxu0 0.0
    %3396 = vmatmul.mubr.f32.gmra.mxu0 %v3329
    %v3397 = vpop.f32.mrf.mxu0
    %v3398 = vadd.f32 %v1410, %v3397
    %v3399 = vpop.f32.mrf.mxu0
    %3400 = vdwg.mxu0
    %v3401 = vsel %vm104, %v3398, -inf
    %3402 = vmax.xlane.f32.xlu0 %v3401
    %v3403 = vpop.xlane.xlu0 %3402
    %v3404 = vsub.f32 %v3398, %v3403
    %v3405 = vmul.f32 %v3404, 1.442695
    %v3406 = vpow.pop %v3405
    %v3407 = vsel %vm104, %v3406, 0.0
    %3408 = vadd.xlane.f32.xlu0 %v3407
    %v3409 = vpop.xlane.xlu0 %3408
    %v3410 = vlog2.pop %v3409
    %v3411 = vmul.f32 %v3410, 0.6931472
    %v3412 = vsub.f32 %v3404, %v3411
    %v3413 = vmul.f32 %v2468, %v3412
    %v3414 = vsel %vm104, %v3413, 0.0
    %3415 = vadd.xlane.f32.xlu0 %v3414
    %v3416 = vpop.xlane.xlu0 %3415
    %v3417 = vrot.slane %v3416, 4
    %v3418 = vadd.f32 %v3416, %v3417
    %v3419 = vrot.slane %v3418, 2
    %v3420 = vadd.f32 %v3418, %v3419
    %v3421 = vrot.slane %v3420, 1
    %v3422 = vadd.f32 %v3420, %v3421
    %v3423 = vmul.f32 %v3422, 0.5
    %v3424 = vsub.f32 %v2466, %v3423
    %s3425 = scalar_lea.vmem %s1, 24
    %v3426 = vld [vmem:[%s3425] sm:$0xff]
    %s3427 = scalar_lea.vmem %s2, 24
    %v3428 = vld [vmem:[%s3427] sm:$0xff]
    %vm3429 = vcmp.gt.f32.partialorder %v3428, 0.0
    %3430 = vmatprep.subr.mxu0 0.0
    %3431 = vmatpush1.msra.mxu0 0.0
    %3432 = vmatprep.subr.mxu0 0.0
    %3433 = vmatpush1.msra.mxu0 0.0
    %3434 = vmatprep.subr.mxu0 0.0
    %3435 = vmatpush1.msra.mxu0 0.0
    %3436 = vmatprep.subr.mxu0 0.0
    %3437 = vmatpush1.msra.mxu0 0.0
    %3438 = vmatprep.subr.mxu0 0.0
    %3439 = vmatpush1.msra.mxu0 0.0
    %3440 = vmatprep.subr.mxu0 0.0
    %3441 = vmatpush1.msra.mxu0 0.0
    %3442 = vmatprep.subr.mxu0 0.0
    %3443 = vmatpush1.msra.mxu0 0.0
    %3444 = vmatprep.subr.mxu0 0.0
    %3445 = vmatpush1.msra.mxu0 0.0
    %3446 = vmatprep.subr.mxu0 0.0
    %3447 = vmatpush1.msra.mxu0 0.0
    %3448 = vmatprep.subr.mxu0 0.0
    %3449 = vmatpush1.msra.mxu0 0.0
    %3450 = vmatprep.subr.mxu0 0.0
    %3451 = vmatpush1.msra.mxu0 0.0
    %3452 = vmatprep.subr.mxu0 0.0
    %3453 = vmatpush1.msra.mxu0 0.0
    %3454 = vmatprep.subr.mxu0 0.0
    %3455 = vmatpush1.msra.mxu0 %v64
    %3456 = vmatprep.subr.mxu0 0.0
    %3457 = vmatpush1.msra.mxu0 %v63
    %3458 = vmatprep.subr.mxu0 0.0
    %3459 = vmatpush1.msra.mxu0 %v62
    %3460 = vmatprep.subr.mxu0 0.0
    %3461 = vmatpush1.msra.mxu0 %v61
    %3462 = vmatprep.subr.mxu0 0.0
    %3463 = vmatpush2.msra.mxu0 0.0
    %3464 = vmatprep.subr.mxu0 0.0
    %3465 = vmatpush2.msra.mxu0 0.0
    %3466 = vmatprep.subr.mxu0 0.0
    %3467 = vmatpush2.msra.mxu0 0.0
    %3468 = vmatprep.subr.mxu0 0.0
    %3469 = vmatpush2.msra.mxu0 0.0
    %3470 = vmatprep.subr.mxu0 0.0
    %3471 = vmatpush2.msra.mxu0 0.0
    %3472 = vmatprep.subr.mxu0 0.0
    %3473 = vmatpush2.msra.mxu0 0.0
    %3474 = vmatprep.subr.mxu0 0.0
    %3475 = vmatpush2.msra.mxu0 0.0
    %3476 = vmatprep.subr.mxu0 0.0
    %3477 = vmatpush2.msra.mxu0 0.0
    %3478 = vmatprep.subr.mxu0 0.0
    %3479 = vmatpush2.msra.mxu0 0.0
    %3480 = vmatprep.subr.mxu0 0.0
    %3481 = vmatpush2.msra.mxu0 0.0
    %3482 = vmatprep.subr.mxu0 0.0
    %3483 = vmatpush2.msra.mxu0 0.0
    %3484 = vmatprep.subr.mxu0 0.0
    %3485 = vmatpush2.msra.mxu0 0.0
    %3486 = vmatprep.subr.mxu0 0.0
    %3487 = vmatpush2.msra.mxu0 0.0
    %3488 = vmatprep.subr.mxu0 0.0
    %3489 = vmatpush2.msra.mxu0 0.0
    %3490 = vmatprep.subr.mxu0 0.0
    %3491 = vmatpush2.msra.mxu0 0.0
    %3492 = vmatprep.subr.mxu0 0.0
    %3493 = vmatpush2.msra.mxu0 0.0
    %3494 = vmatprep.mubr.f32.mxu0 0.0
    %3495 = vmatmul.mubr.f32.gmra.mxu0 %v3329
    %v3496 = vpop.f32.mrf.mxu0
    %v3497 = vadd.f32 %v70, %v3496
    %v3498 = vpop.f32.mrf.mxu0
    %3499 = vdwg.mxu0
    %v3500 = vadd.f32 %v508, %v3497
    %v3501 = vxor.u32 %v3500, 2147483648
    %v3502 = vmul.f32 %v3501, 1.442695
    %v3503 = vpow.pop %v3502
    %v3504 = vadd.f32 %v3503, 1.0
    %v3505 = vrcp.pop %v3504
    %v3506 = vmul.f32 1.0, %v3505
    %3508 = vrot.lane.b32.xlu0 %v3497, 64
    %v3509 = vpop.permute.xlu0 %3508
    %v3511 = vmul.f32 %v3506, %v3509
    %3513 = vrot.lane.b32.xlu0 %v3511, 64
    %v3514 = vpop.permute.xlu0 %3513
    %v3516 = vadd.f32 %v508, %v3514
    %v3517 = vtanh.pop %v3516
    %v3518 = vsub.f32 1.0, %v3506
    %3520 = vrot.lane.b32.xlu0 %v3517, 96
    %v3521 = vpop.permute.xlu0 %3520
    %v3523 = vmul.f32 %v3518, %v3521
    %3524 = vrot.lane.b32.xlu0 %v3325, 32
    %v3525 = vpop.permute.xlu0 %3524
    %v3527 = vmul.f32 %v3506, %v3525
    %v3528 = vadd.f32 %v3523, %v3527
    %3530 = vrot.lane.b32.xlu0 %v3528, 96
    %v3531 = vpop.permute.xlu0 %3530
    %v3532 = vsel %vm258, %v3531, 0
    %3534 = vmatprep.subr.mxu0 0.0
    %3535 = vmatpush1.msra.mxu0 0.0
    %3536 = vmatprep.subr.mxu0 0.0
    %3537 = vmatpush1.msra.mxu0 0.0
    %3538 = vmatprep.subr.mxu0 0.0
    %3539 = vmatpush1.msra.mxu0 0.0
    %3540 = vmatprep.subr.mxu0 0.0
    %3541 = vmatpush1.msra.mxu0 0.0
    %3542 = vmatprep.subr.mxu0 0.0
    %3543 = vmatpush1.msra.mxu0 0.0
    %3544 = vmatprep.subr.mxu0 0.0
    %3545 = vmatpush1.msra.mxu0 0.0
    %3546 = vmatprep.subr.mxu0 0.0
    %3547 = vmatpush1.msra.mxu0 0.0
    %3548 = vmatprep.subr.mxu0 0.0
    %3549 = vmatpush1.msra.mxu0 0.0
    %3550 = vmatprep.subr.mxu0 0.0
    %3551 = vmatpush1.msra.mxu0 0.0
    %3552 = vmatprep.subr.mxu0 0.0
    %3553 = vmatpush1.msra.mxu0 0.0
    %3554 = vmatprep.subr.mxu0 0.0
    %3555 = vmatpush1.msra.mxu0 0.0
    %3556 = vmatprep.subr.mxu0 0.0
    %3557 = vmatpush1.msra.mxu0 0.0
    %3558 = vmatprep.subr.mxu0 0.0
    %3559 = vmatpush1.msra.mxu0 %v74
    %3560 = vmatprep.subr.mxu0 0.0
    %3561 = vmatpush1.msra.mxu0 %v73
    %3562 = vmatprep.subr.mxu0 0.0
    %3563 = vmatpush1.msra.mxu0 %v72
    %3564 = vmatprep.subr.mxu0 0.0
    %3565 = vmatpush1.msra.mxu0 %v71
    %3566 = vmatprep.subr.mxu0 0.0
    %3567 = vmatpush2.msra.mxu0 0.0
    %3568 = vmatprep.subr.mxu0 0.0
    %3569 = vmatpush2.msra.mxu0 0.0
    %3570 = vmatprep.subr.mxu0 0.0
    %3571 = vmatpush2.msra.mxu0 0.0
    %3572 = vmatprep.subr.mxu0 0.0
    %3573 = vmatpush2.msra.mxu0 0.0
    %3574 = vmatprep.subr.mxu0 0.0
    %3575 = vmatpush2.msra.mxu0 0.0
    %3576 = vmatprep.subr.mxu0 0.0
    %3577 = vmatpush2.msra.mxu0 0.0
    %3578 = vmatprep.subr.mxu0 0.0
    %3579 = vmatpush2.msra.mxu0 0.0
    %3580 = vmatprep.subr.mxu0 0.0
    %3581 = vmatpush2.msra.mxu0 0.0
    %3582 = vmatprep.subr.mxu0 0.0
    %3583 = vmatpush2.msra.mxu0 0.0
    %3584 = vmatprep.subr.mxu0 0.0
    %3585 = vmatpush2.msra.mxu0 0.0
    %3586 = vmatprep.subr.mxu0 0.0
    %3587 = vmatpush2.msra.mxu0 0.0
    %3588 = vmatprep.subr.mxu0 0.0
    %3589 = vmatpush2.msra.mxu0 0.0
    %3590 = vmatprep.subr.mxu0 0.0
    %3591 = vmatpush2.msra.mxu0 0.0
    %3592 = vmatprep.subr.mxu0 0.0
    %3593 = vmatpush2.msra.mxu0 0.0
    %3594 = vmatprep.subr.mxu0 0.0
    %3595 = vmatpush2.msra.mxu0 0.0
    %3596 = vmatprep.subr.mxu0 0.0
    %3597 = vmatpush2.msra.mxu0 0.0
    %3598 = vmatprep.mubr.f32.mxu0 0.0
    %3599 = vmatmul.mubr.f32.gmra.mxu0 %v3532
    %v3600 = vpop.f32.mrf.mxu0
    %v3601 = vadd.f32 0.0, %v3600
    %v3602 = vpop.f32.mrf.mxu0
    %3603 = vdwg.mxu0
    %v3604 = vmul.f32 %v3601, %v706
    %v3605 = vsel %vm708, %v3604, 0.0
    %3606 = vadd.xlane.f32.xlu0 %v3605
    %v3607 = vpop.xlane.xlu0 %3606
    %v3609 = vsel %vm708, %v3601, 0
    %3611 = vmatprep.subr.mxu0 0.0
    %3612 = vmatpush1.xpose.msra.mxu0 0.0
    %3613 = vmatprep.subr.mxu0 0.0
    %3614 = vmatpush1.xpose.msra.mxu0 0.0
    %3615 = vmatprep.subr.mxu0 0.0
    %3616 = vmatpush1.xpose.msra.mxu0 0.0
    %3617 = vmatprep.subr.mxu0 0.0
    %3618 = vmatpush1.xpose.msra.mxu0 0.0
    %3619 = vmatprep.subr.mxu0 0.0
    %3620 = vmatpush1.xpose.msra.mxu0 0.0
    %3621 = vmatprep.subr.mxu0 0.0
    %3622 = vmatpush1.xpose.msra.mxu0 0.0
    %3623 = vmatprep.subr.mxu0 0.0
    %3624 = vmatpush1.xpose.msra.mxu0 0.0
    %3625 = vmatprep.subr.mxu0 0.0
    %3626 = vmatpush1.xpose.msra.mxu0 0.0
    %3627 = vmatprep.subr.mxu0 0.0
    %3628 = vmatpush1.xpose.msra.mxu0 0.0
    %3629 = vmatprep.subr.mxu0 0.0
    %3630 = vmatpush1.xpose.msra.mxu0 0.0
    %3631 = vmatprep.subr.mxu0 0.0
    %3632 = vmatpush1.xpose.msra.mxu0 0.0
    %3633 = vmatprep.subr.mxu0 0.0
    %3634 = vmatpush1.xpose.msra.mxu0 0.0
    %3635 = vmatprep.subr.mxu0 0.0
    %3636 = vmatpush1.xpose.msra.mxu0 0.0
    %3637 = vmatprep.subr.mxu0 0.0
    %3638 = vmatpush1.xpose.msra.mxu0 0.0
    %3639 = vmatprep.subr.mxu0 0.0
    %3640 = vmatpush1.xpose.msra.mxu0 0.0
    %3641 = vmatprep.subr.mxu0 0.0
    %3642 = vmatpush1.xpose.msra.mxu0 %v3609
    %3643 = vmatprep.subr.mxu0 0.0
    %3644 = vmatpush2.xpose.msra.mxu0 0.0
    %3645 = vmatprep.subr.mxu0 0.0
    %3646 = vmatpush2.xpose.msra.mxu0 0.0
    %3647 = vmatprep.subr.mxu0 0.0
    %3648 = vmatpush2.xpose.msra.mxu0 0.0
    %3649 = vmatprep.subr.mxu0 0.0
    %3650 = vmatpush2.xpose.msra.mxu0 0.0
    %3651 = vmatprep.subr.mxu0 0.0
    %3652 = vmatpush2.xpose.msra.mxu0 0.0
    %3653 = vmatprep.subr.mxu0 0.0
    %3654 = vmatpush2.xpose.msra.mxu0 0.0
    %3655 = vmatprep.subr.mxu0 0.0
    %3656 = vmatpush2.xpose.msra.mxu0 0.0
    %3657 = vmatprep.subr.mxu0 0.0
    %3658 = vmatpush2.xpose.msra.mxu0 0.0
    %3659 = vmatprep.subr.mxu0 0.0
    %3660 = vmatpush2.xpose.msra.mxu0 0.0
    %3661 = vmatprep.subr.mxu0 0.0
    %3662 = vmatpush2.xpose.msra.mxu0 0.0
    %3663 = vmatprep.subr.mxu0 0.0
    %3664 = vmatpush2.xpose.msra.mxu0 0.0
    %3665 = vmatprep.subr.mxu0 0.0
    %3666 = vmatpush2.xpose.msra.mxu0 0.0
    %3667 = vmatprep.subr.mxu0 0.0
    %3668 = vmatpush2.xpose.msra.mxu0 0.0
    %3669 = vmatprep.subr.mxu0 0.0
    %3670 = vmatpush2.xpose.msra.mxu0 0.0
    %3671 = vmatprep.subr.mxu0 0.0
    %3672 = vmatpush2.xpose.msra.mxu0 0.0
    %3673 = vmatprep.subr.mxu0 0.0
    %3674 = vmatpush2.xpose.msra.mxu0 0.0
    %3675 = vmatprep.mubr.f32.mxu0 0.0
    %3676 = vmatmul.mubr.f32.gmra.mxu0 %v713
    %v3677 = vpop.f32.mrf.mxu0
    %v3678 = vadd.f32 0.0, %v3677
    %v3679 = vpop.f32.mrf.mxu0
    %3680 = vdwg.mxu0
    %v3681 = vlaneseq
    %v3682 = vshrl.u32 %v3681, 7
    %v3683 = vsub.s32 0, %v3682
    %v3684 = vrot.slane %v3678, %v3683
    %v3685 = vadd.f32 %v3607, %v3684
    %vm3686 = vcmp.gt.f32.partialorder %v3685, 0.0
    %v3687 = vmul.f32 %v3685, 0.2
    %v3688 = vsel %vm3686, %v3685, %v3687
    %v3689 = vsel %vm3429, %v3688, -9e+15
    %v3690 = vsel %vm797, %v3689, -inf
    %3691 = vmax.xlane.f32.xlu0 %v3690
    %v3692 = vpop.xlane.xlu0 %3691
    %v3693 = vsub.f32 %v3689, %v3692
    %v3694 = vmul.f32 %v3693, 1.442695
    %v3695 = vpow.pop %v3694
    %v3696 = vsel %vm797, %v3695, 0.0
    %3697 = vadd.xlane.f32.xlu0 %v3696
    %v3698 = vpop.xlane.xlu0 %3697
    %v3699 = vrcp.pop %v3698
    %v3700 = vmul.f32 %v3695, %v3699
    %v3702 = vsel %vm797, %v3700, 0
    %3704 = vmatprep.subr.mxu0 0.0
    %3705 = vmatpush1.msra.mxu0 0.0
    %3706 = vmatprep.subr.mxu0 0.0
    %3707 = vmatpush1.msra.mxu0 0.0
    %3708 = vmatprep.subr.mxu0 0.0
    %3709 = vmatpush1.msra.mxu0 0.0
    %3710 = vmatprep.subr.mxu0 0.0
    %3711 = vmatpush1.msra.mxu0 0.0
    %3712 = vmatprep.subr.mxu0 0.0
    %3713 = vmatpush1.msra.mxu0 0.0
    %3714 = vmatprep.subr.mxu0 0.0
    %3715 = vmatpush1.msra.mxu0 0.0
    %3716 = vmatprep.subr.mxu0 0.0
    %3717 = vmatpush1.msra.mxu0 0.0
    %3718 = vmatprep.subr.mxu0 0.0
    %3719 = vmatpush1.msra.mxu0 0.0
    %3720 = vmatprep.subr.mxu0 0.0
    %3721 = vmatpush1.msra.mxu0 0.0
    %3722 = vmatprep.subr.mxu0 0.0
    %3723 = vmatpush1.msra.mxu0 0.0
    %3724 = vmatprep.subr.mxu0 0.0
    %3725 = vmatpush1.msra.mxu0 0.0
    %3726 = vmatprep.subr.mxu0 0.0
    %3727 = vmatpush1.msra.mxu0 0.0
    %3728 = vmatprep.subr.mxu0 0.0
    %3729 = vmatpush1.msra.mxu0 0.0
    %3730 = vmatprep.subr.mxu0 0.0
    %3731 = vmatpush1.msra.mxu0 0.0
    %3732 = vmatprep.subr.mxu0 0.0
    %3733 = vmatpush1.msra.mxu0 0.0
    %3734 = vmatprep.subr.mxu0 0.0
    %3735 = vmatpush1.msra.mxu0 %v3601
    %3736 = vmatprep.subr.mxu0 0.0
    %3737 = vmatpush2.msra.mxu0 0.0
    %3738 = vmatprep.subr.mxu0 0.0
    %3739 = vmatpush2.msra.mxu0 0.0
    %3740 = vmatprep.subr.mxu0 0.0
    %3741 = vmatpush2.msra.mxu0 0.0
    %3742 = vmatprep.subr.mxu0 0.0
    %3743 = vmatpush2.msra.mxu0 0.0
    %3744 = vmatprep.subr.mxu0 0.0
    %3745 = vmatpush2.msra.mxu0 0.0
    %3746 = vmatprep.subr.mxu0 0.0
    %3747 = vmatpush2.msra.mxu0 0.0
    %3748 = vmatprep.subr.mxu0 0.0
    %3749 = vmatpush2.msra.mxu0 0.0
    %3750 = vmatprep.subr.mxu0 0.0
    %3751 = vmatpush2.msra.mxu0 0.0
    %3752 = vmatprep.subr.mxu0 0.0
    %3753 = vmatpush2.msra.mxu0 0.0
    %3754 = vmatprep.subr.mxu0 0.0
    %3755 = vmatpush2.msra.mxu0 0.0
    %3756 = vmatprep.subr.mxu0 0.0
    %3757 = vmatpush2.msra.mxu0 0.0
    %3758 = vmatprep.subr.mxu0 0.0
    %3759 = vmatpush2.msra.mxu0 0.0
    %3760 = vmatprep.subr.mxu0 0.0
    %3761 = vmatpush2.msra.mxu0 0.0
    %3762 = vmatprep.subr.mxu0 0.0
    %3763 = vmatpush2.msra.mxu0 0.0
    %3764 = vmatprep.subr.mxu0 0.0
    %3765 = vmatpush2.msra.mxu0 0.0
    %3766 = vmatprep.subr.mxu0 0.0
    %3767 = vmatpush2.msra.mxu0 0.0
    %3768 = vmatprep.mubr.f32.mxu0 0.0
    %3769 = vmatmul.mubr.f32.gmra.mxu0 %v3702
    %v3770 = vpop.f32.mrf.mxu0
    %v3771 = vadd.f32 0.0, %v3770
    %v3772 = vpop.f32.mrf.mxu0
    %3773 = vdwg.mxu0
    %vm3774 = vcmp.gt.f32.partialorder %v3771, 0.0
    %v3775 = vmul.f32 %v3771, 1.442695
    %v3776 = vpow.pop %v3775
    %v3777 = vsub.f32 %v3776, 1.0
    %v3778 = vsel %vm3774, %v3771, %v3777
    %3780 = vrot.lane.b32.xlu0 %v3604, 112
    %v3781 = vpop.permute.xlu0 %3780
    %v3783 = vsel %vm708, %v3781, 0.0
    %3784 = vadd.xlane.f32.xlu0 %v3783
    %v3785 = vpop.xlane.xlu0 %3784
    %3786 = vrot.lane.b32.xlu0 %v3601, 112
    %v3787 = vpop.permute.xlu0 %3786
    %v3788 = vsel %vm708, %v3787, 0
    %3790 = vmatprep.subr.mxu0 0.0
    %3791 = vmatpush1.xpose.msra.mxu0 0.0
    %3792 = vmatprep.subr.mxu0 0.0
    %3793 = vmatpush1.xpose.msra.mxu0 0.0
    %3794 = vmatprep.subr.mxu0 0.0
    %3795 = vmatpush1.xpose.msra.mxu0 0.0
    %3796 = vmatprep.subr.mxu0 0.0
    %3797 = vmatpush1.xpose.msra.mxu0 0.0
    %3798 = vmatprep.subr.mxu0 0.0
    %3799 = vmatpush1.xpose.msra.mxu0 0.0
    %3800 = vmatprep.subr.mxu0 0.0
    %3801 = vmatpush1.xpose.msra.mxu0 0.0
    %3802 = vmatprep.subr.mxu0 0.0
    %3803 = vmatpush1.xpose.msra.mxu0 0.0
    %3804 = vmatprep.subr.mxu0 0.0
    %3805 = vmatpush1.xpose.msra.mxu0 0.0
    %3806 = vmatprep.subr.mxu0 0.0
    %3807 = vmatpush1.xpose.msra.mxu0 0.0
    %3808 = vmatprep.subr.mxu0 0.0
    %3809 = vmatpush1.xpose.msra.mxu0 0.0
    %3810 = vmatprep.subr.mxu0 0.0
    %3811 = vmatpush1.xpose.msra.mxu0 0.0
    %3812 = vmatprep.subr.mxu0 0.0
    %3813 = vmatpush1.xpose.msra.mxu0 0.0
    %3814 = vmatprep.subr.mxu0 0.0
    %3815 = vmatpush1.xpose.msra.mxu0 0.0
    %3816 = vmatprep.subr.mxu0 0.0
    %3817 = vmatpush1.xpose.msra.mxu0 0.0
    %3818 = vmatprep.subr.mxu0 0.0
    %3819 = vmatpush1.xpose.msra.mxu0 0.0
    %3820 = vmatprep.subr.mxu0 0.0
    %3821 = vmatpush1.xpose.msra.mxu0 %v3788
    %3822 = vmatprep.subr.mxu0 0.0
    %3823 = vmatpush2.xpose.msra.mxu0 0.0
    %3824 = vmatprep.subr.mxu0 0.0
    %3825 = vmatpush2.xpose.msra.mxu0 0.0
    %3826 = vmatprep.subr.mxu0 0.0
    %3827 = vmatpush2.xpose.msra.mxu0 0.0
    %3828 = vmatprep.subr.mxu0 0.0
    %3829 = vmatpush2.xpose.msra.mxu0 0.0
    %3830 = vmatprep.subr.mxu0 0.0
    %3831 = vmatpush2.xpose.msra.mxu0 0.0
    %3832 = vmatprep.subr.mxu0 0.0
    %3833 = vmatpush2.xpose.msra.mxu0 0.0
    %3834 = vmatprep.subr.mxu0 0.0
    %3835 = vmatpush2.xpose.msra.mxu0 0.0
    %3836 = vmatprep.subr.mxu0 0.0
    %3837 = vmatpush2.xpose.msra.mxu0 0.0
    %3838 = vmatprep.subr.mxu0 0.0
    %3839 = vmatpush2.xpose.msra.mxu0 0.0
    %3840 = vmatprep.subr.mxu0 0.0
    %3841 = vmatpush2.xpose.msra.mxu0 0.0
    %3842 = vmatprep.subr.mxu0 0.0
    %3843 = vmatpush2.xpose.msra.mxu0 0.0
    %3844 = vmatprep.subr.mxu0 0.0
    %3845 = vmatpush2.xpose.msra.mxu0 0.0
    %3846 = vmatprep.subr.mxu0 0.0
    %3847 = vmatpush2.xpose.msra.mxu0 0.0
    %3848 = vmatprep.subr.mxu0 0.0
    %3849 = vmatpush2.xpose.msra.mxu0 0.0
    %3850 = vmatprep.subr.mxu0 0.0
    %3851 = vmatpush2.xpose.msra.mxu0 0.0
    %3852 = vmatprep.subr.mxu0 0.0
    %3853 = vmatpush2.xpose.msra.mxu0 0.0
    %3854 = vmatprep.mubr.f32.mxu0 0.0
    %3855 = vmatmul.mubr.f32.gmra.mxu0 %v898
    %v3856 = vpop.f32.mrf.mxu0
    %v3857 = vadd.f32 0.0, %v3856
    %v3858 = vpop.f32.mrf.mxu0
    %3859 = vdwg.mxu0
    %v3860 = vlaneseq
    %v3861 = vshrl.u32 %v3860, 7
    %v3862 = vsub.s32 0, %v3861
    %v3863 = vrot.slane %v3857, %v3862
    %v3864 = vadd.f32 %v3785, %v3863
    %vm3865 = vcmp.gt.f32.partialorder %v3864, 0.0
    %v3866 = vmul.f32 %v3864, 0.2
    %v3867 = vsel %vm3865, %v3864, %v3866
    %v3868 = vsel %vm3429, %v3867, -9e+15
    %v3869 = vsel %vm797, %v3868, -inf
    %3870 = vmax.xlane.f32.xlu0 %v3869
    %v3871 = vpop.xlane.xlu0 %3870
    %v3872 = vsub.f32 %v3868, %v3871
    %v3873 = vmul.f32 %v3872, 1.442695
    %v3874 = vpow.pop %v3873
    %v3875 = vsel %vm797, %v3874, 0.0
    %3876 = vadd.xlane.f32.xlu0 %v3875
    %v3877 = vpop.xlane.xlu0 %3876
    %v3878 = vrcp.pop %v3877
    %v3879 = vmul.f32 %v3874, %v3878
    %v3882 = vsel %vm797, %v3879, 0
    %3884 = vmatprep.subr.mxu0 0.0
    %3885 = vmatpush1.msra.mxu0 0.0
    %3886 = vmatprep.subr.mxu0 0.0
    %3887 = vmatpush1.msra.mxu0 0.0
    %3888 = vmatprep.subr.mxu0 0.0
    %3889 = vmatpush1.msra.mxu0 0.0
    %3890 = vmatprep.subr.mxu0 0.0
    %3891 = vmatpush1.msra.mxu0 0.0
    %3892 = vmatprep.subr.mxu0 0.0
    %3893 = vmatpush1.msra.mxu0 0.0
    %3894 = vmatprep.subr.mxu0 0.0
    %3895 = vmatpush1.msra.mxu0 0.0
    %3896 = vmatprep.subr.mxu0 0.0
    %3897 = vmatpush1.msra.mxu0 0.0
    %3898 = vmatprep.subr.mxu0 0.0
    %3899 = vmatpush1.msra.mxu0 0.0
    %3900 = vmatprep.subr.mxu0 0.0
    %3901 = vmatpush1.msra.mxu0 0.0
    %3902 = vmatprep.subr.mxu0 0.0
    %3903 = vmatpush1.msra.mxu0 0.0
    %3904 = vmatprep.subr.mxu0 0.0
    %3905 = vmatpush1.msra.mxu0 0.0
    %3906 = vmatprep.subr.mxu0 0.0
    %3907 = vmatpush1.msra.mxu0 0.0
    %3908 = vmatprep.subr.mxu0 0.0
    %3909 = vmatpush1.msra.mxu0 0.0
    %3910 = vmatprep.subr.mxu0 0.0
    %3911 = vmatpush1.msra.mxu0 0.0
    %3912 = vmatprep.subr.mxu0 0.0
    %3913 = vmatpush1.msra.mxu0 0.0
    %3914 = vmatprep.subr.mxu0 0.0
    %3915 = vmatpush1.msra.mxu0 %v3787
    %3916 = vmatprep.subr.mxu0 0.0
    %3917 = vmatpush2.msra.mxu0 0.0
    %3918 = vmatprep.subr.mxu0 0.0
    %3919 = vmatpush2.msra.mxu0 0.0
    %3920 = vmatprep.subr.mxu0 0.0
    %3921 = vmatpush2.msra.mxu0 0.0
    %3922 = vmatprep.subr.mxu0 0.0
    %3923 = vmatpush2.msra.mxu0 0.0
    %3924 = vmatprep.subr.mxu0 0.0
    %3925 = vmatpush2.msra.mxu0 0.0
    %3926 = vmatprep.subr.mxu0 0.0
    %3927 = vmatpush2.msra.mxu0 0.0
    %3928 = vmatprep.subr.mxu0 0.0
    %3929 = vmatpush2.msra.mxu0 0.0
    %3930 = vmatprep.subr.mxu0 0.0
    %3931 = vmatpush2.msra.mxu0 0.0
    %3932 = vmatprep.subr.mxu0 0.0
    %3933 = vmatpush2.msra.mxu0 0.0
    %3934 = vmatprep.subr.mxu0 0.0
    %3935 = vmatpush2.msra.mxu0 0.0
    %3936 = vmatprep.subr.mxu0 0.0
    %3937 = vmatpush2.msra.mxu0 0.0
    %3938 = vmatprep.subr.mxu0 0.0
    %3939 = vmatpush2.msra.mxu0 0.0
    %3940 = vmatprep.subr.mxu0 0.0
    %3941 = vmatpush2.msra.mxu0 0.0
    %3942 = vmatprep.subr.mxu0 0.0
    %3943 = vmatpush2.msra.mxu0 0.0
    %3944 = vmatprep.subr.mxu0 0.0
    %3945 = vmatpush2.msra.mxu0 0.0
    %3946 = vmatprep.subr.mxu0 0.0
    %3947 = vmatpush2.msra.mxu0 0.0
    %3948 = vmatprep.mubr.f32.mxu0 0.0
    %3949 = vmatmul.mubr.f32.gmra.mxu0 %v3882
    %v3950 = vpop.f32.mrf.mxu0
    %v3951 = vadd.f32 0.0, %v3950
    %v3952 = vpop.f32.mrf.mxu0
    %3953 = vdwg.mxu0
    %vm3954 = vcmp.gt.f32.partialorder %v3951, 0.0
    %v3955 = vmul.f32 %v3951, 1.442695
    %v3956 = vpow.pop %v3955
    %v3957 = vsub.f32 %v3956, 1.0
    %v3958 = vsel %vm3954, %v3951, %v3957
    %3960 = vrot.lane.b32.xlu0 %v3958, 16
    %v3961 = vpop.permute.xlu0 %3960
    %v3963 = vsel %vm708, %v3778, %v3961
    %v3965 = vsel %vm258, %v3963, 0
    %3967 = vmatprep.subr.mxu0 0.0
    %3968 = vmatpush1.msra.mxu0 0.0
    %3969 = vmatprep.subr.mxu0 0.0
    %3970 = vmatpush1.msra.mxu0 0.0
    %3971 = vmatprep.subr.mxu0 0.0
    %3972 = vmatpush1.msra.mxu0 0.0
    %3973 = vmatprep.subr.mxu0 0.0
    %3974 = vmatpush1.msra.mxu0 0.0
    %3975 = vmatprep.subr.mxu0 0.0
    %3976 = vmatpush1.msra.mxu0 0.0
    %3977 = vmatprep.subr.mxu0 0.0
    %3978 = vmatpush1.msra.mxu0 0.0
    %3979 = vmatprep.subr.mxu0 0.0
    %3980 = vmatpush1.msra.mxu0 0.0
    %3981 = vmatprep.subr.mxu0 0.0
    %3982 = vmatpush1.msra.mxu0 0.0
    %3983 = vmatprep.subr.mxu0 0.0
    %3984 = vmatpush1.msra.mxu0 0.0
    %3985 = vmatprep.subr.mxu0 0.0
    %3986 = vmatpush1.msra.mxu0 0.0
    %3987 = vmatprep.subr.mxu0 0.0
    %3988 = vmatpush1.msra.mxu0 0.0
    %3989 = vmatprep.subr.mxu0 0.0
    %3990 = vmatpush1.msra.mxu0 0.0
    %3991 = vmatprep.subr.mxu0 0.0
    %3992 = vmatpush1.msra.mxu0 %v80
    %3993 = vmatprep.subr.mxu0 0.0
    %3994 = vmatpush1.msra.mxu0 %v79
    %3995 = vmatprep.subr.mxu0 0.0
    %3996 = vmatpush1.msra.mxu0 %v78
    %3997 = vmatprep.subr.mxu0 0.0
    %3998 = vmatpush1.msra.mxu0 %v77
    %3999 = vmatprep.subr.mxu0 0.0
    %4000 = vmatpush2.msra.mxu0 0.0
    %4001 = vmatprep.subr.mxu0 0.0
    %4002 = vmatpush2.msra.mxu0 0.0
    %4003 = vmatprep.subr.mxu0 0.0
    %4004 = vmatpush2.msra.mxu0 0.0
    %4005 = vmatprep.subr.mxu0 0.0
    %4006 = vmatpush2.msra.mxu0 0.0
    %4007 = vmatprep.subr.mxu0 0.0
    %4008 = vmatpush2.msra.mxu0 0.0
    %4009 = vmatprep.subr.mxu0 0.0
    %4010 = vmatpush2.msra.mxu0 0.0
    %4011 = vmatprep.subr.mxu0 0.0
    %4012 = vmatpush2.msra.mxu0 0.0
    %4013 = vmatprep.subr.mxu0 0.0
    %4014 = vmatpush2.msra.mxu0 0.0
    %4015 = vmatprep.subr.mxu0 0.0
    %4016 = vmatpush2.msra.mxu0 0.0
    %4017 = vmatprep.subr.mxu0 0.0
    %4018 = vmatpush2.msra.mxu0 0.0
    %4019 = vmatprep.subr.mxu0 0.0
    %4020 = vmatpush2.msra.mxu0 0.0
    %4021 = vmatprep.subr.mxu0 0.0
    %4022 = vmatpush2.msra.mxu0 0.0
    %4023 = vmatprep.subr.mxu0 0.0
    %4024 = vmatpush2.msra.mxu0 0.0
    %4025 = vmatprep.subr.mxu0 0.0
    %4026 = vmatpush2.msra.mxu0 0.0
    %4027 = vmatprep.subr.mxu0 0.0
    %4028 = vmatpush2.msra.mxu0 0.0
    %4029 = vmatprep.subr.mxu0 0.0
    %4030 = vmatpush2.msra.mxu0 0.0
    %4031 = vmatprep.mubr.f32.mxu0 0.0
    %4032 = vmatmul.mubr.f32.gmra.mxu0 %v3965
    %v4033 = vpop.f32.mrf.mxu0
    %v4034 = vadd.f32 0.0, %v4033
    %v4035 = vpop.f32.mrf.mxu0
    %4036 = vdwg.mxu0
    %v4037 = vmul.f32 %v4034, %v1152
    %v4038 = vsel %vm258, %v4037, 0.0
    %4039 = vadd.xlane.f32.xlu0 %v4038
    %v4040 = vpop.xlane.xlu0 %4039
    %v4042 = vsel %vm258, %v4034, 0
    %4044 = vmatprep.subr.mxu0 0.0
    %4045 = vmatpush1.xpose.msra.mxu0 0.0
    %4046 = vmatprep.subr.mxu0 0.0
    %4047 = vmatpush1.xpose.msra.mxu0 0.0
    %4048 = vmatprep.subr.mxu0 0.0
    %4049 = vmatpush1.xpose.msra.mxu0 0.0
    %4050 = vmatprep.subr.mxu0 0.0
    %4051 = vmatpush1.xpose.msra.mxu0 0.0
    %4052 = vmatprep.subr.mxu0 0.0
    %4053 = vmatpush1.xpose.msra.mxu0 0.0
    %4054 = vmatprep.subr.mxu0 0.0
    %4055 = vmatpush1.xpose.msra.mxu0 0.0
    %4056 = vmatprep.subr.mxu0 0.0
    %4057 = vmatpush1.xpose.msra.mxu0 0.0
    %4058 = vmatprep.subr.mxu0 0.0
    %4059 = vmatpush1.xpose.msra.mxu0 0.0
    %4060 = vmatprep.subr.mxu0 0.0
    %4061 = vmatpush1.xpose.msra.mxu0 0.0
    %4062 = vmatprep.subr.mxu0 0.0
    %4063 = vmatpush1.xpose.msra.mxu0 0.0
    %4064 = vmatprep.subr.mxu0 0.0
    %4065 = vmatpush1.xpose.msra.mxu0 0.0
    %4066 = vmatprep.subr.mxu0 0.0
    %4067 = vmatpush1.xpose.msra.mxu0 0.0
    %4068 = vmatprep.subr.mxu0 0.0
    %4069 = vmatpush1.xpose.msra.mxu0 0.0
    %4070 = vmatprep.subr.mxu0 0.0
    %4071 = vmatpush1.xpose.msra.mxu0 0.0
    %4072 = vmatprep.subr.mxu0 0.0
    %4073 = vmatpush1.xpose.msra.mxu0 0.0
    %4074 = vmatprep.subr.mxu0 0.0
    %4075 = vmatpush1.xpose.msra.mxu0 %v4042
    %4076 = vmatprep.subr.mxu0 0.0
    %4077 = vmatpush2.xpose.msra.mxu0 0.0
    %4078 = vmatprep.subr.mxu0 0.0
    %4079 = vmatpush2.xpose.msra.mxu0 0.0
    %4080 = vmatprep.subr.mxu0 0.0
    %4081 = vmatpush2.xpose.msra.mxu0 0.0
    %4082 = vmatprep.subr.mxu0 0.0
    %4083 = vmatpush2.xpose.msra.mxu0 0.0
    %4084 = vmatprep.subr.mxu0 0.0
    %4085 = vmatpush2.xpose.msra.mxu0 0.0
    %4086 = vmatprep.subr.mxu0 0.0
    %4087 = vmatpush2.xpose.msra.mxu0 0.0
    %4088 = vmatprep.subr.mxu0 0.0
    %4089 = vmatpush2.xpose.msra.mxu0 0.0
    %4090 = vmatprep.subr.mxu0 0.0
    %4091 = vmatpush2.xpose.msra.mxu0 0.0
    %4092 = vmatprep.subr.mxu0 0.0
    %4093 = vmatpush2.xpose.msra.mxu0 0.0
    %4094 = vmatprep.subr.mxu0 0.0
    %4095 = vmatpush2.xpose.msra.mxu0 0.0
    %4096 = vmatprep.subr.mxu0 0.0
    %4097 = vmatpush2.xpose.msra.mxu0 0.0
    %4098 = vmatprep.subr.mxu0 0.0
    %4099 = vmatpush2.xpose.msra.mxu0 0.0
    %4100 = vmatprep.subr.mxu0 0.0
    %4101 = vmatpush2.xpose.msra.mxu0 0.0
    %4102 = vmatprep.subr.mxu0 0.0
    %4103 = vmatpush2.xpose.msra.mxu0 0.0
    %4104 = vmatprep.subr.mxu0 0.0
    %4105 = vmatpush2.xpose.msra.mxu0 0.0
    %4106 = vmatprep.subr.mxu0 0.0
    %4107 = vmatpush2.xpose.msra.mxu0 0.0
    %4108 = vmatprep.mubr.f32.mxu0 0.0
    %4109 = vmatmul.mubr.f32.gmra.mxu0 %v1158
    %v4110 = vpop.f32.mrf.mxu0
    %v4111 = vadd.f32 0.0, %v4110
    %v4112 = vpop.f32.mrf.mxu0
    %4113 = vdwg.mxu0
    %v4114 = vlaneseq
    %v4115 = vshrl.u32 %v4114, 7
    %v4116 = vsub.s32 0, %v4115
    %v4117 = vrot.slane %v4111, %v4116
    %v4118 = vadd.f32 %v4040, %v4117
    %vm4119 = vcmp.gt.f32.partialorder %v4118, 0.0
    %v4120 = vmul.f32 %v4118, 0.2
    %v4121 = vsel %vm4119, %v4118, %v4120
    %v4122 = vsel %vm3429, %v4121, -9e+15
    %v4123 = vsel %vm797, %v4122, -inf
    %4124 = vmax.xlane.f32.xlu0 %v4123
    %v4125 = vpop.xlane.xlu0 %4124
    %v4126 = vsub.f32 %v4122, %v4125
    %v4127 = vmul.f32 %v4126, 1.442695
    %v4128 = vpow.pop %v4127
    %v4129 = vsel %vm797, %v4128, 0.0
    %4130 = vadd.xlane.f32.xlu0 %v4129
    %v4131 = vpop.xlane.xlu0 %4130
    %v4132 = vrcp.pop %v4131
    %v4133 = vmul.f32 %v4128, %v4132
    %v4135 = vsel %vm797, %v4133, 0
    %4137 = vmatprep.subr.mxu0 0.0
    %4138 = vmatpush1.msra.mxu0 0.0
    %4139 = vmatprep.subr.mxu0 0.0
    %4140 = vmatpush1.msra.mxu0 0.0
    %4141 = vmatprep.subr.mxu0 0.0
    %4142 = vmatpush1.msra.mxu0 0.0
    %4143 = vmatprep.subr.mxu0 0.0
    %4144 = vmatpush1.msra.mxu0 0.0
    %4145 = vmatprep.subr.mxu0 0.0
    %4146 = vmatpush1.msra.mxu0 0.0
    %4147 = vmatprep.subr.mxu0 0.0
    %4148 = vmatpush1.msra.mxu0 0.0
    %4149 = vmatprep.subr.mxu0 0.0
    %4150 = vmatpush1.msra.mxu0 0.0
    %4151 = vmatprep.subr.mxu0 0.0
    %4152 = vmatpush1.msra.mxu0 0.0
    %4153 = vmatprep.subr.mxu0 0.0
    %4154 = vmatpush1.msra.mxu0 0.0
    %4155 = vmatprep.subr.mxu0 0.0
    %4156 = vmatpush1.msra.mxu0 0.0
    %4157 = vmatprep.subr.mxu0 0.0
    %4158 = vmatpush1.msra.mxu0 0.0
    %4159 = vmatprep.subr.mxu0 0.0
    %4160 = vmatpush1.msra.mxu0 0.0
    %4161 = vmatprep.subr.mxu0 0.0
    %4162 = vmatpush1.msra.mxu0 0.0
    %4163 = vmatprep.subr.mxu0 0.0
    %4164 = vmatpush1.msra.mxu0 0.0
    %4165 = vmatprep.subr.mxu0 0.0
    %4166 = vmatpush1.msra.mxu0 0.0
    %4167 = vmatprep.subr.mxu0 0.0
    %4168 = vmatpush1.msra.mxu0 %v4034
    %4169 = vmatprep.subr.mxu0 0.0
    %4170 = vmatpush2.msra.mxu0 0.0
    %4171 = vmatprep.subr.mxu0 0.0
    %4172 = vmatpush2.msra.mxu0 0.0
    %4173 = vmatprep.subr.mxu0 0.0
    %4174 = vmatpush2.msra.mxu0 0.0
    %4175 = vmatprep.subr.mxu0 0.0
    %4176 = vmatpush2.msra.mxu0 0.0
    %4177 = vmatprep.subr.mxu0 0.0
    %4178 = vmatpush2.msra.mxu0 0.0
    %4179 = vmatprep.subr.mxu0 0.0
    %4180 = vmatpush2.msra.mxu0 0.0
    %4181 = vmatprep.subr.mxu0 0.0
    %4182 = vmatpush2.msra.mxu0 0.0
    %4183 = vmatprep.subr.mxu0 0.0
    %4184 = vmatpush2.msra.mxu0 0.0
    %4185 = vmatprep.subr.mxu0 0.0
    %4186 = vmatpush2.msra.mxu0 0.0
    %4187 = vmatprep.subr.mxu0 0.0
    %4188 = vmatpush2.msra.mxu0 0.0
    %4189 = vmatprep.subr.mxu0 0.0
    %4190 = vmatpush2.msra.mxu0 0.0
    %4191 = vmatprep.subr.mxu0 0.0
    %4192 = vmatpush2.msra.mxu0 0.0
    %4193 = vmatprep.subr.mxu0 0.0
    %4194 = vmatpush2.msra.mxu0 0.0
    %4195 = vmatprep.subr.mxu0 0.0
    %4196 = vmatpush2.msra.mxu0 0.0
    %4197 = vmatprep.subr.mxu0 0.0
    %4198 = vmatpush2.msra.mxu0 0.0
    %4199 = vmatprep.subr.mxu0 0.0
    %4200 = vmatpush2.msra.mxu0 0.0
    %4201 = vmatprep.mubr.f32.mxu0 0.0
    %4202 = vmatmul.mubr.f32.gmra.mxu0 %v4135
    %v4203 = vpop.f32.mrf.mxu0
    %v4204 = vadd.f32 0.0, %v4203
    %v4205 = vpop.f32.mrf.mxu0
    %4206 = vdwg.mxu0
    %vm4207 = vcmp.gt.f32.partialorder %v4204, 0.0
    %v4208 = vmul.f32 %v4204, 1.442695
    %v4209 = vpow.pop %v4208
    %v4210 = vsub.f32 %v4209, 1.0
    %v4211 = vsel %vm4207, %v4204, %v4210
    %v4212 = vsel %vm258, %v4211, %v3528
    %v4214 = vsel %vm1335, %v4212, 0
    %4216 = vmatprep.subr.mxu0 0.0
    %4217 = vmatpush1.msra.mxu0 0.0
    %4218 = vmatprep.subr.mxu0 0.0
    %4219 = vmatpush1.msra.mxu0 0.0
    %4220 = vmatprep.subr.mxu0 0.0
    %4221 = vmatpush1.msra.mxu0 0.0
    %4222 = vmatprep.subr.mxu0 0.0
    %4223 = vmatpush1.msra.mxu0 0.0
    %4224 = vmatprep.subr.mxu0 0.0
    %4225 = vmatpush1.msra.mxu0 0.0
    %4226 = vmatprep.subr.mxu0 0.0
    %4227 = vmatpush1.msra.mxu0 0.0
    %4228 = vmatprep.subr.mxu0 0.0
    %4229 = vmatpush1.msra.mxu0 0.0
    %4230 = vmatprep.subr.mxu0 0.0
    %4231 = vmatpush1.msra.mxu0 0.0
    %4232 = vmatprep.subr.mxu0 0.0
    %4233 = vmatpush1.msra.mxu0 %v90
    %4234 = vmatprep.subr.mxu0 0.0
    %4235 = vmatpush1.msra.mxu0 %v89
    %4236 = vmatprep.subr.mxu0 0.0
    %4237 = vmatpush1.msra.mxu0 %v88
    %4238 = vmatprep.subr.mxu0 0.0
    %4239 = vmatpush1.msra.mxu0 %v87
    %4240 = vmatprep.subr.mxu0 0.0
    %4241 = vmatpush1.msra.mxu0 %v86
    %4242 = vmatprep.subr.mxu0 0.0
    %4243 = vmatpush1.msra.mxu0 %v85
    %4244 = vmatprep.subr.mxu0 0.0
    %4245 = vmatpush1.msra.mxu0 %v84
    %4246 = vmatprep.subr.mxu0 0.0
    %4247 = vmatpush1.msra.mxu0 %v83
    %4248 = vmatprep.subr.mxu0 0.0
    %4249 = vmatpush2.msra.mxu0 0.0
    %4250 = vmatprep.subr.mxu0 0.0
    %4251 = vmatpush2.msra.mxu0 0.0
    %4252 = vmatprep.subr.mxu0 0.0
    %4253 = vmatpush2.msra.mxu0 0.0
    %4254 = vmatprep.subr.mxu0 0.0
    %4255 = vmatpush2.msra.mxu0 0.0
    %4256 = vmatprep.subr.mxu0 0.0
    %4257 = vmatpush2.msra.mxu0 0.0
    %4258 = vmatprep.subr.mxu0 0.0
    %4259 = vmatpush2.msra.mxu0 0.0
    %4260 = vmatprep.subr.mxu0 0.0
    %4261 = vmatpush2.msra.mxu0 0.0
    %4262 = vmatprep.subr.mxu0 0.0
    %4263 = vmatpush2.msra.mxu0 0.0
    %4264 = vmatprep.subr.mxu0 0.0
    %4265 = vmatpush2.msra.mxu0 0.0
    %4266 = vmatprep.subr.mxu0 0.0
    %4267 = vmatpush2.msra.mxu0 0.0
    %4268 = vmatprep.subr.mxu0 0.0
    %4269 = vmatpush2.msra.mxu0 0.0
    %4270 = vmatprep.subr.mxu0 0.0
    %4271 = vmatpush2.msra.mxu0 0.0
    %4272 = vmatprep.subr.mxu0 0.0
    %4273 = vmatpush2.msra.mxu0 0.0
    %4274 = vmatprep.subr.mxu0 0.0
    %4275 = vmatpush2.msra.mxu0 0.0
    %4276 = vmatprep.subr.mxu0 0.0
    %4277 = vmatpush2.msra.mxu0 0.0
    %4278 = vmatprep.subr.mxu0 0.0
    %4279 = vmatpush2.msra.mxu0 0.0
    %4280 = vmatprep.mubr.f32.mxu0 0.0
    %4281 = vmatmul.mubr.f32.gmra.mxu0 %v4214
    %v4282 = vpop.f32.mrf.mxu0
    %v4283 = vadd.f32 %v1333, %v4282
    %v4284 = vpop.f32.mrf.mxu0
    %4285 = vdwg.mxu0
    %v4287 = vsel %vm258, %v4283, 0
    %4289 = vmatprep.subr.mxu0 0.0
    %4290 = vmatpush1.msra.mxu0 0.0
    %4291 = vmatprep.subr.mxu0 0.0
    %4292 = vmatpush1.msra.mxu0 0.0
    %4293 = vmatprep.subr.mxu0 0.0
    %4294 = vmatpush1.msra.mxu0 0.0
    %4295 = vmatprep.subr.mxu0 0.0
    %4296 = vmatpush1.msra.mxu0 0.0
    %4297 = vmatprep.subr.mxu0 0.0
    %4298 = vmatpush1.msra.mxu0 0.0
    %4299 = vmatprep.subr.mxu0 0.0
    %4300 = vmatpush1.msra.mxu0 0.0
    %4301 = vmatprep.subr.mxu0 0.0
    %4302 = vmatpush1.msra.mxu0 0.0
    %4303 = vmatprep.subr.mxu0 0.0
    %4304 = vmatpush1.msra.mxu0 0.0
    %4305 = vmatprep.subr.mxu0 0.0
    %4306 = vmatpush1.msra.mxu0 0.0
    %4307 = vmatprep.subr.mxu0 0.0
    %4308 = vmatpush1.msra.mxu0 0.0
    %4309 = vmatprep.subr.mxu0 0.0
    %4310 = vmatpush1.msra.mxu0 0.0
    %4311 = vmatprep.subr.mxu0 0.0
    %4312 = vmatpush1.msra.mxu0 0.0
    %4313 = vmatprep.subr.mxu0 0.0
    %4314 = vmatpush1.msra.mxu0 %v94
    %4315 = vmatprep.subr.mxu0 0.0
    %4316 = vmatpush1.msra.mxu0 %v93
    %4317 = vmatprep.subr.mxu0 0.0
    %4318 = vmatpush1.msra.mxu0 %v92
    %4319 = vmatprep.subr.mxu0 0.0
    %4320 = vmatpush1.msra.mxu0 %v91
    %4321 = vmatprep.subr.mxu0 0.0
    %4322 = vmatpush2.msra.mxu0 0.0
    %4323 = vmatprep.subr.mxu0 0.0
    %4324 = vmatpush2.msra.mxu0 0.0
    %4325 = vmatprep.subr.mxu0 0.0
    %4326 = vmatpush2.msra.mxu0 0.0
    %4327 = vmatprep.subr.mxu0 0.0
    %4328 = vmatpush2.msra.mxu0 0.0
    %4329 = vmatprep.subr.mxu0 0.0
    %4330 = vmatpush2.msra.mxu0 0.0
    %4331 = vmatprep.subr.mxu0 0.0
    %4332 = vmatpush2.msra.mxu0 0.0
    %4333 = vmatprep.subr.mxu0 0.0
    %4334 = vmatpush2.msra.mxu0 0.0
    %4335 = vmatprep.subr.mxu0 0.0
    %4336 = vmatpush2.msra.mxu0 0.0
    %4337 = vmatprep.subr.mxu0 0.0
    %4338 = vmatpush2.msra.mxu0 0.0
    %4339 = vmatprep.subr.mxu0 0.0
    %4340 = vmatpush2.msra.mxu0 0.0
    %4341 = vmatprep.subr.mxu0 0.0
    %4342 = vmatpush2.msra.mxu0 0.0
    %4343 = vmatprep.subr.mxu0 0.0
    %4344 = vmatpush2.msra.mxu0 0.0
    %4345 = vmatprep.subr.mxu0 0.0
    %4346 = vmatpush2.msra.mxu0 0.0
    %4347 = vmatprep.subr.mxu0 0.0
    %4348 = vmatpush2.msra.mxu0 0.0
    %4349 = vmatprep.subr.mxu0 0.0
    %4350 = vmatpush2.msra.mxu0 0.0
    %4351 = vmatprep.subr.mxu0 0.0
    %4352 = vmatpush2.msra.mxu0 0.0
    %4353 = vmatprep.mubr.f32.mxu0 0.0
    %4354 = vmatmul.mubr.f32.gmra.mxu0 %v4287
    %v4355 = vpop.f32.mrf.mxu0
    %v4356 = vadd.f32 %v1410, %v4355
    %v4357 = vpop.f32.mrf.mxu0
    %4358 = vdwg.mxu0
    %v4359 = vsel %vm104, %v4356, -inf
    %4360 = vmax.xlane.f32.xlu0 %v4359
    %v4361 = vpop.xlane.xlu0 %4360
    %v4362 = vsub.f32 %v4356, %v4361
    %v4363 = vmul.f32 %v4362, 1.442695
    %v4364 = vpow.pop %v4363
    %v4365 = vsel %vm104, %v4364, 0.0
    %4366 = vadd.xlane.f32.xlu0 %v4365
    %v4367 = vpop.xlane.xlu0 %4366
    %v4368 = vlog2.pop %v4367
    %v4369 = vmul.f32 %v4368, 0.6931472
    %v4370 = vsub.f32 %v4362, %v4369
    %v4371 = vmul.f32 %v3426, %v4370
    %v4372 = vsel %vm104, %v4371, 0.0
    %4373 = vadd.xlane.f32.xlu0 %v4372
    %v4374 = vpop.xlane.xlu0 %4373
    %v4375 = vrot.slane %v4374, 4
    %v4376 = vadd.f32 %v4374, %v4375
    %v4377 = vrot.slane %v4376, 2
    %v4378 = vadd.f32 %v4376, %v4377
    %v4379 = vrot.slane %v4378, 1
    %v4380 = vadd.f32 %v4378, %v4379
    %v4381 = vmul.f32 %v4380, 0.5
    %v4382 = vsub.f32 %v3424, %v4381
    %s4383 = scalar_lea.vmem %s1, 32
    %v4384 = vld [vmem:[%s4383] sm:$0xff]
    %s4385 = scalar_lea.vmem %s2, 32
    %v4386 = vld [vmem:[%s4385] sm:$0xff]
    %vm4387 = vcmp.gt.f32.partialorder %v4386, 0.0
    %4388 = vmatprep.subr.mxu0 0.0
    %4389 = vmatpush1.msra.mxu0 0.0
    %4390 = vmatprep.subr.mxu0 0.0
    %4391 = vmatpush1.msra.mxu0 0.0
    %4392 = vmatprep.subr.mxu0 0.0
    %4393 = vmatpush1.msra.mxu0 0.0
    %4394 = vmatprep.subr.mxu0 0.0
    %4395 = vmatpush1.msra.mxu0 0.0
    %4396 = vmatprep.subr.mxu0 0.0
    %4397 = vmatpush1.msra.mxu0 0.0
    %4398 = vmatprep.subr.mxu0 0.0
    %4399 = vmatpush1.msra.mxu0 0.0
    %4400 = vmatprep.subr.mxu0 0.0
    %4401 = vmatpush1.msra.mxu0 0.0
    %4402 = vmatprep.subr.mxu0 0.0
    %4403 = vmatpush1.msra.mxu0 0.0
    %4404 = vmatprep.subr.mxu0 0.0
    %4405 = vmatpush1.msra.mxu0 0.0
    %4406 = vmatprep.subr.mxu0 0.0
    %4407 = vmatpush1.msra.mxu0 0.0
    %4408 = vmatprep.subr.mxu0 0.0
    %4409 = vmatpush1.msra.mxu0 0.0
    %4410 = vmatprep.subr.mxu0 0.0
    %4411 = vmatpush1.msra.mxu0 0.0
    %4412 = vmatprep.subr.mxu0 0.0
    %4413 = vmatpush1.msra.mxu0 %v64
    %4414 = vmatprep.subr.mxu0 0.0
    %4415 = vmatpush1.msra.mxu0 %v63
    %4416 = vmatprep.subr.mxu0 0.0
    %4417 = vmatpush1.msra.mxu0 %v62
    %4418 = vmatprep.subr.mxu0 0.0
    %4419 = vmatpush1.msra.mxu0 %v61
    %4420 = vmatprep.subr.mxu0 0.0
    %4421 = vmatpush2.msra.mxu0 0.0
    %4422 = vmatprep.subr.mxu0 0.0
    %4423 = vmatpush2.msra.mxu0 0.0
    %4424 = vmatprep.subr.mxu0 0.0
    %4425 = vmatpush2.msra.mxu0 0.0
    %4426 = vmatprep.subr.mxu0 0.0
    %4427 = vmatpush2.msra.mxu0 0.0
    %4428 = vmatprep.subr.mxu0 0.0
    %4429 = vmatpush2.msra.mxu0 0.0
    %4430 = vmatprep.subr.mxu0 0.0
    %4431 = vmatpush2.msra.mxu0 0.0
    %4432 = vmatprep.subr.mxu0 0.0
    %4433 = vmatpush2.msra.mxu0 0.0
    %4434 = vmatprep.subr.mxu0 0.0
    %4435 = vmatpush2.msra.mxu0 0.0
    %4436 = vmatprep.subr.mxu0 0.0
    %4437 = vmatpush2.msra.mxu0 0.0
    %4438 = vmatprep.subr.mxu0 0.0
    %4439 = vmatpush2.msra.mxu0 0.0
    %4440 = vmatprep.subr.mxu0 0.0
    %4441 = vmatpush2.msra.mxu0 0.0
    %4442 = vmatprep.subr.mxu0 0.0
    %4443 = vmatpush2.msra.mxu0 0.0
    %4444 = vmatprep.subr.mxu0 0.0
    %4445 = vmatpush2.msra.mxu0 0.0
    %4446 = vmatprep.subr.mxu0 0.0
    %4447 = vmatpush2.msra.mxu0 0.0
    %4448 = vmatprep.subr.mxu0 0.0
    %4449 = vmatpush2.msra.mxu0 0.0
    %4450 = vmatprep.subr.mxu0 0.0
    %4451 = vmatpush2.msra.mxu0 0.0
    %4452 = vmatprep.mubr.f32.mxu0 0.0
    %4453 = vmatmul.mubr.f32.gmra.mxu0 %v4287
    %v4454 = vpop.f32.mrf.mxu0
    %v4455 = vadd.f32 %v70, %v4454
    %v4456 = vpop.f32.mrf.mxu0
    %4457 = vdwg.mxu0
    %v4458 = vadd.f32 %v513, %v4455
    %v4459 = vxor.u32 %v4458, 2147483648
    %v4460 = vmul.f32 %v4459, 1.442695
    %v4461 = vpow.pop %v4460
    %v4462 = vadd.f32 %v4461, 1.0
    %v4463 = vrcp.pop %v4462
    %v4464 = vmul.f32 1.0, %v4463
    %4466 = vrot.lane.b32.xlu0 %v4455, 64
    %v4467 = vpop.permute.xlu0 %4466
    %v4469 = vmul.f32 %v4464, %v4467
    %4471 = vrot.lane.b32.xlu0 %v4469, 64
    %v4472 = vpop.permute.xlu0 %4471
    %v4474 = vadd.f32 %v513, %v4472
    %v4475 = vtanh.pop %v4474
    %v4476 = vsub.f32 1.0, %v4464
    %4478 = vrot.lane.b32.xlu0 %v4475, 96
    %v4479 = vpop.permute.xlu0 %4478
    %v4481 = vmul.f32 %v4476, %v4479
    %4482 = vrot.lane.b32.xlu0 %v4283, 32
    %v4483 = vpop.permute.xlu0 %4482
    %v4485 = vmul.f32 %v4464, %v4483
    %v4486 = vadd.f32 %v4481, %v4485
    %4488 = vrot.lane.b32.xlu0 %v4486, 96
    %v4489 = vpop.permute.xlu0 %4488
    %v4490 = vsel %vm258, %v4489, 0
    %4492 = vmatprep.subr.mxu0 0.0
    %4493 = vmatpush1.msra.mxu0 0.0
    %4494 = vmatprep.subr.mxu0 0.0
    %4495 = vmatpush1.msra.mxu0 0.0
    %4496 = vmatprep.subr.mxu0 0.0
    %4497 = vmatpush1.msra.mxu0 0.0
    %4498 = vmatprep.subr.mxu0 0.0
    %4499 = vmatpush1.msra.mxu0 0.0
    %4500 = vmatprep.subr.mxu0 0.0
    %4501 = vmatpush1.msra.mxu0 0.0
    %4502 = vmatprep.subr.mxu0 0.0
    %4503 = vmatpush1.msra.mxu0 0.0
    %4504 = vmatprep.subr.mxu0 0.0
    %4505 = vmatpush1.msra.mxu0 0.0
    %4506 = vmatprep.subr.mxu0 0.0
    %4507 = vmatpush1.msra.mxu0 0.0
    %4508 = vmatprep.subr.mxu0 0.0
    %4509 = vmatpush1.msra.mxu0 0.0
    %4510 = vmatprep.subr.mxu0 0.0
    %4511 = vmatpush1.msra.mxu0 0.0
    %4512 = vmatprep.subr.mxu0 0.0
    %4513 = vmatpush1.msra.mxu0 0.0
    %4514 = vmatprep.subr.mxu0 0.0
    %4515 = vmatpush1.msra.mxu0 0.0
    %4516 = vmatprep.subr.mxu0 0.0
    %4517 = vmatpush1.msra.mxu0 %v74
    %4518 = vmatprep.subr.mxu0 0.0
    %4519 = vmatpush1.msra.mxu0 %v73
    %4520 = vmatprep.subr.mxu0 0.0
    %4521 = vmatpush1.msra.mxu0 %v72
    %4522 = vmatprep.subr.mxu0 0.0
    %4523 = vmatpush1.msra.mxu0 %v71
    %4524 = vmatprep.subr.mxu0 0.0
    %4525 = vmatpush2.msra.mxu0 0.0
    %4526 = vmatprep.subr.mxu0 0.0
    %4527 = vmatpush2.msra.mxu0 0.0
    %4528 = vmatprep.subr.mxu0 0.0
    %4529 = vmatpush2.msra.mxu0 0.0
    %4530 = vmatprep.subr.mxu0 0.0
    %4531 = vmatpush2.msra.mxu0 0.0
    %4532 = vmatprep.subr.mxu0 0.0
    %4533 = vmatpush2.msra.mxu0 0.0
    %4534 = vmatprep.subr.mxu0 0.0
    %4535 = vmatpush2.msra.mxu0 0.0
    %4536 = vmatprep.subr.mxu0 0.0
    %4537 = vmatpush2.msra.mxu0 0.0
    %4538 = vmatprep.subr.mxu0 0.0
    %4539 = vmatpush2.msra.mxu0 0.0
    %4540 = vmatprep.subr.mxu0 0.0
    %4541 = vmatpush2.msra.mxu0 0.0
    %4542 = vmatprep.subr.mxu0 0.0
    %4543 = vmatpush2.msra.mxu0 0.0
    %4544 = vmatprep.subr.mxu0 0.0
    %4545 = vmatpush2.msra.mxu0 0.0
    %4546 = vmatprep.subr.mxu0 0.0
    %4547 = vmatpush2.msra.mxu0 0.0
    %4548 = vmatprep.subr.mxu0 0.0
    %4549 = vmatpush2.msra.mxu0 0.0
    %4550 = vmatprep.subr.mxu0 0.0
    %4551 = vmatpush2.msra.mxu0 0.0
    %4552 = vmatprep.subr.mxu0 0.0
    %4553 = vmatpush2.msra.mxu0 0.0
    %4554 = vmatprep.subr.mxu0 0.0
    %4555 = vmatpush2.msra.mxu0 0.0
    %4556 = vmatprep.mubr.f32.mxu0 0.0
    %4557 = vmatmul.mubr.f32.gmra.mxu0 %v4490
    %v4558 = vpop.f32.mrf.mxu0
    %v4559 = vadd.f32 0.0, %v4558
    %v4560 = vpop.f32.mrf.mxu0
    %4561 = vdwg.mxu0
    %v4562 = vmul.f32 %v4559, %v706
    %v4563 = vsel %vm708, %v4562, 0.0
    %4564 = vadd.xlane.f32.xlu0 %v4563
    %v4565 = vpop.xlane.xlu0 %4564
    %v4567 = vsel %vm708, %v4559, 0
    %4569 = vmatprep.subr.mxu0 0.0
    %4570 = vmatpush1.xpose.msra.mxu0 0.0
    %4571 = vmatprep.subr.mxu0 0.0
    %4572 = vmatpush1.xpose.msra.mxu0 0.0
    %4573 = vmatprep.subr.mxu0 0.0
    %4574 = vmatpush1.xpose.msra.mxu0 0.0
    %4575 = vmatprep.subr.mxu0 0.0
    %4576 = vmatpush1.xpose.msra.mxu0 0.0
    %4577 = vmatprep.subr.mxu0 0.0
    %4578 = vmatpush1.xpose.msra.mxu0 0.0
    %4579 = vmatprep.subr.mxu0 0.0
    %4580 = vmatpush1.xpose.msra.mxu0 0.0
    %4581 = vmatprep.subr.mxu0 0.0
    %4582 = vmatpush1.xpose.msra.mxu0 0.0
    %4583 = vmatprep.subr.mxu0 0.0
    %4584 = vmatpush1.xpose.msra.mxu0 0.0
    %4585 = vmatprep.subr.mxu0 0.0
    %4586 = vmatpush1.xpose.msra.mxu0 0.0
    %4587 = vmatprep.subr.mxu0 0.0
    %4588 = vmatpush1.xpose.msra.mxu0 0.0
    %4589 = vmatprep.subr.mxu0 0.0
    %4590 = vmatpush1.xpose.msra.mxu0 0.0
    %4591 = vmatprep.subr.mxu0 0.0
    %4592 = vmatpush1.xpose.msra.mxu0 0.0
    %4593 = vmatprep.subr.mxu0 0.0
    %4594 = vmatpush1.xpose.msra.mxu0 0.0
    %4595 = vmatprep.subr.mxu0 0.0
    %4596 = vmatpush1.xpose.msra.mxu0 0.0
    %4597 = vmatprep.subr.mxu0 0.0
    %4598 = vmatpush1.xpose.msra.mxu0 0.0
    %4599 = vmatprep.subr.mxu0 0.0
    %4600 = vmatpush1.xpose.msra.mxu0 %v4567
    %4601 = vmatprep.subr.mxu0 0.0
    %4602 = vmatpush2.xpose.msra.mxu0 0.0
    %4603 = vmatprep.subr.mxu0 0.0
    %4604 = vmatpush2.xpose.msra.mxu0 0.0
    %4605 = vmatprep.subr.mxu0 0.0
    %4606 = vmatpush2.xpose.msra.mxu0 0.0
    %4607 = vmatprep.subr.mxu0 0.0
    %4608 = vmatpush2.xpose.msra.mxu0 0.0
    %4609 = vmatprep.subr.mxu0 0.0
    %4610 = vmatpush2.xpose.msra.mxu0 0.0
    %4611 = vmatprep.subr.mxu0 0.0
    %4612 = vmatpush2.xpose.msra.mxu0 0.0
    %4613 = vmatprep.subr.mxu0 0.0
    %4614 = vmatpush2.xpose.msra.mxu0 0.0
    %4615 = vmatprep.subr.mxu0 0.0
    %4616 = vmatpush2.xpose.msra.mxu0 0.0
    %4617 = vmatprep.subr.mxu0 0.0
    %4618 = vmatpush2.xpose.msra.mxu0 0.0
    %4619 = vmatprep.subr.mxu0 0.0
    %4620 = vmatpush2.xpose.msra.mxu0 0.0
    %4621 = vmatprep.subr.mxu0 0.0
    %4622 = vmatpush2.xpose.msra.mxu0 0.0
    %4623 = vmatprep.subr.mxu0 0.0
    %4624 = vmatpush2.xpose.msra.mxu0 0.0
    %4625 = vmatprep.subr.mxu0 0.0
    %4626 = vmatpush2.xpose.msra.mxu0 0.0
    %4627 = vmatprep.subr.mxu0 0.0
    %4628 = vmatpush2.xpose.msra.mxu0 0.0
    %4629 = vmatprep.subr.mxu0 0.0
    %4630 = vmatpush2.xpose.msra.mxu0 0.0
    %4631 = vmatprep.subr.mxu0 0.0
    %4632 = vmatpush2.xpose.msra.mxu0 0.0
    %4633 = vmatprep.mubr.f32.mxu0 0.0
    %4634 = vmatmul.mubr.f32.gmra.mxu0 %v713
    %v4635 = vpop.f32.mrf.mxu0
    %v4636 = vadd.f32 0.0, %v4635
    %v4637 = vpop.f32.mrf.mxu0
    %4638 = vdwg.mxu0
    %v4639 = vlaneseq
    %v4640 = vshrl.u32 %v4639, 7
    %v4641 = vsub.s32 0, %v4640
    %v4642 = vrot.slane %v4636, %v4641
    %v4643 = vadd.f32 %v4565, %v4642
    %vm4644 = vcmp.gt.f32.partialorder %v4643, 0.0
    %v4645 = vmul.f32 %v4643, 0.2
    %v4646 = vsel %vm4644, %v4643, %v4645
    %v4647 = vsel %vm4387, %v4646, -9e+15
    %v4648 = vsel %vm797, %v4647, -inf
    %4649 = vmax.xlane.f32.xlu0 %v4648
    %v4650 = vpop.xlane.xlu0 %4649
    %v4651 = vsub.f32 %v4647, %v4650
    %v4652 = vmul.f32 %v4651, 1.442695
    %v4653 = vpow.pop %v4652
    %v4654 = vsel %vm797, %v4653, 0.0
    %4655 = vadd.xlane.f32.xlu0 %v4654
    %v4656 = vpop.xlane.xlu0 %4655
    %v4657 = vrcp.pop %v4656
    %v4658 = vmul.f32 %v4653, %v4657
    %v4660 = vsel %vm797, %v4658, 0
    %4662 = vmatprep.subr.mxu0 0.0
    %4663 = vmatpush1.msra.mxu0 0.0
    %4664 = vmatprep.subr.mxu0 0.0
    %4665 = vmatpush1.msra.mxu0 0.0
    %4666 = vmatprep.subr.mxu0 0.0
    %4667 = vmatpush1.msra.mxu0 0.0
    %4668 = vmatprep.subr.mxu0 0.0
    %4669 = vmatpush1.msra.mxu0 0.0
    %4670 = vmatprep.subr.mxu0 0.0
    %4671 = vmatpush1.msra.mxu0 0.0
    %4672 = vmatprep.subr.mxu0 0.0
    %4673 = vmatpush1.msra.mxu0 0.0
    %4674 = vmatprep.subr.mxu0 0.0
    %4675 = vmatpush1.msra.mxu0 0.0
    %4676 = vmatprep.subr.mxu0 0.0
    %4677 = vmatpush1.msra.mxu0 0.0
    %4678 = vmatprep.subr.mxu0 0.0
    %4679 = vmatpush1.msra.mxu0 0.0
    %4680 = vmatprep.subr.mxu0 0.0
    %4681 = vmatpush1.msra.mxu0 0.0
    %4682 = vmatprep.subr.mxu0 0.0
    %4683 = vmatpush1.msra.mxu0 0.0
    %4684 = vmatprep.subr.mxu0 0.0
    %4685 = vmatpush1.msra.mxu0 0.0
    %4686 = vmatprep.subr.mxu0 0.0
    %4687 = vmatpush1.msra.mxu0 0.0
    %4688 = vmatprep.subr.mxu0 0.0
    %4689 = vmatpush1.msra.mxu0 0.0
    %4690 = vmatprep.subr.mxu0 0.0
    %4691 = vmatpush1.msra.mxu0 0.0
    %4692 = vmatprep.subr.mxu0 0.0
    %4693 = vmatpush1.msra.mxu0 %v4559
    %4694 = vmatprep.subr.mxu0 0.0
    %4695 = vmatpush2.msra.mxu0 0.0
    %4696 = vmatprep.subr.mxu0 0.0
    %4697 = vmatpush2.msra.mxu0 0.0
    %4698 = vmatprep.subr.mxu0 0.0
    %4699 = vmatpush2.msra.mxu0 0.0
    %4700 = vmatprep.subr.mxu0 0.0
    %4701 = vmatpush2.msra.mxu0 0.0
    %4702 = vmatprep.subr.mxu0 0.0
    %4703 = vmatpush2.msra.mxu0 0.0
    %4704 = vmatprep.subr.mxu0 0.0
    %4705 = vmatpush2.msra.mxu0 0.0
    %4706 = vmatprep.subr.mxu0 0.0
    %4707 = vmatpush2.msra.mxu0 0.0
    %4708 = vmatprep.subr.mxu0 0.0
    %4709 = vmatpush2.msra.mxu0 0.0
    %4710 = vmatprep.subr.mxu0 0.0
    %4711 = vmatpush2.msra.mxu0 0.0
    %4712 = vmatprep.subr.mxu0 0.0
    %4713 = vmatpush2.msra.mxu0 0.0
    %4714 = vmatprep.subr.mxu0 0.0
    %4715 = vmatpush2.msra.mxu0 0.0
    %4716 = vmatprep.subr.mxu0 0.0
    %4717 = vmatpush2.msra.mxu0 0.0
    %4718 = vmatprep.subr.mxu0 0.0
    %4719 = vmatpush2.msra.mxu0 0.0
    %4720 = vmatprep.subr.mxu0 0.0
    %4721 = vmatpush2.msra.mxu0 0.0
    %4722 = vmatprep.subr.mxu0 0.0
    %4723 = vmatpush2.msra.mxu0 0.0
    %4724 = vmatprep.subr.mxu0 0.0
    %4725 = vmatpush2.msra.mxu0 0.0
    %4726 = vmatprep.mubr.f32.mxu0 0.0
    %4727 = vmatmul.mubr.f32.gmra.mxu0 %v4660
    %v4728 = vpop.f32.mrf.mxu0
    %v4729 = vadd.f32 0.0, %v4728
    %v4730 = vpop.f32.mrf.mxu0
    %4731 = vdwg.mxu0
    %vm4732 = vcmp.gt.f32.partialorder %v4729, 0.0
    %v4733 = vmul.f32 %v4729, 1.442695
    %v4734 = vpow.pop %v4733
    %v4735 = vsub.f32 %v4734, 1.0
    %v4736 = vsel %vm4732, %v4729, %v4735
    %4738 = vrot.lane.b32.xlu0 %v4562, 112
    %v4739 = vpop.permute.xlu0 %4738
    %v4741 = vsel %vm708, %v4739, 0.0
    %4742 = vadd.xlane.f32.xlu0 %v4741
    %v4743 = vpop.xlane.xlu0 %4742
    %4744 = vrot.lane.b32.xlu0 %v4559, 112
    %v4745 = vpop.permute.xlu0 %4744
    %v4746 = vsel %vm708, %v4745, 0
    %4748 = vmatprep.subr.mxu0 0.0
    %4749 = vmatpush1.xpose.msra.mxu0 0.0
    %4750 = vmatprep.subr.mxu0 0.0
    %4751 = vmatpush1.xpose.msra.mxu0 0.0
    %4752 = vmatprep.subr.mxu0 0.0
    %4753 = vmatpush1.xpose.msra.mxu0 0.0
    %4754 = vmatprep.subr.mxu0 0.0
    %4755 = vmatpush1.xpose.msra.mxu0 0.0
    %4756 = vmatprep.subr.mxu0 0.0
    %4757 = vmatpush1.xpose.msra.mxu0 0.0
    %4758 = vmatprep.subr.mxu0 0.0
    %4759 = vmatpush1.xpose.msra.mxu0 0.0
    %4760 = vmatprep.subr.mxu0 0.0
    %4761 = vmatpush1.xpose.msra.mxu0 0.0
    %4762 = vmatprep.subr.mxu0 0.0
    %4763 = vmatpush1.xpose.msra.mxu0 0.0
    %4764 = vmatprep.subr.mxu0 0.0
    %4765 = vmatpush1.xpose.msra.mxu0 0.0
    %4766 = vmatprep.subr.mxu0 0.0
    %4767 = vmatpush1.xpose.msra.mxu0 0.0
    %4768 = vmatprep.subr.mxu0 0.0
    %4769 = vmatpush1.xpose.msra.mxu0 0.0
    %4770 = vmatprep.subr.mxu0 0.0
    %4771 = vmatpush1.xpose.msra.mxu0 0.0
    %4772 = vmatprep.subr.mxu0 0.0
    %4773 = vmatpush1.xpose.msra.mxu0 0.0
    %4774 = vmatprep.subr.mxu0 0.0
    %4775 = vmatpush1.xpose.msra.mxu0 0.0
    %4776 = vmatprep.subr.mxu0 0.0
    %4777 = vmatpush1.xpose.msra.mxu0 0.0
    %4778 = vmatprep.subr.mxu0 0.0
    %4779 = vmatpush1.xpose.msra.mxu0 %v4746
    %4780 = vmatprep.subr.mxu0 0.0
    %4781 = vmatpush2.xpose.msra.mxu0 0.0
    %4782 = vmatprep.subr.mxu0 0.0
    %4783 = vmatpush2.xpose.msra.mxu0 0.0
    %4784 = vmatprep.subr.mxu0 0.0
    %4785 = vmatpush2.xpose.msra.mxu0 0.0
    %4786 = vmatprep.subr.mxu0 0.0
    %4787 = vmatpush2.xpose.msra.mxu0 0.0
    %4788 = vmatprep.subr.mxu0 0.0
    %4789 = vmatpush2.xpose.msra.mxu0 0.0
    %4790 = vmatprep.subr.mxu0 0.0
    %4791 = vmatpush2.xpose.msra.mxu0 0.0
    %4792 = vmatprep.subr.mxu0 0.0
    %4793 = vmatpush2.xpose.msra.mxu0 0.0
    %4794 = vmatprep.subr.mxu0 0.0
    %4795 = vmatpush2.xpose.msra.mxu0 0.0
    %4796 = vmatprep.subr.mxu0 0.0
    %4797 = vmatpush2.xpose.msra.mxu0 0.0
    %4798 = vmatprep.subr.mxu0 0.0
    %4799 = vmatpush2.xpose.msra.mxu0 0.0
    %4800 = vmatprep.subr.mxu0 0.0
    %4801 = vmatpush2.xpose.msra.mxu0 0.0
    %4802 = vmatprep.subr.mxu0 0.0
    %4803 = vmatpush2.xpose.msra.mxu0 0.0
    %4804 = vmatprep.subr.mxu0 0.0
    %4805 = vmatpush2.xpose.msra.mxu0 0.0
    %4806 = vmatprep.subr.mxu0 0.0
    %4807 = vmatpush2.xpose.msra.mxu0 0.0
    %4808 = vmatprep.subr.mxu0 0.0
    %4809 = vmatpush2.xpose.msra.mxu0 0.0
    %4810 = vmatprep.subr.mxu0 0.0
    %4811 = vmatpush2.xpose.msra.mxu0 0.0
    %4812 = vmatprep.mubr.f32.mxu0 0.0
    %4813 = vmatmul.mubr.f32.gmra.mxu0 %v898
    %v4814 = vpop.f32.mrf.mxu0
    %v4815 = vadd.f32 0.0, %v4814
    %v4816 = vpop.f32.mrf.mxu0
    %4817 = vdwg.mxu0
    %v4818 = vlaneseq
    %v4819 = vshrl.u32 %v4818, 7
    %v4820 = vsub.s32 0, %v4819
    %v4821 = vrot.slane %v4815, %v4820
    %v4822 = vadd.f32 %v4743, %v4821
    %vm4823 = vcmp.gt.f32.partialorder %v4822, 0.0
    %v4824 = vmul.f32 %v4822, 0.2
    %v4825 = vsel %vm4823, %v4822, %v4824
    %v4826 = vsel %vm4387, %v4825, -9e+15
    %v4827 = vsel %vm797, %v4826, -inf
    %4828 = vmax.xlane.f32.xlu0 %v4827
    %v4829 = vpop.xlane.xlu0 %4828
    %v4830 = vsub.f32 %v4826, %v4829
    %v4831 = vmul.f32 %v4830, 1.442695
    %v4832 = vpow.pop %v4831
    %v4833 = vsel %vm797, %v4832, 0.0
    %4834 = vadd.xlane.f32.xlu0 %v4833
    %v4835 = vpop.xlane.xlu0 %4834
    %v4836 = vrcp.pop %v4835
    %v4837 = vmul.f32 %v4832, %v4836
    %v4840 = vsel %vm797, %v4837, 0
    %4842 = vmatprep.subr.mxu0 0.0
    %4843 = vmatpush1.msra.mxu0 0.0
    %4844 = vmatprep.subr.mxu0 0.0
    %4845 = vmatpush1.msra.mxu0 0.0
    %4846 = vmatprep.subr.mxu0 0.0
    %4847 = vmatpush1.msra.mxu0 0.0
    %4848 = vmatprep.subr.mxu0 0.0
    %4849 = vmatpush1.msra.mxu0 0.0
    %4850 = vmatprep.subr.mxu0 0.0
    %4851 = vmatpush1.msra.mxu0 0.0
    %4852 = vmatprep.subr.mxu0 0.0
    %4853 = vmatpush1.msra.mxu0 0.0
    %4854 = vmatprep.subr.mxu0 0.0
    %4855 = vmatpush1.msra.mxu0 0.0
    %4856 = vmatprep.subr.mxu0 0.0
    %4857 = vmatpush1.msra.mxu0 0.0
    %4858 = vmatprep.subr.mxu0 0.0
    %4859 = vmatpush1.msra.mxu0 0.0
    %4860 = vmatprep.subr.mxu0 0.0
    %4861 = vmatpush1.msra.mxu0 0.0
    %4862 = vmatprep.subr.mxu0 0.0
    %4863 = vmatpush1.msra.mxu0 0.0
    %4864 = vmatprep.subr.mxu0 0.0
    %4865 = vmatpush1.msra.mxu0 0.0
    %4866 = vmatprep.subr.mxu0 0.0
    %4867 = vmatpush1.msra.mxu0 0.0
    %4868 = vmatprep.subr.mxu0 0.0
    %4869 = vmatpush1.msra.mxu0 0.0
    %4870 = vmatprep.subr.mxu0 0.0
    %4871 = vmatpush1.msra.mxu0 0.0
    %4872 = vmatprep.subr.mxu0 0.0
    %4873 = vmatpush1.msra.mxu0 %v4745
    %4874 = vmatprep.subr.mxu0 0.0
    %4875 = vmatpush2.msra.mxu0 0.0
    %4876 = vmatprep.subr.mxu0 0.0
    %4877 = vmatpush2.msra.mxu0 0.0
    %4878 = vmatprep.subr.mxu0 0.0
    %4879 = vmatpush2.msra.mxu0 0.0
    %4880 = vmatprep.subr.mxu0 0.0
    %4881 = vmatpush2.msra.mxu0 0.0
    %4882 = vmatprep.subr.mxu0 0.0
    %4883 = vmatpush2.msra.mxu0 0.0
    %4884 = vmatprep.subr.mxu0 0.0
    %4885 = vmatpush2.msra.mxu0 0.0
    %4886 = vmatprep.subr.mxu0 0.0
    %4887 = vmatpush2.msra.mxu0 0.0
    %4888 = vmatprep.subr.mxu0 0.0
    %4889 = vmatpush2.msra.mxu0 0.0
    %4890 = vmatprep.subr.mxu0 0.0
    %4891 = vmatpush2.msra.mxu0 0.0
    %4892 = vmatprep.subr.mxu0 0.0
    %4893 = vmatpush2.msra.mxu0 0.0
    %4894 = vmatprep.subr.mxu0 0.0
    %4895 = vmatpush2.msra.mxu0 0.0
    %4896 = vmatprep.subr.mxu0 0.0
    %4897 = vmatpush2.msra.mxu0 0.0
    %4898 = vmatprep.subr.mxu0 0.0
    %4899 = vmatpush2.msra.mxu0 0.0
    %4900 = vmatprep.subr.mxu0 0.0
    %4901 = vmatpush2.msra.mxu0 0.0
    %4902 = vmatprep.subr.mxu0 0.0
    %4903 = vmatpush2.msra.mxu0 0.0
    %4904 = vmatprep.subr.mxu0 0.0
    %4905 = vmatpush2.msra.mxu0 0.0
    %4906 = vmatprep.mubr.f32.mxu0 0.0
    %4907 = vmatmul.mubr.f32.gmra.mxu0 %v4840
    %v4908 = vpop.f32.mrf.mxu0
    %v4909 = vadd.f32 0.0, %v4908
    %v4910 = vpop.f32.mrf.mxu0
    %4911 = vdwg.mxu0
    %vm4912 = vcmp.gt.f32.partialorder %v4909, 0.0
    %v4913 = vmul.f32 %v4909, 1.442695
    %v4914 = vpow.pop %v4913
    %v4915 = vsub.f32 %v4914, 1.0
    %v4916 = vsel %vm4912, %v4909, %v4915
    %4918 = vrot.lane.b32.xlu0 %v4916, 16
    %v4919 = vpop.permute.xlu0 %4918
    %v4921 = vsel %vm708, %v4736, %v4919
    %v4923 = vsel %vm258, %v4921, 0
    %4925 = vmatprep.subr.mxu0 0.0
    %4926 = vmatpush1.msra.mxu0 0.0
    %4927 = vmatprep.subr.mxu0 0.0
    %4928 = vmatpush1.msra.mxu0 0.0
    %4929 = vmatprep.subr.mxu0 0.0
    %4930 = vmatpush1.msra.mxu0 0.0
    %4931 = vmatprep.subr.mxu0 0.0
    %4932 = vmatpush1.msra.mxu0 0.0
    %4933 = vmatprep.subr.mxu0 0.0
    %4934 = vmatpush1.msra.mxu0 0.0
    %4935 = vmatprep.subr.mxu0 0.0
    %4936 = vmatpush1.msra.mxu0 0.0
    %4937 = vmatprep.subr.mxu0 0.0
    %4938 = vmatpush1.msra.mxu0 0.0
    %4939 = vmatprep.subr.mxu0 0.0
    %4940 = vmatpush1.msra.mxu0 0.0
    %4941 = vmatprep.subr.mxu0 0.0
    %4942 = vmatpush1.msra.mxu0 0.0
    %4943 = vmatprep.subr.mxu0 0.0
    %4944 = vmatpush1.msra.mxu0 0.0
    %4945 = vmatprep.subr.mxu0 0.0
    %4946 = vmatpush1.msra.mxu0 0.0
    %4947 = vmatprep.subr.mxu0 0.0
    %4948 = vmatpush1.msra.mxu0 0.0
    %4949 = vmatprep.subr.mxu0 0.0
    %4950 = vmatpush1.msra.mxu0 %v80
    %4951 = vmatprep.subr.mxu0 0.0
    %4952 = vmatpush1.msra.mxu0 %v79
    %4953 = vmatprep.subr.mxu0 0.0
    %4954 = vmatpush1.msra.mxu0 %v78
    %4955 = vmatprep.subr.mxu0 0.0
    %4956 = vmatpush1.msra.mxu0 %v77
    %4957 = vmatprep.subr.mxu0 0.0
    %4958 = vmatpush2.msra.mxu0 0.0
    %4959 = vmatprep.subr.mxu0 0.0
    %4960 = vmatpush2.msra.mxu0 0.0
    %4961 = vmatprep.subr.mxu0 0.0
    %4962 = vmatpush2.msra.mxu0 0.0
    %4963 = vmatprep.subr.mxu0 0.0
    %4964 = vmatpush2.msra.mxu0 0.0
    %4965 = vmatprep.subr.mxu0 0.0
    %4966 = vmatpush2.msra.mxu0 0.0
    %4967 = vmatprep.subr.mxu0 0.0
    %4968 = vmatpush2.msra.mxu0 0.0
    %4969 = vmatprep.subr.mxu0 0.0
    %4970 = vmatpush2.msra.mxu0 0.0
    %4971 = vmatprep.subr.mxu0 0.0
    %4972 = vmatpush2.msra.mxu0 0.0
    %4973 = vmatprep.subr.mxu0 0.0
    %4974 = vmatpush2.msra.mxu0 0.0
    %4975 = vmatprep.subr.mxu0 0.0
    %4976 = vmatpush2.msra.mxu0 0.0
    %4977 = vmatprep.subr.mxu0 0.0
    %4978 = vmatpush2.msra.mxu0 0.0
    %4979 = vmatprep.subr.mxu0 0.0
    %4980 = vmatpush2.msra.mxu0 0.0
    %4981 = vmatprep.subr.mxu0 0.0
    %4982 = vmatpush2.msra.mxu0 0.0
    %4983 = vmatprep.subr.mxu0 0.0
    %4984 = vmatpush2.msra.mxu0 0.0
    %4985 = vmatprep.subr.mxu0 0.0
    %4986 = vmatpush2.msra.mxu0 0.0
    %4987 = vmatprep.subr.mxu0 0.0
    %4988 = vmatpush2.msra.mxu0 0.0
    %4989 = vmatprep.mubr.f32.mxu0 0.0
    %4990 = vmatmul.mubr.f32.gmra.mxu0 %v4923
    %v4991 = vpop.f32.mrf.mxu0
    %v4992 = vadd.f32 0.0, %v4991
    %v4993 = vpop.f32.mrf.mxu0
    %4994 = vdwg.mxu0
    %v4995 = vmul.f32 %v4992, %v1152
    %v4996 = vsel %vm258, %v4995, 0.0
    %4997 = vadd.xlane.f32.xlu0 %v4996
    %v4998 = vpop.xlane.xlu0 %4997
    %v5000 = vsel %vm258, %v4992, 0
    %5002 = vmatprep.subr.mxu0 0.0
    %5003 = vmatpush1.xpose.msra.mxu0 0.0
    %5004 = vmatprep.subr.mxu0 0.0
    %5005 = vmatpush1.xpose.msra.mxu0 0.0
    %5006 = vmatprep.subr.mxu0 0.0
    %5007 = vmatpush1.xpose.msra.mxu0 0.0
    %5008 = vmatprep.subr.mxu0 0.0
    %5009 = vmatpush1.xpose.msra.mxu0 0.0
    %5010 = vmatprep.subr.mxu0 0.0
    %5011 = vmatpush1.xpose.msra.mxu0 0.0
    %5012 = vmatprep.subr.mxu0 0.0
    %5013 = vmatpush1.xpose.msra.mxu0 0.0
    %5014 = vmatprep.subr.mxu0 0.0
    %5015 = vmatpush1.xpose.msra.mxu0 0.0
    %5016 = vmatprep.subr.mxu0 0.0
    %5017 = vmatpush1.xpose.msra.mxu0 0.0
    %5018 = vmatprep.subr.mxu0 0.0
    %5019 = vmatpush1.xpose.msra.mxu0 0.0
    %5020 = vmatprep.subr.mxu0 0.0
    %5021 = vmatpush1.xpose.msra.mxu0 0.0
    %5022 = vmatprep.subr.mxu0 0.0
    %5023 = vmatpush1.xpose.msra.mxu0 0.0
    %5024 = vmatprep.subr.mxu0 0.0
    %5025 = vmatpush1.xpose.msra.mxu0 0.0
    %5026 = vmatprep.subr.mxu0 0.0
    %5027 = vmatpush1.xpose.msra.mxu0 0.0
    %5028 = vmatprep.subr.mxu0 0.0
    %5029 = vmatpush1.xpose.msra.mxu0 0.0
    %5030 = vmatprep.subr.mxu0 0.0
    %5031 = vmatpush1.xpose.msra.mxu0 0.0
    %5032 = vmatprep.subr.mxu0 0.0
    %5033 = vmatpush1.xpose.msra.mxu0 %v5000
    %5034 = vmatprep.subr.mxu0 0.0
    %5035 = vmatpush2.xpose.msra.mxu0 0.0
    %5036 = vmatprep.subr.mxu0 0.0
    %5037 = vmatpush2.xpose.msra.mxu0 0.0
    %5038 = vmatprep.subr.mxu0 0.0
    %5039 = vmatpush2.xpose.msra.mxu0 0.0
    %5040 = vmatprep.subr.mxu0 0.0
    %5041 = vmatpush2.xpose.msra.mxu0 0.0
    %5042 = vmatprep.subr.mxu0 0.0
    %5043 = vmatpush2.xpose.msra.mxu0 0.0
    %5044 = vmatprep.subr.mxu0 0.0
    %5045 = vmatpush2.xpose.msra.mxu0 0.0
    %5046 = vmatprep.subr.mxu0 0.0
    %5047 = vmatpush2.xpose.msra.mxu0 0.0
    %5048 = vmatprep.subr.mxu0 0.0
    %5049 = vmatpush2.xpose.msra.mxu0 0.0
    %5050 = vmatprep.subr.mxu0 0.0
    %5051 = vmatpush2.xpose.msra.mxu0 0.0
    %5052 = vmatprep.subr.mxu0 0.0
    %5053 = vmatpush2.xpose.msra.mxu0 0.0
    %5054 = vmatprep.subr.mxu0 0.0
    %5055 = vmatpush2.xpose.msra.mxu0 0.0
    %5056 = vmatprep.subr.mxu0 0.0
    %5057 = vmatpush2.xpose.msra.mxu0 0.0
    %5058 = vmatprep.subr.mxu0 0.0
    %5059 = vmatpush2.xpose.msra.mxu0 0.0
    %5060 = vmatprep.subr.mxu0 0.0
    %5061 = vmatpush2.xpose.msra.mxu0 0.0
    %5062 = vmatprep.subr.mxu0 0.0
    %5063 = vmatpush2.xpose.msra.mxu0 0.0
    %5064 = vmatprep.subr.mxu0 0.0
    %5065 = vmatpush2.xpose.msra.mxu0 0.0
    %5066 = vmatprep.mubr.f32.mxu0 0.0
    %5067 = vmatmul.mubr.f32.gmra.mxu0 %v1158
    %v5068 = vpop.f32.mrf.mxu0
    %v5069 = vadd.f32 0.0, %v5068
    %v5070 = vpop.f32.mrf.mxu0
    %5071 = vdwg.mxu0
    %v5072 = vlaneseq
    %v5073 = vshrl.u32 %v5072, 7
    %v5074 = vsub.s32 0, %v5073
    %v5075 = vrot.slane %v5069, %v5074
    %v5076 = vadd.f32 %v4998, %v5075
    %vm5077 = vcmp.gt.f32.partialorder %v5076, 0.0
    %v5078 = vmul.f32 %v5076, 0.2
    %v5079 = vsel %vm5077, %v5076, %v5078
    %v5080 = vsel %vm4387, %v5079, -9e+15
    %v5081 = vsel %vm797, %v5080, -inf
    %5082 = vmax.xlane.f32.xlu0 %v5081
    %v5083 = vpop.xlane.xlu0 %5082
    %v5084 = vsub.f32 %v5080, %v5083
    %v5085 = vmul.f32 %v5084, 1.442695
    %v5086 = vpow.pop %v5085
    %v5087 = vsel %vm797, %v5086, 0.0
    %5088 = vadd.xlane.f32.xlu0 %v5087
    %v5089 = vpop.xlane.xlu0 %5088
    %v5090 = vrcp.pop %v5089
    %v5091 = vmul.f32 %v5086, %v5090
    %v5093 = vsel %vm797, %v5091, 0
    %5095 = vmatprep.subr.mxu0 0.0
    %5096 = vmatpush1.msra.mxu0 0.0
    %5097 = vmatprep.subr.mxu0 0.0
    %5098 = vmatpush1.msra.mxu0 0.0
    %5099 = vmatprep.subr.mxu0 0.0
    %5100 = vmatpush1.msra.mxu0 0.0
    %5101 = vmatprep.subr.mxu0 0.0
    %5102 = vmatpush1.msra.mxu0 0.0
    %5103 = vmatprep.subr.mxu0 0.0
    %5104 = vmatpush1.msra.mxu0 0.0
    %5105 = vmatprep.subr.mxu0 0.0
    %5106 = vmatpush1.msra.mxu0 0.0
    %5107 = vmatprep.subr.mxu0 0.0
    %5108 = vmatpush1.msra.mxu0 0.0
    %5109 = vmatprep.subr.mxu0 0.0
    %5110 = vmatpush1.msra.mxu0 0.0
    %5111 = vmatprep.subr.mxu0 0.0
    %5112 = vmatpush1.msra.mxu0 0.0
    %5113 = vmatprep.subr.mxu0 0.0
    %5114 = vmatpush1.msra.mxu0 0.0
    %5115 = vmatprep.subr.mxu0 0.0
    %5116 = vmatpush1.msra.mxu0 0.0
    %5117 = vmatprep.subr.mxu0 0.0
    %5118 = vmatpush1.msra.mxu0 0.0
    %5119 = vmatprep.subr.mxu0 0.0
    %5120 = vmatpush1.msra.mxu0 0.0
    %5121 = vmatprep.subr.mxu0 0.0
    %5122 = vmatpush1.msra.mxu0 0.0
    %5123 = vmatprep.subr.mxu0 0.0
    %5124 = vmatpush1.msra.mxu0 0.0
    %5125 = vmatprep.subr.mxu0 0.0
    %5126 = vmatpush1.msra.mxu0 %v4992
    %5127 = vmatprep.subr.mxu0 0.0
    %5128 = vmatpush2.msra.mxu0 0.0
    %5129 = vmatprep.subr.mxu0 0.0
    %5130 = vmatpush2.msra.mxu0 0.0
    %5131 = vmatprep.subr.mxu0 0.0
    %5132 = vmatpush2.msra.mxu0 0.0
    %5133 = vmatprep.subr.mxu0 0.0
    %5134 = vmatpush2.msra.mxu0 0.0
    %5135 = vmatprep.subr.mxu0 0.0
    %5136 = vmatpush2.msra.mxu0 0.0
    %5137 = vmatprep.subr.mxu0 0.0
    %5138 = vmatpush2.msra.mxu0 0.0
    %5139 = vmatprep.subr.mxu0 0.0
    %5140 = vmatpush2.msra.mxu0 0.0
    %5141 = vmatprep.subr.mxu0 0.0
    %5142 = vmatpush2.msra.mxu0 0.0
    %5143 = vmatprep.subr.mxu0 0.0
    %5144 = vmatpush2.msra.mxu0 0.0
    %5145 = vmatprep.subr.mxu0 0.0
    %5146 = vmatpush2.msra.mxu0 0.0
    %5147 = vmatprep.subr.mxu0 0.0
    %5148 = vmatpush2.msra.mxu0 0.0
    %5149 = vmatprep.subr.mxu0 0.0
    %5150 = vmatpush2.msra.mxu0 0.0
    %5151 = vmatprep.subr.mxu0 0.0
    %5152 = vmatpush2.msra.mxu0 0.0
    %5153 = vmatprep.subr.mxu0 0.0
    %5154 = vmatpush2.msra.mxu0 0.0
    %5155 = vmatprep.subr.mxu0 0.0
    %5156 = vmatpush2.msra.mxu0 0.0
    %5157 = vmatprep.subr.mxu0 0.0
    %5158 = vmatpush2.msra.mxu0 0.0
    %5159 = vmatprep.mubr.f32.mxu0 0.0
    %5160 = vmatmul.mubr.f32.gmra.mxu0 %v5093
    %v5161 = vpop.f32.mrf.mxu0
    %v5162 = vadd.f32 0.0, %v5161
    %v5163 = vpop.f32.mrf.mxu0
    %5164 = vdwg.mxu0
    %vm5165 = vcmp.gt.f32.partialorder %v5162, 0.0
    %v5166 = vmul.f32 %v5162, 1.442695
    %v5167 = vpow.pop %v5166
    %v5168 = vsub.f32 %v5167, 1.0
    %v5169 = vsel %vm5165, %v5162, %v5168
    %v5170 = vsel %vm258, %v5169, %v4486
    %v5172 = vsel %vm1335, %v5170, 0
    %5174 = vmatprep.subr.mxu0 0.0
    %5175 = vmatpush1.msra.mxu0 0.0
    %5176 = vmatprep.subr.mxu0 0.0
    %5177 = vmatpush1.msra.mxu0 0.0
    %5178 = vmatprep.subr.mxu0 0.0
    %5179 = vmatpush1.msra.mxu0 0.0
    %5180 = vmatprep.subr.mxu0 0.0
    %5181 = vmatpush1.msra.mxu0 0.0
    %5182 = vmatprep.subr.mxu0 0.0
    %5183 = vmatpush1.msra.mxu0 0.0
    %5184 = vmatprep.subr.mxu0 0.0
    %5185 = vmatpush1.msra.mxu0 0.0
    %5186 = vmatprep.subr.mxu0 0.0
    %5187 = vmatpush1.msra.mxu0 0.0
    %5188 = vmatprep.subr.mxu0 0.0
    %5189 = vmatpush1.msra.mxu0 0.0
    %5190 = vmatprep.subr.mxu0 0.0
    %5191 = vmatpush1.msra.mxu0 %v90
    %5192 = vmatprep.subr.mxu0 0.0
    %5193 = vmatpush1.msra.mxu0 %v89
    %5194 = vmatprep.subr.mxu0 0.0
    %5195 = vmatpush1.msra.mxu0 %v88
    %5196 = vmatprep.subr.mxu0 0.0
    %5197 = vmatpush1.msra.mxu0 %v87
    %5198 = vmatprep.subr.mxu0 0.0
    %5199 = vmatpush1.msra.mxu0 %v86
    %5200 = vmatprep.subr.mxu0 0.0
    %5201 = vmatpush1.msra.mxu0 %v85
    %5202 = vmatprep.subr.mxu0 0.0
    %5203 = vmatpush1.msra.mxu0 %v84
    %5204 = vmatprep.subr.mxu0 0.0
    %5205 = vmatpush1.msra.mxu0 %v83
    %5206 = vmatprep.subr.mxu0 0.0
    %5207 = vmatpush2.msra.mxu0 0.0
    %5208 = vmatprep.subr.mxu0 0.0
    %5209 = vmatpush2.msra.mxu0 0.0
    %5210 = vmatprep.subr.mxu0 0.0
    %5211 = vmatpush2.msra.mxu0 0.0
    %5212 = vmatprep.subr.mxu0 0.0
    %5213 = vmatpush2.msra.mxu0 0.0
    %5214 = vmatprep.subr.mxu0 0.0
    %5215 = vmatpush2.msra.mxu0 0.0
    %5216 = vmatprep.subr.mxu0 0.0
    %5217 = vmatpush2.msra.mxu0 0.0
    %5218 = vmatprep.subr.mxu0 0.0
    %5219 = vmatpush2.msra.mxu0 0.0
    %5220 = vmatprep.subr.mxu0 0.0
    %5221 = vmatpush2.msra.mxu0 0.0
    %5222 = vmatprep.subr.mxu0 0.0
    %5223 = vmatpush2.msra.mxu0 0.0
    %5224 = vmatprep.subr.mxu0 0.0
    %5225 = vmatpush2.msra.mxu0 0.0
    %5226 = vmatprep.subr.mxu0 0.0
    %5227 = vmatpush2.msra.mxu0 0.0
    %5228 = vmatprep.subr.mxu0 0.0
    %5229 = vmatpush2.msra.mxu0 0.0
    %5230 = vmatprep.subr.mxu0 0.0
    %5231 = vmatpush2.msra.mxu0 0.0
    %5232 = vmatprep.subr.mxu0 0.0
    %5233 = vmatpush2.msra.mxu0 0.0
    %5234 = vmatprep.subr.mxu0 0.0
    %5235 = vmatpush2.msra.mxu0 0.0
    %5236 = vmatprep.subr.mxu0 0.0
    %5237 = vmatpush2.msra.mxu0 0.0
    %5238 = vmatprep.mubr.f32.mxu0 0.0
    %5239 = vmatmul.mubr.f32.gmra.mxu0 %v5172
    %v5240 = vpop.f32.mrf.mxu0
    %v5241 = vadd.f32 %v1333, %v5240
    %v5242 = vpop.f32.mrf.mxu0
    %5243 = vdwg.mxu0
    %v5245 = vsel %vm258, %v5241, 0
    %5247 = vmatprep.subr.mxu0 0.0
    %5248 = vmatpush1.msra.mxu0 0.0
    %5249 = vmatprep.subr.mxu0 0.0
    %5250 = vmatpush1.msra.mxu0 0.0
    %5251 = vmatprep.subr.mxu0 0.0
    %5252 = vmatpush1.msra.mxu0 0.0
    %5253 = vmatprep.subr.mxu0 0.0
    %5254 = vmatpush1.msra.mxu0 0.0
    %5255 = vmatprep.subr.mxu0 0.0
    %5256 = vmatpush1.msra.mxu0 0.0
    %5257 = vmatprep.subr.mxu0 0.0
    %5258 = vmatpush1.msra.mxu0 0.0
    %5259 = vmatprep.subr.mxu0 0.0
    %5260 = vmatpush1.msra.mxu0 0.0
    %5261 = vmatprep.subr.mxu0 0.0
    %5262 = vmatpush1.msra.mxu0 0.0
    %5263 = vmatprep.subr.mxu0 0.0
    %5264 = vmatpush1.msra.mxu0 0.0
    %5265 = vmatprep.subr.mxu0 0.0
    %5266 = vmatpush1.msra.mxu0 0.0
    %5267 = vmatprep.subr.mxu0 0.0
    %5268 = vmatpush1.msra.mxu0 0.0
    %5269 = vmatprep.subr.mxu0 0.0
    %5270 = vmatpush1.msra.mxu0 0.0
    %5271 = vmatprep.subr.mxu0 0.0
    %5272 = vmatpush1.msra.mxu0 %v94
    %5273 = vmatprep.subr.mxu0 0.0
    %5274 = vmatpush1.msra.mxu0 %v93
    %5275 = vmatprep.subr.mxu0 0.0
    %5276 = vmatpush1.msra.mxu0 %v92
    %5277 = vmatprep.subr.mxu0 0.0
    %5278 = vmatpush1.msra.mxu0 %v91
    %5279 = vmatprep.subr.mxu0 0.0
    %5280 = vmatpush2.msra.mxu0 0.0
    %5281 = vmatprep.subr.mxu0 0.0
    %5282 = vmatpush2.msra.mxu0 0.0
    %5283 = vmatprep.subr.mxu0 0.0
    %5284 = vmatpush2.msra.mxu0 0.0
    %5285 = vmatprep.subr.mxu0 0.0
    %5286 = vmatpush2.msra.mxu0 0.0
    %5287 = vmatprep.subr.mxu0 0.0
    %5288 = vmatpush2.msra.mxu0 0.0
    %5289 = vmatprep.subr.mxu0 0.0
    %5290 = vmatpush2.msra.mxu0 0.0
    %5291 = vmatprep.subr.mxu0 0.0
    %5292 = vmatpush2.msra.mxu0 0.0
    %5293 = vmatprep.subr.mxu0 0.0
    %5294 = vmatpush2.msra.mxu0 0.0
    %5295 = vmatprep.subr.mxu0 0.0
    %5296 = vmatpush2.msra.mxu0 0.0
    %5297 = vmatprep.subr.mxu0 0.0
    %5298 = vmatpush2.msra.mxu0 0.0
    %5299 = vmatprep.subr.mxu0 0.0
    %5300 = vmatpush2.msra.mxu0 0.0
    %5301 = vmatprep.subr.mxu0 0.0
    %5302 = vmatpush2.msra.mxu0 0.0
    %5303 = vmatprep.subr.mxu0 0.0
    %5304 = vmatpush2.msra.mxu0 0.0
    %5305 = vmatprep.subr.mxu0 0.0
    %5306 = vmatpush2.msra.mxu0 0.0
    %5307 = vmatprep.subr.mxu0 0.0
    %5308 = vmatpush2.msra.mxu0 0.0
    %5309 = vmatprep.subr.mxu0 0.0
    %5310 = vmatpush2.msra.mxu0 0.0
    %5311 = vmatprep.mubr.f32.mxu0 0.0
    %5312 = vmatmul.mubr.f32.gmra.mxu0 %v5245
    %v5313 = vpop.f32.mrf.mxu0
    %v5314 = vadd.f32 %v1410, %v5313
    %v5315 = vpop.f32.mrf.mxu0
    %5316 = vdwg.mxu0
    %v5317 = vsel %vm104, %v5314, -inf
    %5318 = vmax.xlane.f32.xlu0 %v5317
    %v5319 = vpop.xlane.xlu0 %5318
    %v5320 = vsub.f32 %v5314, %v5319
    %v5321 = vmul.f32 %v5320, 1.442695
    %v5322 = vpow.pop %v5321
    %v5323 = vsel %vm104, %v5322, 0.0
    %5324 = vadd.xlane.f32.xlu0 %v5323
    %v5325 = vpop.xlane.xlu0 %5324
    %v5326 = vlog2.pop %v5325
    %v5327 = vmul.f32 %v5326, 0.6931472
    %v5328 = vsub.f32 %v5320, %v5327
    %v5329 = vmul.f32 %v4384, %v5328
    %v5330 = vsel %vm104, %v5329, 0.0
    %5331 = vadd.xlane.f32.xlu0 %v5330
    %v5332 = vpop.xlane.xlu0 %5331
    %v5333 = vrot.slane %v5332, 4
    %v5334 = vadd.f32 %v5332, %v5333
    %v5335 = vrot.slane %v5334, 2
    %v5336 = vadd.f32 %v5334, %v5335
    %v5337 = vrot.slane %v5336, 1
    %v5338 = vadd.f32 %v5336, %v5337
    %v5339 = vmul.f32 %v5338, 0.5
    %v5340 = vsub.f32 %v4382, %v5339
    %s5341 = scalar_lea.vmem %s1, 40
    %v5342 = vld [vmem:[%s5341] sm:$0xff]
    %s5343 = scalar_lea.vmem %s2, 40
    %v5344 = vld [vmem:[%s5343] sm:$0xff]
    %vm5345 = vcmp.gt.f32.partialorder %v5344, 0.0
    %5346 = vmatprep.subr.mxu0 0.0
    %5347 = vmatpush1.msra.mxu0 0.0
    %5348 = vmatprep.subr.mxu0 0.0
    %5349 = vmatpush1.msra.mxu0 0.0
    %5350 = vmatprep.subr.mxu0 0.0
    %5351 = vmatpush1.msra.mxu0 0.0
    %5352 = vmatprep.subr.mxu0 0.0
    %5353 = vmatpush1.msra.mxu0 0.0
    %5354 = vmatprep.subr.mxu0 0.0
    %5355 = vmatpush1.msra.mxu0 0.0
    %5356 = vmatprep.subr.mxu0 0.0
    %5357 = vmatpush1.msra.mxu0 0.0
    %5358 = vmatprep.subr.mxu0 0.0
    %5359 = vmatpush1.msra.mxu0 0.0
    %5360 = vmatprep.subr.mxu0 0.0
    %5361 = vmatpush1.msra.mxu0 0.0
    %5362 = vmatprep.subr.mxu0 0.0
    %5363 = vmatpush1.msra.mxu0 0.0
    %5364 = vmatprep.subr.mxu0 0.0
    %5365 = vmatpush1.msra.mxu0 0.0
    %5366 = vmatprep.subr.mxu0 0.0
    %5367 = vmatpush1.msra.mxu0 0.0
    %5368 = vmatprep.subr.mxu0 0.0
    %5369 = vmatpush1.msra.mxu0 0.0
    %5370 = vmatprep.subr.mxu0 0.0
    %5371 = vmatpush1.msra.mxu0 %v64
    %5372 = vmatprep.subr.mxu0 0.0
    %5373 = vmatpush1.msra.mxu0 %v63
    %5374 = vmatprep.subr.mxu0 0.0
    %5375 = vmatpush1.msra.mxu0 %v62
    %5376 = vmatprep.subr.mxu0 0.0
    %5377 = vmatpush1.msra.mxu0 %v61
    %5378 = vmatprep.subr.mxu0 0.0
    %5379 = vmatpush2.msra.mxu0 0.0
    %5380 = vmatprep.subr.mxu0 0.0
    %5381 = vmatpush2.msra.mxu0 0.0
    %5382 = vmatprep.subr.mxu0 0.0
    %5383 = vmatpush2.msra.mxu0 0.0
    %5384 = vmatprep.subr.mxu0 0.0
    %5385 = vmatpush2.msra.mxu0 0.0
    %5386 = vmatprep.subr.mxu0 0.0
    %5387 = vmatpush2.msra.mxu0 0.0
    %5388 = vmatprep.subr.mxu0 0.0
    %5389 = vmatpush2.msra.mxu0 0.0
    %5390 = vmatprep.subr.mxu0 0.0
    %5391 = vmatpush2.msra.mxu0 0.0
    %5392 = vmatprep.subr.mxu0 0.0
    %5393 = vmatpush2.msra.mxu0 0.0
    %5394 = vmatprep.subr.mxu0 0.0
    %5395 = vmatpush2.msra.mxu0 0.0
    %5396 = vmatprep.subr.mxu0 0.0
    %5397 = vmatpush2.msra.mxu0 0.0
    %5398 = vmatprep.subr.mxu0 0.0
    %5399 = vmatpush2.msra.mxu0 0.0
    %5400 = vmatprep.subr.mxu0 0.0
    %5401 = vmatpush2.msra.mxu0 0.0
    %5402 = vmatprep.subr.mxu0 0.0
    %5403 = vmatpush2.msra.mxu0 0.0
    %5404 = vmatprep.subr.mxu0 0.0
    %5405 = vmatpush2.msra.mxu0 0.0
    %5406 = vmatprep.subr.mxu0 0.0
    %5407 = vmatpush2.msra.mxu0 0.0
    %5408 = vmatprep.subr.mxu0 0.0
    %5409 = vmatpush2.msra.mxu0 0.0
    %5410 = vmatprep.mubr.f32.mxu0 0.0
    %5411 = vmatmul.mubr.f32.gmra.mxu0 %v5245
    %v5412 = vpop.f32.mrf.mxu0
    %v5413 = vadd.f32 %v70, %v5412
    %v5414 = vpop.f32.mrf.mxu0
    %5415 = vdwg.mxu0
    %v5416 = vadd.f32 %v518, %v5413
    %v5417 = vxor.u32 %v5416, 2147483648
    %v5418 = vmul.f32 %v5417, 1.442695
    %v5419 = vpow.pop %v5418
    %v5420 = vadd.f32 %v5419, 1.0
    %v5421 = vrcp.pop %v5420
    %v5422 = vmul.f32 1.0, %v5421
    %5424 = vrot.lane.b32.xlu0 %v5413, 64
    %v5425 = vpop.permute.xlu0 %5424
    %v5427 = vmul.f32 %v5422, %v5425
    %5429 = vrot.lane.b32.xlu0 %v5427, 64
    %v5430 = vpop.permute.xlu0 %5429
    %v5432 = vadd.f32 %v518, %v5430
    %v5433 = vtanh.pop %v5432
    %v5434 = vsub.f32 1.0, %v5422
    %5436 = vrot.lane.b32.xlu0 %v5433, 96
    %v5437 = vpop.permute.xlu0 %5436
    %v5439 = vmul.f32 %v5434, %v5437
    %5440 = vrot.lane.b32.xlu0 %v5241, 32
    %v5441 = vpop.permute.xlu0 %5440
    %v5443 = vmul.f32 %v5422, %v5441
    %v5444 = vadd.f32 %v5439, %v5443
    %5446 = vrot.lane.b32.xlu0 %v5444, 96
    %v5447 = vpop.permute.xlu0 %5446
    %v5448 = vsel %vm258, %v5447, 0
    %5450 = vmatprep.subr.mxu0 0.0
    %5451 = vmatpush1.msra.mxu0 0.0
    %5452 = vmatprep.subr.mxu0 0.0
    %5453 = vmatpush1.msra.mxu0 0.0
    %5454 = vmatprep.subr.mxu0 0.0
    %5455 = vmatpush1.msra.mxu0 0.0
    %5456 = vmatprep.subr.mxu0 0.0
    %5457 = vmatpush1.msra.mxu0 0.0
    %5458 = vmatprep.subr.mxu0 0.0
    %5459 = vmatpush1.msra.mxu0 0.0
    %5460 = vmatprep.subr.mxu0 0.0
    %5461 = vmatpush1.msra.mxu0 0.0
    %5462 = vmatprep.subr.mxu0 0.0
    %5463 = vmatpush1.msra.mxu0 0.0
    %5464 = vmatprep.subr.mxu0 0.0
    %5465 = vmatpush1.msra.mxu0 0.0
    %5466 = vmatprep.subr.mxu0 0.0
    %5467 = vmatpush1.msra.mxu0 0.0
    %5468 = vmatprep.subr.mxu0 0.0
    %5469 = vmatpush1.msra.mxu0 0.0
    %5470 = vmatprep.subr.mxu0 0.0
    %5471 = vmatpush1.msra.mxu0 0.0
    %5472 = vmatprep.subr.mxu0 0.0
    %5473 = vmatpush1.msra.mxu0 0.0
    %5474 = vmatprep.subr.mxu0 0.0
    %5475 = vmatpush1.msra.mxu0 %v74
    %5476 = vmatprep.subr.mxu0 0.0
    %5477 = vmatpush1.msra.mxu0 %v73
    %5478 = vmatprep.subr.mxu0 0.0
    %5479 = vmatpush1.msra.mxu0 %v72
    %5480 = vmatprep.subr.mxu0 0.0
    %5481 = vmatpush1.msra.mxu0 %v71
    %5482 = vmatprep.subr.mxu0 0.0
    %5483 = vmatpush2.msra.mxu0 0.0
    %5484 = vmatprep.subr.mxu0 0.0
    %5485 = vmatpush2.msra.mxu0 0.0
    %5486 = vmatprep.subr.mxu0 0.0
    %5487 = vmatpush2.msra.mxu0 0.0
    %5488 = vmatprep.subr.mxu0 0.0
    %5489 = vmatpush2.msra.mxu0 0.0
    %5490 = vmatprep.subr.mxu0 0.0
    %5491 = vmatpush2.msra.mxu0 0.0
    %5492 = vmatprep.subr.mxu0 0.0
    %5493 = vmatpush2.msra.mxu0 0.0
    %5494 = vmatprep.subr.mxu0 0.0
    %5495 = vmatpush2.msra.mxu0 0.0
    %5496 = vmatprep.subr.mxu0 0.0
    %5497 = vmatpush2.msra.mxu0 0.0
    %5498 = vmatprep.subr.mxu0 0.0
    %5499 = vmatpush2.msra.mxu0 0.0
    %5500 = vmatprep.subr.mxu0 0.0
    %5501 = vmatpush2.msra.mxu0 0.0
    %5502 = vmatprep.subr.mxu0 0.0
    %5503 = vmatpush2.msra.mxu0 0.0
    %5504 = vmatprep.subr.mxu0 0.0
    %5505 = vmatpush2.msra.mxu0 0.0
    %5506 = vmatprep.subr.mxu0 0.0
    %5507 = vmatpush2.msra.mxu0 0.0
    %5508 = vmatprep.subr.mxu0 0.0
    %5509 = vmatpush2.msra.mxu0 0.0
    %5510 = vmatprep.subr.mxu0 0.0
    %5511 = vmatpush2.msra.mxu0 0.0
    %5512 = vmatprep.subr.mxu0 0.0
    %5513 = vmatpush2.msra.mxu0 0.0
    %5514 = vmatprep.mubr.f32.mxu0 0.0
    %5515 = vmatmul.mubr.f32.gmra.mxu0 %v5448
    %v5516 = vpop.f32.mrf.mxu0
    %v5517 = vadd.f32 0.0, %v5516
    %v5518 = vpop.f32.mrf.mxu0
    %5519 = vdwg.mxu0
    %v5520 = vmul.f32 %v5517, %v706
    %v5521 = vsel %vm708, %v5520, 0.0
    %5522 = vadd.xlane.f32.xlu0 %v5521
    %v5523 = vpop.xlane.xlu0 %5522
    %v5525 = vsel %vm708, %v5517, 0
    %5527 = vmatprep.subr.mxu0 0.0
    %5528 = vmatpush1.xpose.msra.mxu0 0.0
    %5529 = vmatprep.subr.mxu0 0.0
    %5530 = vmatpush1.xpose.msra.mxu0 0.0
    %5531 = vmatprep.subr.mxu0 0.0
    %5532 = vmatpush1.xpose.msra.mxu0 0.0
    %5533 = vmatprep.subr.mxu0 0.0
    %5534 = vmatpush1.xpose.msra.mxu0 0.0
    %5535 = vmatprep.subr.mxu0 0.0
    %5536 = vmatpush1.xpose.msra.mxu0 0.0
    %5537 = vmatprep.subr.mxu0 0.0
    %5538 = vmatpush1.xpose.msra.mxu0 0.0
    %5539 = vmatprep.subr.mxu0 0.0
    %5540 = vmatpush1.xpose.msra.mxu0 0.0
    %5541 = vmatprep.subr.mxu0 0.0
    %5542 = vmatpush1.xpose.msra.mxu0 0.0
    %5543 = vmatprep.subr.mxu0 0.0
    %5544 = vmatpush1.xpose.msra.mxu0 0.0
    %5545 = vmatprep.subr.mxu0 0.0
    %5546 = vmatpush1.xpose.msra.mxu0 0.0
    %5547 = vmatprep.subr.mxu0 0.0
    %5548 = vmatpush1.xpose.msra.mxu0 0.0
    %5549 = vmatprep.subr.mxu0 0.0
    %5550 = vmatpush1.xpose.msra.mxu0 0.0
    %5551 = vmatprep.subr.mxu0 0.0
    %5552 = vmatpush1.xpose.msra.mxu0 0.0
    %5553 = vmatprep.subr.mxu0 0.0
    %5554 = vmatpush1.xpose.msra.mxu0 0.0
    %5555 = vmatprep.subr.mxu0 0.0
    %5556 = vmatpush1.xpose.msra.mxu0 0.0
    %5557 = vmatprep.subr.mxu0 0.0
    %5558 = vmatpush1.xpose.msra.mxu0 %v5525
    %5559 = vmatprep.subr.mxu0 0.0
    %5560 = vmatpush2.xpose.msra.mxu0 0.0
    %5561 = vmatprep.subr.mxu0 0.0
    %5562 = vmatpush2.xpose.msra.mxu0 0.0
    %5563 = vmatprep.subr.mxu0 0.0
    %5564 = vmatpush2.xpose.msra.mxu0 0.0
    %5565 = vmatprep.subr.mxu0 0.0
    %5566 = vmatpush2.xpose.msra.mxu0 0.0
    %5567 = vmatprep.subr.mxu0 0.0
    %5568 = vmatpush2.xpose.msra.mxu0 0.0
    %5569 = vmatprep.subr.mxu0 0.0
    %5570 = vmatpush2.xpose.msra.mxu0 0.0
    %5571 = vmatprep.subr.mxu0 0.0
    %5572 = vmatpush2.xpose.msra.mxu0 0.0
    %5573 = vmatprep.subr.mxu0 0.0
    %5574 = vmatpush2.xpose.msra.mxu0 0.0
    %5575 = vmatprep.subr.mxu0 0.0
    %5576 = vmatpush2.xpose.msra.mxu0 0.0
    %5577 = vmatprep.subr.mxu0 0.0
    %5578 = vmatpush2.xpose.msra.mxu0 0.0
    %5579 = vmatprep.subr.mxu0 0.0
    %5580 = vmatpush2.xpose.msra.mxu0 0.0
    %5581 = vmatprep.subr.mxu0 0.0
    %5582 = vmatpush2.xpose.msra.mxu0 0.0
    %5583 = vmatprep.subr.mxu0 0.0
    %5584 = vmatpush2.xpose.msra.mxu0 0.0
    %5585 = vmatprep.subr.mxu0 0.0
    %5586 = vmatpush2.xpose.msra.mxu0 0.0
    %5587 = vmatprep.subr.mxu0 0.0
    %5588 = vmatpush2.xpose.msra.mxu0 0.0
    %5589 = vmatprep.subr.mxu0 0.0
    %5590 = vmatpush2.xpose.msra.mxu0 0.0
    %5591 = vmatprep.mubr.f32.mxu0 0.0
    %5592 = vmatmul.mubr.f32.gmra.mxu0 %v713
    %v5593 = vpop.f32.mrf.mxu0
    %v5594 = vadd.f32 0.0, %v5593
    %v5595 = vpop.f32.mrf.mxu0
    %5596 = vdwg.mxu0
    %v5597 = vlaneseq
    %v5598 = vshrl.u32 %v5597, 7
    %v5599 = vsub.s32 0, %v5598
    %v5600 = vrot.slane %v5594, %v5599
    %v5601 = vadd.f32 %v5523, %v5600
    %vm5602 = vcmp.gt.f32.partialorder %v5601, 0.0
    %v5603 = vmul.f32 %v5601, 0.2
    %v5604 = vsel %vm5602, %v5601, %v5603
    %v5605 = vsel %vm5345, %v5604, -9e+15
    %v5606 = vsel %vm797, %v5605, -inf
    %5607 = vmax.xlane.f32.xlu0 %v5606
    %v5608 = vpop.xlane.xlu0 %5607
    %v5609 = vsub.f32 %v5605, %v5608
    %v5610 = vmul.f32 %v5609, 1.442695
    %v5611 = vpow.pop %v5610
    %v5612 = vsel %vm797, %v5611, 0.0
    %5613 = vadd.xlane.f32.xlu0 %v5612
    %v5614 = vpop.xlane.xlu0 %5613
    %v5615 = vrcp.pop %v5614
    %v5616 = vmul.f32 %v5611, %v5615
    %v5618 = vsel %vm797, %v5616, 0
    %5620 = vmatprep.subr.mxu0 0.0
    %5621 = vmatpush1.msra.mxu0 0.0
    %5622 = vmatprep.subr.mxu0 0.0
    %5623 = vmatpush1.msra.mxu0 0.0
    %5624 = vmatprep.subr.mxu0 0.0
    %5625 = vmatpush1.msra.mxu0 0.0
    %5626 = vmatprep.subr.mxu0 0.0
    %5627 = vmatpush1.msra.mxu0 0.0
    %5628 = vmatprep.subr.mxu0 0.0
    %5629 = vmatpush1.msra.mxu0 0.0
    %5630 = vmatprep.subr.mxu0 0.0
    %5631 = vmatpush1.msra.mxu0 0.0
    %5632 = vmatprep.subr.mxu0 0.0
    %5633 = vmatpush1.msra.mxu0 0.0
    %5634 = vmatprep.subr.mxu0 0.0
    %5635 = vmatpush1.msra.mxu0 0.0
    %5636 = vmatprep.subr.mxu0 0.0
    %5637 = vmatpush1.msra.mxu0 0.0
    %5638 = vmatprep.subr.mxu0 0.0
    %5639 = vmatpush1.msra.mxu0 0.0
    %5640 = vmatprep.subr.mxu0 0.0
    %5641 = vmatpush1.msra.mxu0 0.0
    %5642 = vmatprep.subr.mxu0 0.0
    %5643 = vmatpush1.msra.mxu0 0.0
    %5644 = vmatprep.subr.mxu0 0.0
    %5645 = vmatpush1.msra.mxu0 0.0
    %5646 = vmatprep.subr.mxu0 0.0
    %5647 = vmatpush1.msra.mxu0 0.0
    %5648 = vmatprep.subr.mxu0 0.0
    %5649 = vmatpush1.msra.mxu0 0.0
    %5650 = vmatprep.subr.mxu0 0.0
    %5651 = vmatpush1.msra.mxu0 %v5517
    %5652 = vmatprep.subr.mxu0 0.0
    %5653 = vmatpush2.msra.mxu0 0.0
    %5654 = vmatprep.subr.mxu0 0.0
    %5655 = vmatpush2.msra.mxu0 0.0
    %5656 = vmatprep.subr.mxu0 0.0
    %5657 = vmatpush2.msra.mxu0 0.0
    %5658 = vmatprep.subr.mxu0 0.0
    %5659 = vmatpush2.msra.mxu0 0.0
    %5660 = vmatprep.subr.mxu0 0.0
    %5661 = vmatpush2.msra.mxu0 0.0
    %5662 = vmatprep.subr.mxu0 0.0
    %5663 = vmatpush2.msra.mxu0 0.0
    %5664 = vmatprep.subr.mxu0 0.0
    %5665 = vmatpush2.msra.mxu0 0.0
    %5666 = vmatprep.subr.mxu0 0.0
    %5667 = vmatpush2.msra.mxu0 0.0
    %5668 = vmatprep.subr.mxu0 0.0
    %5669 = vmatpush2.msra.mxu0 0.0
    %5670 = vmatprep.subr.mxu0 0.0
    %5671 = vmatpush2.msra.mxu0 0.0
    %5672 = vmatprep.subr.mxu0 0.0
    %5673 = vmatpush2.msra.mxu0 0.0
    %5674 = vmatprep.subr.mxu0 0.0
    %5675 = vmatpush2.msra.mxu0 0.0
    %5676 = vmatprep.subr.mxu0 0.0
    %5677 = vmatpush2.msra.mxu0 0.0
    %5678 = vmatprep.subr.mxu0 0.0
    %5679 = vmatpush2.msra.mxu0 0.0
    %5680 = vmatprep.subr.mxu0 0.0
    %5681 = vmatpush2.msra.mxu0 0.0
    %5682 = vmatprep.subr.mxu0 0.0
    %5683 = vmatpush2.msra.mxu0 0.0
    %5684 = vmatprep.mubr.f32.mxu0 0.0
    %5685 = vmatmul.mubr.f32.gmra.mxu0 %v5618
    %v5686 = vpop.f32.mrf.mxu0
    %v5687 = vadd.f32 0.0, %v5686
    %v5688 = vpop.f32.mrf.mxu0
    %5689 = vdwg.mxu0
    %vm5690 = vcmp.gt.f32.partialorder %v5687, 0.0
    %v5691 = vmul.f32 %v5687, 1.442695
    %v5692 = vpow.pop %v5691
    %v5693 = vsub.f32 %v5692, 1.0
    %v5694 = vsel %vm5690, %v5687, %v5693
    %5696 = vrot.lane.b32.xlu0 %v5520, 112
    %v5697 = vpop.permute.xlu0 %5696
    %v5699 = vsel %vm708, %v5697, 0.0
    %5700 = vadd.xlane.f32.xlu0 %v5699
    %v5701 = vpop.xlane.xlu0 %5700
    %5702 = vrot.lane.b32.xlu0 %v5517, 112
    %v5703 = vpop.permute.xlu0 %5702
    %v5704 = vsel %vm708, %v5703, 0
    %5706 = vmatprep.subr.mxu0 0.0
    %5707 = vmatpush1.xpose.msra.mxu0 0.0
    %5708 = vmatprep.subr.mxu0 0.0
    %5709 = vmatpush1.xpose.msra.mxu0 0.0
    %5710 = vmatprep.subr.mxu0 0.0
    %5711 = vmatpush1.xpose.msra.mxu0 0.0
    %5712 = vmatprep.subr.mxu0 0.0
    %5713 = vmatpush1.xpose.msra.mxu0 0.0
    %5714 = vmatprep.subr.mxu0 0.0
    %5715 = vmatpush1.xpose.msra.mxu0 0.0
    %5716 = vmatprep.subr.mxu0 0.0
    %5717 = vmatpush1.xpose.msra.mxu0 0.0
    %5718 = vmatprep.subr.mxu0 0.0
    %5719 = vmatpush1.xpose.msra.mxu0 0.0
    %5720 = vmatprep.subr.mxu0 0.0
    %5721 = vmatpush1.xpose.msra.mxu0 0.0
    %5722 = vmatprep.subr.mxu0 0.0
    %5723 = vmatpush1.xpose.msra.mxu0 0.0
    %5724 = vmatprep.subr.mxu0 0.0
    %5725 = vmatpush1.xpose.msra.mxu0 0.0
    %5726 = vmatprep.subr.mxu0 0.0
    %5727 = vmatpush1.xpose.msra.mxu0 0.0
    %5728 = vmatprep.subr.mxu0 0.0
    %5729 = vmatpush1.xpose.msra.mxu0 0.0
    %5730 = vmatprep.subr.mxu0 0.0
    %5731 = vmatpush1.xpose.msra.mxu0 0.0
    %5732 = vmatprep.subr.mxu0 0.0
    %5733 = vmatpush1.xpose.msra.mxu0 0.0
    %5734 = vmatprep.subr.mxu0 0.0
    %5735 = vmatpush1.xpose.msra.mxu0 0.0
    %5736 = vmatprep.subr.mxu0 0.0
    %5737 = vmatpush1.xpose.msra.mxu0 %v5704
    %5738 = vmatprep.subr.mxu0 0.0
    %5739 = vmatpush2.xpose.msra.mxu0 0.0
    %5740 = vmatprep.subr.mxu0 0.0
    %5741 = vmatpush2.xpose.msra.mxu0 0.0
    %5742 = vmatprep.subr.mxu0 0.0
    %5743 = vmatpush2.xpose.msra.mxu0 0.0
    %5744 = vmatprep.subr.mxu0 0.0
    %5745 = vmatpush2.xpose.msra.mxu0 0.0
    %5746 = vmatprep.subr.mxu0 0.0
    %5747 = vmatpush2.xpose.msra.mxu0 0.0
    %5748 = vmatprep.subr.mxu0 0.0
    %5749 = vmatpush2.xpose.msra.mxu0 0.0
    %5750 = vmatprep.subr.mxu0 0.0
    %5751 = vmatpush2.xpose.msra.mxu0 0.0
    %5752 = vmatprep.subr.mxu0 0.0
    %5753 = vmatpush2.xpose.msra.mxu0 0.0
    %5754 = vmatprep.subr.mxu0 0.0
    %5755 = vmatpush2.xpose.msra.mxu0 0.0
    %5756 = vmatprep.subr.mxu0 0.0
    %5757 = vmatpush2.xpose.msra.mxu0 0.0
    %5758 = vmatprep.subr.mxu0 0.0
    %5759 = vmatpush2.xpose.msra.mxu0 0.0
    %5760 = vmatprep.subr.mxu0 0.0
    %5761 = vmatpush2.xpose.msra.mxu0 0.0
    %5762 = vmatprep.subr.mxu0 0.0
    %5763 = vmatpush2.xpose.msra.mxu0 0.0
    %5764 = vmatprep.subr.mxu0 0.0
    %5765 = vmatpush2.xpose.msra.mxu0 0.0
    %5766 = vmatprep.subr.mxu0 0.0
    %5767 = vmatpush2.xpose.msra.mxu0 0.0
    %5768 = vmatprep.subr.mxu0 0.0
    %5769 = vmatpush2.xpose.msra.mxu0 0.0
    %5770 = vmatprep.mubr.f32.mxu0 0.0
    %5771 = vmatmul.mubr.f32.gmra.mxu0 %v898
    %v5772 = vpop.f32.mrf.mxu0
    %v5773 = vadd.f32 0.0, %v5772
    %v5774 = vpop.f32.mrf.mxu0
    %5775 = vdwg.mxu0
    %v5776 = vlaneseq
    %v5777 = vshrl.u32 %v5776, 7
    %v5778 = vsub.s32 0, %v5777
    %v5779 = vrot.slane %v5773, %v5778
    %v5780 = vadd.f32 %v5701, %v5779
    %vm5781 = vcmp.gt.f32.partialorder %v5780, 0.0
    %v5782 = vmul.f32 %v5780, 0.2
    %v5783 = vsel %vm5781, %v5780, %v5782
    %v5784 = vsel %vm5345, %v5783, -9e+15
    %v5785 = vsel %vm797, %v5784, -inf
    %5786 = vmax.xlane.f32.xlu0 %v5785
    %v5787 = vpop.xlane.xlu0 %5786
    %v5788 = vsub.f32 %v5784, %v5787
    %v5789 = vmul.f32 %v5788, 1.442695
    %v5790 = vpow.pop %v5789
    %v5791 = vsel %vm797, %v5790, 0.0
    %5792 = vadd.xlane.f32.xlu0 %v5791
    %v5793 = vpop.xlane.xlu0 %5792
    %v5794 = vrcp.pop %v5793
    %v5795 = vmul.f32 %v5790, %v5794
    %v5798 = vsel %vm797, %v5795, 0
    %5800 = vmatprep.subr.mxu0 0.0
    %5801 = vmatpush1.msra.mxu0 0.0
    %5802 = vmatprep.subr.mxu0 0.0
    %5803 = vmatpush1.msra.mxu0 0.0
    %5804 = vmatprep.subr.mxu0 0.0
    %5805 = vmatpush1.msra.mxu0 0.0
    %5806 = vmatprep.subr.mxu0 0.0
    %5807 = vmatpush1.msra.mxu0 0.0
    %5808 = vmatprep.subr.mxu0 0.0
    %5809 = vmatpush1.msra.mxu0 0.0
    %5810 = vmatprep.subr.mxu0 0.0
    %5811 = vmatpush1.msra.mxu0 0.0
    %5812 = vmatprep.subr.mxu0 0.0
    %5813 = vmatpush1.msra.mxu0 0.0
    %5814 = vmatprep.subr.mxu0 0.0
    %5815 = vmatpush1.msra.mxu0 0.0
    %5816 = vmatprep.subr.mxu0 0.0
    %5817 = vmatpush1.msra.mxu0 0.0
    %5818 = vmatprep.subr.mxu0 0.0
    %5819 = vmatpush1.msra.mxu0 0.0
    %5820 = vmatprep.subr.mxu0 0.0
    %5821 = vmatpush1.msra.mxu0 0.0
    %5822 = vmatprep.subr.mxu0 0.0
    %5823 = vmatpush1.msra.mxu0 0.0
    %5824 = vmatprep.subr.mxu0 0.0
    %5825 = vmatpush1.msra.mxu0 0.0
    %5826 = vmatprep.subr.mxu0 0.0
    %5827 = vmatpush1.msra.mxu0 0.0
    %5828 = vmatprep.subr.mxu0 0.0
    %5829 = vmatpush1.msra.mxu0 0.0
    %5830 = vmatprep.subr.mxu0 0.0
    %5831 = vmatpush1.msra.mxu0 %v5703
    %5832 = vmatprep.subr.mxu0 0.0
    %5833 = vmatpush2.msra.mxu0 0.0
    %5834 = vmatprep.subr.mxu0 0.0
    %5835 = vmatpush2.msra.mxu0 0.0
    %5836 = vmatprep.subr.mxu0 0.0
    %5837 = vmatpush2.msra.mxu0 0.0
    %5838 = vmatprep.subr.mxu0 0.0
    %5839 = vmatpush2.msra.mxu0 0.0
    %5840 = vmatprep.subr.mxu0 0.0
    %5841 = vmatpush2.msra.mxu0 0.0
    %5842 = vmatprep.subr.mxu0 0.0
    %5843 = vmatpush2.msra.mxu0 0.0
    %5844 = vmatprep.subr.mxu0 0.0
    %5845 = vmatpush2.msra.mxu0 0.0
    %5846 = vmatprep.subr.mxu0 0.0
    %5847 = vmatpush2.msra.mxu0 0.0
    %5848 = vmatprep.subr.mxu0 0.0
    %5849 = vmatpush2.msra.mxu0 0.0
    %5850 = vmatprep.subr.mxu0 0.0
    %5851 = vmatpush2.msra.mxu0 0.0
    %5852 = vmatprep.subr.mxu0 0.0
    %5853 = vmatpush2.msra.mxu0 0.0
    %5854 = vmatprep.subr.mxu0 0.0
    %5855 = vmatpush2.msra.mxu0 0.0
    %5856 = vmatprep.subr.mxu0 0.0
    %5857 = vmatpush2.msra.mxu0 0.0
    %5858 = vmatprep.subr.mxu0 0.0
    %5859 = vmatpush2.msra.mxu0 0.0
    %5860 = vmatprep.subr.mxu0 0.0
    %5861 = vmatpush2.msra.mxu0 0.0
    %5862 = vmatprep.subr.mxu0 0.0
    %5863 = vmatpush2.msra.mxu0 0.0
    %5864 = vmatprep.mubr.f32.mxu0 0.0
    %5865 = vmatmul.mubr.f32.gmra.mxu0 %v5798
    %v5866 = vpop.f32.mrf.mxu0
    %v5867 = vadd.f32 0.0, %v5866
    %v5868 = vpop.f32.mrf.mxu0
    %5869 = vdwg.mxu0
    %vm5870 = vcmp.gt.f32.partialorder %v5867, 0.0
    %v5871 = vmul.f32 %v5867, 1.442695
    %v5872 = vpow.pop %v5871
    %v5873 = vsub.f32 %v5872, 1.0
    %v5874 = vsel %vm5870, %v5867, %v5873
    %5876 = vrot.lane.b32.xlu0 %v5874, 16
    %v5877 = vpop.permute.xlu0 %5876
    %v5879 = vsel %vm708, %v5694, %v5877
    %v5881 = vsel %vm258, %v5879, 0
    %5883 = vmatprep.subr.mxu0 0.0
    %5884 = vmatpush1.msra.mxu0 0.0
    %5885 = vmatprep.subr.mxu0 0.0
    %5886 = vmatpush1.msra.mxu0 0.0
    %5887 = vmatprep.subr.mxu0 0.0
    %5888 = vmatpush1.msra.mxu0 0.0
    %5889 = vmatprep.subr.mxu0 0.0
    %5890 = vmatpush1.msra.mxu0 0.0
    %5891 = vmatprep.subr.mxu0 0.0
    %5892 = vmatpush1.msra.mxu0 0.0
    %5893 = vmatprep.subr.mxu0 0.0
    %5894 = vmatpush1.msra.mxu0 0.0
    %5895 = vmatprep.subr.mxu0 0.0
    %5896 = vmatpush1.msra.mxu0 0.0
    %5897 = vmatprep.subr.mxu0 0.0
    %5898 = vmatpush1.msra.mxu0 0.0
    %5899 = vmatprep.subr.mxu0 0.0
    %5900 = vmatpush1.msra.mxu0 0.0
    %5901 = vmatprep.subr.mxu0 0.0
    %5902 = vmatpush1.msra.mxu0 0.0
    %5903 = vmatprep.subr.mxu0 0.0
    %5904 = vmatpush1.msra.mxu0 0.0
    %5905 = vmatprep.subr.mxu0 0.0
    %5906 = vmatpush1.msra.mxu0 0.0
    %5907 = vmatprep.subr.mxu0 0.0
    %5908 = vmatpush1.msra.mxu0 %v80
    %5909 = vmatprep.subr.mxu0 0.0
    %5910 = vmatpush1.msra.mxu0 %v79
    %5911 = vmatprep.subr.mxu0 0.0
    %5912 = vmatpush1.msra.mxu0 %v78
    %5913 = vmatprep.subr.mxu0 0.0
    %5914 = vmatpush1.msra.mxu0 %v77
    %5915 = vmatprep.subr.mxu0 0.0
    %5916 = vmatpush2.msra.mxu0 0.0
    %5917 = vmatprep.subr.mxu0 0.0
    %5918 = vmatpush2.msra.mxu0 0.0
    %5919 = vmatprep.subr.mxu0 0.0
    %5920 = vmatpush2.msra.mxu0 0.0
    %5921 = vmatprep.subr.mxu0 0.0
    %5922 = vmatpush2.msra.mxu0 0.0
    %5923 = vmatprep.subr.mxu0 0.0
    %5924 = vmatpush2.msra.mxu0 0.0
    %5925 = vmatprep.subr.mxu0 0.0
    %5926 = vmatpush2.msra.mxu0 0.0
    %5927 = vmatprep.subr.mxu0 0.0
    %5928 = vmatpush2.msra.mxu0 0.0
    %5929 = vmatprep.subr.mxu0 0.0
    %5930 = vmatpush2.msra.mxu0 0.0
    %5931 = vmatprep.subr.mxu0 0.0
    %5932 = vmatpush2.msra.mxu0 0.0
    %5933 = vmatprep.subr.mxu0 0.0
    %5934 = vmatpush2.msra.mxu0 0.0
    %5935 = vmatprep.subr.mxu0 0.0
    %5936 = vmatpush2.msra.mxu0 0.0
    %5937 = vmatprep.subr.mxu0 0.0
    %5938 = vmatpush2.msra.mxu0 0.0
    %5939 = vmatprep.subr.mxu0 0.0
    %5940 = vmatpush2.msra.mxu0 0.0
    %5941 = vmatprep.subr.mxu0 0.0
    %5942 = vmatpush2.msra.mxu0 0.0
    %5943 = vmatprep.subr.mxu0 0.0
    %5944 = vmatpush2.msra.mxu0 0.0
    %5945 = vmatprep.subr.mxu0 0.0
    %5946 = vmatpush2.msra.mxu0 0.0
    %5947 = vmatprep.mubr.f32.mxu0 0.0
    %5948 = vmatmul.mubr.f32.gmra.mxu0 %v5881
    %v5949 = vpop.f32.mrf.mxu0
    %v5950 = vadd.f32 0.0, %v5949
    %v5951 = vpop.f32.mrf.mxu0
    %5952 = vdwg.mxu0
    %v5953 = vmul.f32 %v5950, %v1152
    %v5954 = vsel %vm258, %v5953, 0.0
    %5955 = vadd.xlane.f32.xlu0 %v5954
    %v5956 = vpop.xlane.xlu0 %5955
    %v5958 = vsel %vm258, %v5950, 0
    %5960 = vmatprep.subr.mxu0 0.0
    %5961 = vmatpush1.xpose.msra.mxu0 0.0
    %5962 = vmatprep.subr.mxu0 0.0
    %5963 = vmatpush1.xpose.msra.mxu0 0.0
    %5964 = vmatprep.subr.mxu0 0.0
    %5965 = vmatpush1.xpose.msra.mxu0 0.0
    %5966 = vmatprep.subr.mxu0 0.0
    %5967 = vmatpush1.xpose.msra.mxu0 0.0
    %5968 = vmatprep.subr.mxu0 0.0
    %5969 = vmatpush1.xpose.msra.mxu0 0.0
    %5970 = vmatprep.subr.mxu0 0.0
    %5971 = vmatpush1.xpose.msra.mxu0 0.0
    %5972 = vmatprep.subr.mxu0 0.0
    %5973 = vmatpush1.xpose.msra.mxu0 0.0
    %5974 = vmatprep.subr.mxu0 0.0
    %5975 = vmatpush1.xpose.msra.mxu0 0.0
    %5976 = vmatprep.subr.mxu0 0.0
    %5977 = vmatpush1.xpose.msra.mxu0 0.0
    %5978 = vmatprep.subr.mxu0 0.0
    %5979 = vmatpush1.xpose.msra.mxu0 0.0
    %5980 = vmatprep.subr.mxu0 0.0
    %5981 = vmatpush1.xpose.msra.mxu0 0.0
    %5982 = vmatprep.subr.mxu0 0.0
    %5983 = vmatpush1.xpose.msra.mxu0 0.0
    %5984 = vmatprep.subr.mxu0 0.0
    %5985 = vmatpush1.xpose.msra.mxu0 0.0
    %5986 = vmatprep.subr.mxu0 0.0
    %5987 = vmatpush1.xpose.msra.mxu0 0.0
    %5988 = vmatprep.subr.mxu0 0.0
    %5989 = vmatpush1.xpose.msra.mxu0 0.0
    %5990 = vmatprep.subr.mxu0 0.0
    %5991 = vmatpush1.xpose.msra.mxu0 %v5958
    %5992 = vmatprep.subr.mxu0 0.0
    %5993 = vmatpush2.xpose.msra.mxu0 0.0
    %5994 = vmatprep.subr.mxu0 0.0
    %5995 = vmatpush2.xpose.msra.mxu0 0.0
    %5996 = vmatprep.subr.mxu0 0.0
    %5997 = vmatpush2.xpose.msra.mxu0 0.0
    %5998 = vmatprep.subr.mxu0 0.0
    %5999 = vmatpush2.xpose.msra.mxu0 0.0
    %6000 = vmatprep.subr.mxu0 0.0
    %6001 = vmatpush2.xpose.msra.mxu0 0.0
    %6002 = vmatprep.subr.mxu0 0.0
    %6003 = vmatpush2.xpose.msra.mxu0 0.0
    %6004 = vmatprep.subr.mxu0 0.0
    %6005 = vmatpush2.xpose.msra.mxu0 0.0
    %6006 = vmatprep.subr.mxu0 0.0
    %6007 = vmatpush2.xpose.msra.mxu0 0.0
    %6008 = vmatprep.subr.mxu0 0.0
    %6009 = vmatpush2.xpose.msra.mxu0 0.0
    %6010 = vmatprep.subr.mxu0 0.0
    %6011 = vmatpush2.xpose.msra.mxu0 0.0
    %6012 = vmatprep.subr.mxu0 0.0
    %6013 = vmatpush2.xpose.msra.mxu0 0.0
    %6014 = vmatprep.subr.mxu0 0.0
    %6015 = vmatpush2.xpose.msra.mxu0 0.0
    %6016 = vmatprep.subr.mxu0 0.0
    %6017 = vmatpush2.xpose.msra.mxu0 0.0
    %6018 = vmatprep.subr.mxu0 0.0
    %6019 = vmatpush2.xpose.msra.mxu0 0.0
    %6020 = vmatprep.subr.mxu0 0.0
    %6021 = vmatpush2.xpose.msra.mxu0 0.0
    %6022 = vmatprep.subr.mxu0 0.0
    %6023 = vmatpush2.xpose.msra.mxu0 0.0
    %6024 = vmatprep.mubr.f32.mxu0 0.0
    %6025 = vmatmul.mubr.f32.gmra.mxu0 %v1158
    %v6026 = vpop.f32.mrf.mxu0
    %v6027 = vadd.f32 0.0, %v6026
    %v6028 = vpop.f32.mrf.mxu0
    %6029 = vdwg.mxu0
    %v6030 = vlaneseq
    %v6031 = vshrl.u32 %v6030, 7
    %v6032 = vsub.s32 0, %v6031
    %v6033 = vrot.slane %v6027, %v6032
    %v6034 = vadd.f32 %v5956, %v6033
    %vm6035 = vcmp.gt.f32.partialorder %v6034, 0.0
    %v6036 = vmul.f32 %v6034, 0.2
    %v6037 = vsel %vm6035, %v6034, %v6036
    %v6038 = vsel %vm5345, %v6037, -9e+15
    %v6039 = vsel %vm797, %v6038, -inf
    %6040 = vmax.xlane.f32.xlu0 %v6039
    %v6041 = vpop.xlane.xlu0 %6040
    %v6042 = vsub.f32 %v6038, %v6041
    %v6043 = vmul.f32 %v6042, 1.442695
    %v6044 = vpow.pop %v6043
    %v6045 = vsel %vm797, %v6044, 0.0
    %6046 = vadd.xlane.f32.xlu0 %v6045
    %v6047 = vpop.xlane.xlu0 %6046
    %v6048 = vrcp.pop %v6047
    %v6049 = vmul.f32 %v6044, %v6048
    %v6051 = vsel %vm797, %v6049, 0
    %6053 = vmatprep.subr.mxu0 0.0
    %6054 = vmatpush1.msra.mxu0 0.0
    %6055 = vmatprep.subr.mxu0 0.0
    %6056 = vmatpush1.msra.mxu0 0.0
    %6057 = vmatprep.subr.mxu0 0.0
    %6058 = vmatpush1.msra.mxu0 0.0
    %6059 = vmatprep.subr.mxu0 0.0
    %6060 = vmatpush1.msra.mxu0 0.0
    %6061 = vmatprep.subr.mxu0 0.0
    %6062 = vmatpush1.msra.mxu0 0.0
    %6063 = vmatprep.subr.mxu0 0.0
    %6064 = vmatpush1.msra.mxu0 0.0
    %6065 = vmatprep.subr.mxu0 0.0
    %6066 = vmatpush1.msra.mxu0 0.0
    %6067 = vmatprep.subr.mxu0 0.0
    %6068 = vmatpush1.msra.mxu0 0.0
    %6069 = vmatprep.subr.mxu0 0.0
    %6070 = vmatpush1.msra.mxu0 0.0
    %6071 = vmatprep.subr.mxu0 0.0
    %6072 = vmatpush1.msra.mxu0 0.0
    %6073 = vmatprep.subr.mxu0 0.0
    %6074 = vmatpush1.msra.mxu0 0.0
    %6075 = vmatprep.subr.mxu0 0.0
    %6076 = vmatpush1.msra.mxu0 0.0
    %6077 = vmatprep.subr.mxu0 0.0
    %6078 = vmatpush1.msra.mxu0 0.0
    %6079 = vmatprep.subr.mxu0 0.0
    %6080 = vmatpush1.msra.mxu0 0.0
    %6081 = vmatprep.subr.mxu0 0.0
    %6082 = vmatpush1.msra.mxu0 0.0
    %6083 = vmatprep.subr.mxu0 0.0
    %6084 = vmatpush1.msra.mxu0 %v5950
    %6085 = vmatprep.subr.mxu0 0.0
    %6086 = vmatpush2.msra.mxu0 0.0
    %6087 = vmatprep.subr.mxu0 0.0
    %6088 = vmatpush2.msra.mxu0 0.0
    %6089 = vmatprep.subr.mxu0 0.0
    %6090 = vmatpush2.msra.mxu0 0.0
    %6091 = vmatprep.subr.mxu0 0.0
    %6092 = vmatpush2.msra.mxu0 0.0
    %6093 = vmatprep.subr.mxu0 0.0
    %6094 = vmatpush2.msra.mxu0 0.0
    %6095 = vmatprep.subr.mxu0 0.0
    %6096 = vmatpush2.msra.mxu0 0.0
    %6097 = vmatprep.subr.mxu0 0.0
    %6098 = vmatpush2.msra.mxu0 0.0
    %6099 = vmatprep.subr.mxu0 0.0
    %6100 = vmatpush2.msra.mxu0 0.0
    %6101 = vmatprep.subr.mxu0 0.0
    %6102 = vmatpush2.msra.mxu0 0.0
    %6103 = vmatprep.subr.mxu0 0.0
    %6104 = vmatpush2.msra.mxu0 0.0
    %6105 = vmatprep.subr.mxu0 0.0
    %6106 = vmatpush2.msra.mxu0 0.0
    %6107 = vmatprep.subr.mxu0 0.0
    %6108 = vmatpush2.msra.mxu0 0.0
    %6109 = vmatprep.subr.mxu0 0.0
    %6110 = vmatpush2.msra.mxu0 0.0
    %6111 = vmatprep.subr.mxu0 0.0
    %6112 = vmatpush2.msra.mxu0 0.0
    %6113 = vmatprep.subr.mxu0 0.0
    %6114 = vmatpush2.msra.mxu0 0.0
    %6115 = vmatprep.subr.mxu0 0.0
    %6116 = vmatpush2.msra.mxu0 0.0
    %6117 = vmatprep.mubr.f32.mxu0 0.0
    %6118 = vmatmul.mubr.f32.gmra.mxu0 %v6051
    %v6119 = vpop.f32.mrf.mxu0
    %v6120 = vadd.f32 0.0, %v6119
    %v6121 = vpop.f32.mrf.mxu0
    %6122 = vdwg.mxu0
    %vm6123 = vcmp.gt.f32.partialorder %v6120, 0.0
    %v6124 = vmul.f32 %v6120, 1.442695
    %v6125 = vpow.pop %v6124
    %v6126 = vsub.f32 %v6125, 1.0
    %v6127 = vsel %vm6123, %v6120, %v6126
    %v6128 = vsel %vm258, %v6127, %v5444
    %v6130 = vsel %vm1335, %v6128, 0
    %6132 = vmatprep.subr.mxu0 0.0
    %6133 = vmatpush1.msra.mxu0 0.0
    %6134 = vmatprep.subr.mxu0 0.0
    %6135 = vmatpush1.msra.mxu0 0.0
    %6136 = vmatprep.subr.mxu0 0.0
    %6137 = vmatpush1.msra.mxu0 0.0
    %6138 = vmatprep.subr.mxu0 0.0
    %6139 = vmatpush1.msra.mxu0 0.0
    %6140 = vmatprep.subr.mxu0 0.0
    %6141 = vmatpush1.msra.mxu0 0.0
    %6142 = vmatprep.subr.mxu0 0.0
    %6143 = vmatpush1.msra.mxu0 0.0
    %6144 = vmatprep.subr.mxu0 0.0
    %6145 = vmatpush1.msra.mxu0 0.0
    %6146 = vmatprep.subr.mxu0 0.0
    %6147 = vmatpush1.msra.mxu0 0.0
    %6148 = vmatprep.subr.mxu0 0.0
    %6149 = vmatpush1.msra.mxu0 %v90
    %6150 = vmatprep.subr.mxu0 0.0
    %6151 = vmatpush1.msra.mxu0 %v89
    %6152 = vmatprep.subr.mxu0 0.0
    %6153 = vmatpush1.msra.mxu0 %v88
    %6154 = vmatprep.subr.mxu0 0.0
    %6155 = vmatpush1.msra.mxu0 %v87
    %6156 = vmatprep.subr.mxu0 0.0
    %6157 = vmatpush1.msra.mxu0 %v86
    %6158 = vmatprep.subr.mxu0 0.0
    %6159 = vmatpush1.msra.mxu0 %v85
    %6160 = vmatprep.subr.mxu0 0.0
    %6161 = vmatpush1.msra.mxu0 %v84
    %6162 = vmatprep.subr.mxu0 0.0
    %6163 = vmatpush1.msra.mxu0 %v83
    %6164 = vmatprep.subr.mxu0 0.0
    %6165 = vmatpush2.msra.mxu0 0.0
    %6166 = vmatprep.subr.mxu0 0.0
    %6167 = vmatpush2.msra.mxu0 0.0
    %6168 = vmatprep.subr.mxu0 0.0
    %6169 = vmatpush2.msra.mxu0 0.0
    %6170 = vmatprep.subr.mxu0 0.0
    %6171 = vmatpush2.msra.mxu0 0.0
    %6172 = vmatprep.subr.mxu0 0.0
    %6173 = vmatpush2.msra.mxu0 0.0
    %6174 = vmatprep.subr.mxu0 0.0
    %6175 = vmatpush2.msra.mxu0 0.0
    %6176 = vmatprep.subr.mxu0 0.0
    %6177 = vmatpush2.msra.mxu0 0.0
    %6178 = vmatprep.subr.mxu0 0.0
    %6179 = vmatpush2.msra.mxu0 0.0
    %6180 = vmatprep.subr.mxu0 0.0
    %6181 = vmatpush2.msra.mxu0 0.0
    %6182 = vmatprep.subr.mxu0 0.0
    %6183 = vmatpush2.msra.mxu0 0.0
    %6184 = vmatprep.subr.mxu0 0.0
    %6185 = vmatpush2.msra.mxu0 0.0
    %6186 = vmatprep.subr.mxu0 0.0
    %6187 = vmatpush2.msra.mxu0 0.0
    %6188 = vmatprep.subr.mxu0 0.0
    %6189 = vmatpush2.msra.mxu0 0.0
    %6190 = vmatprep.subr.mxu0 0.0
    %6191 = vmatpush2.msra.mxu0 0.0
    %6192 = vmatprep.subr.mxu0 0.0
    %6193 = vmatpush2.msra.mxu0 0.0
    %6194 = vmatprep.subr.mxu0 0.0
    %6195 = vmatpush2.msra.mxu0 0.0
    %6196 = vmatprep.mubr.f32.mxu0 0.0
    %6197 = vmatmul.mubr.f32.gmra.mxu0 %v6130
    %v6198 = vpop.f32.mrf.mxu0
    %v6199 = vadd.f32 %v1333, %v6198
    %v6200 = vpop.f32.mrf.mxu0
    %6201 = vdwg.mxu0
    %v6203 = vsel %vm258, %v6199, 0
    %6205 = vmatprep.subr.mxu0 0.0
    %6206 = vmatpush1.msra.mxu0 0.0
    %6207 = vmatprep.subr.mxu0 0.0
    %6208 = vmatpush1.msra.mxu0 0.0
    %6209 = vmatprep.subr.mxu0 0.0
    %6210 = vmatpush1.msra.mxu0 0.0
    %6211 = vmatprep.subr.mxu0 0.0
    %6212 = vmatpush1.msra.mxu0 0.0
    %6213 = vmatprep.subr.mxu0 0.0
    %6214 = vmatpush1.msra.mxu0 0.0
    %6215 = vmatprep.subr.mxu0 0.0
    %6216 = vmatpush1.msra.mxu0 0.0
    %6217 = vmatprep.subr.mxu0 0.0
    %6218 = vmatpush1.msra.mxu0 0.0
    %6219 = vmatprep.subr.mxu0 0.0
    %6220 = vmatpush1.msra.mxu0 0.0
    %6221 = vmatprep.subr.mxu0 0.0
    %6222 = vmatpush1.msra.mxu0 0.0
    %6223 = vmatprep.subr.mxu0 0.0
    %6224 = vmatpush1.msra.mxu0 0.0
    %6225 = vmatprep.subr.mxu0 0.0
    %6226 = vmatpush1.msra.mxu0 0.0
    %6227 = vmatprep.subr.mxu0 0.0
    %6228 = vmatpush1.msra.mxu0 0.0
    %6229 = vmatprep.subr.mxu0 0.0
    %6230 = vmatpush1.msra.mxu0 %v94
    %6231 = vmatprep.subr.mxu0 0.0
    %6232 = vmatpush1.msra.mxu0 %v93
    %6233 = vmatprep.subr.mxu0 0.0
    %6234 = vmatpush1.msra.mxu0 %v92
    %6235 = vmatprep.subr.mxu0 0.0
    %6236 = vmatpush1.msra.mxu0 %v91
    %6237 = vmatprep.subr.mxu0 0.0
    %6238 = vmatpush2.msra.mxu0 0.0
    %6239 = vmatprep.subr.mxu0 0.0
    %6240 = vmatpush2.msra.mxu0 0.0
    %6241 = vmatprep.subr.mxu0 0.0
    %6242 = vmatpush2.msra.mxu0 0.0
    %6243 = vmatprep.subr.mxu0 0.0
    %6244 = vmatpush2.msra.mxu0 0.0
    %6245 = vmatprep.subr.mxu0 0.0
    %6246 = vmatpush2.msra.mxu0 0.0
    %6247 = vmatprep.subr.mxu0 0.0
    %6248 = vmatpush2.msra.mxu0 0.0
    %6249 = vmatprep.subr.mxu0 0.0
    %6250 = vmatpush2.msra.mxu0 0.0
    %6251 = vmatprep.subr.mxu0 0.0
    %6252 = vmatpush2.msra.mxu0 0.0
    %6253 = vmatprep.subr.mxu0 0.0
    %6254 = vmatpush2.msra.mxu0 0.0
    %6255 = vmatprep.subr.mxu0 0.0
    %6256 = vmatpush2.msra.mxu0 0.0
    %6257 = vmatprep.subr.mxu0 0.0
    %6258 = vmatpush2.msra.mxu0 0.0
    %6259 = vmatprep.subr.mxu0 0.0
    %6260 = vmatpush2.msra.mxu0 0.0
    %6261 = vmatprep.subr.mxu0 0.0
    %6262 = vmatpush2.msra.mxu0 0.0
    %6263 = vmatprep.subr.mxu0 0.0
    %6264 = vmatpush2.msra.mxu0 0.0
    %6265 = vmatprep.subr.mxu0 0.0
    %6266 = vmatpush2.msra.mxu0 0.0
    %6267 = vmatprep.subr.mxu0 0.0
    %6268 = vmatpush2.msra.mxu0 0.0
    %6269 = vmatprep.mubr.f32.mxu0 0.0
    %6270 = vmatmul.mubr.f32.gmra.mxu0 %v6203
    %v6271 = vpop.f32.mrf.mxu0
    %v6272 = vadd.f32 %v1410, %v6271
    %v6273 = vpop.f32.mrf.mxu0
    %6274 = vdwg.mxu0
    %v6275 = vsel %vm104, %v6272, -inf
    %6276 = vmax.xlane.f32.xlu0 %v6275
    %v6277 = vpop.xlane.xlu0 %6276
    %v6278 = vsub.f32 %v6272, %v6277
    %v6279 = vmul.f32 %v6278, 1.442695
    %v6280 = vpow.pop %v6279
    %v6281 = vsel %vm104, %v6280, 0.0
    %6282 = vadd.xlane.f32.xlu0 %v6281
    %v6283 = vpop.xlane.xlu0 %6282
    %v6284 = vlog2.pop %v6283
    %v6285 = vmul.f32 %v6284, 0.6931472
    %v6286 = vsub.f32 %v6278, %v6285
    %v6287 = vmul.f32 %v5342, %v6286
    %v6288 = vsel %vm104, %v6287, 0.0
    %6289 = vadd.xlane.f32.xlu0 %v6288
    %v6290 = vpop.xlane.xlu0 %6289
    %v6291 = vrot.slane %v6290, 4
    %v6292 = vadd.f32 %v6290, %v6291
    %v6293 = vrot.slane %v6292, 2
    %v6294 = vadd.f32 %v6292, %v6293
    %v6295 = vrot.slane %v6294, 1
    %v6296 = vadd.f32 %v6294, %v6295
    %v6297 = vmul.f32 %v6296, 0.5
    %v6298 = vsub.f32 %v5340, %v6297
    %s6299 = scalar_lea.vmem %s1, 48
    %v6300 = vld [vmem:[%s6299] sm:$0xff]
    %s6301 = scalar_lea.vmem %s2, 48
    %v6302 = vld [vmem:[%s6301] sm:$0xff]
    %vm6303 = vcmp.gt.f32.partialorder %v6302, 0.0
    %6304 = vmatprep.subr.mxu0 0.0
    %6305 = vmatpush1.msra.mxu0 0.0
    %6306 = vmatprep.subr.mxu0 0.0
    %6307 = vmatpush1.msra.mxu0 0.0
    %6308 = vmatprep.subr.mxu0 0.0
    %6309 = vmatpush1.msra.mxu0 0.0
    %6310 = vmatprep.subr.mxu0 0.0
    %6311 = vmatpush1.msra.mxu0 0.0
    %6312 = vmatprep.subr.mxu0 0.0
    %6313 = vmatpush1.msra.mxu0 0.0
    %6314 = vmatprep.subr.mxu0 0.0
    %6315 = vmatpush1.msra.mxu0 0.0
    %6316 = vmatprep.subr.mxu0 0.0
    %6317 = vmatpush1.msra.mxu0 0.0
    %6318 = vmatprep.subr.mxu0 0.0
    %6319 = vmatpush1.msra.mxu0 0.0
    %6320 = vmatprep.subr.mxu0 0.0
    %6321 = vmatpush1.msra.mxu0 0.0
    %6322 = vmatprep.subr.mxu0 0.0
    %6323 = vmatpush1.msra.mxu0 0.0
    %6324 = vmatprep.subr.mxu0 0.0
    %6325 = vmatpush1.msra.mxu0 0.0
    %6326 = vmatprep.subr.mxu0 0.0
    %6327 = vmatpush1.msra.mxu0 0.0
    %6328 = vmatprep.subr.mxu0 0.0
    %6329 = vmatpush1.msra.mxu0 %v64
    %6330 = vmatprep.subr.mxu0 0.0
    %6331 = vmatpush1.msra.mxu0 %v63
    %6332 = vmatprep.subr.mxu0 0.0
    %6333 = vmatpush1.msra.mxu0 %v62
    %6334 = vmatprep.subr.mxu0 0.0
    %6335 = vmatpush1.msra.mxu0 %v61
    %6336 = vmatprep.subr.mxu0 0.0
    %6337 = vmatpush2.msra.mxu0 0.0
    %6338 = vmatprep.subr.mxu0 0.0
    %6339 = vmatpush2.msra.mxu0 0.0
    %6340 = vmatprep.subr.mxu0 0.0
    %6341 = vmatpush2.msra.mxu0 0.0
    %6342 = vmatprep.subr.mxu0 0.0
    %6343 = vmatpush2.msra.mxu0 0.0
    %6344 = vmatprep.subr.mxu0 0.0
    %6345 = vmatpush2.msra.mxu0 0.0
    %6346 = vmatprep.subr.mxu0 0.0
    %6347 = vmatpush2.msra.mxu0 0.0
    %6348 = vmatprep.subr.mxu0 0.0
    %6349 = vmatpush2.msra.mxu0 0.0
    %6350 = vmatprep.subr.mxu0 0.0
    %6351 = vmatpush2.msra.mxu0 0.0
    %6352 = vmatprep.subr.mxu0 0.0
    %6353 = vmatpush2.msra.mxu0 0.0
    %6354 = vmatprep.subr.mxu0 0.0
    %6355 = vmatpush2.msra.mxu0 0.0
    %6356 = vmatprep.subr.mxu0 0.0
    %6357 = vmatpush2.msra.mxu0 0.0
    %6358 = vmatprep.subr.mxu0 0.0
    %6359 = vmatpush2.msra.mxu0 0.0
    %6360 = vmatprep.subr.mxu0 0.0
    %6361 = vmatpush2.msra.mxu0 0.0
    %6362 = vmatprep.subr.mxu0 0.0
    %6363 = vmatpush2.msra.mxu0 0.0
    %6364 = vmatprep.subr.mxu0 0.0
    %6365 = vmatpush2.msra.mxu0 0.0
    %6366 = vmatprep.subr.mxu0 0.0
    %6367 = vmatpush2.msra.mxu0 0.0
    %6368 = vmatprep.mubr.f32.mxu0 0.0
    %6369 = vmatmul.mubr.f32.gmra.mxu0 %v6203
    %v6370 = vpop.f32.mrf.mxu0
    %v6371 = vadd.f32 %v70, %v6370
    %v6372 = vpop.f32.mrf.mxu0
    %6373 = vdwg.mxu0
    %v6374 = vadd.f32 %v523, %v6371
    %v6375 = vxor.u32 %v6374, 2147483648
    %v6376 = vmul.f32 %v6375, 1.442695
    %v6377 = vpow.pop %v6376
    %v6378 = vadd.f32 %v6377, 1.0
    %v6379 = vrcp.pop %v6378
    %v6380 = vmul.f32 1.0, %v6379
    %6382 = vrot.lane.b32.xlu0 %v6371, 64
    %v6383 = vpop.permute.xlu0 %6382
    %v6385 = vmul.f32 %v6380, %v6383
    %6387 = vrot.lane.b32.xlu0 %v6385, 64
    %v6388 = vpop.permute.xlu0 %6387
    %v6390 = vadd.f32 %v523, %v6388
    %v6391 = vtanh.pop %v6390
    %v6392 = vsub.f32 1.0, %v6380
    %6394 = vrot.lane.b32.xlu0 %v6391, 96
    %v6395 = vpop.permute.xlu0 %6394
    %v6397 = vmul.f32 %v6392, %v6395
    %6398 = vrot.lane.b32.xlu0 %v6199, 32
    %v6399 = vpop.permute.xlu0 %6398
    %v6401 = vmul.f32 %v6380, %v6399
    %v6402 = vadd.f32 %v6397, %v6401
    %6404 = vrot.lane.b32.xlu0 %v6402, 96
    %v6405 = vpop.permute.xlu0 %6404
    %v6406 = vsel %vm258, %v6405, 0
    %6408 = vmatprep.subr.mxu0 0.0
    %6409 = vmatpush1.msra.mxu0 0.0
    %6410 = vmatprep.subr.mxu0 0.0
    %6411 = vmatpush1.msra.mxu0 0.0
    %6412 = vmatprep.subr.mxu0 0.0
    %6413 = vmatpush1.msra.mxu0 0.0
    %6414 = vmatprep.subr.mxu0 0.0
    %6415 = vmatpush1.msra.mxu0 0.0
    %6416 = vmatprep.subr.mxu0 0.0
    %6417 = vmatpush1.msra.mxu0 0.0
    %6418 = vmatprep.subr.mxu0 0.0
    %6419 = vmatpush1.msra.mxu0 0.0
    %6420 = vmatprep.subr.mxu0 0.0
    %6421 = vmatpush1.msra.mxu0 0.0
    %6422 = vmatprep.subr.mxu0 0.0
    %6423 = vmatpush1.msra.mxu0 0.0
    %6424 = vmatprep.subr.mxu0 0.0
    %6425 = vmatpush1.msra.mxu0 0.0
    %6426 = vmatprep.subr.mxu0 0.0
    %6427 = vmatpush1.msra.mxu0 0.0
    %6428 = vmatprep.subr.mxu0 0.0
    %6429 = vmatpush1.msra.mxu0 0.0
    %6430 = vmatprep.subr.mxu0 0.0
    %6431 = vmatpush1.msra.mxu0 0.0
    %6432 = vmatprep.subr.mxu0 0.0
    %6433 = vmatpush1.msra.mxu0 %v74
    %6434 = vmatprep.subr.mxu0 0.0
    %6435 = vmatpush1.msra.mxu0 %v73
    %6436 = vmatprep.subr.mxu0 0.0
    %6437 = vmatpush1.msra.mxu0 %v72
    %6438 = vmatprep.subr.mxu0 0.0
    %6439 = vmatpush1.msra.mxu0 %v71
    %6440 = vmatprep.subr.mxu0 0.0
    %6441 = vmatpush2.msra.mxu0 0.0
    %6442 = vmatprep.subr.mxu0 0.0
    %6443 = vmatpush2.msra.mxu0 0.0
    %6444 = vmatprep.subr.mxu0 0.0
    %6445 = vmatpush2.msra.mxu0 0.0
    %6446 = vmatprep.subr.mxu0 0.0
    %6447 = vmatpush2.msra.mxu0 0.0
    %6448 = vmatprep.subr.mxu0 0.0
    %6449 = vmatpush2.msra.mxu0 0.0
    %6450 = vmatprep.subr.mxu0 0.0
    %6451 = vmatpush2.msra.mxu0 0.0
    %6452 = vmatprep.subr.mxu0 0.0
    %6453 = vmatpush2.msra.mxu0 0.0
    %6454 = vmatprep.subr.mxu0 0.0
    %6455 = vmatpush2.msra.mxu0 0.0
    %6456 = vmatprep.subr.mxu0 0.0
    %6457 = vmatpush2.msra.mxu0 0.0
    %6458 = vmatprep.subr.mxu0 0.0
    %6459 = vmatpush2.msra.mxu0 0.0
    %6460 = vmatprep.subr.mxu0 0.0
    %6461 = vmatpush2.msra.mxu0 0.0
    %6462 = vmatprep.subr.mxu0 0.0
    %6463 = vmatpush2.msra.mxu0 0.0
    %6464 = vmatprep.subr.mxu0 0.0
    %6465 = vmatpush2.msra.mxu0 0.0
    %6466 = vmatprep.subr.mxu0 0.0
    %6467 = vmatpush2.msra.mxu0 0.0
    %6468 = vmatprep.subr.mxu0 0.0
    %6469 = vmatpush2.msra.mxu0 0.0
    %6470 = vmatprep.subr.mxu0 0.0
    %6471 = vmatpush2.msra.mxu0 0.0
    %6472 = vmatprep.mubr.f32.mxu0 0.0
    %6473 = vmatmul.mubr.f32.gmra.mxu0 %v6406
    %v6474 = vpop.f32.mrf.mxu0
    %v6475 = vadd.f32 0.0, %v6474
    %v6476 = vpop.f32.mrf.mxu0
    %6477 = vdwg.mxu0
    %v6478 = vmul.f32 %v6475, %v706
    %v6479 = vsel %vm708, %v6478, 0.0
    %6480 = vadd.xlane.f32.xlu0 %v6479
    %v6481 = vpop.xlane.xlu0 %6480
    %v6483 = vsel %vm708, %v6475, 0
    %6485 = vmatprep.subr.mxu0 0.0
    %6486 = vmatpush1.xpose.msra.mxu0 0.0
    %6487 = vmatprep.subr.mxu0 0.0
    %6488 = vmatpush1.xpose.msra.mxu0 0.0
    %6489 = vmatprep.subr.mxu0 0.0
    %6490 = vmatpush1.xpose.msra.mxu0 0.0
    %6491 = vmatprep.subr.mxu0 0.0
    %6492 = vmatpush1.xpose.msra.mxu0 0.0
    %6493 = vmatprep.subr.mxu0 0.0
    %6494 = vmatpush1.xpose.msra.mxu0 0.0
    %6495 = vmatprep.subr.mxu0 0.0
    %6496 = vmatpush1.xpose.msra.mxu0 0.0
    %6497 = vmatprep.subr.mxu0 0.0
    %6498 = vmatpush1.xpose.msra.mxu0 0.0
    %6499 = vmatprep.subr.mxu0 0.0
    %6500 = vmatpush1.xpose.msra.mxu0 0.0
    %6501 = vmatprep.subr.mxu0 0.0
    %6502 = vmatpush1.xpose.msra.mxu0 0.0
    %6503 = vmatprep.subr.mxu0 0.0
    %6504 = vmatpush1.xpose.msra.mxu0 0.0
    %6505 = vmatprep.subr.mxu0 0.0
    %6506 = vmatpush1.xpose.msra.mxu0 0.0
    %6507 = vmatprep.subr.mxu0 0.0
    %6508 = vmatpush1.xpose.msra.mxu0 0.0
    %6509 = vmatprep.subr.mxu0 0.0
    %6510 = vmatpush1.xpose.msra.mxu0 0.0
    %6511 = vmatprep.subr.mxu0 0.0
    %6512 = vmatpush1.xpose.msra.mxu0 0.0
    %6513 = vmatprep.subr.mxu0 0.0
    %6514 = vmatpush1.xpose.msra.mxu0 0.0
    %6515 = vmatprep.subr.mxu0 0.0
    %6516 = vmatpush1.xpose.msra.mxu0 %v6483
    %6517 = vmatprep.subr.mxu0 0.0
    %6518 = vmatpush2.xpose.msra.mxu0 0.0
    %6519 = vmatprep.subr.mxu0 0.0
    %6520 = vmatpush2.xpose.msra.mxu0 0.0
    %6521 = vmatprep.subr.mxu0 0.0
    %6522 = vmatpush2.xpose.msra.mxu0 0.0
    %6523 = vmatprep.subr.mxu0 0.0
    %6524 = vmatpush2.xpose.msra.mxu0 0.0
    %6525 = vmatprep.subr.mxu0 0.0
    %6526 = vmatpush2.xpose.msra.mxu0 0.0
    %6527 = vmatprep.subr.mxu0 0.0
    %6528 = vmatpush2.xpose.msra.mxu0 0.0
    %6529 = vmatprep.subr.mxu0 0.0
    %6530 = vmatpush2.xpose.msra.mxu0 0.0
    %6531 = vmatprep.subr.mxu0 0.0
    %6532 = vmatpush2.xpose.msra.mxu0 0.0
    %6533 = vmatprep.subr.mxu0 0.0
    %6534 = vmatpush2.xpose.msra.mxu0 0.0
    %6535 = vmatprep.subr.mxu0 0.0
    %6536 = vmatpush2.xpose.msra.mxu0 0.0
    %6537 = vmatprep.subr.mxu0 0.0
    %6538 = vmatpush2.xpose.msra.mxu0 0.0
    %6539 = vmatprep.subr.mxu0 0.0
    %6540 = vmatpush2.xpose.msra.mxu0 0.0
    %6541 = vmatprep.subr.mxu0 0.0
    %6542 = vmatpush2.xpose.msra.mxu0 0.0
    %6543 = vmatprep.subr.mxu0 0.0
    %6544 = vmatpush2.xpose.msra.mxu0 0.0
    %6545 = vmatprep.subr.mxu0 0.0
    %6546 = vmatpush2.xpose.msra.mxu0 0.0
    %6547 = vmatprep.subr.mxu0 0.0
    %6548 = vmatpush2.xpose.msra.mxu0 0.0
    %6549 = vmatprep.mubr.f32.mxu0 0.0
    %6550 = vmatmul.mubr.f32.gmra.mxu0 %v713
    %v6551 = vpop.f32.mrf.mxu0
    %v6552 = vadd.f32 0.0, %v6551
    %v6553 = vpop.f32.mrf.mxu0
    %6554 = vdwg.mxu0
    %v6555 = vlaneseq
    %v6556 = vshrl.u32 %v6555, 7
    %v6557 = vsub.s32 0, %v6556
    %v6558 = vrot.slane %v6552, %v6557
    %v6559 = vadd.f32 %v6481, %v6558
    %vm6560 = vcmp.gt.f32.partialorder %v6559, 0.0
    %v6561 = vmul.f32 %v6559, 0.2
    %v6562 = vsel %vm6560, %v6559, %v6561
    %v6563 = vsel %vm6303, %v6562, -9e+15
    %v6564 = vsel %vm797, %v6563, -inf
    %6565 = vmax.xlane.f32.xlu0 %v6564
    %v6566 = vpop.xlane.xlu0 %6565
    %v6567 = vsub.f32 %v6563, %v6566
    %v6568 = vmul.f32 %v6567, 1.442695
    %v6569 = vpow.pop %v6568
    %v6570 = vsel %vm797, %v6569, 0.0
    %6571 = vadd.xlane.f32.xlu0 %v6570
    %v6572 = vpop.xlane.xlu0 %6571
    %v6573 = vrcp.pop %v6572
    %v6574 = vmul.f32 %v6569, %v6573
    %v6576 = vsel %vm797, %v6574, 0
    %6578 = vmatprep.subr.mxu0 0.0
    %6579 = vmatpush1.msra.mxu0 0.0
    %6580 = vmatprep.subr.mxu0 0.0
    %6581 = vmatpush1.msra.mxu0 0.0
    %6582 = vmatprep.subr.mxu0 0.0
    %6583 = vmatpush1.msra.mxu0 0.0
    %6584 = vmatprep.subr.mxu0 0.0
    %6585 = vmatpush1.msra.mxu0 0.0
    %6586 = vmatprep.subr.mxu0 0.0
    %6587 = vmatpush1.msra.mxu0 0.0
    %6588 = vmatprep.subr.mxu0 0.0
    %6589 = vmatpush1.msra.mxu0 0.0
    %6590 = vmatprep.subr.mxu0 0.0
    %6591 = vmatpush1.msra.mxu0 0.0
    %6592 = vmatprep.subr.mxu0 0.0
    %6593 = vmatpush1.msra.mxu0 0.0
    %6594 = vmatprep.subr.mxu0 0.0
    %6595 = vmatpush1.msra.mxu0 0.0
    %6596 = vmatprep.subr.mxu0 0.0
    %6597 = vmatpush1.msra.mxu0 0.0
    %6598 = vmatprep.subr.mxu0 0.0
    %6599 = vmatpush1.msra.mxu0 0.0
    %6600 = vmatprep.subr.mxu0 0.0
    %6601 = vmatpush1.msra.mxu0 0.0
    %6602 = vmatprep.subr.mxu0 0.0
    %6603 = vmatpush1.msra.mxu0 0.0
    %6604 = vmatprep.subr.mxu0 0.0
    %6605 = vmatpush1.msra.mxu0 0.0
    %6606 = vmatprep.subr.mxu0 0.0
    %6607 = vmatpush1.msra.mxu0 0.0
    %6608 = vmatprep.subr.mxu0 0.0
    %6609 = vmatpush1.msra.mxu0 %v6475
    %6610 = vmatprep.subr.mxu0 0.0
    %6611 = vmatpush2.msra.mxu0 0.0
    %6612 = vmatprep.subr.mxu0 0.0
    %6613 = vmatpush2.msra.mxu0 0.0
    %6614 = vmatprep.subr.mxu0 0.0
    %6615 = vmatpush2.msra.mxu0 0.0
    %6616 = vmatprep.subr.mxu0 0.0
    %6617 = vmatpush2.msra.mxu0 0.0
    %6618 = vmatprep.subr.mxu0 0.0
    %6619 = vmatpush2.msra.mxu0 0.0
    %6620 = vmatprep.subr.mxu0 0.0
    %6621 = vmatpush2.msra.mxu0 0.0
    %6622 = vmatprep.subr.mxu0 0.0
    %6623 = vmatpush2.msra.mxu0 0.0
    %6624 = vmatprep.subr.mxu0 0.0
    %6625 = vmatpush2.msra.mxu0 0.0
    %6626 = vmatprep.subr.mxu0 0.0
    %6627 = vmatpush2.msra.mxu0 0.0
    %6628 = vmatprep.subr.mxu0 0.0
    %6629 = vmatpush2.msra.mxu0 0.0
    %6630 = vmatprep.subr.mxu0 0.0
    %6631 = vmatpush2.msra.mxu0 0.0
    %6632 = vmatprep.subr.mxu0 0.0
    %6633 = vmatpush2.msra.mxu0 0.0
    %6634 = vmatprep.subr.mxu0 0.0
    %6635 = vmatpush2.msra.mxu0 0.0
    %6636 = vmatprep.subr.mxu0 0.0
    %6637 = vmatpush2.msra.mxu0 0.0
    %6638 = vmatprep.subr.mxu0 0.0
    %6639 = vmatpush2.msra.mxu0 0.0
    %6640 = vmatprep.subr.mxu0 0.0
    %6641 = vmatpush2.msra.mxu0 0.0
    %6642 = vmatprep.mubr.f32.mxu0 0.0
    %6643 = vmatmul.mubr.f32.gmra.mxu0 %v6576
    %v6644 = vpop.f32.mrf.mxu0
    %v6645 = vadd.f32 0.0, %v6644
    %v6646 = vpop.f32.mrf.mxu0
    %6647 = vdwg.mxu0
    %vm6648 = vcmp.gt.f32.partialorder %v6645, 0.0
    %v6649 = vmul.f32 %v6645, 1.442695
    %v6650 = vpow.pop %v6649
    %v6651 = vsub.f32 %v6650, 1.0
    %v6652 = vsel %vm6648, %v6645, %v6651
    %6654 = vrot.lane.b32.xlu0 %v6478, 112
    %v6655 = vpop.permute.xlu0 %6654
    %v6657 = vsel %vm708, %v6655, 0.0
    %6658 = vadd.xlane.f32.xlu0 %v6657
    %v6659 = vpop.xlane.xlu0 %6658
    %6660 = vrot.lane.b32.xlu0 %v6475, 112
    %v6661 = vpop.permute.xlu0 %6660
    %v6662 = vsel %vm708, %v6661, 0
    %6664 = vmatprep.subr.mxu0 0.0
    %6665 = vmatpush1.xpose.msra.mxu0 0.0
    %6666 = vmatprep.subr.mxu0 0.0
    %6667 = vmatpush1.xpose.msra.mxu0 0.0
    %6668 = vmatprep.subr.mxu0 0.0
    %6669 = vmatpush1.xpose.msra.mxu0 0.0
    %6670 = vmatprep.subr.mxu0 0.0
    %6671 = vmatpush1.xpose.msra.mxu0 0.0
    %6672 = vmatprep.subr.mxu0 0.0
    %6673 = vmatpush1.xpose.msra.mxu0 0.0
    %6674 = vmatprep.subr.mxu0 0.0
    %6675 = vmatpush1.xpose.msra.mxu0 0.0
    %6676 = vmatprep.subr.mxu0 0.0
    %6677 = vmatpush1.xpose.msra.mxu0 0.0
    %6678 = vmatprep.subr.mxu0 0.0
    %6679 = vmatpush1.xpose.msra.mxu0 0.0
    %6680 = vmatprep.subr.mxu0 0.0
    %6681 = vmatpush1.xpose.msra.mxu0 0.0
    %6682 = vmatprep.subr.mxu0 0.0
    %6683 = vmatpush1.xpose.msra.mxu0 0.0
    %6684 = vmatprep.subr.mxu0 0.0
    %6685 = vmatpush1.xpose.msra.mxu0 0.0
    %6686 = vmatprep.subr.mxu0 0.0
    %6687 = vmatpush1.xpose.msra.mxu0 0.0
    %6688 = vmatprep.subr.mxu0 0.0
    %6689 = vmatpush1.xpose.msra.mxu0 0.0
    %6690 = vmatprep.subr.mxu0 0.0
    %6691 = vmatpush1.xpose.msra.mxu0 0.0
    %6692 = vmatprep.subr.mxu0 0.0
    %6693 = vmatpush1.xpose.msra.mxu0 0.0
    %6694 = vmatprep.subr.mxu0 0.0
    %6695 = vmatpush1.xpose.msra.mxu0 %v6662
    %6696 = vmatprep.subr.mxu0 0.0
    %6697 = vmatpush2.xpose.msra.mxu0 0.0
    %6698 = vmatprep.subr.mxu0 0.0
    %6699 = vmatpush2.xpose.msra.mxu0 0.0
    %6700 = vmatprep.subr.mxu0 0.0
    %6701 = vmatpush2.xpose.msra.mxu0 0.0
    %6702 = vmatprep.subr.mxu0 0.0
    %6703 = vmatpush2.xpose.msra.mxu0 0.0
    %6704 = vmatprep.subr.mxu0 0.0
    %6705 = vmatpush2.xpose.msra.mxu0 0.0
    %6706 = vmatprep.subr.mxu0 0.0
    %6707 = vmatpush2.xpose.msra.mxu0 0.0
    %6708 = vmatprep.subr.mxu0 0.0
    %6709 = vmatpush2.xpose.msra.mxu0 0.0
    %6710 = vmatprep.subr.mxu0 0.0
    %6711 = vmatpush2.xpose.msra.mxu0 0.0
    %6712 = vmatprep.subr.mxu0 0.0
    %6713 = vmatpush2.xpose.msra.mxu0 0.0
    %6714 = vmatprep.subr.mxu0 0.0
    %6715 = vmatpush2.xpose.msra.mxu0 0.0
    %6716 = vmatprep.subr.mxu0 0.0
    %6717 = vmatpush2.xpose.msra.mxu0 0.0
    %6718 = vmatprep.subr.mxu0 0.0
    %6719 = vmatpush2.xpose.msra.mxu0 0.0
    %6720 = vmatprep.subr.mxu0 0.0
    %6721 = vmatpush2.xpose.msra.mxu0 0.0
    %6722 = vmatprep.subr.mxu0 0.0
    %6723 = vmatpush2.xpose.msra.mxu0 0.0
    %6724 = vmatprep.subr.mxu0 0.0
    %6725 = vmatpush2.xpose.msra.mxu0 0.0
    %6726 = vmatprep.subr.mxu0 0.0
    %6727 = vmatpush2.xpose.msra.mxu0 0.0
    %6728 = vmatprep.mubr.f32.mxu0 0.0
    %6729 = vmatmul.mubr.f32.gmra.mxu0 %v898
    %v6730 = vpop.f32.mrf.mxu0
    %v6731 = vadd.f32 0.0, %v6730
    %v6732 = vpop.f32.mrf.mxu0
    %6733 = vdwg.mxu0
    %v6734 = vlaneseq
    %v6735 = vshrl.u32 %v6734, 7
    %v6736 = vsub.s32 0, %v6735
    %v6737 = vrot.slane %v6731, %v6736
    %v6738 = vadd.f32 %v6659, %v6737
    %vm6739 = vcmp.gt.f32.partialorder %v6738, 0.0
    %v6740 = vmul.f32 %v6738, 0.2
    %v6741 = vsel %vm6739, %v6738, %v6740
    %v6742 = vsel %vm6303, %v6741, -9e+15
    %v6743 = vsel %vm797, %v6742, -inf
    %6744 = vmax.xlane.f32.xlu0 %v6743
    %v6745 = vpop.xlane.xlu0 %6744
    %v6746 = vsub.f32 %v6742, %v6745
    %v6747 = vmul.f32 %v6746, 1.442695
    %v6748 = vpow.pop %v6747
    %v6749 = vsel %vm797, %v6748, 0.0
    %6750 = vadd.xlane.f32.xlu0 %v6749
    %v6751 = vpop.xlane.xlu0 %6750
    %v6752 = vrcp.pop %v6751
    %v6753 = vmul.f32 %v6748, %v6752
    %v6756 = vsel %vm797, %v6753, 0
    %6758 = vmatprep.subr.mxu0 0.0
    %6759 = vmatpush1.msra.mxu0 0.0
    %6760 = vmatprep.subr.mxu0 0.0
    %6761 = vmatpush1.msra.mxu0 0.0
    %6762 = vmatprep.subr.mxu0 0.0
    %6763 = vmatpush1.msra.mxu0 0.0
    %6764 = vmatprep.subr.mxu0 0.0
    %6765 = vmatpush1.msra.mxu0 0.0
    %6766 = vmatprep.subr.mxu0 0.0
    %6767 = vmatpush1.msra.mxu0 0.0
    %6768 = vmatprep.subr.mxu0 0.0
    %6769 = vmatpush1.msra.mxu0 0.0
    %6770 = vmatprep.subr.mxu0 0.0
    %6771 = vmatpush1.msra.mxu0 0.0
    %6772 = vmatprep.subr.mxu0 0.0
    %6773 = vmatpush1.msra.mxu0 0.0
    %6774 = vmatprep.subr.mxu0 0.0
    %6775 = vmatpush1.msra.mxu0 0.0
    %6776 = vmatprep.subr.mxu0 0.0
    %6777 = vmatpush1.msra.mxu0 0.0
    %6778 = vmatprep.subr.mxu0 0.0
    %6779 = vmatpush1.msra.mxu0 0.0
    %6780 = vmatprep.subr.mxu0 0.0
    %6781 = vmatpush1.msra.mxu0 0.0
    %6782 = vmatprep.subr.mxu0 0.0
    %6783 = vmatpush1.msra.mxu0 0.0
    %6784 = vmatprep.subr.mxu0 0.0
    %6785 = vmatpush1.msra.mxu0 0.0
    %6786 = vmatprep.subr.mxu0 0.0
    %6787 = vmatpush1.msra.mxu0 0.0
    %6788 = vmatprep.subr.mxu0 0.0
    %6789 = vmatpush1.msra.mxu0 %v6661
    %6790 = vmatprep.subr.mxu0 0.0
    %6791 = vmatpush2.msra.mxu0 0.0
    %6792 = vmatprep.subr.mxu0 0.0
    %6793 = vmatpush2.msra.mxu0 0.0
    %6794 = vmatprep.subr.mxu0 0.0
    %6795 = vmatpush2.msra.mxu0 0.0
    %6796 = vmatprep.subr.mxu0 0.0
    %6797 = vmatpush2.msra.mxu0 0.0
    %6798 = vmatprep.subr.mxu0 0.0
    %6799 = vmatpush2.msra.mxu0 0.0
    %6800 = vmatprep.subr.mxu0 0.0
    %6801 = vmatpush2.msra.mxu0 0.0
    %6802 = vmatprep.subr.mxu0 0.0
    %6803 = vmatpush2.msra.mxu0 0.0
    %6804 = vmatprep.subr.mxu0 0.0
    %6805 = vmatpush2.msra.mxu0 0.0
    %6806 = vmatprep.subr.mxu0 0.0
    %6807 = vmatpush2.msra.mxu0 0.0
    %6808 = vmatprep.subr.mxu0 0.0
    %6809 = vmatpush2.msra.mxu0 0.0
    %6810 = vmatprep.subr.mxu0 0.0
    %6811 = vmatpush2.msra.mxu0 0.0
    %6812 = vmatprep.subr.mxu0 0.0
    %6813 = vmatpush2.msra.mxu0 0.0
    %6814 = vmatprep.subr.mxu0 0.0
    %6815 = vmatpush2.msra.mxu0 0.0
    %6816 = vmatprep.subr.mxu0 0.0
    %6817 = vmatpush2.msra.mxu0 0.0
    %6818 = vmatprep.subr.mxu0 0.0
    %6819 = vmatpush2.msra.mxu0 0.0
    %6820 = vmatprep.subr.mxu0 0.0
    %6821 = vmatpush2.msra.mxu0 0.0
    %6822 = vmatprep.mubr.f32.mxu0 0.0
    %6823 = vmatmul.mubr.f32.gmra.mxu0 %v6756
    %v6824 = vpop.f32.mrf.mxu0
    %v6825 = vadd.f32 0.0, %v6824
    %v6826 = vpop.f32.mrf.mxu0
    %6827 = vdwg.mxu0
    %vm6828 = vcmp.gt.f32.partialorder %v6825, 0.0
    %v6829 = vmul.f32 %v6825, 1.442695
    %v6830 = vpow.pop %v6829
    %v6831 = vsub.f32 %v6830, 1.0
    %v6832 = vsel %vm6828, %v6825, %v6831
    %6834 = vrot.lane.b32.xlu0 %v6832, 16
    %v6835 = vpop.permute.xlu0 %6834
    %v6837 = vsel %vm708, %v6652, %v6835
    %v6839 = vsel %vm258, %v6837, 0
    %6841 = vmatprep.subr.mxu0 0.0
    %6842 = vmatpush1.msra.mxu0 0.0
    %6843 = vmatprep.subr.mxu0 0.0
    %6844 = vmatpush1.msra.mxu0 0.0
    %6845 = vmatprep.subr.mxu0 0.0
    %6846 = vmatpush1.msra.mxu0 0.0
    %6847 = vmatprep.subr.mxu0 0.0
    %6848 = vmatpush1.msra.mxu0 0.0
    %6849 = vmatprep.subr.mxu0 0.0
    %6850 = vmatpush1.msra.mxu0 0.0
    %6851 = vmatprep.subr.mxu0 0.0
    %6852 = vmatpush1.msra.mxu0 0.0
    %6853 = vmatprep.subr.mxu0 0.0
    %6854 = vmatpush1.msra.mxu0 0.0
    %6855 = vmatprep.subr.mxu0 0.0
    %6856 = vmatpush1.msra.mxu0 0.0
    %6857 = vmatprep.subr.mxu0 0.0
    %6858 = vmatpush1.msra.mxu0 0.0
    %6859 = vmatprep.subr.mxu0 0.0
    %6860 = vmatpush1.msra.mxu0 0.0
    %6861 = vmatprep.subr.mxu0 0.0
    %6862 = vmatpush1.msra.mxu0 0.0
    %6863 = vmatprep.subr.mxu0 0.0
    %6864 = vmatpush1.msra.mxu0 0.0
    %6865 = vmatprep.subr.mxu0 0.0
    %6866 = vmatpush1.msra.mxu0 %v80
    %6867 = vmatprep.subr.mxu0 0.0
    %6868 = vmatpush1.msra.mxu0 %v79
    %6869 = vmatprep.subr.mxu0 0.0
    %6870 = vmatpush1.msra.mxu0 %v78
    %6871 = vmatprep.subr.mxu0 0.0
    %6872 = vmatpush1.msra.mxu0 %v77
    %6873 = vmatprep.subr.mxu0 0.0
    %6874 = vmatpush2.msra.mxu0 0.0
    %6875 = vmatprep.subr.mxu0 0.0
    %6876 = vmatpush2.msra.mxu0 0.0
    %6877 = vmatprep.subr.mxu0 0.0
    %6878 = vmatpush2.msra.mxu0 0.0
    %6879 = vmatprep.subr.mxu0 0.0
    %6880 = vmatpush2.msra.mxu0 0.0
    %6881 = vmatprep.subr.mxu0 0.0
    %6882 = vmatpush2.msra.mxu0 0.0
    %6883 = vmatprep.subr.mxu0 0.0
    %6884 = vmatpush2.msra.mxu0 0.0
    %6885 = vmatprep.subr.mxu0 0.0
    %6886 = vmatpush2.msra.mxu0 0.0
    %6887 = vmatprep.subr.mxu0 0.0
    %6888 = vmatpush2.msra.mxu0 0.0
    %6889 = vmatprep.subr.mxu0 0.0
    %6890 = vmatpush2.msra.mxu0 0.0
    %6891 = vmatprep.subr.mxu0 0.0
    %6892 = vmatpush2.msra.mxu0 0.0
    %6893 = vmatprep.subr.mxu0 0.0
    %6894 = vmatpush2.msra.mxu0 0.0
    %6895 = vmatprep.subr.mxu0 0.0
    %6896 = vmatpush2.msra.mxu0 0.0
    %6897 = vmatprep.subr.mxu0 0.0
    %6898 = vmatpush2.msra.mxu0 0.0
    %6899 = vmatprep.subr.mxu0 0.0
    %6900 = vmatpush2.msra.mxu0 0.0
    %6901 = vmatprep.subr.mxu0 0.0
    %6902 = vmatpush2.msra.mxu0 0.0
    %6903 = vmatprep.subr.mxu0 0.0
    %6904 = vmatpush2.msra.mxu0 0.0
    %6905 = vmatprep.mubr.f32.mxu0 0.0
    %6906 = vmatmul.mubr.f32.gmra.mxu0 %v6839
    %v6907 = vpop.f32.mrf.mxu0
    %v6908 = vadd.f32 0.0, %v6907
    %v6909 = vpop.f32.mrf.mxu0
    %6910 = vdwg.mxu0
    %v6911 = vmul.f32 %v6908, %v1152
    %v6912 = vsel %vm258, %v6911, 0.0
    %6913 = vadd.xlane.f32.xlu0 %v6912
    %v6914 = vpop.xlane.xlu0 %6913
    %v6916 = vsel %vm258, %v6908, 0
    %6918 = vmatprep.subr.mxu0 0.0
    %6919 = vmatpush1.xpose.msra.mxu0 0.0
    %6920 = vmatprep.subr.mxu0 0.0
    %6921 = vmatpush1.xpose.msra.mxu0 0.0
    %6922 = vmatprep.subr.mxu0 0.0
    %6923 = vmatpush1.xpose.msra.mxu0 0.0
    %6924 = vmatprep.subr.mxu0 0.0
    %6925 = vmatpush1.xpose.msra.mxu0 0.0
    %6926 = vmatprep.subr.mxu0 0.0
    %6927 = vmatpush1.xpose.msra.mxu0 0.0
    %6928 = vmatprep.subr.mxu0 0.0
    %6929 = vmatpush1.xpose.msra.mxu0 0.0
    %6930 = vmatprep.subr.mxu0 0.0
    %6931 = vmatpush1.xpose.msra.mxu0 0.0
    %6932 = vmatprep.subr.mxu0 0.0
    %6933 = vmatpush1.xpose.msra.mxu0 0.0
    %6934 = vmatprep.subr.mxu0 0.0
    %6935 = vmatpush1.xpose.msra.mxu0 0.0
    %6936 = vmatprep.subr.mxu0 0.0
    %6937 = vmatpush1.xpose.msra.mxu0 0.0
    %6938 = vmatprep.subr.mxu0 0.0
    %6939 = vmatpush1.xpose.msra.mxu0 0.0
    %6940 = vmatprep.subr.mxu0 0.0
    %6941 = vmatpush1.xpose.msra.mxu0 0.0
    %6942 = vmatprep.subr.mxu0 0.0
    %6943 = vmatpush1.xpose.msra.mxu0 0.0
    %6944 = vmatprep.subr.mxu0 0.0
    %6945 = vmatpush1.xpose.msra.mxu0 0.0
    %6946 = vmatprep.subr.mxu0 0.0
    %6947 = vmatpush1.xpose.msra.mxu0 0.0
    %6948 = vmatprep.subr.mxu0 0.0
    %6949 = vmatpush1.xpose.msra.mxu0 %v6916
    %6950 = vmatprep.subr.mxu0 0.0
    %6951 = vmatpush2.xpose.msra.mxu0 0.0
    %6952 = vmatprep.subr.mxu0 0.0
    %6953 = vmatpush2.xpose.msra.mxu0 0.0
    %6954 = vmatprep.subr.mxu0 0.0
    %6955 = vmatpush2.xpose.msra.mxu0 0.0
    %6956 = vmatprep.subr.mxu0 0.0
    %6957 = vmatpush2.xpose.msra.mxu0 0.0
    %6958 = vmatprep.subr.mxu0 0.0
    %6959 = vmatpush2.xpose.msra.mxu0 0.0
    %6960 = vmatprep.subr.mxu0 0.0
    %6961 = vmatpush2.xpose.msra.mxu0 0.0
    %6962 = vmatprep.subr.mxu0 0.0
    %6963 = vmatpush2.xpose.msra.mxu0 0.0
    %6964 = vmatprep.subr.mxu0 0.0
    %6965 = vmatpush2.xpose.msra.mxu0 0.0
    %6966 = vmatprep.subr.mxu0 0.0
    %6967 = vmatpush2.xpose.msra.mxu0 0.0
    %6968 = vmatprep.subr.mxu0 0.0
    %6969 = vmatpush2.xpose.msra.mxu0 0.0
    %6970 = vmatprep.subr.mxu0 0.0
    %6971 = vmatpush2.xpose.msra.mxu0 0.0
    %6972 = vmatprep.subr.mxu0 0.0
    %6973 = vmatpush2.xpose.msra.mxu0 0.0
    %6974 = vmatprep.subr.mxu0 0.0
    %6975 = vmatpush2.xpose.msra.mxu0 0.0
    %6976 = vmatprep.subr.mxu0 0.0
    %6977 = vmatpush2.xpose.msra.mxu0 0.0
    %6978 = vmatprep.subr.mxu0 0.0
    %6979 = vmatpush2.xpose.msra.mxu0 0.0
    %6980 = vmatprep.subr.mxu0 0.0
    %6981 = vmatpush2.xpose.msra.mxu0 0.0
    %6982 = vmatprep.mubr.f32.mxu0 0.0
    %6983 = vmatmul.mubr.f32.gmra.mxu0 %v1158
    %v6984 = vpop.f32.mrf.mxu0
    %v6985 = vadd.f32 0.0, %v6984
    %v6986 = vpop.f32.mrf.mxu0
    %6987 = vdwg.mxu0
    %v6988 = vlaneseq
    %v6989 = vshrl.u32 %v6988, 7
    %v6990 = vsub.s32 0, %v6989
    %v6991 = vrot.slane %v6985, %v6990
    %v6992 = vadd.f32 %v6914, %v6991
    %vm6993 = vcmp.gt.f32.partialorder %v6992, 0.0
    %v6994 = vmul.f32 %v6992, 0.2
    %v6995 = vsel %vm6993, %v6992, %v6994
    %v6996 = vsel %vm6303, %v6995, -9e+15
    %v6997 = vsel %vm797, %v6996, -inf
    %6998 = vmax.xlane.f32.xlu0 %v6997
    %v6999 = vpop.xlane.xlu0 %6998
    %v7000 = vsub.f32 %v6996, %v6999
    %v7001 = vmul.f32 %v7000, 1.442695
    %v7002 = vpow.pop %v7001
    %v7003 = vsel %vm797, %v7002, 0.0
    %7004 = vadd.xlane.f32.xlu0 %v7003
    %v7005 = vpop.xlane.xlu0 %7004
    %v7006 = vrcp.pop %v7005
    %v7007 = vmul.f32 %v7002, %v7006
    %v7009 = vsel %vm797, %v7007, 0
    %7011 = vmatprep.subr.mxu0 0.0
    %7012 = vmatpush1.msra.mxu0 0.0
    %7013 = vmatprep.subr.mxu0 0.0
    %7014 = vmatpush1.msra.mxu0 0.0
    %7015 = vmatprep.subr.mxu0 0.0
    %7016 = vmatpush1.msra.mxu0 0.0
    %7017 = vmatprep.subr.mxu0 0.0
    %7018 = vmatpush1.msra.mxu0 0.0
    %7019 = vmatprep.subr.mxu0 0.0
    %7020 = vmatpush1.msra.mxu0 0.0
    %7021 = vmatprep.subr.mxu0 0.0
    %7022 = vmatpush1.msra.mxu0 0.0
    %7023 = vmatprep.subr.mxu0 0.0
    %7024 = vmatpush1.msra.mxu0 0.0
    %7025 = vmatprep.subr.mxu0 0.0
    %7026 = vmatpush1.msra.mxu0 0.0
    %7027 = vmatprep.subr.mxu0 0.0
    %7028 = vmatpush1.msra.mxu0 0.0
    %7029 = vmatprep.subr.mxu0 0.0
    %7030 = vmatpush1.msra.mxu0 0.0
    %7031 = vmatprep.subr.mxu0 0.0
    %7032 = vmatpush1.msra.mxu0 0.0
    %7033 = vmatprep.subr.mxu0 0.0
    %7034 = vmatpush1.msra.mxu0 0.0
    %7035 = vmatprep.subr.mxu0 0.0
    %7036 = vmatpush1.msra.mxu0 0.0
    %7037 = vmatprep.subr.mxu0 0.0
    %7038 = vmatpush1.msra.mxu0 0.0
    %7039 = vmatprep.subr.mxu0 0.0
    %7040 = vmatpush1.msra.mxu0 0.0
    %7041 = vmatprep.subr.mxu0 0.0
    %7042 = vmatpush1.msra.mxu0 %v6908
    %7043 = vmatprep.subr.mxu0 0.0
    %7044 = vmatpush2.msra.mxu0 0.0
    %7045 = vmatprep.subr.mxu0 0.0
    %7046 = vmatpush2.msra.mxu0 0.0
    %7047 = vmatprep.subr.mxu0 0.0
    %7048 = vmatpush2.msra.mxu0 0.0
    %7049 = vmatprep.subr.mxu0 0.0
    %7050 = vmatpush2.msra.mxu0 0.0
    %7051 = vmatprep.subr.mxu0 0.0
    %7052 = vmatpush2.msra.mxu0 0.0
    %7053 = vmatprep.subr.mxu0 0.0
    %7054 = vmatpush2.msra.mxu0 0.0
    %7055 = vmatprep.subr.mxu0 0.0
    %7056 = vmatpush2.msra.mxu0 0.0
    %7057 = vmatprep.subr.mxu0 0.0
    %7058 = vmatpush2.msra.mxu0 0.0
    %7059 = vmatprep.subr.mxu0 0.0
    %7060 = vmatpush2.msra.mxu0 0.0
    %7061 = vmatprep.subr.mxu0 0.0
    %7062 = vmatpush2.msra.mxu0 0.0
    %7063 = vmatprep.subr.mxu0 0.0
    %7064 = vmatpush2.msra.mxu0 0.0
    %7065 = vmatprep.subr.mxu0 0.0
    %7066 = vmatpush2.msra.mxu0 0.0
    %7067 = vmatprep.subr.mxu0 0.0
    %7068 = vmatpush2.msra.mxu0 0.0
    %7069 = vmatprep.subr.mxu0 0.0
    %7070 = vmatpush2.msra.mxu0 0.0
    %7071 = vmatprep.subr.mxu0 0.0
    %7072 = vmatpush2.msra.mxu0 0.0
    %7073 = vmatprep.subr.mxu0 0.0
    %7074 = vmatpush2.msra.mxu0 0.0
    %7075 = vmatprep.mubr.f32.mxu0 0.0
    %7076 = vmatmul.mubr.f32.gmra.mxu0 %v7009
    %v7077 = vpop.f32.mrf.mxu0
    %v7078 = vadd.f32 0.0, %v7077
    %v7079 = vpop.f32.mrf.mxu0
    %7080 = vdwg.mxu0
    %vm7081 = vcmp.gt.f32.partialorder %v7078, 0.0
    %v7082 = vmul.f32 %v7078, 1.442695
    %v7083 = vpow.pop %v7082
    %v7084 = vsub.f32 %v7083, 1.0
    %v7085 = vsel %vm7081, %v7078, %v7084
    %v7086 = vsel %vm258, %v7085, %v6402
    %v7088 = vsel %vm1335, %v7086, 0
    %7090 = vmatprep.subr.mxu0 0.0
    %7091 = vmatpush1.msra.mxu0 0.0
    %7092 = vmatprep.subr.mxu0 0.0
    %7093 = vmatpush1.msra.mxu0 0.0
    %7094 = vmatprep.subr.mxu0 0.0
    %7095 = vmatpush1.msra.mxu0 0.0
    %7096 = vmatprep.subr.mxu0 0.0
    %7097 = vmatpush1.msra.mxu0 0.0
    %7098 = vmatprep.subr.mxu0 0.0
    %7099 = vmatpush1.msra.mxu0 0.0
    %7100 = vmatprep.subr.mxu0 0.0
    %7101 = vmatpush1.msra.mxu0 0.0
    %7102 = vmatprep.subr.mxu0 0.0
    %7103 = vmatpush1.msra.mxu0 0.0
    %7104 = vmatprep.subr.mxu0 0.0
    %7105 = vmatpush1.msra.mxu0 0.0
    %7106 = vmatprep.subr.mxu0 0.0
    %7107 = vmatpush1.msra.mxu0 %v90
    %7108 = vmatprep.subr.mxu0 0.0
    %7109 = vmatpush1.msra.mxu0 %v89
    %7110 = vmatprep.subr.mxu0 0.0
    %7111 = vmatpush1.msra.mxu0 %v88
    %7112 = vmatprep.subr.mxu0 0.0
    %7113 = vmatpush1.msra.mxu0 %v87
    %7114 = vmatprep.subr.mxu0 0.0
    %7115 = vmatpush1.msra.mxu0 %v86
    %7116 = vmatprep.subr.mxu0 0.0
    %7117 = vmatpush1.msra.mxu0 %v85
    %7118 = vmatprep.subr.mxu0 0.0
    %7119 = vmatpush1.msra.mxu0 %v84
    %7120 = vmatprep.subr.mxu0 0.0
    %7121 = vmatpush1.msra.mxu0 %v83
    %7122 = vmatprep.subr.mxu0 0.0
    %7123 = vmatpush2.msra.mxu0 0.0
    %7124 = vmatprep.subr.mxu0 0.0
    %7125 = vmatpush2.msra.mxu0 0.0
    %7126 = vmatprep.subr.mxu0 0.0
    %7127 = vmatpush2.msra.mxu0 0.0
    %7128 = vmatprep.subr.mxu0 0.0
    %7129 = vmatpush2.msra.mxu0 0.0
    %7130 = vmatprep.subr.mxu0 0.0
    %7131 = vmatpush2.msra.mxu0 0.0
    %7132 = vmatprep.subr.mxu0 0.0
    %7133 = vmatpush2.msra.mxu0 0.0
    %7134 = vmatprep.subr.mxu0 0.0
    %7135 = vmatpush2.msra.mxu0 0.0
    %7136 = vmatprep.subr.mxu0 0.0
    %7137 = vmatpush2.msra.mxu0 0.0
    %7138 = vmatprep.subr.mxu0 0.0
    %7139 = vmatpush2.msra.mxu0 0.0
    %7140 = vmatprep.subr.mxu0 0.0
    %7141 = vmatpush2.msra.mxu0 0.0
    %7142 = vmatprep.subr.mxu0 0.0
    %7143 = vmatpush2.msra.mxu0 0.0
    %7144 = vmatprep.subr.mxu0 0.0
    %7145 = vmatpush2.msra.mxu0 0.0
    %7146 = vmatprep.subr.mxu0 0.0
    %7147 = vmatpush2.msra.mxu0 0.0
    %7148 = vmatprep.subr.mxu0 0.0
    %7149 = vmatpush2.msra.mxu0 0.0
    %7150 = vmatprep.subr.mxu0 0.0
    %7151 = vmatpush2.msra.mxu0 0.0
    %7152 = vmatprep.subr.mxu0 0.0
    %7153 = vmatpush2.msra.mxu0 0.0
    %7154 = vmatprep.mubr.f32.mxu0 0.0
    %7155 = vmatmul.mubr.f32.gmra.mxu0 %v7088
    %v7156 = vpop.f32.mrf.mxu0
    %v7157 = vadd.f32 %v1333, %v7156
    %v7158 = vpop.f32.mrf.mxu0
    %7159 = vdwg.mxu0
    %v7161 = vsel %vm258, %v7157, 0
    %7163 = vmatprep.subr.mxu0 0.0
    %7164 = vmatpush1.msra.mxu0 0.0
    %7165 = vmatprep.subr.mxu0 0.0
    %7166 = vmatpush1.msra.mxu0 0.0
    %7167 = vmatprep.subr.mxu0 0.0
    %7168 = vmatpush1.msra.mxu0 0.0
    %7169 = vmatprep.subr.mxu0 0.0
    %7170 = vmatpush1.msra.mxu0 0.0
    %7171 = vmatprep.subr.mxu0 0.0
    %7172 = vmatpush1.msra.mxu0 0.0
    %7173 = vmatprep.subr.mxu0 0.0
    %7174 = vmatpush1.msra.mxu0 0.0
    %7175 = vmatprep.subr.mxu0 0.0
    %7176 = vmatpush1.msra.mxu0 0.0
    %7177 = vmatprep.subr.mxu0 0.0
    %7178 = vmatpush1.msra.mxu0 0.0
    %7179 = vmatprep.subr.mxu0 0.0
    %7180 = vmatpush1.msra.mxu0 0.0
    %7181 = vmatprep.subr.mxu0 0.0
    %7182 = vmatpush1.msra.mxu0 0.0
    %7183 = vmatprep.subr.mxu0 0.0
    %7184 = vmatpush1.msra.mxu0 0.0
    %7185 = vmatprep.subr.mxu0 0.0
    %7186 = vmatpush1.msra.mxu0 0.0
    %7187 = vmatprep.subr.mxu0 0.0
    %7188 = vmatpush1.msra.mxu0 %v94
    %7189 = vmatprep.subr.mxu0 0.0
    %7190 = vmatpush1.msra.mxu0 %v93
    %7191 = vmatprep.subr.mxu0 0.0
    %7192 = vmatpush1.msra.mxu0 %v92
    %7193 = vmatprep.subr.mxu0 0.0
    %7194 = vmatpush1.msra.mxu0 %v91
    %7195 = vmatprep.subr.mxu0 0.0
    %7196 = vmatpush2.msra.mxu0 0.0
    %7197 = vmatprep.subr.mxu0 0.0
    %7198 = vmatpush2.msra.mxu0 0.0
    %7199 = vmatprep.subr.mxu0 0.0
    %7200 = vmatpush2.msra.mxu0 0.0
    %7201 = vmatprep.subr.mxu0 0.0
    %7202 = vmatpush2.msra.mxu0 0.0
    %7203 = vmatprep.subr.mxu0 0.0
    %7204 = vmatpush2.msra.mxu0 0.0
    %7205 = vmatprep.subr.mxu0 0.0
    %7206 = vmatpush2.msra.mxu0 0.0
    %7207 = vmatprep.subr.mxu0 0.0
    %7208 = vmatpush2.msra.mxu0 0.0
    %7209 = vmatprep.subr.mxu0 0.0
    %7210 = vmatpush2.msra.mxu0 0.0
    %7211 = vmatprep.subr.mxu0 0.0
    %7212 = vmatpush2.msra.mxu0 0.0
    %7213 = vmatprep.subr.mxu0 0.0
    %7214 = vmatpush2.msra.mxu0 0.0
    %7215 = vmatprep.subr.mxu0 0.0
    %7216 = vmatpush2.msra.mxu0 0.0
    %7217 = vmatprep.subr.mxu0 0.0
    %7218 = vmatpush2.msra.mxu0 0.0
    %7219 = vmatprep.subr.mxu0 0.0
    %7220 = vmatpush2.msra.mxu0 0.0
    %7221 = vmatprep.subr.mxu0 0.0
    %7222 = vmatpush2.msra.mxu0 0.0
    %7223 = vmatprep.subr.mxu0 0.0
    %7224 = vmatpush2.msra.mxu0 0.0
    %7225 = vmatprep.subr.mxu0 0.0
    %7226 = vmatpush2.msra.mxu0 0.0
    %7227 = vmatprep.mubr.f32.mxu0 0.0
    %7228 = vmatmul.mubr.f32.gmra.mxu0 %v7161
    %v7229 = vpop.f32.mrf.mxu0
    %v7230 = vadd.f32 %v1410, %v7229
    %v7231 = vpop.f32.mrf.mxu0
    %7232 = vdwg.mxu0
    %v7233 = vsel %vm104, %v7230, -inf
    %7234 = vmax.xlane.f32.xlu0 %v7233
    %v7235 = vpop.xlane.xlu0 %7234
    %v7236 = vsub.f32 %v7230, %v7235
    %v7237 = vmul.f32 %v7236, 1.442695
    %v7238 = vpow.pop %v7237
    %v7239 = vsel %vm104, %v7238, 0.0
    %7240 = vadd.xlane.f32.xlu0 %v7239
    %v7241 = vpop.xlane.xlu0 %7240
    %v7242 = vlog2.pop %v7241
    %v7243 = vmul.f32 %v7242, 0.6931472
    %v7244 = vsub.f32 %v7236, %v7243
    %v7245 = vmul.f32 %v6300, %v7244
    %v7246 = vsel %vm104, %v7245, 0.0
    %7247 = vadd.xlane.f32.xlu0 %v7246
    %v7248 = vpop.xlane.xlu0 %7247
    %v7249 = vrot.slane %v7248, 4
    %v7250 = vadd.f32 %v7248, %v7249
    %v7251 = vrot.slane %v7250, 2
    %v7252 = vadd.f32 %v7250, %v7251
    %v7253 = vrot.slane %v7252, 1
    %v7254 = vadd.f32 %v7252, %v7253
    %v7255 = vmul.f32 %v7254, 0.5
    %v7256 = vsub.f32 %v6298, %v7255
    %vm7257 = vcmask 0
    %7258 = vst.msk [vmem:[#allocation2] sm:$0x1] %vm7257, %v7256
    %7259 = vst.msk [vmem:[#allocation4] sm:$0xff] %vm258, %v7157
    // Predicated region
    $region58: #{detnet_forward.1} parent=1 // pred_check
      _
    $region59: #{detnet_forward.1} parent=1 // pred_check_branch
      %7261 = sbr.rel (0) target = $region61
    $region60: #{detnet_forward.1} parent=1 // pred_region
      %s7263 = ssub.s32 16, 16
      %7264 = vsyncadd [#allocation3], %s7263
      %s7266 = sshll.u32 [#allocation2], 4
      %s7267 = int_to_ptr.vmem [resolvable:$true] %s7266
      %7269 = dma.vmem_to_hbm [thread:$0]  %s7267, 16, %s14, [#allocation3]
    $region61: #{detnet_forward.1} parent=1 // pred_fallthru
      _
    // Predicated region
    $region62: #{detnet_forward.1} parent=1 // pred_check
      _
    $region63: #{detnet_forward.1} parent=1 // pred_check_branch
      %7271 = sbr.rel (0) target = $region65
    $region64: #{detnet_forward.1} parent=1 // pred_region
      %s7273 = ssub.s32 128, 128
      %7274 = vsyncadd [#allocation5], %s7273
      %s7276 = sshll.u32 [#allocation4], 4
      %s7277 = int_to_ptr.vmem [resolvable:$true] %s7276
      %7279 = dma.vmem_to_hbm [thread:$0]  %s7277, 128, %s15, [#allocation5]
    $region65: #{detnet_forward.1} parent=1 // pred_fallthru
      _
    // Predicated region
    $region66: #{detnet_forward.1} parent=1 // pred_check
      _
    $region67: #{detnet_forward.1} parent=1 // pred_check_branch
      %7281 = sbr.rel (0) target = $region69
    $region68: #{detnet_forward.1} parent=1 // pred_region
      %7282 = dma.done [#allocation3], 16
    $region69: #{detnet_forward.1} parent=1 // pred_fallthru
      _
    // Predicated region
    $region70: #{detnet_forward.1} parent=1 // pred_check
      _
    $region71: #{detnet_forward.1} parent=1 // pred_check_branch
      %7284 = sbr.rel (0) target = $region73
    $region72: #{detnet_forward.1} parent=1 // pred_region
      %7285 = dma.done [#allocation5], 128
    $region73: #{detnet_forward.1} parent=1 // pred_fallthru
      _
    %7286 = vsyncpa [#allocation3], 1
    %7287 = vsyncpa [#allocation5], 1

</llo_original>
